<compile_context>
chip_gen: v5e
topology: v5e:2x2
jax: 0.10.0
libtpu: 0.0.40
codegen_flags: <defaults>
</compile_context>

<pallas_src>
import math

import jax
import jax.numpy as jnp
from jax import lax
from jax.experimental import pallas as pl
from jax.experimental.pallas import tpu as pltpu


# ----------------------------------------------------------------------------
# small helpers
# ----------------------------------------------------------------------------
def _round_up(x, m):
    return ((x + m - 1) // m) * m


# conservative per-grid-step VMEM budget (fits the v5e 16 MiB scoped default)
_VMEM_BUDGET = 12 << 20


def _batch_tile(Bp, row_bytes):
    """Pick the per-grid-step batch tile (multiple of 8).

    row_bytes = approx VMEM bytes needed per batch row (pipelined blocks incl.
    double buffering + scratch).  Returns (bt, Bp_padded) with bt | Bp_padded.
    Prefers >= 2 grid steps when possible so the batch axis can be split
    across the two TensorCores on v7x ("parallel" dimension semantics)."""
    cap = max(8, (_VMEM_BUDGET // max(row_bytes, 1)) // 8 * 8)
    bt = min(Bp, cap)
    if bt == Bp and Bp >= 16 and (Bp // 2) % 8 == 0:
        bt = Bp // 2
    return bt, _round_up(Bp, bt)


def _enc_row_bytes(T, I, H):
    # x block (x2 double buffer) + 3 gate scratches + h0/hn blocks
    return 4 * (2 * T * I + 3 * T * H + 8 * H)


def _dec_row_bytes(T, H, O):
    # out block (x2 double buffer) + yf/yb scratches + h0 block
    return 4 * (2 * T * O + 2 * T * H + 4 * H)


def _ds(t_eff, bt):
    off = t_eff * bt
    if not isinstance(t_eff, int):
        off = pl.multiple_of(off, bt)
    return pl.ds(off, bt)


def _loop(T, body, init):
    """Fully unroll short fixed-trip recurrences (trace-time python loop) so
    the scheduler can overlap the h @ W_hh matmul of step t+1 with the gate
    sigmoid/tanh of step t; fall back to fori_loop for long sequences."""
    if T <= 16:
        carry = init
        for t in range(T):
            carry = body(t, carry)
        return carry
    return lax.fori_loop(0, T, body, init)


# ----------------------------------------------------------------------------
# Pallas kernel: bidirectional GRU *encoder* (returns only h_n)
# ----------------------------------------------------------------------------
def _gru_encoder_kernel(x_ref, h0_ref, wih_ref, whh_ref, bih_ref, bhh_ref,
                        hn_ref, gr_ref, gz_ref, gn_ref):
    """
    x_ref:   (T, bt, I)   time-major inputs (batch tile)
    h0_ref:  (2, bt, H)
    wih_ref: (2, 3, I, H) per-direction, per-gate (r,z,n), pre-transposed
    whh_ref: (2, 3, H, H)
    bih_ref: (2, 3, 1, H)
    bhh_ref: (2, 3, 1, H)
    hn_ref:  (2, bt, H)   final hidden per direction
    gr/gz/gn_ref: (T*bt, H) VMEM scratch holding the hoisted input projection
    """
    T, bt, I = x_ref.shape

    # (T, bt, I) -> (T*bt, I); bt is a multiple of 8 so the collapse is
    # sublane-tile aligned (layout preserving).
    x2d = x_ref[...].reshape(T * bt, I)

    for d in range(2):  # two directions, traced sequentially
        # hoisted input projection: one MXU matmul per gate for the whole
        # sequence instead of T tiny matmuls inside the recurrence
        gr_ref[...] = jnp.dot(x2d, wih_ref[d, 0],
                              preferred_element_type=jnp.float32) + bih_ref[d, 0]
        gz_ref[...] = jnp.dot(x2d, wih_ref[d, 1],
                              preferred_element_type=jnp.float32) + bih_ref[d, 1]
        gn_ref[...] = jnp.dot(x2d, wih_ref[d, 2],
                              preferred_element_type=jnp.float32) + bih_ref[d, 2]

        w_r = whh_ref[d, 0]
        w_z = whh_ref[d, 1]
        w_n = whh_ref[d, 2]
        b_r = bhh_ref[d, 0]
        b_z = bhh_ref[d, 1]
        b_n = bhh_ref[d, 2]

        def step(t, h):
            t_eff = t if d == 0 else (T - 1) - t
            sl = _ds(t_eff, bt)
            r = jax.nn.sigmoid(
                gr_ref[sl, :]
                + jnp.dot(h, w_r, preferred_element_type=jnp.float32) + b_r)
            z = jax.nn.sigmoid(
                gz_ref[sl, :]
                + jnp.dot(h, w_z, preferred_element_type=jnp.float32) + b_z)
            n = jnp.tanh(
                gn_ref[sl, :]
                + r * (jnp.dot(h, w_n, preferred_element_type=jnp.float32) + b_n))
            return (1.0 - z) * n + z * h

        hn_ref[d] = _loop(T, step, h0_ref[d])


# ----------------------------------------------------------------------------
# Pallas kernel: bidirectional GRU *decoder* (zero inputs) + fused FC epilogue
# ----------------------------------------------------------------------------
def _make_gru_decoder_kernel(apply_tanh):
    def kernel(h0_ref, whh_ref, bih_ref, bhh_ref, fwf_ref, fwb_ref, fb_ref,
               out_ref, yf_ref, yb_ref):
        """
        h0_ref:  (2, bt, H)
        whh_ref: (2, 3, H, H); bih/bhh: (2, 3, 1, H)
        fwf_ref: (H, O)  FC weight for the forward half of concat(yf, yb)
        fwb_ref: (H, O)  FC weight for the backward half
        fb_ref:  (1, O)
        out_ref: (T, bt, O)
        yf/yb_ref: (T*bt, H) VMEM scratch holding per-timestep hidden states
        """
        T, bt, O = out_ref.shape

        for d in range(2):
            y_ref = yf_ref if d == 0 else yb_ref
            w_r = whh_ref[d, 0]
            w_z = whh_ref[d, 1]
            w_n = whh_ref[d, 2]
            # zero input => gi_g == b_ih_g (constant); fold into the hidden bias
            c_r = bih_ref[d, 0] + bhh_ref[d, 0]
            c_z = bih_ref[d, 1] + bhh_ref[d, 1]
            b_in = bih_ref[d, 2]
            b_hn = bhh_ref[d, 2]

            def step(t, h):
                t_eff = t if d == 0 else (T - 1) - t
                r = jax.nn.sigmoid(
                    jnp.dot(h, w_r, preferred_element_type=jnp.float32) + c_r)
                z = jax.nn.sigmoid(
                    jnp.dot(h, w_z, preferred_element_type=jnp.float32) + c_z)
                n = jnp.tanh(
                    b_in + r * (jnp.dot(h, w_n,
                                        preferred_element_type=jnp.float32) + b_hn))
                h_new = (1.0 - z) * n + z * h
                y_ref[_ds(t_eff, bt), :] = h_new
                return h_new

            _loop(T, step, h0_ref[d])

        # fused FC epilogue on the whole sequence:
        #   out[t] = concat(yf[t], yb[t]) @ W^T + b   (+ optional tanh)
        o = (jnp.dot(yf_ref[...], fwf_ref[...], preferred_element_type=jnp.float32)
             + jnp.dot(yb_ref[...], fwb_ref[...], preferred_element_type=jnp.float32)
             + fb_ref[...])
        if apply_tanh:
            o = jnp.tanh(o)
        out_ref[...] = o.reshape(T, bt, O)

    return kernel


# ----------------------------------------------------------------------------
# wrappers
# ----------------------------------------------------------------------------
def bigru_encode(x, gru_params):
    """x: (B, T, I) batch-first. Returns concat(h_n[0], h_n[1]) -> (B, 2H)."""
    wih_g, whh_g, bih_g, bhh_g = gru_params
    B, T, I = x.shape
    H = whh_g.shape[-1]
    bt, Bp = _batch_tile(_round_up(B, 8), _enc_row_bytes(T, I, H))

    x_tm = jnp.transpose(x.astype(jnp.float32), (1, 0, 2))        # (T, B, I)
    if Bp != B:
        x_tm = jnp.pad(x_tm, ((0, 0), (0, Bp - B), (0, 0)))
    h0 = jnp.zeros((2, Bp, H), jnp.float32)

    hn = pl.pallas_call(
        _gru_encoder_kernel,
        out_shape=jax.ShapeDtypeStruct((2, Bp, H), jnp.float32),
        grid_spec=pltpu.PrefetchScalarGridSpec(
            num_scalar_prefetch=0,
            grid=(Bp // bt,),
            in_specs=[
                pl.BlockSpec((T, bt, I), lambda b: (0, b, 0)),
                pl.BlockSpec((2, bt, H), lambda b: (0, b, 0)),
                pl.BlockSpec(wih_g.shape, lambda b: (0, 0, 0, 0)),
                pl.BlockSpec(whh_g.shape, lambda b: (0, 0, 0, 0)),
                pl.BlockSpec(bih_g.shape, lambda b: (0, 0, 0, 0)),
                pl.BlockSpec(bhh_g.shape, lambda b: (0, 0, 0, 0)),
            ],
            out_specs=pl.BlockSpec((2, bt, H), lambda b: (0, b, 0)),
            scratch_shapes=[pltpu.VMEM((T * bt, H), jnp.float32)] * 3,
        ),
        compiler_params=pltpu.CompilerParams(
            dimension_semantics=("parallel",)),
    )(x_tm, h0, wih_g, whh_g, bih_g, bhh_g)

    return jnp.concatenate([hn[0, :B], hn[1, :B]], axis=1)


def bigru_decode(latent, T, gru_params, fc_params, apply_tanh):
    """latent: (B, 2H) bidirectional initial hidden state; GRU input is all
    zeros (as in the PyTorch decoders).  Returns fused GRU+FC out (B, T, O)."""
    _, whh_g, bih_g, bhh_g = gru_params
    fwf, fwb, fb = fc_params
    B = latent.shape[0]
    H = whh_g.shape[-1]
    O = fwf.shape[-1]
    bt, Bp = _batch_tile(_round_up(B, 8), _dec_row_bytes(T, H, O))

    h0 = jnp.stack([latent[:, :H], latent[:, H:]], axis=0).astype(jnp.float32)
    if Bp != B:
        h0 = jnp.pad(h0, ((0, 0), (0, Bp - B), (0, 0)))

    out = pl.pallas_call(
        _make_gru_decoder_kernel(apply_tanh),
        out_shape=jax.ShapeDtypeStruct((T, Bp, O), jnp.float32),
        grid_spec=pltpu.PrefetchScalarGridSpec(
            num_scalar_prefetch=0,
            grid=(Bp // bt,),
            in_specs=[
                pl.BlockSpec((2, bt, H), lambda b: (0, b, 0)),
                pl.BlockSpec(whh_g.shape, lambda b: (0, 0, 0, 0)),
                pl.BlockSpec(bih_g.shape, lambda b: (0, 0, 0, 0)),
                pl.BlockSpec(bhh_g.shape, lambda b: (0, 0, 0, 0)),
                pl.BlockSpec(fwf.shape, lambda b: (0, 0)),
                pl.BlockSpec(fwb.shape, lambda b: (0, 0)),
                pl.BlockSpec(fb.shape, lambda b: (0, 0)),
            ],
            out_specs=pl.BlockSpec((T, bt, O), lambda b: (0, b, 0)),
            scratch_shapes=[pltpu.VMEM((T * bt, H), jnp.float32)] * 2,
        ),
        compiler_params=pltpu.CompilerParams(
            dimension_semantics=("parallel",)),
    )(h0, whh_g, bih_g, bhh_g, fwf, fwb, fb)

    return jnp.transpose(out, (1, 0, 2))[:B]                      # (B, T, O)


# ----------------------------------------------------------------------------
# full AuTiSM forward (Pallas path)
# ----------------------------------------------------------------------------
def autism_forward(x, params, latent_dim_A, latent_dim_B):
    B, M, N, _ = x.shape

    # frame encoder (BondVectorEncoder): (B*M, N, 3) -> (B*M, A)
    latent_A = bigru_encode(x.reshape(B * M, N, 3), params['fe'])

    # sequence encoder (TemporalEncoder): (B, M, A) -> (B, Bdim)
    latent_B = bigru_encode(latent_A.reshape(B, M, latent_dim_A), params['se'])

    # sequence decoder (TemporalDecoder): zero-input GRU + fused FC
    rec_latent_A_seq = bigru_decode(latent_B, M, params['sd_gru'],
                                    params['sd_fc'], apply_tanh=False)
    rec_latent_A = rec_latent_A_seq.reshape(B * M, latent_dim_A)

    # frame decoder (BondVectorDecoder): zero-input GRU + fused FC + tanh
    rec = bigru_decode(rec_latent_A, N, params['fd_gru'],
                       params['fd_fc'], apply_tanh=True)           # (B*M, N, 3)

    return rec.reshape(B, M, N, 3), latent_B


# ----------------------------------------------------------------------------
# parameter init (PyTorch layout) + one-time kernel-layout prep
# ----------------------------------------------------------------------------
def init_gru(key, input_size, hidden_size):
    k = 1.0 / math.sqrt(hidden_size)
    ks = jax.random.split(key, 4)
    wih = jax.random.uniform(ks[0], (2, 3 * hidden_size, input_size),
                             jnp.float32, -k, k)
    whh = jax.random.uniform(ks[1], (2, 3 * hidden_size, hidden_size),
                             jnp.float32, -k, k)
    bih = jax.random.uniform(ks[2], (2, 3 * hidden_size), jnp.float32, -k, k)
    bhh = jax.random.uniform(ks[3], (2, 3 * hidden_size), jnp.float32, -k, k)
    return (wih, whh, bih, bhh)


def init_linear(key, in_f, out_f):
    k = 1.0 / math.sqrt(in_f)
    k1, k2 = jax.random.split(key)
    w = jax.random.uniform(k1, (out_f, in_f), jnp.float32, -k, k)
    b = jax.random.uniform(k2, (out_f,), jnp.float32, -k, k)
    return (w, b)


def prep_gru(pt):
    """PyTorch layout -> per-direction, per-gate (r,z,n), pre-transposed."""
    wih, whh, bih, bhh = pt
    H = whh.shape[-1]
    I = wih.shape[-1]
    wih_g = jnp.transpose(wih.reshape(2, 3, H, I), (0, 1, 3, 2)).astype(jnp.float32)
    whh_g = jnp.transpose(whh.reshape(2, 3, H, H), (0, 1, 3, 2)).astype(jnp.float32)
    bih_g = bih.reshape(2, 3, 1, H).astype(jnp.float32)
    bhh_g = bhh.reshape(2, 3, 1, H).astype(jnp.float32)
    return (wih_g, whh_g, bih_g, bhh_g)


def prep_linear(pt, H):
    """Split FC weight into forward/backward halves of the concat input."""
    w, b = pt
    O = w.shape[0]
    wt = jnp.transpose(w).astype(jnp.float32)        # (2H, O)
    return (wt[:H], wt[H:], b.reshape(1, O).astype(jnp.float32))


# ----------------------------------------------------------------------------
# pure-JAX reference (exact PyTorch semantics, for correctness check only)
# ----------------------------------------------------------------------------
def _ref_bigru(x, h0, wih, whh, bih, bhh):
    B, T, I = x.shape
    H = h0.shape[2]
    outs, hns = [], []
    for d in range(2):
        h = h0[d]
        ys = [None] * T
        order = range(T) if d == 0 else range(T - 1, -1, -1)
        for t in order:
            gi = x[:, t, :] @ wih[d].T + bih[d]
            gh = h @ whh[d].T + bhh[d]
            r = jax.nn.sigmoid(gi[:, :H] + gh[:, :H])
            z = jax.nn.sigmoid(gi[:, H:2 * H] + gh[:, H:2 * H])
            n = jnp.tanh(gi[:, 2 * H:] + r * gh[:, 2 * H:])
            h = (1.0 - z) * n + z * h
            ys[t] = h
        outs.append(jnp.stack(ys, axis=1))
        hns.append(h)
    return jnp.concatenate(outs, axis=-1), jnp.stack(hns, axis=0)


def _ref_linear(x2d, w, b, apply_tanh):
    y = x2d @ w.T + b
    return jnp.tanh(y) if apply_tanh else y


def reference_forward(x, pt, latent_dim_A, latent_dim_B):
    B, M, N, _ = x.shape
    H_A, H_B = latent_dim_A // 2, latent_dim_B // 2
    _, hn = _ref_bigru(x.reshape(B * M, N, 3),
                       jnp.zeros((2, B * M, H_A), jnp.float32), *pt['fe'])
    latent_A = jnp.concatenate([hn[0], hn[1]], axis=1)
    _, hnb = _ref_bigru(latent_A.reshape(B, M, latent_dim_A),
                        jnp.zeros((2, B, H_B), jnp.float32), *pt['se'])
    latent_B = jnp.concatenate([hnb[0], hnb[1]], axis=1)
    h0_sd = jnp.stack([latent_B[:, :H_B], latent_B[:, H_B:]], axis=0)
    y_sd, _ = _ref_bigru(jnp.zeros((B, M, latent_dim_A), jnp.float32),
                         h0_sd, *pt['sd_gru'])
    rec_lA = _ref_linear(y_sd.reshape(B * M, latent_dim_B), *pt['sd_fc'], False)
    h0_fd = jnp.stack([rec_lA[:, :H_A], rec_lA[:, H_A:]], axis=0)
    y_fd, _ = _ref_bigru(jnp.zeros((B * M, N, 3), jnp.float32),
                         h0_fd, *pt['fd_gru'])
    rec = _ref_linear(y_fd.reshape(B * M * N, latent_dim_A), *pt['fd_fc'], True)
    return rec.reshape(B, M, N, 3), latent_B


# ----------------------------------------------------------------------------
if __name__ == "__main__":
    B, M, N = 2, 4, 8
    latent_dim_A, latent_dim_B = 32, 8

    key = jax.random.PRNGKey(0)
    k_x, k_fe, k_fd, k_fdf, k_se, k_sd, k_sdf = jax.random.split(key, 7)
    x = jax.random.uniform(k_x, (B, M, N, 3), jnp.float32, -1.0, 1.0)

    pt_params = {
        'fe': init_gru(k_fe, 3, latent_dim_A // 2),
        'fd_gru': init_gru(k_fd, 3, latent_dim_A // 2),
        'fd_fc': init_linear(k_fdf, latent_dim_A, 3),
        'se': init_gru(k_se, latent_dim_A, latent_dim_B // 2),
        'sd_gru': init_gru(k_sd, latent_dim_A, latent_dim_B // 2),
        'sd_fc': init_linear(k_sdf, latent_dim_B, latent_dim_A),
    }
    # one-time layout prep (outside the hot path)
    params = {
        'fe': prep_gru(pt_params['fe']),
        'se': prep_gru(pt_params['se']),
        'sd_gru': prep_gru(pt_params['sd_gru']),
        'sd_fc': prep_linear(pt_params['sd_fc'], latent_dim_B // 2),
        'fd_gru': prep_gru(pt_params['fd_gru']),
        'fd_fc': prep_linear(pt_params['fd_fc'], latent_dim_A // 2),
    }

    fwd = jax.jit(lambda xx, pp: autism_forward(xx, pp, latent_dim_A, latent_dim_B))
    rec_x, latent_B = fwd(x, params)
    rec_x = jax.block_until_ready(rec_x)
    latent_B = jax.block_until_ready(latent_B)

    ref_rec, ref_lat = reference_forward(x, pt_params, latent_dim_A, latent_dim_B)

    assert rec_x.shape == (B, M, N, 3)
    assert latent_B.shape == (B, latent_dim_B)
    assert jnp.allclose(rec_x, ref_rec, atol=1e-4, rtol=1e-4)
    assert jnp.allclose(latent_B, ref_lat, atol=1e-4, rtol=1e-4)

    print("KERNEL_OK")
</pallas_src>

<mosaic_0001>
module attributes {stable_mosaic.version = 11 : i64} {
  func.func @_gru_encoder_kernel(%arg0: i32, %arg1: memref<8x8x3xf32, #tpu.memory_space<vmem>>, %arg2: memref<2x8x16xf32, #tpu.memory_space<vmem>>, %arg3: memref<2x3x3x16xf32, #tpu.memory_space<vmem>>, %arg4: memref<2x3x16x16xf32, #tpu.memory_space<vmem>>, %arg5: memref<2x3x1x16xf32, #tpu.memory_space<vmem>>, %arg6: memref<2x3x1x16xf32, #tpu.memory_space<vmem>>, %arg7: memref<2x8x16xf32, #tpu.memory_space<vmem>>, %arg8: memref<64x16xf32, #tpu.memory_space<vmem>>, %arg9: memref<64x16xf32, #tpu.memory_space<vmem>>, %arg10: memref<64x16xf32, #tpu.memory_space<vmem>>) attributes {dimension_semantics = [#tpu.dimension_semantics<parallel>], iteration_bounds = array<i64: 1>, scalar_prefetch = 0 : i64, scratch_operands = 3 : i64, tpu.core_type = #tpu.core_type<tc>, window_params = [{transform_indices = @transform_0, window_bounds = array<i64: 8, 8, 3>}, {transform_indices = @transform_1, window_bounds = array<i64: 2, 8, 16>}, {pipeline_mode = #tpu.pipeline_mode<synchronous>, transform_indices = @transform_2, window_bounds = array<i64: 2, 3, 3, 16>}, {pipeline_mode = #tpu.pipeline_mode<synchronous>, transform_indices = @transform_3, window_bounds = array<i64: 2, 3, 16, 16>}, {pipeline_mode = #tpu.pipeline_mode<synchronous>, transform_indices = @transform_4, window_bounds = array<i64: 2, 3, 1, 16>}, {pipeline_mode = #tpu.pipeline_mode<synchronous>, transform_indices = @transform_5, window_bounds = array<i64: 2, 3, 1, 16>}, {transform_indices = @transform_6, window_bounds = array<i64: 2, 8, 16>}]} {
    %c0 = arith.constant 0 : index
    %c0_0 = arith.constant 0 : index
    %c0_1 = arith.constant 0 : index
    %0 = vector.load %arg1[%c0, %c0_0, %c0_1] : memref<8x8x3xf32, #tpu.memory_space<vmem>>, vector<8x8x3xf32>
    %1 = vector.shape_cast %0 : vector<8x8x3xf32> to vector<64x3xf32>
    %c0_2 = arith.constant 0 : index
    %c0_3 = arith.constant 0 : index
    %c0_4 = arith.constant 0 : index
    %c0_5 = arith.constant 0 : index
    %2 = vector.load %arg3[%c0_2, %c0_3, %c0_4, %c0_5] : memref<2x3x3x16xf32, #tpu.memory_space<vmem>>, vector<1x1x3x16xf32>
    %3 = vector.shape_cast %2 : vector<1x1x3x16xf32> to vector<3x16xf32>
    %cst = arith.constant dense<0.000000e+00> : vector<64x16xf32>
    %4 = tpu.matmul %1, %3, %cst {dimension_numbers = #tpu.dot_dimension_numbers<[1], [0], [0], [1], [0, 0, 1, 1], [], []>} : vector<64x3xf32>, vector<3x16xf32>, vector<64x16xf32> -> vector<64x16xf32>
    %c0_6 = arith.constant 0 : index
    %c0_7 = arith.constant 0 : index
    %c0_8 = arith.constant 0 : index
    %c0_9 = arith.constant 0 : index
    %5 = vector.load %arg5[%c0_6, %c0_7, %c0_8, %c0_9] : memref<2x3x1x16xf32, #tpu.memory_space<vmem>>, vector<1x1x1x16xf32>
    %6 = vector.shape_cast %5 : vector<1x1x1x16xf32> to vector<1x16xf32>
    %7 = vector.broadcast %6 : vector<1x16xf32> to vector<64x16xf32>
    %8 = arith.addf %4, %7 : vector<64x16xf32>
    %c0_10 = arith.constant 0 : index
    %c0_11 = arith.constant 0 : index
    %9 = vector.load %arg8[%c0_10, %c0_11] : memref<64x16xf32, #tpu.memory_space<vmem>>, vector<64x16xf32>
    tpu.vector_store %arg8[%c0_10, %c0_11], %8 {strides = array<i32>} : memref<64x16xf32, #tpu.memory_space<vmem>>, vector<64x16xf32>,
    %c0_12 = arith.constant 0 : index
    %c1 = arith.constant 1 : index
    %c0_13 = arith.constant 0 : index
    %c0_14 = arith.constant 0 : index
    %10 = vector.load %arg3[%c0_12, %c1, %c0_13, %c0_14] : memref<2x3x3x16xf32, #tpu.memory_space<vmem>>, vector<1x1x3x16xf32>
    %11 = vector.shape_cast %10 : vector<1x1x3x16xf32> to vector<3x16xf32>
    %cst_15 = arith.constant dense<0.000000e+00> : vector<64x16xf32>
    %12 = tpu.matmul %1, %11, %cst_15 {dimension_numbers = #tpu.dot_dimension_numbers<[1], [0], [0], [1], [0, 0, 1, 1], [], []>} : vector<64x3xf32>, vector<3x16xf32>, vector<64x16xf32> -> vector<64x16xf32>
    %c0_16 = arith.constant 0 : index
    %c1_17 = arith.constant 1 : index
    %c0_18 = arith.constant 0 : index
    %c0_19 = arith.constant 0 : index
    %13 = vector.load %arg5[%c0_16, %c1_17, %c0_18, %c0_19] : memref<2x3x1x16xf32, #tpu.memory_space<vmem>>, vector<1x1x1x16xf32>
    %14 = vector.shape_cast %13 : vector<1x1x1x16xf32> to vector<1x16xf32>
    %15 = vector.broadcast %14 : vector<1x16xf32> to vector<64x16xf32>
    %16 = arith.addf %12, %15 : vector<64x16xf32>
    %c0_20 = arith.constant 0 : index
    %c0_21 = arith.constant 0 : index
    %17 = vector.load %arg9[%c0_20, %c0_21] : memref<64x16xf32, #tpu.memory_space<vmem>>, vector<64x16xf32>
    tpu.vector_store %arg9[%c0_20, %c0_21], %16 {strides = array<i32>} : memref<64x16xf32, #tpu.memory_space<vmem>>, vector<64x16xf32>,
    %c0_22 = arith.constant 0 : index
    %c2 = arith.constant 2 : index
    %c0_23 = arith.constant 0 : index
    %c0_24 = arith.constant 0 : index
    %18 = vector.load %arg3[%c0_22, %c2, %c0_23, %c0_24] : memref<2x3x3x16xf32, #tpu.memory_space<vmem>>, vector<1x1x3x16xf32>
    %19 = vector.shape_cast %18 : vector<1x1x3x16xf32> to vector<3x16xf32>
    %cst_25 = arith.constant dense<0.000000e+00> : vector<64x16xf32>
    %20 = tpu.matmul %1, %19, %cst_25 {dimension_numbers = #tpu.dot_dimension_numbers<[1], [0], [0], [1], [0, 0, 1, 1], [], []>} : vector<64x3xf32>, vector<3x16xf32>, vector<64x16xf32> -> vector<64x16xf32>
    %c0_26 = arith.constant 0 : index
    %c2_27 = arith.constant 2 : index
    %c0_28 = arith.constant 0 : index
    %c0_29 = arith.constant 0 : index
    %21 = vector.load %arg5[%c0_26, %c2_27, %c0_28, %c0_29] : memref<2x3x1x16xf32, #tpu.memory_space<vmem>>, vector<1x1x1x16xf32>
    %22 = vector.shape_cast %21 : vector<1x1x1x16xf32> to vector<1x16xf32>
    %23 = vector.broadcast %22 : vector<1x16xf32> to vector<64x16xf32>
    %24 = arith.addf %20, %23 : vector<64x16xf32>
    %c0_30 = arith.constant 0 : index
    %c0_31 = arith.constant 0 : index
    %25 = vector.load %arg10[%c0_30, %c0_31] : memref<64x16xf32, #tpu.memory_space<vmem>>, vector<64x16xf32>
    tpu.vector_store %arg10[%c0_30, %c0_31], %24 {strides = array<i32>} : memref<64x16xf32, #tpu.memory_space<vmem>>, vector<64x16xf32>,
    %c0_32 = arith.constant 0 : index
    %c0_33 = arith.constant 0 : index
    %c0_34 = arith.constant 0 : index
    %c0_35 = arith.constant 0 : index
    %26 = vector.load %arg4[%c0_32, %c0_33, %c0_34, %c0_35] : memref<2x3x16x16xf32, #tpu.memory_space<vmem>>, vector<1x1x16x16xf32>
    %27 = vector.shape_cast %26 : vector<1x1x16x16xf32> to vector<16x16xf32>
    %c0_36 = arith.constant 0 : index
    %c1_37 = arith.constant 1 : index
    %c0_38 = arith.constant 0 : index
    %c0_39 = arith.constant 0 : index
    %28 = vector.load %arg4[%c0_36, %c1_37, %c0_38, %c0_39] : memref<2x3x16x16xf32, #tpu.memory_space<vmem>>, vector<1x1x16x16xf32>
    %29 = vector.shape_cast %28 : vector<1x1x16x16xf32> to vector<16x16xf32>
    %c0_40 = arith.constant 0 : index
    %c2_41 = arith.constant 2 : index
    %c0_42 = arith.constant 0 : index
    %c0_43 = arith.constant 0 : index
    %30 = vector.load %arg4[%c0_40, %c2_41, %c0_42, %c0_43] : memref<2x3x16x16xf32, #tpu.memory_space<vmem>>, vector<1x1x16x16xf32>
    %31 = vector.shape_cast %30 : vector<1x1x16x16xf32> to vector<16x16xf32>
    %c0_44 = arith.constant 0 : index
    %c0_45 = arith.constant 0 : index
    %c0_46 = arith.constant 0 : index
    %c0_47 = arith.constant 0 : index
    %32 = vector.load %arg6[%c0_44, %c0_45, %c0_46, %c0_47] : memref<2x3x1x16xf32, #tpu.memory_space<vmem>>, vector<1x1x1x16xf32>
    %33 = vector.shape_cast %32 : vector<1x1x1x16xf32> to vector<1x16xf32>
    %c0_48 = arith.constant 0 : index
    %c1_49 = arith.constant 1 : index
    %c0_50 = arith.constant 0 : index
    %c0_51 = arith.constant 0 : index
    %34 = vector.load %arg6[%c0_48, %c1_49, %c0_50, %c0_51] : memref<2x3x1x16xf32, #tpu.memory_space<vmem>>, vector<1x1x1x16xf32>
    %35 = vector.shape_cast %34 : vector<1x1x1x16xf32> to vector<1x16xf32>
    %c0_52 = arith.constant 0 : index
    %c2_53 = arith.constant 2 : index
    %c0_54 = arith.constant 0 : index
    %c0_55 = arith.constant 0 : index
    %36 = vector.load %arg6[%c0_52, %c2_53, %c0_54, %c0_55] : memref<2x3x1x16xf32, #tpu.memory_space<vmem>>, vector<1x1x1x16xf32>
    %37 = vector.shape_cast %36 : vector<1x1x1x16xf32> to vector<1x16xf32>
    %c0_56 = arith.constant 0 : index
    %c0_57 = arith.constant 0 : index
    %c0_58 = arith.constant 0 : index
    %38 = vector.load %arg2[%c0_56, %c0_57, %c0_58] : memref<2x8x16xf32, #tpu.memory_space<vmem>>, vector<1x8x16xf32>
    %39 = vector.shape_cast %38 : vector<1x8x16xf32> to vector<8x16xf32>
    %c0_59 = arith.constant 0 : index
    %c0_60 = arith.constant 0 : index
    %40 = vector.load %arg8[%c0_59, %c0_60] : memref<64x16xf32, #tpu.memory_space<vmem>>, vector<8x16xf32>
    %cst_61 = arith.constant dense<0.000000e+00> : vector<8x16xf32>
    %41 = tpu.matmul %39, %27, %cst_61 {dimension_numbers = #tpu.dot_dimension_numbers<[1], [0], [0], [1], [0, 0, 1, 1], [], []>} : vector<8x16xf32>, vector<16x16xf32>, vector<8x16xf32> -> vector<8x16xf32>
    %42 = arith.addf %40, %41 : vector<8x16xf32>
    %43 = vector.broadcast %33 : vector<1x16xf32> to vector<8x16xf32>
    %44 = arith.addf %42, %43 : vector<8x16xf32>
    %45 = arith.negf %44 : vector<8x16xf32>
    %46 = math.exp %45 : vector<8x16xf32>
    %cst_62 = arith.constant 1.000000e+00 : f32
    %47 = vector.broadcast %cst_62 : f32 to vector<8x16xf32>
    %48 = arith.addf %47, %46 : vector<8x16xf32>
    %49 = arith.divf %47, %48 : vector<8x16xf32>
    %c0_63 = arith.constant 0 : index
    %c0_64 = arith.constant 0 : index
    %50 = vector.load %arg9[%c0_63, %c0_64] : memref<64x16xf32, #tpu.memory_space<vmem>>, vector<8x16xf32>
    %cst_65 = arith.constant dense<0.000000e+00> : vector<8x16xf32>
    %51 = tpu.matmul %39, %29, %cst_65 {dimension_numbers = #tpu.dot_dimension_numbers<[1], [0], [0], [1], [0, 0, 1, 1], [], []>} : vector<8x16xf32>, vector<16x16xf32>, vector<8x16xf32> -> vector<8x16xf32>
    %52 = arith.addf %50, %51 : vector<8x16xf32>
    %53 = vector.broadcast %35 : vector<1x16xf32> to vector<8x16xf32>
    %54 = arith.addf %52, %53 : vector<8x16xf32>
    %55 = arith.negf %54 : vector<8x16xf32>
    %56 = math.exp %55 : vector<8x16xf32>
    %cst_66 = arith.constant 1.000000e+00 : f32
    %57 = vector.broadcast %cst_66 : f32 to vector<8x16xf32>
    %58 = arith.addf %57, %56 : vector<8x16xf32>
    %59 = arith.divf %57, %58 : vector<8x16xf32>
    %c0_67 = arith.constant 0 : index
    %c0_68 = arith.constant 0 : index
    %60 = vector.load %arg10[%c0_67, %c0_68] : memref<64x16xf32, #tpu.memory_space<vmem>>, vector<8x16xf32>
    %cst_69 = arith.constant dense<0.000000e+00> : vector<8x16xf32>
    %61 = tpu.matmul %39, %31, %cst_69 {dimension_numbers = #tpu.dot_dimension_numbers<[1], [0], [0], [1], [0, 0, 1, 1], [], []>} : vector<8x16xf32>, vector<16x16xf32>, vector<8x16xf32> -> vector<8x16xf32>
    %62 = vector.broadcast %37 : vector<1x16xf32> to vector<8x16xf32>
    %63 = arith.addf %61, %62 : vector<8x16xf32>
    %64 = arith.mulf %49, %63 : vector<8x16xf32>
    %65 = arith.addf %60, %64 : vector<8x16xf32>
    %66 = math.tanh %65 : vector<8x16xf32>
    %cst_70 = arith.constant 1.000000e+00 : f32
    %67 = vector.broadcast %cst_70 : f32 to vector<8x16xf32>
    %68 = arith.subf %67, %59 : vector<8x16xf32>
    %69 = arith.mulf %68, %66 : vector<8x16xf32>
    %70 = arith.mulf %59, %39 : vector<8x16xf32>
    %71 = arith.addf %69, %70 : vector<8x16xf32>
    %c8 = arith.constant 8 : index
    %c0_71 = arith.constant 0 : index
    %72 = vector.load %arg8[%c8, %c0_71] : memref<64x16xf32, #tpu.memory_space<vmem>>, vector<8x16xf32>
    %cst_72 = arith.constant dense<0.000000e+00> : vector<8x16xf32>
    %73 = tpu.matmul %71, %27, %cst_72 {dimension_numbers = #tpu.dot_dimension_numbers<[1], [0], [0], [1], [0, 0, 1, 1], [], []>} : vector<8x16xf32>, vector<16x16xf32>, vector<8x16xf32> -> vector<8x16xf32>
    %74 = arith.addf %72, %73 : vector<8x16xf32>
    %75 = vector.broadcast %33 : vector<1x16xf32> to vector<8x16xf32>
    %76 = arith.addf %74, %75 : vector<8x16xf32>
    %77 = arith.negf %76 : vector<8x16xf32>
    %78 = math.exp %77 : vector<8x16xf32>
    %cst_73 = arith.constant 1.000000e+00 : f32
    %79 = vector.broadcast %cst_73 : f32 to vector<8x16xf32>
    %80 = arith.addf %79, %78 : vector<8x16xf32>
    %81 = arith.divf %79, %80 : vector<8x16xf32>
    %c8_74 = arith.constant 8 : index
    %c0_75 = arith.constant 0 : index
    %82 = vector.load %arg9[%c8_74, %c0_75] : memref<64x16xf32, #tpu.memory_space<vmem>>, vector<8x16xf32>
    %cst_76 = arith.constant dense<0.000000e+00> : vector<8x16xf32>
    %83 = tpu.matmul %71, %29, %cst_76 {dimension_numbers = #tpu.dot_dimension_numbers<[1], [0], [0], [1], [0, 0, 1, 1], [], []>} : vector<8x16xf32>, vector<16x16xf32>, vector<8x16xf32> -> vector<8x16xf32>
    %84 = arith.addf %82, %83 : vector<8x16xf32>
    %85 = vector.broadcast %35 : vector<1x16xf32> to vector<8x16xf32>
    %86 = arith.addf %84, %85 : vector<8x16xf32>
    %87 = arith.negf %86 : vector<8x16xf32>
    %88 = math.exp %87 : vector<8x16xf32>
    %cst_77 = arith.constant 1.000000e+00 : f32
    %89 = vector.broadcast %cst_77 : f32 to vector<8x16xf32>
    %90 = arith.addf %89, %88 : vector<8x16xf32>
    %91 = arith.divf %89, %90 : vector<8x16xf32>
    %c8_78 = arith.constant 8 : index
    %c0_79 = arith.constant 0 : index
    %92 = vector.load %arg10[%c8_78, %c0_79] : memref<64x16xf32, #tpu.memory_space<vmem>>, vector<8x16xf32>
    %cst_80 = arith.constant dense<0.000000e+00> : vector<8x16xf32>
    %93 = tpu.matmul %71, %31, %cst_80 {dimension_numbers = #tpu.dot_dimension_numbers<[1], [0], [0], [1], [0, 0, 1, 1], [], []>} : vector<8x16xf32>, vector<16x16xf32>, vector<8x16xf32> -> vector<8x16xf32>
    %94 = vector.broadcast %37 : vector<1x16xf32> to vector<8x16xf32>
    %95 = arith.addf %93, %94 : vector<8x16xf32>
    %96 = arith.mulf %81, %95 : vector<8x16xf32>
    %97 = arith.addf %92, %96 : vector<8x16xf32>
    %98 = math.tanh %97 : vector<8x16xf32>
    %cst_81 = arith.constant 1.000000e+00 : f32
    %99 = vector.broadcast %cst_81 : f32 to vector<8x16xf32>
    %100 = arith.subf %99, %91 : vector<8x16xf32>
    %101 = arith.mulf %100, %98 : vector<8x16xf32>
    %102 = arith.mulf %91, %71 : vector<8x16xf32>
    %103 = arith.addf %101, %102 : vector<8x16xf32>
    %c16 = arith.constant 16 : index
    %c0_82 = arith.constant 0 : index
    %104 = vector.load %arg8[%c16, %c0_82] : memref<64x16xf32, #tpu.memory_space<vmem>>, vector<8x16xf32>
    %cst_83 = arith.constant dense<0.000000e+00> : vector<8x16xf32>
    %105 = tpu.matmul %103, %27, %cst_83 {dimension_numbers = #tpu.dot_dimension_numbers<[1], [0], [0], [1], [0, 0, 1, 1], [], []>} : vector<8x16xf32>, vector<16x16xf32>, vector<8x16xf32> -> vector<8x16xf32>
    %106 = arith.addf %104, %105 : vector<8x16xf32>
    %107 = vector.broadcast %33 : vector<1x16xf32> to vector<8x16xf32>
    %108 = arith.addf %106, %107 : vector<8x16xf32>
    %109 = arith.negf %108 : vector<8x16xf32>
    %110 = math.exp %109 : vector<8x16xf32>
    %cst_84 = arith.constant 1.000000e+00 : f32
    %111 = vector.broadcast %cst_84 : f32 to vector<8x16xf32>
    %112 = arith.addf %111, %110 : vector<8x16xf32>
    %113 = arith.divf %111, %112 : vector<8x16xf32>
    %c16_85 = arith.constant 16 : index
    %c0_86 = arith.constant 0 : index
    %114 = vector.load %arg9[%c16_85, %c0_86] : memref<64x16xf32, #tpu.memory_space<vmem>>, vector<8x16xf32>
    %cst_87 = arith.constant dense<0.000000e+00> : vector<8x16xf32>
    %115 = tpu.matmul %103, %29, %cst_87 {dimension_numbers = #tpu.dot_dimension_numbers<[1], [0], [0], [1], [0, 0, 1, 1], [], []>} : vector<8x16xf32>, vector<16x16xf32>, vector<8x16xf32> -> vector<8x16xf32>
    %116 = arith.addf %114, %115 : vector<8x16xf32>
    %117 = vector.broadcast %35 : vector<1x16xf32> to vector<8x16xf32>
    %118 = arith.addf %116, %117 : vector<8x16xf32>
    %119 = arith.negf %118 : vector<8x16xf32>
    %120 = math.exp %119 : vector<8x16xf32>
    %cst_88 = arith.constant 1.000000e+00 : f32
    %121 = vector.broadcast %cst_88 : f32 to vector<8x16xf32>
    %122 = arith.addf %121, %120 : vector<8x16xf32>
    %123 = arith.divf %121, %122 : vector<8x16xf32>
    %c16_89 = arith.constant 16 : index
    %c0_90 = arith.constant 0 : index
    %124 = vector.load %arg10[%c16_89, %c0_90] : memref<64x16xf32, #tpu.memory_space<vmem>>, vector<8x16xf32>
    %cst_91 = arith.constant dense<0.000000e+00> : vector<8x16xf32>
    %125 = tpu.matmul %103, %31, %cst_91 {dimension_numbers = #tpu.dot_dimension_numbers<[1], [0], [0], [1], [0, 0, 1, 1], [], []>} : vector<8x16xf32>, vector<16x16xf32>, vector<8x16xf32> -> vector<8x16xf32>
    %126 = vector.broadcast %37 : vector<1x16xf32> to vector<8x16xf32>
    %127 = arith.addf %125, %126 : vector<8x16xf32>
    %128 = arith.mulf %113, %127 : vector<8x16xf32>
    %129 = arith.addf %124, %128 : vector<8x16xf32>
    %130 = math.tanh %129 : vector<8x16xf32>
    %cst_92 = arith.constant 1.000000e+00 : f32
    %131 = vector.broadcast %cst_92 : f32 to vector<8x16xf32>
    %132 = arith.subf %131, %123 : vector<8x16xf32>
    %133 = arith.mulf %132, %130 : vector<8x16xf32>
    %134 = arith.mulf %123, %103 : vector<8x16xf32>
    %135 = arith.addf %133, %134 : vector<8x16xf32>
    %c24 = arith.constant 24 : index
    %c0_93 = arith.constant 0 : index
    %136 = vector.load %arg8[%c24, %c0_93] : memref<64x16xf32, #tpu.memory_space<vmem>>, vector<8x16xf32>
    %cst_94 = arith.constant dense<0.000000e+00> : vector<8x16xf32>
    %137 = tpu.matmul %135, %27, %cst_94 {dimension_numbers = #tpu.dot_dimension_numbers<[1], [0], [0], [1], [0, 0, 1, 1], [], []>} : vector<8x16xf32>, vector<16x16xf32>, vector<8x16xf32> -> vector<8x16xf32>
    %138 = arith.addf %136, %137 : vector<8x16xf32>
    %139 = vector.broadcast %33 : vector<1x16xf32> to vector<8x16xf32>
    %140 = arith.addf %138, %139 : vector<8x16xf32>
    %141 = arith.negf %140 : vector<8x16xf32>
    %142 = math.exp %141 : vector<8x16xf32>
    %cst_95 = arith.constant 1.000000e+00 : f32
    %143 = vector.broadcast %cst_95 : f32 to vector<8x16xf32>
    %144 = arith.addf %143, %142 : vector<8x16xf32>
    %145 = arith.divf %143, %144 : vector<8x16xf32>
    %c24_96 = arith.constant 24 : index
    %c0_97 = arith.constant 0 : index
    %146 = vector.load %arg9[%c24_96, %c0_97] : memref<64x16xf32, #tpu.memory_space<vmem>>, vector<8x16xf32>
    %cst_98 = arith.constant dense<0.000000e+00> : vector<8x16xf32>
    %147 = tpu.matmul %135, %29, %cst_98 {dimension_numbers = #tpu.dot_dimension_numbers<[1], [0], [0], [1], [0, 0, 1, 1], [], []>} : vector<8x16xf32>, vector<16x16xf32>, vector<8x16xf32> -> vector<8x16xf32>
    %148 = arith.addf %146, %147 : vector<8x16xf32>
    %149 = vector.broadcast %35 : vector<1x16xf32> to vector<8x16xf32>
    %150 = arith.addf %148, %149 : vector<8x16xf32>
    %151 = arith.negf %150 : vector<8x16xf32>
    %152 = math.exp %151 : vector<8x16xf32>
    %cst_99 = arith.constant 1.000000e+00 : f32
    %153 = vector.broadcast %cst_99 : f32 to vector<8x16xf32>
    %154 = arith.addf %153, %152 : vector<8x16xf32>
    %155 = arith.divf %153, %154 : vector<8x16xf32>
    %c24_100 = arith.constant 24 : index
    %c0_101 = arith.constant 0 : index
    %156 = vector.load %arg10[%c24_100, %c0_101] : memref<64x16xf32, #tpu.memory_space<vmem>>, vector<8x16xf32>
    %cst_102 = arith.constant dense<0.000000e+00> : vector<8x16xf32>
    %157 = tpu.matmul %135, %31, %cst_102 {dimension_numbers = #tpu.dot_dimension_numbers<[1], [0], [0], [1], [0, 0, 1, 1], [], []>} : vector<8x16xf32>, vector<16x16xf32>, vector<8x16xf32> -> vector<8x16xf32>
    %158 = vector.broadcast %37 : vector<1x16xf32> to vector<8x16xf32>
    %159 = arith.addf %157, %158 : vector<8x16xf32>
    %160 = arith.mulf %145, %159 : vector<8x16xf32>
    %161 = arith.addf %156, %160 : vector<8x16xf32>
    %162 = math.tanh %161 : vector<8x16xf32>
    %cst_103 = arith.constant 1.000000e+00 : f32
    %163 = vector.broadcast %cst_103 : f32 to vector<8x16xf32>
    %164 = arith.subf %163, %155 : vector<8x16xf32>
    %165 = arith.mulf %164, %162 : vector<8x16xf32>
    %166 = arith.mulf %155, %135 : vector<8x16xf32>
    %167 = arith.addf %165, %166 : vector<8x16xf32>
    %c32 = arith.constant 32 : index
    %c0_104 = arith.constant 0 : index
    %168 = vector.load %arg8[%c32, %c0_104] : memref<64x16xf32, #tpu.memory_space<vmem>>, vector<8x16xf32>
    %cst_105 = arith.constant dense<0.000000e+00> : vector<8x16xf32>
    %169 = tpu.matmul %167, %27, %cst_105 {dimension_numbers = #tpu.dot_dimension_numbers<[1], [0], [0], [1], [0, 0, 1, 1], [], []>} : vector<8x16xf32>, vector<16x16xf32>, vector<8x16xf32> -> vector<8x16xf32>
    %170 = arith.addf %168, %169 : vector<8x16xf32>
    %171 = vector.broadcast %33 : vector<1x16xf32> to vector<8x16xf32>
    %172 = arith.addf %170, %171 : vector<8x16xf32>
    %173 = arith.negf %172 : vector<8x16xf32>
    %174 = math.exp %173 : vector<8x16xf32>
    %cst_106 = arith.constant 1.000000e+00 : f32
    %175 = vector.broadcast %cst_106 : f32 to vector<8x16xf32>
    %176 = arith.addf %175, %174 : vector<8x16xf32>
    %177 = arith.divf %175, %176 : vector<8x16xf32>
    %c32_107 = arith.constant 32 : index
    %c0_108 = arith.constant 0 : index
    %178 = vector.load %arg9[%c32_107, %c0_108] : memref<64x16xf32, #tpu.memory_space<vmem>>, vector<8x16xf32>
    %cst_109 = arith.constant dense<0.000000e+00> : vector<8x16xf32>
    %179 = tpu.matmul %167, %29, %cst_109 {dimension_numbers = #tpu.dot_dimension_numbers<[1], [0], [0], [1], [0, 0, 1, 1], [], []>} : vector<8x16xf32>, vector<16x16xf32>, vector<8x16xf32> -> vector<8x16xf32>
    %180 = arith.addf %178, %179 : vector<8x16xf32>
    %181 = vector.broadcast %35 : vector<1x16xf32> to vector<8x16xf32>
    %182 = arith.addf %180, %181 : vector<8x16xf32>
    %183 = arith.negf %182 : vector<8x16xf32>
    %184 = math.exp %183 : vector<8x16xf32>
    %cst_110 = arith.constant 1.000000e+00 : f32
    %185 = vector.broadcast %cst_110 : f32 to vector<8x16xf32>
    %186 = arith.addf %185, %184 : vector<8x16xf32>
    %187 = arith.divf %185, %186 : vector<8x16xf32>
    %c32_111 = arith.constant 32 : index
    %c0_112 = arith.constant 0 : index
    %188 = vector.load %arg10[%c32_111, %c0_112] : memref<64x16xf32, #tpu.memory_space<vmem>>, vector<8x16xf32>
    %cst_113 = arith.constant dense<0.000000e+00> : vector<8x16xf32>
    %189 = tpu.matmul %167, %31, %cst_113 {dimension_numbers = #tpu.dot_dimension_numbers<[1], [0], [0], [1], [0, 0, 1, 1], [], []>} : vector<8x16xf32>, vector<16x16xf32>, vector<8x16xf32> -> vector<8x16xf32>
    %190 = vector.broadcast %37 : vector<1x16xf32> to vector<8x16xf32>
    %191 = arith.addf %189, %190 : vector<8x16xf32>
    %192 = arith.mulf %177, %191 : vector<8x16xf32>
    %193 = arith.addf %188, %192 : vector<8x16xf32>
    %194 = math.tanh %193 : vector<8x16xf32>
    %cst_114 = arith.constant 1.000000e+00 : f32
    %195 = vector.broadcast %cst_114 : f32 to vector<8x16xf32>
    %196 = arith.subf %195, %187 : vector<8x16xf32>
    %197 = arith.mulf %196, %194 : vector<8x16xf32>
    %198 = arith.mulf %187, %167 : vector<8x16xf32>
    %199 = arith.addf %197, %198 : vector<8x16xf32>
    %c40 = arith.constant 40 : index
    %c0_115 = arith.constant 0 : index
    %200 = vector.load %arg8[%c40, %c0_115] : memref<64x16xf32, #tpu.memory_space<vmem>>, vector<8x16xf32>
    %cst_116 = arith.constant dense<0.000000e+00> : vector<8x16xf32>
    %201 = tpu.matmul %199, %27, %cst_116 {dimension_numbers = #tpu.dot_dimension_numbers<[1], [0], [0], [1], [0, 0, 1, 1], [], []>} : vector<8x16xf32>, vector<16x16xf32>, vector<8x16xf32> -> vector<8x16xf32>
    %202 = arith.addf %200, %201 : vector<8x16xf32>
    %203 = vector.broadcast %33 : vector<1x16xf32> to vector<8x16xf32>
    %204 = arith.addf %202, %203 : vector<8x16xf32>
    %205 = arith.negf %204 : vector<8x16xf32>
    %206 = math.exp %205 : vector<8x16xf32>
    %cst_117 = arith.constant 1.000000e+00 : f32
    %207 = vector.broadcast %cst_117 : f32 to vector<8x16xf32>
    %208 = arith.addf %207, %206 : vector<8x16xf32>
    %209 = arith.divf %207, %208 : vector<8x16xf32>
    %c40_118 = arith.constant 40 : index
    %c0_119 = arith.constant 0 : index
    %210 = vector.load %arg9[%c40_118, %c0_119] : memref<64x16xf32, #tpu.memory_space<vmem>>, vector<8x16xf32>
    %cst_120 = arith.constant dense<0.000000e+00> : vector<8x16xf32>
    %211 = tpu.matmul %199, %29, %cst_120 {dimension_numbers = #tpu.dot_dimension_numbers<[1], [0], [0], [1], [0, 0, 1, 1], [], []>} : vector<8x16xf32>, vector<16x16xf32>, vector<8x16xf32> -> vector<8x16xf32>
    %212 = arith.addf %210, %211 : vector<8x16xf32>
    %213 = vector.broadcast %35 : vector<1x16xf32> to vector<8x16xf32>
    %214 = arith.addf %212, %213 : vector<8x16xf32>
    %215 = arith.negf %214 : vector<8x16xf32>
    %216 = math.exp %215 : vector<8x16xf32>
    %cst_121 = arith.constant 1.000000e+00 : f32
    %217 = vector.broadcast %cst_121 : f32 to vector<8x16xf32>
    %218 = arith.addf %217, %216 : vector<8x16xf32>
    %219 = arith.divf %217, %218 : vector<8x16xf32>
    %c40_122 = arith.constant 40 : index
    %c0_123 = arith.constant 0 : index
    %220 = vector.load %arg10[%c40_122, %c0_123] : memref<64x16xf32, #tpu.memory_space<vmem>>, vector<8x16xf32>
    %cst_124 = arith.constant dense<0.000000e+00> : vector<8x16xf32>
    %221 = tpu.matmul %199, %31, %cst_124 {dimension_numbers = #tpu.dot_dimension_numbers<[1], [0], [0], [1], [0, 0, 1, 1], [], []>} : vector<8x16xf32>, vector<16x16xf32>, vector<8x16xf32> -> vector<8x16xf32>
    %222 = vector.broadcast %37 : vector<1x16xf32> to vector<8x16xf32>
    %223 = arith.addf %221, %222 : vector<8x16xf32>
    %224 = arith.mulf %209, %223 : vector<8x16xf32>
    %225 = arith.addf %220, %224 : vector<8x16xf32>
    %226 = math.tanh %225 : vector<8x16xf32>
    %cst_125 = arith.constant 1.000000e+00 : f32
    %227 = vector.broadcast %cst_125 : f32 to vector<8x16xf32>
    %228 = arith.subf %227, %219 : vector<8x16xf32>
    %229 = arith.mulf %228, %226 : vector<8x16xf32>
    %230 = arith.mulf %219, %199 : vector<8x16xf32>
    %231 = arith.addf %229, %230 : vector<8x16xf32>
    %c48 = arith.constant 48 : index
    %c0_126 = arith.constant 0 : index
    %232 = vector.load %arg8[%c48, %c0_126] : memref<64x16xf32, #tpu.memory_space<vmem>>, vector<8x16xf32>
    %cst_127 = arith.constant dense<0.000000e+00> : vector<8x16xf32>
    %233 = tpu.matmul %231, %27, %cst_127 {dimension_numbers = #tpu.dot_dimension_numbers<[1], [0], [0], [1], [0, 0, 1, 1], [], []>} : vector<8x16xf32>, vector<16x16xf32>, vector<8x16xf32> -> vector<8x16xf32>
    %234 = arith.addf %232, %233 : vector<8x16xf32>
    %235 = vector.broadcast %33 : vector<1x16xf32> to vector<8x16xf32>
    %236 = arith.addf %234, %235 : vector<8x16xf32>
    %237 = arith.negf %236 : vector<8x16xf32>
    %238 = math.exp %237 : vector<8x16xf32>
    %cst_128 = arith.constant 1.000000e+00 : f32
    %239 = vector.broadcast %cst_128 : f32 to vector<8x16xf32>
    %240 = arith.addf %239, %238 : vector<8x16xf32>
    %241 = arith.divf %239, %240 : vector<8x16xf32>
    %c48_129 = arith.constant 48 : index
    %c0_130 = arith.constant 0 : index
    %242 = vector.load %arg9[%c48_129, %c0_130] : memref<64x16xf32, #tpu.memory_space<vmem>>, vector<8x16xf32>
    %cst_131 = arith.constant dense<0.000000e+00> : vector<8x16xf32>
    %243 = tpu.matmul %231, %29, %cst_131 {dimension_numbers = #tpu.dot_dimension_numbers<[1], [0], [0], [1], [0, 0, 1, 1], [], []>} : vector<8x16xf32>, vector<16x16xf32>, vector<8x16xf32> -> vector<8x16xf32>
    %244 = arith.addf %242, %243 : vector<8x16xf32>
    %245 = vector.broadcast %35 : vector<1x16xf32> to vector<8x16xf32>
    %246 = arith.addf %244, %245 : vector<8x16xf32>
    %247 = arith.negf %246 : vector<8x16xf32>
    %248 = math.exp %247 : vector<8x16xf32>
    %cst_132 = arith.constant 1.000000e+00 : f32
    %249 = vector.broadcast %cst_132 : f32 to vector<8x16xf32>
    %250 = arith.addf %249, %248 : vector<8x16xf32>
    %251 = arith.divf %249, %250 : vector<8x16xf32>
    %c48_133 = arith.constant 48 : index
    %c0_134 = arith.constant 0 : index
    %252 = vector.load %arg10[%c48_133, %c0_134] : memref<64x16xf32, #tpu.memory_space<vmem>>, vector<8x16xf32>
    %cst_135 = arith.constant dense<0.000000e+00> : vector<8x16xf32>
    %253 = tpu.matmul %231, %31, %cst_135 {dimension_numbers = #tpu.dot_dimension_numbers<[1], [0], [0], [1], [0, 0, 1, 1], [], []>} : vector<8x16xf32>, vector<16x16xf32>, vector<8x16xf32> -> vector<8x16xf32>
    %254 = vector.broadcast %37 : vector<1x16xf32> to vector<8x16xf32>
    %255 = arith.addf %253, %254 : vector<8x16xf32>
    %256 = arith.mulf %241, %255 : vector<8x16xf32>
    %257 = arith.addf %252, %256 : vector<8x16xf32>
    %258 = math.tanh %257 : vector<8x16xf32>
    %cst_136 = arith.constant 1.000000e+00 : f32
    %259 = vector.broadcast %cst_136 : f32 to vector<8x16xf32>
    %260 = arith.subf %259, %251 : vector<8x16xf32>
    %261 = arith.mulf %260, %258 : vector<8x16xf32>
    %262 = arith.mulf %251, %231 : vector<8x16xf32>
    %263 = arith.addf %261, %262 : vector<8x16xf32>
    %c56 = arith.constant 56 : index
    %c0_137 = arith.constant 0 : index
    %264 = vector.load %arg8[%c56, %c0_137] : memref<64x16xf32, #tpu.memory_space<vmem>>, vector<8x16xf32>
    %cst_138 = arith.constant dense<0.000000e+00> : vector<8x16xf32>
    %265 = tpu.matmul %263, %27, %cst_138 {dimension_numbers = #tpu.dot_dimension_numbers<[1], [0], [0], [1], [0, 0, 1, 1], [], []>} : vector<8x16xf32>, vector<16x16xf32>, vector<8x16xf32> -> vector<8x16xf32>
    %266 = arith.addf %264, %265 : vector<8x16xf32>
    %267 = vector.broadcast %33 : vector<1x16xf32> to vector<8x16xf32>
    %268 = arith.addf %266, %267 : vector<8x16xf32>
    %269 = arith.negf %268 : vector<8x16xf32>
    %270 = math.exp %269 : vector<8x16xf32>
    %cst_139 = arith.constant 1.000000e+00 : f32
    %271 = vector.broadcast %cst_139 : f32 to vector<8x16xf32>
    %272 = arith.addf %271, %270 : vector<8x16xf32>
    %273 = arith.divf %271, %272 : vector<8x16xf32>
    %c56_140 = arith.constant 56 : index
    %c0_141 = arith.constant 0 : index
    %274 = vector.load %arg9[%c56_140, %c0_141] : memref<64x16xf32, #tpu.memory_space<vmem>>, vector<8x16xf32>
    %cst_142 = arith.constant dense<0.000000e+00> : vector<8x16xf32>
    %275 = tpu.matmul %263, %29, %cst_142 {dimension_numbers = #tpu.dot_dimension_numbers<[1], [0], [0], [1], [0, 0, 1, 1], [], []>} : vector<8x16xf32>, vector<16x16xf32>, vector<8x16xf32> -> vector<8x16xf32>
    %276 = arith.addf %274, %275 : vector<8x16xf32>
    %277 = vector.broadcast %35 : vector<1x16xf32> to vector<8x16xf32>
    %278 = arith.addf %276, %277 : vector<8x16xf32>
    %279 = arith.negf %278 : vector<8x16xf32>
    %280 = math.exp %279 : vector<8x16xf32>
    %cst_143 = arith.constant 1.000000e+00 : f32
    %281 = vector.broadcast %cst_143 : f32 to vector<8x16xf32>
    %282 = arith.addf %281, %280 : vector<8x16xf32>
    %283 = arith.divf %281, %282 : vector<8x16xf32>
    %c56_144 = arith.constant 56 : index
    %c0_145 = arith.constant 0 : index
    %284 = vector.load %arg10[%c56_144, %c0_145] : memref<64x16xf32, #tpu.memory_space<vmem>>, vector<8x16xf32>
    %cst_146 = arith.constant dense<0.000000e+00> : vector<8x16xf32>
    %285 = tpu.matmul %263, %31, %cst_146 {dimension_numbers = #tpu.dot_dimension_numbers<[1], [0], [0], [1], [0, 0, 1, 1], [], []>} : vector<8x16xf32>, vector<16x16xf32>, vector<8x16xf32> -> vector<8x16xf32>
    %286 = vector.broadcast %37 : vector<1x16xf32> to vector<8x16xf32>
    %287 = arith.addf %285, %286 : vector<8x16xf32>
    %288 = arith.mulf %273, %287 : vector<8x16xf32>
    %289 = arith.addf %284, %288 : vector<8x16xf32>
    %290 = math.tanh %289 : vector<8x16xf32>
    %cst_147 = arith.constant 1.000000e+00 : f32
    %291 = vector.broadcast %cst_147 : f32 to vector<8x16xf32>
    %292 = arith.subf %291, %283 : vector<8x16xf32>
    %293 = arith.mulf %292, %290 : vector<8x16xf32>
    %294 = arith.mulf %283, %263 : vector<8x16xf32>
    %295 = arith.addf %293, %294 : vector<8x16xf32>
    %c0_148 = arith.constant 0 : index
    %c0_149 = arith.constant 0 : index
    %c0_150 = arith.constant 0 : index
    %296 = vector.load %arg7[%c0_148, %c0_149, %c0_150] : memref<2x8x16xf32, #tpu.memory_space<vmem>>, vector<1x8x16xf32>
    %297 = vector.shape_cast %296 : vector<1x8x16xf32> to vector<8x16xf32>
    %298 = vector.shape_cast %295 : vector<8x16xf32> to vector<1x8x16xf32>
    tpu.vector_store %arg7[%c0_148, %c0_149, %c0_150], %298 {strides = array<i32>} : memref<2x8x16xf32, #tpu.memory_space<vmem>>, vector<1x8x16xf32>,
    %c1_151 = arith.constant 1 : index
    %c0_152 = arith.constant 0 : index
    %c0_153 = arith.constant 0 : index
    %c0_154 = arith.constant 0 : index
    %299 = vector.load %arg3[%c1_151, %c0_152, %c0_153, %c0_154] : memref<2x3x3x16xf32, #tpu.memory_space<vmem>>, vector<1x1x3x16xf32>
    %300 = vector.shape_cast %299 : vector<1x1x3x16xf32> to vector<3x16xf32>
    %cst_155 = arith.constant dense<0.000000e+00> : vector<64x16xf32>
    %301 = tpu.matmul %1, %300, %cst_155 {dimension_numbers = #tpu.dot_dimension_numbers<[1], [0], [0], [1], [0, 0, 1, 1], [], []>} : vector<64x3xf32>, vector<3x16xf32>, vector<64x16xf32> -> vector<64x16xf32>
    %c1_156 = arith.constant 1 : index
    %c0_157 = arith.constant 0 : index
    %c0_158 = arith.constant 0 : index
    %c0_159 = arith.constant 0 : index
    %302 = vector.load %arg5[%c1_156, %c0_157, %c0_158, %c0_159] : memref<2x3x1x16xf32, #tpu.memory_space<vmem>>, vector<1x1x1x16xf32>
    %303 = vector.shape_cast %302 : vector<1x1x1x16xf32> to vector<1x16xf32>
    %304 = vector.broadcast %303 : vector<1x16xf32> to vector<64x16xf32>
    %305 = arith.addf %301, %304 : vector<64x16xf32>
    %c0_160 = arith.constant 0 : index
    %c0_161 = arith.constant 0 : index
    %306 = vector.load %arg8[%c0_160, %c0_161] : memref<64x16xf32, #tpu.memory_space<vmem>>, vector<64x16xf32>
    tpu.vector_store %arg8[%c0_160, %c0_161], %305 {strides = array<i32>} : memref<64x16xf32, #tpu.memory_space<vmem>>, vector<64x16xf32>,
    %c1_162 = arith.constant 1 : index
    %c1_163 = arith.constant 1 : index
    %c0_164 = arith.constant 0 : index
    %c0_165 = arith.constant 0 : index
    %307 = vector.load %arg3[%c1_162, %c1_163, %c0_164, %c0_165] : memref<2x3x3x16xf32, #tpu.memory_space<vmem>>, vector<1x1x3x16xf32>
    %308 = vector.shape_cast %307 : vector<1x1x3x16xf32> to vector<3x16xf32>
    %cst_166 = arith.constant dense<0.000000e+00> : vector<64x16xf32>
    %309 = tpu.matmul %1, %308, %cst_166 {dimension_numbers = #tpu.dot_dimension_numbers<[1], [0], [0], [1], [0, 0, 1, 1], [], []>} : vector<64x3xf32>, vector<3x16xf32>, vector<64x16xf32> -> vector<64x16xf32>
    %c1_167 = arith.constant 1 : index
    %c1_168 = arith.constant 1 : index
    %c0_169 = arith.constant 0 : index
    %c0_170 = arith.constant 0 : index
    %310 = vector.load %arg5[%c1_167, %c1_168, %c0_169, %c0_170] : memref<2x3x1x16xf32, #tpu.memory_space<vmem>>, vector<1x1x1x16xf32>
    %311 = vector.shape_cast %310 : vector<1x1x1x16xf32> to vector<1x16xf32>
    %312 = vector.broadcast %311 : vector<1x16xf32> to vector<64x16xf32>
    %313 = arith.addf %309, %312 : vector<64x16xf32>
    %c0_171 = arith.constant 0 : index
    %c0_172 = arith.constant 0 : index
    %314 = vector.load %arg9[%c0_171, %c0_172] : memref<64x16xf32, #tpu.memory_space<vmem>>, vector<64x16xf32>
    tpu.vector_store %arg9[%c0_171, %c0_172], %313 {strides = array<i32>} : memref<64x16xf32, #tpu.memory_space<vmem>>, vector<64x16xf32>,
    %c1_173 = arith.constant 1 : index
    %c2_174 = arith.constant 2 : index
    %c0_175 = arith.constant 0 : index
    %c0_176 = arith.constant 0 : index
    %315 = vector.load %arg3[%c1_173, %c2_174, %c0_175, %c0_176] : memref<2x3x3x16xf32, #tpu.memory_space<vmem>>, vector<1x1x3x16xf32>
    %316 = vector.shape_cast %315 : vector<1x1x3x16xf32> to vector<3x16xf32>
    %cst_177 = arith.constant dense<0.000000e+00> : vector<64x16xf32>
    %317 = tpu.matmul %1, %316, %cst_177 {dimension_numbers = #tpu.dot_dimension_numbers<[1], [0], [0], [1], [0, 0, 1, 1], [], []>} : vector<64x3xf32>, vector<3x16xf32>, vector<64x16xf32> -> vector<64x16xf32>
    %c1_178 = arith.constant 1 : index
    %c2_179 = arith.constant 2 : index
    %c0_180 = arith.constant 0 : index
    %c0_181 = arith.constant 0 : index
    %318 = vector.load %arg5[%c1_178, %c2_179, %c0_180, %c0_181] : memref<2x3x1x16xf32, #tpu.memory_space<vmem>>, vector<1x1x1x16xf32>
    %319 = vector.shape_cast %318 : vector<1x1x1x16xf32> to vector<1x16xf32>
    %320 = vector.broadcast %319 : vector<1x16xf32> to vector<64x16xf32>
    %321 = arith.addf %317, %320 : vector<64x16xf32>
    %c0_182 = arith.constant 0 : index
    %c0_183 = arith.constant 0 : index
    %322 = vector.load %arg10[%c0_182, %c0_183] : memref<64x16xf32, #tpu.memory_space<vmem>>, vector<64x16xf32>
    tpu.vector_store %arg10[%c0_182, %c0_183], %321 {strides = array<i32>} : memref<64x16xf32, #tpu.memory_space<vmem>>, vector<64x16xf32>,
    %c1_184 = arith.constant 1 : index
    %c0_185 = arith.constant 0 : index
    %c0_186 = arith.constant 0 : index
    %c0_187 = arith.constant 0 : index
    %323 = vector.load %arg4[%c1_184, %c0_185, %c0_186, %c0_187] : memref<2x3x16x16xf32, #tpu.memory_space<vmem>>, vector<1x1x16x16xf32>
    %324 = vector.shape_cast %323 : vector<1x1x16x16xf32> to vector<16x16xf32>
    %c1_188 = arith.constant 1 : index
    %c1_189 = arith.constant 1 : index
    %c0_190 = arith.constant 0 : index
    %c0_191 = arith.constant 0 : index
    %325 = vector.load %arg4[%c1_188, %c1_189, %c0_190, %c0_191] : memref<2x3x16x16xf32, #tpu.memory_space<vmem>>, vector<1x1x16x16xf32>
    %326 = vector.shape_cast %325 : vector<1x1x16x16xf32> to vector<16x16xf32>
    %c1_192 = arith.constant 1 : index
    %c2_193 = arith.constant 2 : index
    %c0_194 = arith.constant 0 : index
    %c0_195 = arith.constant 0 : index
    %327 = vector.load %arg4[%c1_192, %c2_193, %c0_194, %c0_195] : memref<2x3x16x16xf32, #tpu.memory_space<vmem>>, vector<1x1x16x16xf32>
    %328 = vector.shape_cast %327 : vector<1x1x16x16xf32> to vector<16x16xf32>
    %c1_196 = arith.constant 1 : index
    %c0_197 = arith.constant 0 : index
    %c0_198 = arith.constant 0 : index
    %c0_199 = arith.constant 0 : index
    %329 = vector.load %arg6[%c1_196, %c0_197, %c0_198, %c0_199] : memref<2x3x1x16xf32, #tpu.memory_space<vmem>>, vector<1x1x1x16xf32>
    %330 = vector.shape_cast %329 : vector<1x1x1x16xf32> to vector<1x16xf32>
    %c1_200 = arith.constant 1 : index
    %c1_201 = arith.constant 1 : index
    %c0_202 = arith.constant 0 : index
    %c0_203 = arith.constant 0 : index
    %331 = vector.load %arg6[%c1_200, %c1_201, %c0_202, %c0_203] : memref<2x3x1x16xf32, #tpu.memory_space<vmem>>, vector<1x1x1x16xf32>
    %332 = vector.shape_cast %331 : vector<1x1x1x16xf32> to vector<1x16xf32>
    %c1_204 = arith.constant 1 : index
    %c2_205 = arith.constant 2 : index
    %c0_206 = arith.constant 0 : index
    %c0_207 = arith.constant 0 : index
    %333 = vector.load %arg6[%c1_204, %c2_205, %c0_206, %c0_207] : memref<2x3x1x16xf32, #tpu.memory_space<vmem>>, vector<1x1x1x16xf32>
    %334 = vector.shape_cast %333 : vector<1x1x1x16xf32> to vector<1x16xf32>
    %c1_208 = arith.constant 1 : index
    %c0_209 = arith.constant 0 : index
    %c0_210 = arith.constant 0 : index
    %335 = vector.load %arg2[%c1_208, %c0_209, %c0_210] : memref<2x8x16xf32, #tpu.memory_space<vmem>>, vector<1x8x16xf32>
    %336 = vector.shape_cast %335 : vector<1x8x16xf32> to vector<8x16xf32>
    %c56_211 = arith.constant 56 : index
    %c0_212 = arith.constant 0 : index
    %337 = vector.load %arg8[%c56_211, %c0_212] : memref<64x16xf32, #tpu.memory_space<vmem>>, vector<8x16xf32>
    %cst_213 = arith.constant dense<0.000000e+00> : vector<8x16xf32>
    %338 = tpu.matmul %336, %324, %cst_213 {dimension_numbers = #tpu.dot_dimension_numbers<[1], [0], [0], [1], [0, 0, 1, 1], [], []>} : vector<8x16xf32>, vector<16x16xf32>, vector<8x16xf32> -> vector<8x16xf32>
    %339 = arith.addf %337, %338 : vector<8x16xf32>
    %340 = vector.broadcast %330 : vector<1x16xf32> to vector<8x16xf32>
    %341 = arith.addf %339, %340 : vector<8x16xf32>
    %342 = arith.negf %341 : vector<8x16xf32>
    %343 = math.exp %342 : vector<8x16xf32>
    %cst_214 = arith.constant 1.000000e+00 : f32
    %344 = vector.broadcast %cst_214 : f32 to vector<8x16xf32>
    %345 = arith.addf %344, %343 : vector<8x16xf32>
    %346 = arith.divf %344, %345 : vector<8x16xf32>
    %c56_215 = arith.constant 56 : index
    %c0_216 = arith.constant 0 : index
    %347 = vector.load %arg9[%c56_215, %c0_216] : memref<64x16xf32, #tpu.memory_space<vmem>>, vector<8x16xf32>
    %cst_217 = arith.constant dense<0.000000e+00> : vector<8x16xf32>
    %348 = tpu.matmul %336, %326, %cst_217 {dimension_numbers = #tpu.dot_dimension_numbers<[1], [0], [0], [1], [0, 0, 1, 1], [], []>} : vector<8x16xf32>, vector<16x16xf32>, vector<8x16xf32> -> vector<8x16xf32>
    %349 = arith.addf %347, %348 : vector<8x16xf32>
    %350 = vector.broadcast %332 : vector<1x16xf32> to vector<8x16xf32>
    %351 = arith.addf %349, %350 : vector<8x16xf32>
    %352 = arith.negf %351 : vector<8x16xf32>
    %353 = math.exp %352 : vector<8x16xf32>
    %cst_218 = arith.constant 1.000000e+00 : f32
    %354 = vector.broadcast %cst_218 : f32 to vector<8x16xf32>
    %355 = arith.addf %354, %353 : vector<8x16xf32>
    %356 = arith.divf %354, %355 : vector<8x16xf32>
    %c56_219 = arith.constant 56 : index
    %c0_220 = arith.constant 0 : index
    %357 = vector.load %arg10[%c56_219, %c0_220] : memref<64x16xf32, #tpu.memory_space<vmem>>, vector<8x16xf32>
    %cst_221 = arith.constant dense<0.000000e+00> : vector<8x16xf32>
    %358 = tpu.matmul %336, %328, %cst_221 {dimension_numbers = #tpu.dot_dimension_numbers<[1], [0], [0], [1], [0, 0, 1, 1], [], []>} : vector<8x16xf32>, vector<16x16xf32>, vector<8x16xf32> -> vector<8x16xf32>
    %359 = vector.broadcast %334 : vector<1x16xf32> to vector<8x16xf32>
    %360 = arith.addf %358, %359 : vector<8x16xf32>
    %361 = arith.mulf %346, %360 : vector<8x16xf32>
    %362 = arith.addf %357, %361 : vector<8x16xf32>
    %363 = math.tanh %362 : vector<8x16xf32>
    %cst_222 = arith.constant 1.000000e+00 : f32
    %364 = vector.broadcast %cst_222 : f32 to vector<8x16xf32>
    %365 = arith.subf %364, %356 : vector<8x16xf32>
    %366 = arith.mulf %365, %363 : vector<8x16xf32>
    %367 = arith.mulf %356, %336 : vector<8x16xf32>
    %368 = arith.addf %366, %367 : vector<8x16xf32>
    %c48_223 = arith.constant 48 : index
    %c0_224 = arith.constant 0 : index
    %369 = vector.load %arg8[%c48_223, %c0_224] : memref<64x16xf32, #tpu.memory_space<vmem>>, vector<8x16xf32>
    %cst_225 = arith.constant dense<0.000000e+00> : vector<8x16xf32>
    %370 = tpu.matmul %368, %324, %cst_225 {dimension_numbers = #tpu.dot_dimension_numbers<[1], [0], [0], [1], [0, 0, 1, 1], [], []>} : vector<8x16xf32>, vector<16x16xf32>, vector<8x16xf32> -> vector<8x16xf32>
    %371 = arith.addf %369, %370 : vector<8x16xf32>
    %372 = vector.broadcast %330 : vector<1x16xf32> to vector<8x16xf32>
    %373 = arith.addf %371, %372 : vector<8x16xf32>
    %374 = arith.negf %373 : vector<8x16xf32>
    %375 = math.exp %374 : vector<8x16xf32>
    %cst_226 = arith.constant 1.000000e+00 : f32
    %376 = vector.broadcast %cst_226 : f32 to vector<8x16xf32>
    %377 = arith.addf %376, %375 : vector<8x16xf32>
    %378 = arith.divf %376, %377 : vector<8x16xf32>
    %c48_227 = arith.constant 48 : index
    %c0_228 = arith.constant 0 : index
    %379 = vector.load %arg9[%c48_227, %c0_228] : memref<64x16xf32, #tpu.memory_space<vmem>>, vector<8x16xf32>
    %cst_229 = arith.constant dense<0.000000e+00> : vector<8x16xf32>
    %380 = tpu.matmul %368, %326, %cst_229 {dimension_numbers = #tpu.dot_dimension_numbers<[1], [0], [0], [1], [0, 0, 1, 1], [], []>} : vector<8x16xf32>, vector<16x16xf32>, vector<8x16xf32> -> vector<8x16xf32>
    %381 = arith.addf %379, %380 : vector<8x16xf32>
    %382 = vector.broadcast %332 : vector<1x16xf32> to vector<8x16xf32>
    %383 = arith.addf %381, %382 : vector<8x16xf32>
    %384 = arith.negf %383 : vector<8x16xf32>
    %385 = math.exp %384 : vector<8x16xf32>
    %cst_230 = arith.constant 1.000000e+00 : f32
    %386 = vector.broadcast %cst_230 : f32 to vector<8x16xf32>
    %387 = arith.addf %386, %385 : vector<8x16xf32>
    %388 = arith.divf %386, %387 : vector<8x16xf32>
    %c48_231 = arith.constant 48 : index
    %c0_232 = arith.constant 0 : index
    %389 = vector.load %arg10[%c48_231, %c0_232] : memref<64x16xf32, #tpu.memory_space<vmem>>, vector<8x16xf32>
    %cst_233 = arith.constant dense<0.000000e+00> : vector<8x16xf32>
    %390 = tpu.matmul %368, %328, %cst_233 {dimension_numbers = #tpu.dot_dimension_numbers<[1], [0], [0], [1], [0, 0, 1, 1], [], []>} : vector<8x16xf32>, vector<16x16xf32>, vector<8x16xf32> -> vector<8x16xf32>
    %391 = vector.broadcast %334 : vector<1x16xf32> to vector<8x16xf32>
    %392 = arith.addf %390, %391 : vector<8x16xf32>
    %393 = arith.mulf %378, %392 : vector<8x16xf32>
    %394 = arith.addf %389, %393 : vector<8x16xf32>
    %395 = math.tanh %394 : vector<8x16xf32>
    %cst_234 = arith.constant 1.000000e+00 : f32
    %396 = vector.broadcast %cst_234 : f32 to vector<8x16xf32>
    %397 = arith.subf %396, %388 : vector<8x16xf32>
    %398 = arith.mulf %397, %395 : vector<8x16xf32>
    %399 = arith.mulf %388, %368 : vector<8x16xf32>
    %400 = arith.addf %398, %399 : vector<8x16xf32>
    %c40_235 = arith.constant 40 : index
    %c0_236 = arith.constant 0 : index
    %401 = vector.load %arg8[%c40_235, %c0_236] : memref<64x16xf32, #tpu.memory_space<vmem>>, vector<8x16xf32>
    %cst_237 = arith.constant dense<0.000000e+00> : vector<8x16xf32>
    %402 = tpu.matmul %400, %324, %cst_237 {dimension_numbers = #tpu.dot_dimension_numbers<[1], [0], [0], [1], [0, 0, 1, 1], [], []>} : vector<8x16xf32>, vector<16x16xf32>, vector<8x16xf32> -> vector<8x16xf32>
    %403 = arith.addf %401, %402 : vector<8x16xf32>
    %404 = vector.broadcast %330 : vector<1x16xf32> to vector<8x16xf32>
    %405 = arith.addf %403, %404 : vector<8x16xf32>
    %406 = arith.negf %405 : vector<8x16xf32>
    %407 = math.exp %406 : vector<8x16xf32>
    %cst_238 = arith.constant 1.000000e+00 : f32
    %408 = vector.broadcast %cst_238 : f32 to vector<8x16xf32>
    %409 = arith.addf %408, %407 : vector<8x16xf32>
    %410 = arith.divf %408, %409 : vector<8x16xf32>
    %c40_239 = arith.constant 40 : index
    %c0_240 = arith.constant 0 : index
    %411 = vector.load %arg9[%c40_239, %c0_240] : memref<64x16xf32, #tpu.memory_space<vmem>>, vector<8x16xf32>
    %cst_241 = arith.constant dense<0.000000e+00> : vector<8x16xf32>
    %412 = tpu.matmul %400, %326, %cst_241 {dimension_numbers = #tpu.dot_dimension_numbers<[1], [0], [0], [1], [0, 0, 1, 1], [], []>} : vector<8x16xf32>, vector<16x16xf32>, vector<8x16xf32> -> vector<8x16xf32>
    %413 = arith.addf %411, %412 : vector<8x16xf32>
    %414 = vector.broadcast %332 : vector<1x16xf32> to vector<8x16xf32>
    %415 = arith.addf %413, %414 : vector<8x16xf32>
    %416 = arith.negf %415 : vector<8x16xf32>
    %417 = math.exp %416 : vector<8x16xf32>
    %cst_242 = arith.constant 1.000000e+00 : f32
    %418 = vector.broadcast %cst_242 : f32 to vector<8x16xf32>
    %419 = arith.addf %418, %417 : vector<8x16xf32>
    %420 = arith.divf %418, %419 : vector<8x16xf32>
    %c40_243 = arith.constant 40 : index
    %c0_244 = arith.constant 0 : index
    %421 = vector.load %arg10[%c40_243, %c0_244] : memref<64x16xf32, #tpu.memory_space<vmem>>, vector<8x16xf32>
    %cst_245 = arith.constant dense<0.000000e+00> : vector<8x16xf32>
    %422 = tpu.matmul %400, %328, %cst_245 {dimension_numbers = #tpu.dot_dimension_numbers<[1], [0], [0], [1], [0, 0, 1, 1], [], []>} : vector<8x16xf32>, vector<16x16xf32>, vector<8x16xf32> -> vector<8x16xf32>
    %423 = vector.broadcast %334 : vector<1x16xf32> to vector<8x16xf32>
    %424 = arith.addf %422, %423 : vector<8x16xf32>
    %425 = arith.mulf %410, %424 : vector<8x16xf32>
    %426 = arith.addf %421, %425 : vector<8x16xf32>
    %427 = math.tanh %426 : vector<8x16xf32>
    %cst_246 = arith.constant 1.000000e+00 : f32
    %428 = vector.broadcast %cst_246 : f32 to vector<8x16xf32>
    %429 = arith.subf %428, %420 : vector<8x16xf32>
    %430 = arith.mulf %429, %427 : vector<8x16xf32>
    %431 = arith.mulf %420, %400 : vector<8x16xf32>
    %432 = arith.addf %430, %431 : vector<8x16xf32>
    %c32_247 = arith.constant 32 : index
    %c0_248 = arith.constant 0 : index
    %433 = vector.load %arg8[%c32_247, %c0_248] : memref<64x16xf32, #tpu.memory_space<vmem>>, vector<8x16xf32>
    %cst_249 = arith.constant dense<0.000000e+00> : vector<8x16xf32>
    %434 = tpu.matmul %432, %324, %cst_249 {dimension_numbers = #tpu.dot_dimension_numbers<[1], [0], [0], [1], [0, 0, 1, 1], [], []>} : vector<8x16xf32>, vector<16x16xf32>, vector<8x16xf32> -> vector<8x16xf32>
    %435 = arith.addf %433, %434 : vector<8x16xf32>
    %436 = vector.broadcast %330 : vector<1x16xf32> to vector<8x16xf32>
    %437 = arith.addf %435, %436 : vector<8x16xf32>
    %438 = arith.negf %437 : vector<8x16xf32>
    %439 = math.exp %438 : vector<8x16xf32>
    %cst_250 = arith.constant 1.000000e+00 : f32
    %440 = vector.broadcast %cst_250 : f32 to vector<8x16xf32>
    %441 = arith.addf %440, %439 : vector<8x16xf32>
    %442 = arith.divf %440, %441 : vector<8x16xf32>
    %c32_251 = arith.constant 32 : index
    %c0_252 = arith.constant 0 : index
    %443 = vector.load %arg9[%c32_251, %c0_252] : memref<64x16xf32, #tpu.memory_space<vmem>>, vector<8x16xf32>
    %cst_253 = arith.constant dense<0.000000e+00> : vector<8x16xf32>
    %444 = tpu.matmul %432, %326, %cst_253 {dimension_numbers = #tpu.dot_dimension_numbers<[1], [0], [0], [1], [0, 0, 1, 1], [], []>} : vector<8x16xf32>, vector<16x16xf32>, vector<8x16xf32> -> vector<8x16xf32>
    %445 = arith.addf %443, %444 : vector<8x16xf32>
    %446 = vector.broadcast %332 : vector<1x16xf32> to vector<8x16xf32>
    %447 = arith.addf %445, %446 : vector<8x16xf32>
    %448 = arith.negf %447 : vector<8x16xf32>
    %449 = math.exp %448 : vector<8x16xf32>
    %cst_254 = arith.constant 1.000000e+00 : f32
    %450 = vector.broadcast %cst_254 : f32 to vector<8x16xf32>
    %451 = arith.addf %450, %449 : vector<8x16xf32>
    %452 = arith.divf %450, %451 : vector<8x16xf32>
    %c32_255 = arith.constant 32 : index
    %c0_256 = arith.constant 0 : index
    %453 = vector.load %arg10[%c32_255, %c0_256] : memref<64x16xf32, #tpu.memory_space<vmem>>, vector<8x16xf32>
    %cst_257 = arith.constant dense<0.000000e+00> : vector<8x16xf32>
    %454 = tpu.matmul %432, %328, %cst_257 {dimension_numbers = #tpu.dot_dimension_numbers<[1], [0], [0], [1], [0, 0, 1, 1], [], []>} : vector<8x16xf32>, vector<16x16xf32>, vector<8x16xf32> -> vector<8x16xf32>
    %455 = vector.broadcast %334 : vector<1x16xf32> to vector<8x16xf32>
    %456 = arith.addf %454, %455 : vector<8x16xf32>
    %457 = arith.mulf %442, %456 : vector<8x16xf32>
    %458 = arith.addf %453, %457 : vector<8x16xf32>
    %459 = math.tanh %458 : vector<8x16xf32>
    %cst_258 = arith.constant 1.000000e+00 : f32
    %460 = vector.broadcast %cst_258 : f32 to vector<8x16xf32>
    %461 = arith.subf %460, %452 : vector<8x16xf32>
    %462 = arith.mulf %461, %459 : vector<8x16xf32>
    %463 = arith.mulf %452, %432 : vector<8x16xf32>
    %464 = arith.addf %462, %463 : vector<8x16xf32>
    %c24_259 = arith.constant 24 : index
    %c0_260 = arith.constant 0 : index
    %465 = vector.load %arg8[%c24_259, %c0_260] : memref<64x16xf32, #tpu.memory_space<vmem>>, vector<8x16xf32>
    %cst_261 = arith.constant dense<0.000000e+00> : vector<8x16xf32>
    %466 = tpu.matmul %464, %324, %cst_261 {dimension_numbers = #tpu.dot_dimension_numbers<[1], [0], [0], [1], [0, 0, 1, 1], [], []>} : vector<8x16xf32>, vector<16x16xf32>, vector<8x16xf32> -> vector<8x16xf32>
    %467 = arith.addf %465, %466 : vector<8x16xf32>
    %468 = vector.broadcast %330 : vector<1x16xf32> to vector<8x16xf32>
    %469 = arith.addf %467, %468 : vector<8x16xf32>
    %470 = arith.negf %469 : vector<8x16xf32>
    %471 = math.exp %470 : vector<8x16xf32>
    %cst_262 = arith.constant 1.000000e+00 : f32
    %472 = vector.broadcast %cst_262 : f32 to vector<8x16xf32>
    %473 = arith.addf %472, %471 : vector<8x16xf32>
    %474 = arith.divf %472, %473 : vector<8x16xf32>
    %c24_263 = arith.constant 24 : index
    %c0_264 = arith.constant 0 : index
    %475 = vector.load %arg9[%c24_263, %c0_264] : memref<64x16xf32, #tpu.memory_space<vmem>>, vector<8x16xf32>
    %cst_265 = arith.constant dense<0.000000e+00> : vector<8x16xf32>
    %476 = tpu.matmul %464, %326, %cst_265 {dimension_numbers = #tpu.dot_dimension_numbers<[1], [0], [0], [1], [0, 0, 1, 1], [], []>} : vector<8x16xf32>, vector<16x16xf32>, vector<8x16xf32> -> vector<8x16xf32>
    %477 = arith.addf %475, %476 : vector<8x16xf32>
    %478 = vector.broadcast %332 : vector<1x16xf32> to vector<8x16xf32>
    %479 = arith.addf %477, %478 : vector<8x16xf32>
    %480 = arith.negf %479 : vector<8x16xf32>
    %481 = math.exp %480 : vector<8x16xf32>
    %cst_266 = arith.constant 1.000000e+00 : f32
    %482 = vector.broadcast %cst_266 : f32 to vector<8x16xf32>
    %483 = arith.addf %482, %481 : vector<8x16xf32>
    %484 = arith.divf %482, %483 : vector<8x16xf32>
    %c24_267 = arith.constant 24 : index
    %c0_268 = arith.constant 0 : index
    %485 = vector.load %arg10[%c24_267, %c0_268] : memref<64x16xf32, #tpu.memory_space<vmem>>, vector<8x16xf32>
    %cst_269 = arith.constant dense<0.000000e+00> : vector<8x16xf32>
    %486 = tpu.matmul %464, %328, %cst_269 {dimension_numbers = #tpu.dot_dimension_numbers<[1], [0], [0], [1], [0, 0, 1, 1], [], []>} : vector<8x16xf32>, vector<16x16xf32>, vector<8x16xf32> -> vector<8x16xf32>
    %487 = vector.broadcast %334 : vector<1x16xf32> to vector<8x16xf32>
    %488 = arith.addf %486, %487 : vector<8x16xf32>
    %489 = arith.mulf %474, %488 : vector<8x16xf32>
    %490 = arith.addf %485, %489 : vector<8x16xf32>
    %491 = math.tanh %490 : vector<8x16xf32>
    %cst_270 = arith.constant 1.000000e+00 : f32
    %492 = vector.broadcast %cst_270 : f32 to vector<8x16xf32>
    %493 = arith.subf %492, %484 : vector<8x16xf32>
    %494 = arith.mulf %493, %491 : vector<8x16xf32>
    %495 = arith.mulf %484, %464 : vector<8x16xf32>
    %496 = arith.addf %494, %495 : vector<8x16xf32>
    %c16_271 = arith.constant 16 : index
    %c0_272 = arith.constant 0 : index
    %497 = vector.load %arg8[%c16_271, %c0_272] : memref<64x16xf32, #tpu.memory_space<vmem>>, vector<8x16xf32>
    %cst_273 = arith.constant dense<0.000000e+00> : vector<8x16xf32>
    %498 = tpu.matmul %496, %324, %cst_273 {dimension_numbers = #tpu.dot_dimension_numbers<[1], [0], [0], [1], [0, 0, 1, 1], [], []>} : vector<8x16xf32>, vector<16x16xf32>, vector<8x16xf32> -> vector<8x16xf32>
    %499 = arith.addf %497, %498 : vector<8x16xf32>
    %500 = vector.broadcast %330 : vector<1x16xf32> to vector<8x16xf32>
    %501 = arith.addf %499, %500 : vector<8x16xf32>
    %502 = arith.negf %501 : vector<8x16xf32>
    %503 = math.exp %502 : vector<8x16xf32>
    %cst_274 = arith.constant 1.000000e+00 : f32
    %504 = vector.broadcast %cst_274 : f32 to vector<8x16xf32>
    %505 = arith.addf %504, %503 : vector<8x16xf32>
    %506 = arith.divf %504, %505 : vector<8x16xf32>
    %c16_275 = arith.constant 16 : index
    %c0_276 = arith.constant 0 : index
    %507 = vector.load %arg9[%c16_275, %c0_276] : memref<64x16xf32, #tpu.memory_space<vmem>>, vector<8x16xf32>
    %cst_277 = arith.constant dense<0.000000e+00> : vector<8x16xf32>
    %508 = tpu.matmul %496, %326, %cst_277 {dimension_numbers = #tpu.dot_dimension_numbers<[1], [0], [0], [1], [0, 0, 1, 1], [], []>} : vector<8x16xf32>, vector<16x16xf32>, vector<8x16xf32> -> vector<8x16xf32>
    %509 = arith.addf %507, %508 : vector<8x16xf32>
    %510 = vector.broadcast %332 : vector<1x16xf32> to vector<8x16xf32>
    %511 = arith.addf %509, %510 : vector<8x16xf32>
    %512 = arith.negf %511 : vector<8x16xf32>
    %513 = math.exp %512 : vector<8x16xf32>
    %cst_278 = arith.constant 1.000000e+00 : f32
    %514 = vector.broadcast %cst_278 : f32 to vector<8x16xf32>
    %515 = arith.addf %514, %513 : vector<8x16xf32>
    %516 = arith.divf %514, %515 : vector<8x16xf32>
    %c16_279 = arith.constant 16 : index
    %c0_280 = arith.constant 0 : index
    %517 = vector.load %arg10[%c16_279, %c0_280] : memref<64x16xf32, #tpu.memory_space<vmem>>, vector<8x16xf32>
    %cst_281 = arith.constant dense<0.000000e+00> : vector<8x16xf32>
    %518 = tpu.matmul %496, %328, %cst_281 {dimension_numbers = #tpu.dot_dimension_numbers<[1], [0], [0], [1], [0, 0, 1, 1], [], []>} : vector<8x16xf32>, vector<16x16xf32>, vector<8x16xf32> -> vector<8x16xf32>
    %519 = vector.broadcast %334 : vector<1x16xf32> to vector<8x16xf32>
    %520 = arith.addf %518, %519 : vector<8x16xf32>
    %521 = arith.mulf %506, %520 : vector<8x16xf32>
    %522 = arith.addf %517, %521 : vector<8x16xf32>
    %523 = math.tanh %522 : vector<8x16xf32>
    %cst_282 = arith.constant 1.000000e+00 : f32
    %524 = vector.broadcast %cst_282 : f32 to vector<8x16xf32>
    %525 = arith.subf %524, %516 : vector<8x16xf32>
    %526 = arith.mulf %525, %523 : vector<8x16xf32>
    %527 = arith.mulf %516, %496 : vector<8x16xf32>
    %528 = arith.addf %526, %527 : vector<8x16xf32>
    %c8_283 = arith.constant 8 : index
    %c0_284 = arith.constant 0 : index
    %529 = vector.load %arg8[%c8_283, %c0_284] : memref<64x16xf32, #tpu.memory_space<vmem>>, vector<8x16xf32>
    %cst_285 = arith.constant dense<0.000000e+00> : vector<8x16xf32>
    %530 = tpu.matmul %528, %324, %cst_285 {dimension_numbers = #tpu.dot_dimension_numbers<[1], [0], [0], [1], [0, 0, 1, 1], [], []>} : vector<8x16xf32>, vector<16x16xf32>, vector<8x16xf32> -> vector<8x16xf32>
    %531 = arith.addf %529, %530 : vector<8x16xf32>
    %532 = vector.broadcast %330 : vector<1x16xf32> to vector<8x16xf32>
    %533 = arith.addf %531, %532 : vector<8x16xf32>
    %534 = arith.negf %533 : vector<8x16xf32>
    %535 = math.exp %534 : vector<8x16xf32>
    %cst_286 = arith.constant 1.000000e+00 : f32
    %536 = vector.broadcast %cst_286 : f32 to vector<8x16xf32>
    %537 = arith.addf %536, %535 : vector<8x16xf32>
    %538 = arith.divf %536, %537 : vector<8x16xf32>
    %c8_287 = arith.constant 8 : index
    %c0_288 = arith.constant 0 : index
    %539 = vector.load %arg9[%c8_287, %c0_288] : memref<64x16xf32, #tpu.memory_space<vmem>>, vector<8x16xf32>
    %cst_289 = arith.constant dense<0.000000e+00> : vector<8x16xf32>
    %540 = tpu.matmul %528, %326, %cst_289 {dimension_numbers = #tpu.dot_dimension_numbers<[1], [0], [0], [1], [0, 0, 1, 1], [], []>} : vector<8x16xf32>, vector<16x16xf32>, vector<8x16xf32> -> vector<8x16xf32>
    %541 = arith.addf %539, %540 : vector<8x16xf32>
    %542 = vector.broadcast %332 : vector<1x16xf32> to vector<8x16xf32>
    %543 = arith.addf %541, %542 : vector<8x16xf32>
    %544 = arith.negf %543 : vector<8x16xf32>
    %545 = math.exp %544 : vector<8x16xf32>
    %cst_290 = arith.constant 1.000000e+00 : f32
    %546 = vector.broadcast %cst_290 : f32 to vector<8x16xf32>
    %547 = arith.addf %546, %545 : vector<8x16xf32>
    %548 = arith.divf %546, %547 : vector<8x16xf32>
    %c8_291 = arith.constant 8 : index
    %c0_292 = arith.constant 0 : index
    %549 = vector.load %arg10[%c8_291, %c0_292] : memref<64x16xf32, #tpu.memory_space<vmem>>, vector<8x16xf32>
    %cst_293 = arith.constant dense<0.000000e+00> : vector<8x16xf32>
    %550 = tpu.matmul %528, %328, %cst_293 {dimension_numbers = #tpu.dot_dimension_numbers<[1], [0], [0], [1], [0, 0, 1, 1], [], []>} : vector<8x16xf32>, vector<16x16xf32>, vector<8x16xf32> -> vector<8x16xf32>
    %551 = vector.broadcast %334 : vector<1x16xf32> to vector<8x16xf32>
    %552 = arith.addf %550, %551 : vector<8x16xf32>
    %553 = arith.mulf %538, %552 : vector<8x16xf32>
    %554 = arith.addf %549, %553 : vector<8x16xf32>
    %555 = math.tanh %554 : vector<8x16xf32>
    %cst_294 = arith.constant 1.000000e+00 : f32
    %556 = vector.broadcast %cst_294 : f32 to vector<8x16xf32>
    %557 = arith.subf %556, %548 : vector<8x16xf32>
    %558 = arith.mulf %557, %555 : vector<8x16xf32>
    %559 = arith.mulf %548, %528 : vector<8x16xf32>
    %560 = arith.addf %558, %559 : vector<8x16xf32>
    %c0_295 = arith.constant 0 : index
    %c0_296 = arith.constant 0 : index
    %561 = vector.load %arg8[%c0_295, %c0_296] : memref<64x16xf32, #tpu.memory_space<vmem>>, vector<8x16xf32>
    %cst_297 = arith.constant dense<0.000000e+00> : vector<8x16xf32>
    %562 = tpu.matmul %560, %324, %cst_297 {dimension_numbers = #tpu.dot_dimension_numbers<[1], [0], [0], [1], [0, 0, 1, 1], [], []>} : vector<8x16xf32>, vector<16x16xf32>, vector<8x16xf32> -> vector<8x16xf32>
    %563 = arith.addf %561, %562 : vector<8x16xf32>
    %564 = vector.broadcast %330 : vector<1x16xf32> to vector<8x16xf32>
    %565 = arith.addf %563, %564 : vector<8x16xf32>
    %566 = arith.negf %565 : vector<8x16xf32>
    %567 = math.exp %566 : vector<8x16xf32>
    %cst_298 = arith.constant 1.000000e+00 : f32
    %568 = vector.broadcast %cst_298 : f32 to vector<8x16xf32>
    %569 = arith.addf %568, %567 : vector<8x16xf32>
    %570 = arith.divf %568, %569 : vector<8x16xf32>
    %c0_299 = arith.constant 0 : index
    %c0_300 = arith.constant 0 : index
    %571 = vector.load %arg9[%c0_299, %c0_300] : memref<64x16xf32, #tpu.memory_space<vmem>>, vector<8x16xf32>
    %cst_301 = arith.constant dense<0.000000e+00> : vector<8x16xf32>
    %572 = tpu.matmul %560, %326, %cst_301 {dimension_numbers = #tpu.dot_dimension_numbers<[1], [0], [0], [1], [0, 0, 1, 1], [], []>} : vector<8x16xf32>, vector<16x16xf32>, vector<8x16xf32> -> vector<8x16xf32>
    %573 = arith.addf %571, %572 : vector<8x16xf32>
    %574 = vector.broadcast %332 : vector<1x16xf32> to vector<8x16xf32>
    %575 = arith.addf %573, %574 : vector<8x16xf32>
    %576 = arith.negf %575 : vector<8x16xf32>
    %577 = math.exp %576 : vector<8x16xf32>
    %cst_302 = arith.constant 1.000000e+00 : f32
    %578 = vector.broadcast %cst_302 : f32 to vector<8x16xf32>
    %579 = arith.addf %578, %577 : vector<8x16xf32>
    %580 = arith.divf %578, %579 : vector<8x16xf32>
    %c0_303 = arith.constant 0 : index
    %c0_304 = arith.constant 0 : index
    %581 = vector.load %arg10[%c0_303, %c0_304] : memref<64x16xf32, #tpu.memory_space<vmem>>, vector<8x16xf32>
    %cst_305 = arith.constant dense<0.000000e+00> : vector<8x16xf32>
    %582 = tpu.matmul %560, %328, %cst_305 {dimension_numbers = #tpu.dot_dimension_numbers<[1], [0], [0], [1], [0, 0, 1, 1], [], []>} : vector<8x16xf32>, vector<16x16xf32>, vector<8x16xf32> -> vector<8x16xf32>
    %583 = vector.broadcast %334 : vector<1x16xf32> to vector<8x16xf32>
    %584 = arith.addf %582, %583 : vector<8x16xf32>
    %585 = arith.mulf %570, %584 : vector<8x16xf32>
    %586 = arith.addf %581, %585 : vector<8x16xf32>
    %587 = math.tanh %586 : vector<8x16xf32>
    %cst_306 = arith.constant 1.000000e+00 : f32
    %588 = vector.broadcast %cst_306 : f32 to vector<8x16xf32>
    %589 = arith.subf %588, %580 : vector<8x16xf32>
    %590 = arith.mulf %589, %587 : vector<8x16xf32>
    %591 = arith.mulf %580, %560 : vector<8x16xf32>
    %592 = arith.addf %590, %591 : vector<8x16xf32>
    %c1_307 = arith.constant 1 : index
    %c0_308 = arith.constant 0 : index
    %c0_309 = arith.constant 0 : index
    %593 = vector.load %arg7[%c1_307, %c0_308, %c0_309] : memref<2x8x16xf32, #tpu.memory_space<vmem>>, vector<1x8x16xf32>
    %594 = vector.shape_cast %593 : vector<1x8x16xf32> to vector<8x16xf32>
    %595 = vector.shape_cast %592 : vector<8x16xf32> to vector<1x8x16xf32>
    tpu.vector_store %arg7[%c1_307, %c0_308, %c0_309], %595 {strides = array<i32>} : memref<2x8x16xf32, #tpu.memory_space<vmem>>, vector<1x8x16xf32>,
    return
  }
  func.func @transform_0(%arg0: i32) -> (i32, i32, i32) {
    %c0_i32 = arith.constant 0 : i32
    %c0_i32_0 = arith.constant 0 : i32
    %c0_i32_1 = arith.constant 0 : i32
    return %c0_i32, %arg0, %c0_i32_0 : i32, i32, i32
  }
  func.func @transform_1(%arg0: i32) -> (i32, i32, i32) {
    %c0_i32 = arith.constant 0 : i32
    %c0_i32_0 = arith.constant 0 : i32
    %c0_i32_1 = arith.constant 0 : i32
    return %c0_i32, %arg0, %c0_i32_0 : i32, i32, i32
  }
  func.func @transform_2(%arg0: i32) -> (i32, i32, i32, i32) {
    %c0_i32 = arith.constant 0 : i32
    %c0_i32_0 = arith.constant 0 : i32
    %c0_i32_1 = arith.constant 0 : i32
    %c0_i32_2 = arith.constant 0 : i32
    %c0_i32_3 = arith.constant 0 : i32
    return %c0_i32, %c0_i32_0, %c0_i32_1, %c0_i32_2 : i32, i32, i32, i32
  }
  func.func @transform_3(%arg0: i32) -> (i32, i32, i32, i32) {
    %c0_i32 = arith.constant 0 : i32
    %c0_i32_0 = arith.constant 0 : i32
    %c0_i32_1 = arith.constant 0 : i32
    %c0_i32_2 = arith.constant 0 : i32
    %c0_i32_3 = arith.constant 0 : i32
    return %c0_i32, %c0_i32_0, %c0_i32_1, %c0_i32_2 : i32, i32, i32, i32
  }
  func.func @transform_4(%arg0: i32) -> (i32, i32, i32, i32) {
    %c0_i32 = arith.constant 0 : i32
    %c0_i32_0 = arith.constant 0 : i32
    %c0_i32_1 = arith.constant 0 : i32
    %c0_i32_2 = arith.constant 0 : i32
    %c0_i32_3 = arith.constant 0 : i32
    return %c0_i32, %c0_i32_0, %c0_i32_1, %c0_i32_2 : i32, i32, i32, i32
  }
  func.func @transform_5(%arg0: i32) -> (i32, i32, i32, i32) {
    %c0_i32 = arith.constant 0 : i32
    %c0_i32_0 = arith.constant 0 : i32
    %c0_i32_1 = arith.constant 0 : i32
    %c0_i32_2 = arith.constant 0 : i32
    %c0_i32_3 = arith.constant 0 : i32
    return %c0_i32, %c0_i32_0, %c0_i32_1, %c0_i32_2 : i32, i32, i32, i32
  }
  func.func @transform_6(%arg0: i32) -> (i32, i32, i32) {
    %c0_i32 = arith.constant 0 : i32
    %c0_i32_0 = arith.constant 0 : i32
    %c0_i32_1 = arith.constant 0 : i32
    return %c0_i32, %arg0, %c0_i32_0 : i32, i32, i32
  }
}

module attributes {stable_mosaic.version = 11 : i64} {
  func.func @_gru_encoder_kernel(%arg0: i32, %arg1: memref<4x8x32xf32, #tpu.memory_space<vmem>>, %arg2: memref<2x8x4xf32, #tpu.memory_space<vmem>>, %arg3: memref<2x3x32x4xf32, #tpu.memory_space<vmem>>, %arg4: memref<2x3x4x4xf32, #tpu.memory_space<vmem>>, %arg5: memref<2x3x1x4xf32, #tpu.memory_space<vmem>>, %arg6: memref<2x3x1x4xf32, #tpu.memory_space<vmem>>, %arg7: memref<2x8x4xf32, #tpu.memory_space<vmem>>, %arg8: memref<32x4xf32, #tpu.memory_space<vmem>>, %arg9: memref<32x4xf32, #tpu.memory_space<vmem>>, %arg10: memref<32x4xf32, #tpu.memory_space<vmem>>) attributes {dimension_semantics = [#tpu.dimension_semantics<parallel>], iteration_bounds = array<i64: 1>, scalar_prefetch = 0 : i64, scratch_operands = 3 : i64, tpu.core_type = #tpu.core_type<tc>, window_params = [{transform_indices = @transform_0, window_bounds = array<i64: 4, 8, 32>}, {transform_indices = @transform_1, window_bounds = array<i64: 2, 8, 4>}, {pipeline_mode = #tpu.pipeline_mode<synchronous>, transform_indices = @transform_2, window_bounds = array<i64: 2, 3, 32, 4>}, {pipeline_mode = #tpu.pipeline_mode<synchronous>, transform_indices = @transform_3, window_bounds = array<i64: 2, 3, 4, 4>}, {pipeline_mode = #tpu.pipeline_mode<synchronous>, transform_indices = @transform_4, window_bounds = array<i64: 2, 3, 1, 4>}, {pipeline_mode = #tpu.pipeline_mode<synchronous>, transform_indices = @transform_5, window_bounds = array<i64: 2, 3, 1, 4>}, {transform_indices = @transform_6, window_bounds = array<i64: 2, 8, 4>}]} {
    %c0 = arith.constant 0 : index
    %c0_0 = arith.constant 0 : index
    %c0_1 = arith.constant 0 : index
    %0 = vector.load %arg1[%c0, %c0_0, %c0_1] : memref<4x8x32xf32, #tpu.memory_space<vmem>>, vector<4x8x32xf32>
    %1 = vector.shape_cast %0 : vector<4x8x32xf32> to vector<32x32xf32>
    %c0_2 = arith.constant 0 : index
    %c0_3 = arith.constant 0 : index
    %c0_4 = arith.constant 0 : index
    %c0_5 = arith.constant 0 : index
    %2 = vector.load %arg3[%c0_2, %c0_3, %c0_4, %c0_5] : memref<2x3x32x4xf32, #tpu.memory_space<vmem>>, vector<1x1x32x4xf32>
    %3 = vector.shape_cast %2 : vector<1x1x32x4xf32> to vector<32x4xf32>
    %cst = arith.constant dense<0.000000e+00> : vector<32x4xf32>
    %4 = tpu.matmul %1, %3, %cst {dimension_numbers = #tpu.dot_dimension_numbers<[1], [0], [0], [1], [0, 0, 1, 1], [], []>} : vector<32x32xf32>, vector<32x4xf32>, vector<32x4xf32> -> vector<32x4xf32>
    %c0_6 = arith.constant 0 : index
    %c0_7 = arith.constant 0 : index
    %c0_8 = arith.constant 0 : index
    %c0_9 = arith.constant 0 : index
    %5 = vector.load %arg5[%c0_6, %c0_7, %c0_8, %c0_9] : memref<2x3x1x4xf32, #tpu.memory_space<vmem>>, vector<1x1x1x4xf32>
    %6 = vector.shape_cast %5 : vector<1x1x1x4xf32> to vector<1x4xf32>
    %7 = vector.broadcast %6 : vector<1x4xf32> to vector<32x4xf32>
    %8 = arith.addf %4, %7 : vector<32x4xf32>
    %c0_10 = arith.constant 0 : index
    %c0_11 = arith.constant 0 : index
    %9 = vector.load %arg8[%c0_10, %c0_11] : memref<32x4xf32, #tpu.memory_space<vmem>>, vector<32x4xf32>
    tpu.vector_store %arg8[%c0_10, %c0_11], %8 {strides = array<i32>} : memref<32x4xf32, #tpu.memory_space<vmem>>, vector<32x4xf32>,
    %c0_12 = arith.constant 0 : index
    %c1 = arith.constant 1 : index
    %c0_13 = arith.constant 0 : index
    %c0_14 = arith.constant 0 : index
    %10 = vector.load %arg3[%c0_12, %c1, %c0_13, %c0_14] : memref<2x3x32x4xf32, #tpu.memory_space<vmem>>, vector<1x1x32x4xf32>
    %11 = vector.shape_cast %10 : vector<1x1x32x4xf32> to vector<32x4xf32>
    %cst_15 = arith.constant dense<0.000000e+00> : vector<32x4xf32>
    %12 = tpu.matmul %1, %11, %cst_15 {dimension_numbers = #tpu.dot_dimension_numbers<[1], [0], [0], [1], [0, 0, 1, 1], [], []>} : vector<32x32xf32>, vector<32x4xf32>, vector<32x4xf32> -> vector<32x4xf32>
    %c0_16 = arith.constant 0 : index
    %c1_17 = arith.constant 1 : index
    %c0_18 = arith.constant 0 : index
    %c0_19 = arith.constant 0 : index
    %13 = vector.load %arg5[%c0_16, %c1_17, %c0_18, %c0_19] : memref<2x3x1x4xf32, #tpu.memory_space<vmem>>, vector<1x1x1x4xf32>
    %14 = vector.shape_cast %13 : vector<1x1x1x4xf32> to vector<1x4xf32>
    %15 = vector.broadcast %14 : vector<1x4xf32> to vector<32x4xf32>
    %16 = arith.addf %12, %15 : vector<32x4xf32>
    %c0_20 = arith.constant 0 : index
    %c0_21 = arith.constant 0 : index
    %17 = vector.load %arg9[%c0_20, %c0_21] : memref<32x4xf32, #tpu.memory_space<vmem>>, vector<32x4xf32>
    tpu.vector_store %arg9[%c0_20, %c0_21], %16 {strides = array<i32>} : memref<32x4xf32, #tpu.memory_space<vmem>>, vector<32x4xf32>,
    %c0_22 = arith.constant 0 : index
    %c2 = arith.constant 2 : index
    %c0_23 = arith.constant 0 : index
    %c0_24 = arith.constant 0 : index
    %18 = vector.load %arg3[%c0_22, %c2, %c0_23, %c0_24] : memref<2x3x32x4xf32, #tpu.memory_space<vmem>>, vector<1x1x32x4xf32>
    %19 = vector.shape_cast %18 : vector<1x1x32x4xf32> to vector<32x4xf32>
    %cst_25 = arith.constant dense<0.000000e+00> : vector<32x4xf32>
    %20 = tpu.matmul %1, %19, %cst_25 {dimension_numbers = #tpu.dot_dimension_numbers<[1], [0], [0], [1], [0, 0, 1, 1], [], []>} : vector<32x32xf32>, vector<32x4xf32>, vector<32x4xf32> -> vector<32x4xf32>
    %c0_26 = arith.constant 0 : index
    %c2_27 = arith.constant 2 : index
    %c0_28 = arith.constant 0 : index
    %c0_29 = arith.constant 0 : index
    %21 = vector.load %arg5[%c0_26, %c2_27, %c0_28, %c0_29] : memref<2x3x1x4xf32, #tpu.memory_space<vmem>>, vector<1x1x1x4xf32>
    %22 = vector.shape_cast %21 : vector<1x1x1x4xf32> to vector<1x4xf32>
    %23 = vector.broadcast %22 : vector<1x4xf32> to vector<32x4xf32>
    %24 = arith.addf %20, %23 : vector<32x4xf32>
    %c0_30 = arith.constant 0 : index
    %c0_31 = arith.constant 0 : index
    %25 = vector.load %arg10[%c0_30, %c0_31] : memref<32x4xf32, #tpu.memory_space<vmem>>, vector<32x4xf32>
    tpu.vector_store %arg10[%c0_30, %c0_31], %24 {strides = array<i32>} : memref<32x4xf32, #tpu.memory_space<vmem>>, vector<32x4xf32>,
    %c0_32 = arith.constant 0 : index
    %c0_33 = arith.constant 0 : index
    %c0_34 = arith.constant 0 : index
    %c0_35 = arith.constant 0 : index
    %26 = vector.load %arg4[%c0_32, %c0_33, %c0_34, %c0_35] : memref<2x3x4x4xf32, #tpu.memory_space<vmem>>, vector<1x1x4x4xf32>
    %27 = vector.shape_cast %26 : vector<1x1x4x4xf32> to vector<4x4xf32>
    %c0_36 = arith.constant 0 : index
    %c1_37 = arith.constant 1 : index
    %c0_38 = arith.constant 0 : index
    %c0_39 = arith.constant 0 : index
    %28 = vector.load %arg4[%c0_36, %c1_37, %c0_38, %c0_39] : memref<2x3x4x4xf32, #tpu.memory_space<vmem>>, vector<1x1x4x4xf32>
    %29 = vector.shape_cast %28 : vector<1x1x4x4xf32> to vector<4x4xf32>
    %c0_40 = arith.constant 0 : index
    %c2_41 = arith.constant 2 : index
    %c0_42 = arith.constant 0 : index
    %c0_43 = arith.constant 0 : index
    %30 = vector.load %arg4[%c0_40, %c2_41, %c0_42, %c0_43] : memref<2x3x4x4xf32, #tpu.memory_space<vmem>>, vector<1x1x4x4xf32>
    %31 = vector.shape_cast %30 : vector<1x1x4x4xf32> to vector<4x4xf32>
    %c0_44 = arith.constant 0 : index
    %c0_45 = arith.constant 0 : index
    %c0_46 = arith.constant 0 : index
    %c0_47 = arith.constant 0 : index
    %32 = vector.load %arg6[%c0_44, %c0_45, %c0_46, %c0_47] : memref<2x3x1x4xf32, #tpu.memory_space<vmem>>, vector<1x1x1x4xf32>
    %33 = vector.shape_cast %32 : vector<1x1x1x4xf32> to vector<1x4xf32>
    %c0_48 = arith.constant 0 : index
    %c1_49 = arith.constant 1 : index
    %c0_50 = arith.constant 0 : index
    %c0_51 = arith.constant 0 : index
    %34 = vector.load %arg6[%c0_48, %c1_49, %c0_50, %c0_51] : memref<2x3x1x4xf32, #tpu.memory_space<vmem>>, vector<1x1x1x4xf32>
    %35 = vector.shape_cast %34 : vector<1x1x1x4xf32> to vector<1x4xf32>
    %c0_52 = arith.constant 0 : index
    %c2_53 = arith.constant 2 : index
    %c0_54 = arith.constant 0 : index
    %c0_55 = arith.constant 0 : index
    %36 = vector.load %arg6[%c0_52, %c2_53, %c0_54, %c0_55] : memref<2x3x1x4xf32, #tpu.memory_space<vmem>>, vector<1x1x1x4xf32>
    %37 = vector.shape_cast %36 : vector<1x1x1x4xf32> to vector<1x4xf32>
    %c0_56 = arith.constant 0 : index
    %c0_57 = arith.constant 0 : index
    %c0_58 = arith.constant 0 : index
    %38 = vector.load %arg2[%c0_56, %c0_57, %c0_58] : memref<2x8x4xf32, #tpu.memory_space<vmem>>, vector<1x8x4xf32>
    %39 = vector.shape_cast %38 : vector<1x8x4xf32> to vector<8x4xf32>
    %c0_59 = arith.constant 0 : index
    %c0_60 = arith.constant 0 : index
    %40 = vector.load %arg8[%c0_59, %c0_60] : memref<32x4xf32, #tpu.memory_space<vmem>>, vector<8x4xf32>
    %cst_61 = arith.constant dense<0.000000e+00> : vector<8x4xf32>
    %41 = tpu.matmul %39, %27, %cst_61 {dimension_numbers = #tpu.dot_dimension_numbers<[1], [0], [0], [1], [0, 0, 1, 1], [], []>} : vector<8x4xf32>, vector<4x4xf32>, vector<8x4xf32> -> vector<8x4xf32>
    %42 = arith.addf %40, %41 : vector<8x4xf32>
    %43 = vector.broadcast %33 : vector<1x4xf32> to vector<8x4xf32>
    %44 = arith.addf %42, %43 : vector<8x4xf32>
    %45 = arith.negf %44 : vector<8x4xf32>
    %46 = math.exp %45 : vector<8x4xf32>
    %cst_62 = arith.constant 1.000000e+00 : f32
    %47 = vector.broadcast %cst_62 : f32 to vector<8x4xf32>
    %48 = arith.addf %47, %46 : vector<8x4xf32>
    %49 = arith.divf %47, %48 : vector<8x4xf32>
    %c0_63 = arith.constant 0 : index
    %c0_64 = arith.constant 0 : index
    %50 = vector.load %arg9[%c0_63, %c0_64] : memref<32x4xf32, #tpu.memory_space<vmem>>, vector<8x4xf32>
    %cst_65 = arith.constant dense<0.000000e+00> : vector<8x4xf32>
    %51 = tpu.matmul %39, %29, %cst_65 {dimension_numbers = #tpu.dot_dimension_numbers<[1], [0], [0], [1], [0, 0, 1, 1], [], []>} : vector<8x4xf32>, vector<4x4xf32>, vector<8x4xf32> -> vector<8x4xf32>
    %52 = arith.addf %50, %51 : vector<8x4xf32>
    %53 = vector.broadcast %35 : vector<1x4xf32> to vector<8x4xf32>
    %54 = arith.addf %52, %53 : vector<8x4xf32>
    %55 = arith.negf %54 : vector<8x4xf32>
    %56 = math.exp %55 : vector<8x4xf32>
    %cst_66 = arith.constant 1.000000e+00 : f32
    %57 = vector.broadcast %cst_66 : f32 to vector<8x4xf32>
    %58 = arith.addf %57, %56 : vector<8x4xf32>
    %59 = arith.divf %57, %58 : vector<8x4xf32>
    %c0_67 = arith.constant 0 : index
    %c0_68 = arith.constant 0 : index
    %60 = vector.load %arg10[%c0_67, %c0_68] : memref<32x4xf32, #tpu.memory_space<vmem>>, vector<8x4xf32>
    %cst_69 = arith.constant dense<0.000000e+00> : vector<8x4xf32>
    %61 = tpu.matmul %39, %31, %cst_69 {dimension_numbers = #tpu.dot_dimension_numbers<[1], [0], [0], [1], [0, 0, 1, 1], [], []>} : vector<8x4xf32>, vector<4x4xf32>, vector<8x4xf32> -> vector<8x4xf32>
    %62 = vector.broadcast %37 : vector<1x4xf32> to vector<8x4xf32>
    %63 = arith.addf %61, %62 : vector<8x4xf32>
    %64 = arith.mulf %49, %63 : vector<8x4xf32>
    %65 = arith.addf %60, %64 : vector<8x4xf32>
    %66 = math.tanh %65 : vector<8x4xf32>
    %cst_70 = arith.constant 1.000000e+00 : f32
    %67 = vector.broadcast %cst_70 : f32 to vector<8x4xf32>
    %68 = arith.subf %67, %59 : vector<8x4xf32>
    %69 = arith.mulf %68, %66 : vector<8x4xf32>
    %70 = arith.mulf %59, %39 : vector<8x4xf32>
    %71 = arith.addf %69, %70 : vector<8x4xf32>
    %c8 = arith.constant 8 : index
    %c0_71 = arith.constant 0 : index
    %72 = vector.load %arg8[%c8, %c0_71] : memref<32x4xf32, #tpu.memory_space<vmem>>, vector<8x4xf32>
    %cst_72 = arith.constant dense<0.000000e+00> : vector<8x4xf32>
    %73 = tpu.matmul %71, %27, %cst_72 {dimension_numbers = #tpu.dot_dimension_numbers<[1], [0], [0], [1], [0, 0, 1, 1], [], []>} : vector<8x4xf32>, vector<4x4xf32>, vector<8x4xf32> -> vector<8x4xf32>
    %74 = arith.addf %72, %73 : vector<8x4xf32>
    %75 = vector.broadcast %33 : vector<1x4xf32> to vector<8x4xf32>
    %76 = arith.addf %74, %75 : vector<8x4xf32>
    %77 = arith.negf %76 : vector<8x4xf32>
    %78 = math.exp %77 : vector<8x4xf32>
    %cst_73 = arith.constant 1.000000e+00 : f32
    %79 = vector.broadcast %cst_73 : f32 to vector<8x4xf32>
    %80 = arith.addf %79, %78 : vector<8x4xf32>
    %81 = arith.divf %79, %80 : vector<8x4xf32>
    %c8_74 = arith.constant 8 : index
    %c0_75 = arith.constant 0 : index
    %82 = vector.load %arg9[%c8_74, %c0_75] : memref<32x4xf32, #tpu.memory_space<vmem>>, vector<8x4xf32>
    %cst_76 = arith.constant dense<0.000000e+00> : vector<8x4xf32>
    %83 = tpu.matmul %71, %29, %cst_76 {dimension_numbers = #tpu.dot_dimension_numbers<[1], [0], [0], [1], [0, 0, 1, 1], [], []>} : vector<8x4xf32>, vector<4x4xf32>, vector<8x4xf32> -> vector<8x4xf32>
    %84 = arith.addf %82, %83 : vector<8x4xf32>
    %85 = vector.broadcast %35 : vector<1x4xf32> to vector<8x4xf32>
    %86 = arith.addf %84, %85 : vector<8x4xf32>
    %87 = arith.negf %86 : vector<8x4xf32>
    %88 = math.exp %87 : vector<8x4xf32>
    %cst_77 = arith.constant 1.000000e+00 : f32
    %89 = vector.broadcast %cst_77 : f32 to vector<8x4xf32>
    %90 = arith.addf %89, %88 : vector<8x4xf32>
    %91 = arith.divf %89, %90 : vector<8x4xf32>
    %c8_78 = arith.constant 8 : index
    %c0_79 = arith.constant 0 : index
    %92 = vector.load %arg10[%c8_78, %c0_79] : memref<32x4xf32, #tpu.memory_space<vmem>>, vector<8x4xf32>
    %cst_80 = arith.constant dense<0.000000e+00> : vector<8x4xf32>
    %93 = tpu.matmul %71, %31, %cst_80 {dimension_numbers = #tpu.dot_dimension_numbers<[1], [0], [0], [1], [0, 0, 1, 1], [], []>} : vector<8x4xf32>, vector<4x4xf32>, vector<8x4xf32> -> vector<8x4xf32>
    %94 = vector.broadcast %37 : vector<1x4xf32> to vector<8x4xf32>
    %95 = arith.addf %93, %94 : vector<8x4xf32>
    %96 = arith.mulf %81, %95 : vector<8x4xf32>
    %97 = arith.addf %92, %96 : vector<8x4xf32>
    %98 = math.tanh %97 : vector<8x4xf32>
    %cst_81 = arith.constant 1.000000e+00 : f32
    %99 = vector.broadcast %cst_81 : f32 to vector<8x4xf32>
    %100 = arith.subf %99, %91 : vector<8x4xf32>
    %101 = arith.mulf %100, %98 : vector<8x4xf32>
    %102 = arith.mulf %91, %71 : vector<8x4xf32>
    %103 = arith.addf %101, %102 : vector<8x4xf32>
    %c16 = arith.constant 16 : index
    %c0_82 = arith.constant 0 : index
    %104 = vector.load %arg8[%c16, %c0_82] : memref<32x4xf32, #tpu.memory_space<vmem>>, vector<8x4xf32>
    %cst_83 = arith.constant dense<0.000000e+00> : vector<8x4xf32>
    %105 = tpu.matmul %103, %27, %cst_83 {dimension_numbers = #tpu.dot_dimension_numbers<[1], [0], [0], [1], [0, 0, 1, 1], [], []>} : vector<8x4xf32>, vector<4x4xf32>, vector<8x4xf32> -> vector<8x4xf32>
    %106 = arith.addf %104, %105 : vector<8x4xf32>
    %107 = vector.broadcast %33 : vector<1x4xf32> to vector<8x4xf32>
    %108 = arith.addf %106, %107 : vector<8x4xf32>
    %109 = arith.negf %108 : vector<8x4xf32>
    %110 = math.exp %109 : vector<8x4xf32>
    %cst_84 = arith.constant 1.000000e+00 : f32
    %111 = vector.broadcast %cst_84 : f32 to vector<8x4xf32>
    %112 = arith.addf %111, %110 : vector<8x4xf32>
    %113 = arith.divf %111, %112 : vector<8x4xf32>
    %c16_85 = arith.constant 16 : index
    %c0_86 = arith.constant 0 : index
    %114 = vector.load %arg9[%c16_85, %c0_86] : memref<32x4xf32, #tpu.memory_space<vmem>>, vector<8x4xf32>
    %cst_87 = arith.constant dense<0.000000e+00> : vector<8x4xf32>
    %115 = tpu.matmul %103, %29, %cst_87 {dimension_numbers = #tpu.dot_dimension_numbers<[1], [0], [0], [1], [0, 0, 1, 1], [], []>} : vector<8x4xf32>, vector<4x4xf32>, vector<8x4xf32> -> vector<8x4xf32>
    %116 = arith.addf %114, %115 : vector<8x4xf32>
    %117 = vector.broadcast %35 : vector<1x4xf32> to vector<8x4xf32>
    %118 = arith.addf %116, %117 : vector<8x4xf32>
    %119 = arith.negf %118 : vector<8x4xf32>
    %120 = math.exp %119 : vector<8x4xf32>
    %cst_88 = arith.constant 1.000000e+00 : f32
    %121 = vector.broadcast %cst_88 : f32 to vector<8x4xf32>
    %122 = arith.addf %121, %120 : vector<8x4xf32>
    %123 = arith.divf %121, %122 : vector<8x4xf32>
    %c16_89 = arith.constant 16 : index
    %c0_90 = arith.constant 0 : index
    %124 = vector.load %arg10[%c16_89, %c0_90] : memref<32x4xf32, #tpu.memory_space<vmem>>, vector<8x4xf32>
    %cst_91 = arith.constant dense<0.000000e+00> : vector<8x4xf32>
    %125 = tpu.matmul %103, %31, %cst_91 {dimension_numbers = #tpu.dot_dimension_numbers<[1], [0], [0], [1], [0, 0, 1, 1], [], []>} : vector<8x4xf32>, vector<4x4xf32>, vector<8x4xf32> -> vector<8x4xf32>
    %126 = vector.broadcast %37 : vector<1x4xf32> to vector<8x4xf32>
    %127 = arith.addf %125, %126 : vector<8x4xf32>
    %128 = arith.mulf %113, %127 : vector<8x4xf32>
    %129 = arith.addf %124, %128 : vector<8x4xf32>
    %130 = math.tanh %129 : vector<8x4xf32>
    %cst_92 = arith.constant 1.000000e+00 : f32
    %131 = vector.broadcast %cst_92 : f32 to vector<8x4xf32>
    %132 = arith.subf %131, %123 : vector<8x4xf32>
    %133 = arith.mulf %132, %130 : vector<8x4xf32>
    %134 = arith.mulf %123, %103 : vector<8x4xf32>
    %135 = arith.addf %133, %134 : vector<8x4xf32>
    %c24 = arith.constant 24 : index
    %c0_93 = arith.constant 0 : index
    %136 = vector.load %arg8[%c24, %c0_93] : memref<32x4xf32, #tpu.memory_space<vmem>>, vector<8x4xf32>
    %cst_94 = arith.constant dense<0.000000e+00> : vector<8x4xf32>
    %137 = tpu.matmul %135, %27, %cst_94 {dimension_numbers = #tpu.dot_dimension_numbers<[1], [0], [0], [1], [0, 0, 1, 1], [], []>} : vector<8x4xf32>, vector<4x4xf32>, vector<8x4xf32> -> vector<8x4xf32>
    %138 = arith.addf %136, %137 : vector<8x4xf32>
    %139 = vector.broadcast %33 : vector<1x4xf32> to vector<8x4xf32>
    %140 = arith.addf %138, %139 : vector<8x4xf32>
    %141 = arith.negf %140 : vector<8x4xf32>
    %142 = math.exp %141 : vector<8x4xf32>
    %cst_95 = arith.constant 1.000000e+00 : f32
    %143 = vector.broadcast %cst_95 : f32 to vector<8x4xf32>
    %144 = arith.addf %143, %142 : vector<8x4xf32>
    %145 = arith.divf %143, %144 : vector<8x4xf32>
    %c24_96 = arith.constant 24 : index
    %c0_97 = arith.constant 0 : index
    %146 = vector.load %arg9[%c24_96, %c0_97] : memref<32x4xf32, #tpu.memory_space<vmem>>, vector<8x4xf32>
    %cst_98 = arith.constant dense<0.000000e+00> : vector<8x4xf32>
    %147 = tpu.matmul %135, %29, %cst_98 {dimension_numbers = #tpu.dot_dimension_numbers<[1], [0], [0], [1], [0, 0, 1, 1], [], []>} : vector<8x4xf32>, vector<4x4xf32>, vector<8x4xf32> -> vector<8x4xf32>
    %148 = arith.addf %146, %147 : vector<8x4xf32>
    %149 = vector.broadcast %35 : vector<1x4xf32> to vector<8x4xf32>
    %150 = arith.addf %148, %149 : vector<8x4xf32>
    %151 = arith.negf %150 : vector<8x4xf32>
    %152 = math.exp %151 : vector<8x4xf32>
    %cst_99 = arith.constant 1.000000e+00 : f32
    %153 = vector.broadcast %cst_99 : f32 to vector<8x4xf32>
    %154 = arith.addf %153, %152 : vector<8x4xf32>
    %155 = arith.divf %153, %154 : vector<8x4xf32>
    %c24_100 = arith.constant 24 : index
    %c0_101 = arith.constant 0 : index
    %156 = vector.load %arg10[%c24_100, %c0_101] : memref<32x4xf32, #tpu.memory_space<vmem>>, vector<8x4xf32>
    %cst_102 = arith.constant dense<0.000000e+00> : vector<8x4xf32>
    %157 = tpu.matmul %135, %31, %cst_102 {dimension_numbers = #tpu.dot_dimension_numbers<[1], [0], [0], [1], [0, 0, 1, 1], [], []>} : vector<8x4xf32>, vector<4x4xf32>, vector<8x4xf32> -> vector<8x4xf32>
    %158 = vector.broadcast %37 : vector<1x4xf32> to vector<8x4xf32>
    %159 = arith.addf %157, %158 : vector<8x4xf32>
    %160 = arith.mulf %145, %159 : vector<8x4xf32>
    %161 = arith.addf %156, %160 : vector<8x4xf32>
    %162 = math.tanh %161 : vector<8x4xf32>
    %cst_103 = arith.constant 1.000000e+00 : f32
    %163 = vector.broadcast %cst_103 : f32 to vector<8x4xf32>
    %164 = arith.subf %163, %155 : vector<8x4xf32>
    %165 = arith.mulf %164, %162 : vector<8x4xf32>
    %166 = arith.mulf %155, %135 : vector<8x4xf32>
    %167 = arith.addf %165, %166 : vector<8x4xf32>
    %c0_104 = arith.constant 0 : index
    %c0_105 = arith.constant 0 : index
    %c0_106 = arith.constant 0 : index
    %168 = vector.load %arg7[%c0_104, %c0_105, %c0_106] : memref<2x8x4xf32, #tpu.memory_space<vmem>>, vector<1x8x4xf32>
    %169 = vector.shape_cast %168 : vector<1x8x4xf32> to vector<8x4xf32>
    %170 = vector.shape_cast %167 : vector<8x4xf32> to vector<1x8x4xf32>
    tpu.vector_store %arg7[%c0_104, %c0_105, %c0_106], %170 {strides = array<i32>} : memref<2x8x4xf32, #tpu.memory_space<vmem>>, vector<1x8x4xf32>,
    %c1_107 = arith.constant 1 : index
    %c0_108 = arith.constant 0 : index
    %c0_109 = arith.constant 0 : index
    %c0_110 = arith.constant 0 : index
    %171 = vector.load %arg3[%c1_107, %c0_108, %c0_109, %c0_110] : memref<2x3x32x4xf32, #tpu.memory_space<vmem>>, vector<1x1x32x4xf32>
    %172 = vector.shape_cast %171 : vector<1x1x32x4xf32> to vector<32x4xf32>
    %cst_111 = arith.constant dense<0.000000e+00> : vector<32x4xf32>
    %173 = tpu.matmul %1, %172, %cst_111 {dimension_numbers = #tpu.dot_dimension_numbers<[1], [0], [0], [1], [0, 0, 1, 1], [], []>} : vector<32x32xf32>, vector<32x4xf32>, vector<32x4xf32> -> vector<32x4xf32>
    %c1_112 = arith.constant 1 : index
    %c0_113 = arith.constant 0 : index
    %c0_114 = arith.constant 0 : index
    %c0_115 = arith.constant 0 : index
    %174 = vector.load %arg5[%c1_112, %c0_113, %c0_114, %c0_115] : memref<2x3x1x4xf32, #tpu.memory_space<vmem>>, vector<1x1x1x4xf32>
    %175 = vector.shape_cast %174 : vector<1x1x1x4xf32> to vector<1x4xf32>
    %176 = vector.broadcast %175 : vector<1x4xf32> to vector<32x4xf32>
    %177 = arith.addf %173, %176 : vector<32x4xf32>
    %c0_116 = arith.constant 0 : index
    %c0_117 = arith.constant 0 : index
    %178 = vector.load %arg8[%c0_116, %c0_117] : memref<32x4xf32, #tpu.memory_space<vmem>>, vector<32x4xf32>
    tpu.vector_store %arg8[%c0_116, %c0_117], %177 {strides = array<i32>} : memref<32x4xf32, #tpu.memory_space<vmem>>, vector<32x4xf32>,
    %c1_118 = arith.constant 1 : index
    %c1_119 = arith.constant 1 : index
    %c0_120 = arith.constant 0 : index
    %c0_121 = arith.constant 0 : index
    %179 = vector.load %arg3[%c1_118, %c1_119, %c0_120, %c0_121] : memref<2x3x32x4xf32, #tpu.memory_space<vmem>>, vector<1x1x32x4xf32>
    %180 = vector.shape_cast %179 : vector<1x1x32x4xf32> to vector<32x4xf32>
    %cst_122 = arith.constant dense<0.000000e+00> : vector<32x4xf32>
    %181 = tpu.matmul %1, %180, %cst_122 {dimension_numbers = #tpu.dot_dimension_numbers<[1], [0], [0], [1], [0, 0, 1, 1], [], []>} : vector<32x32xf32>, vector<32x4xf32>, vector<32x4xf32> -> vector<32x4xf32>
    %c1_123 = arith.constant 1 : index
    %c1_124 = arith.constant 1 : index
    %c0_125 = arith.constant 0 : index
    %c0_126 = arith.constant 0 : index
    %182 = vector.load %arg5[%c1_123, %c1_124, %c0_125, %c0_126] : memref<2x3x1x4xf32, #tpu.memory_space<vmem>>, vector<1x1x1x4xf32>
    %183 = vector.shape_cast %182 : vector<1x1x1x4xf32> to vector<1x4xf32>
    %184 = vector.broadcast %183 : vector<1x4xf32> to vector<32x4xf32>
    %185 = arith.addf %181, %184 : vector<32x4xf32>
    %c0_127 = arith.constant 0 : index
    %c0_128 = arith.constant 0 : index
    %186 = vector.load %arg9[%c0_127, %c0_128] : memref<32x4xf32, #tpu.memory_space<vmem>>, vector<32x4xf32>
    tpu.vector_store %arg9[%c0_127, %c0_128], %185 {strides = array<i32>} : memref<32x4xf32, #tpu.memory_space<vmem>>, vector<32x4xf32>,
    %c1_129 = arith.constant 1 : index
    %c2_130 = arith.constant 2 : index
    %c0_131 = arith.constant 0 : index
    %c0_132 = arith.constant 0 : index
    %187 = vector.load %arg3[%c1_129, %c2_130, %c0_131, %c0_132] : memref<2x3x32x4xf32, #tpu.memory_space<vmem>>, vector<1x1x32x4xf32>
    %188 = vector.shape_cast %187 : vector<1x1x32x4xf32> to vector<32x4xf32>
    %cst_133 = arith.constant dense<0.000000e+00> : vector<32x4xf32>
    %189 = tpu.matmul %1, %188, %cst_133 {dimension_numbers = #tpu.dot_dimension_numbers<[1], [0], [0], [1], [0, 0, 1, 1], [], []>} : vector<32x32xf32>, vector<32x4xf32>, vector<32x4xf32> -> vector<32x4xf32>
    %c1_134 = arith.constant 1 : index
    %c2_135 = arith.constant 2 : index
    %c0_136 = arith.constant 0 : index
    %c0_137 = arith.constant 0 : index
    %190 = vector.load %arg5[%c1_134, %c2_135, %c0_136, %c0_137] : memref<2x3x1x4xf32, #tpu.memory_space<vmem>>, vector<1x1x1x4xf32>
    %191 = vector.shape_cast %190 : vector<1x1x1x4xf32> to vector<1x4xf32>
    %192 = vector.broadcast %191 : vector<1x4xf32> to vector<32x4xf32>
    %193 = arith.addf %189, %192 : vector<32x4xf32>
    %c0_138 = arith.constant 0 : index
    %c0_139 = arith.constant 0 : index
    %194 = vector.load %arg10[%c0_138, %c0_139] : memref<32x4xf32, #tpu.memory_space<vmem>>, vector<32x4xf32>
    tpu.vector_store %arg10[%c0_138, %c0_139], %193 {strides = array<i32>} : memref<32x4xf32, #tpu.memory_space<vmem>>, vector<32x4xf32>,
    %c1_140 = arith.constant 1 : index
    %c0_141 = arith.constant 0 : index
    %c0_142 = arith.constant 0 : index
    %c0_143 = arith.constant 0 : index
    %195 = vector.load %arg4[%c1_140, %c0_141, %c0_142, %c0_143] : memref<2x3x4x4xf32, #tpu.memory_space<vmem>>, vector<1x1x4x4xf32>
    %196 = vector.shape_cast %195 : vector<1x1x4x4xf32> to vector<4x4xf32>
    %c1_144 = arith.constant 1 : index
    %c1_145 = arith.constant 1 : index
    %c0_146 = arith.constant 0 : index
    %c0_147 = arith.constant 0 : index
    %197 = vector.load %arg4[%c1_144, %c1_145, %c0_146, %c0_147] : memref<2x3x4x4xf32, #tpu.memory_space<vmem>>, vector<1x1x4x4xf32>
    %198 = vector.shape_cast %197 : vector<1x1x4x4xf32> to vector<4x4xf32>
    %c1_148 = arith.constant 1 : index
    %c2_149 = arith.constant 2 : index
    %c0_150 = arith.constant 0 : index
    %c0_151 = arith.constant 0 : index
    %199 = vector.load %arg4[%c1_148, %c2_149, %c0_150, %c0_151] : memref<2x3x4x4xf32, #tpu.memory_space<vmem>>, vector<1x1x4x4xf32>
    %200 = vector.shape_cast %199 : vector<1x1x4x4xf32> to vector<4x4xf32>
    %c1_152 = arith.constant 1 : index
    %c0_153 = arith.constant 0 : index
    %c0_154 = arith.constant 0 : index
    %c0_155 = arith.constant 0 : index
    %201 = vector.load %arg6[%c1_152, %c0_153, %c0_154, %c0_155] : memref<2x3x1x4xf32, #tpu.memory_space<vmem>>, vector<1x1x1x4xf32>
    %202 = vector.shape_cast %201 : vector<1x1x1x4xf32> to vector<1x4xf32>
    %c1_156 = arith.constant 1 : index
    %c1_157 = arith.constant 1 : index
    %c0_158 = arith.constant 0 : index
    %c0_159 = arith.constant 0 : index
    %203 = vector.load %arg6[%c1_156, %c1_157, %c0_158, %c0_159] : memref<2x3x1x4xf32, #tpu.memory_space<vmem>>, vector<1x1x1x4xf32>
    %204 = vector.shape_cast %203 : vector<1x1x1x4xf32> to vector<1x4xf32>
    %c1_160 = arith.constant 1 : index
    %c2_161 = arith.constant 2 : index
    %c0_162 = arith.constant 0 : index
    %c0_163 = arith.constant 0 : index
    %205 = vector.load %arg6[%c1_160, %c2_161, %c0_162, %c0_163] : memref<2x3x1x4xf32, #tpu.memory_space<vmem>>, vector<1x1x1x4xf32>
    %206 = vector.shape_cast %205 : vector<1x1x1x4xf32> to vector<1x4xf32>
    %c1_164 = arith.constant 1 : index
    %c0_165 = arith.constant 0 : index
    %c0_166 = arith.constant 0 : index
    %207 = vector.load %arg2[%c1_164, %c0_165, %c0_166] : memref<2x8x4xf32, #tpu.memory_space<vmem>>, vector<1x8x4xf32>
    %208 = vector.shape_cast %207 : vector<1x8x4xf32> to vector<8x4xf32>
    %c24_167 = arith.constant 24 : index
    %c0_168 = arith.constant 0 : index
    %209 = vector.load %arg8[%c24_167, %c0_168] : memref<32x4xf32, #tpu.memory_space<vmem>>, vector<8x4xf32>
    %cst_169 = arith.constant dense<0.000000e+00> : vector<8x4xf32>
    %210 = tpu.matmul %208, %196, %cst_169 {dimension_numbers = #tpu.dot_dimension_numbers<[1], [0], [0], [1], [0, 0, 1, 1], [], []>} : vector<8x4xf32>, vector<4x4xf32>, vector<8x4xf32> -> vector<8x4xf32>
    %211 = arith.addf %209, %210 : vector<8x4xf32>
    %212 = vector.broadcast %202 : vector<1x4xf32> to vector<8x4xf32>
    %213 = arith.addf %211, %212 : vector<8x4xf32>
    %214 = arith.negf %213 : vector<8x4xf32>
    %215 = math.exp %214 : vector<8x4xf32>
    %cst_170 = arith.constant 1.000000e+00 : f32
    %216 = vector.broadcast %cst_170 : f32 to vector<8x4xf32>
    %217 = arith.addf %216, %215 : vector<8x4xf32>
    %218 = arith.divf %216, %217 : vector<8x4xf32>
    %c24_171 = arith.constant 24 : index
    %c0_172 = arith.constant 0 : index
    %219 = vector.load %arg9[%c24_171, %c0_172] : memref<32x4xf32, #tpu.memory_space<vmem>>, vector<8x4xf32>
    %cst_173 = arith.constant dense<0.000000e+00> : vector<8x4xf32>
    %220 = tpu.matmul %208, %198, %cst_173 {dimension_numbers = #tpu.dot_dimension_numbers<[1], [0], [0], [1], [0, 0, 1, 1], [], []>} : vector<8x4xf32>, vector<4x4xf32>, vector<8x4xf32> -> vector<8x4xf32>
    %221 = arith.addf %219, %220 : vector<8x4xf32>
    %222 = vector.broadcast %204 : vector<1x4xf32> to vector<8x4xf32>
    %223 = arith.addf %221, %222 : vector<8x4xf32>
    %224 = arith.negf %223 : vector<8x4xf32>
    %225 = math.exp %224 : vector<8x4xf32>
    %cst_174 = arith.constant 1.000000e+00 : f32
    %226 = vector.broadcast %cst_174 : f32 to vector<8x4xf32>
    %227 = arith.addf %226, %225 : vector<8x4xf32>
    %228 = arith.divf %226, %227 : vector<8x4xf32>
    %c24_175 = arith.constant 24 : index
    %c0_176 = arith.constant 0 : index
    %229 = vector.load %arg10[%c24_175, %c0_176] : memref<32x4xf32, #tpu.memory_space<vmem>>, vector<8x4xf32>
    %cst_177 = arith.constant dense<0.000000e+00> : vector<8x4xf32>
    %230 = tpu.matmul %208, %200, %cst_177 {dimension_numbers = #tpu.dot_dimension_numbers<[1], [0], [0], [1], [0, 0, 1, 1], [], []>} : vector<8x4xf32>, vector<4x4xf32>, vector<8x4xf32> -> vector<8x4xf32>
    %231 = vector.broadcast %206 : vector<1x4xf32> to vector<8x4xf32>
    %232 = arith.addf %230, %231 : vector<8x4xf32>
    %233 = arith.mulf %218, %232 : vector<8x4xf32>
    %234 = arith.addf %229, %233 : vector<8x4xf32>
    %235 = math.tanh %234 : vector<8x4xf32>
    %cst_178 = arith.constant 1.000000e+00 : f32
    %236 = vector.broadcast %cst_178 : f32 to vector<8x4xf32>
    %237 = arith.subf %236, %228 : vector<8x4xf32>
    %238 = arith.mulf %237, %235 : vector<8x4xf32>
    %239 = arith.mulf %228, %208 : vector<8x4xf32>
    %240 = arith.addf %238, %239 : vector<8x4xf32>
    %c16_179 = arith.constant 16 : index
    %c0_180 = arith.constant 0 : index
    %241 = vector.load %arg8[%c16_179, %c0_180] : memref<32x4xf32, #tpu.memory_space<vmem>>, vector<8x4xf32>
    %cst_181 = arith.constant dense<0.000000e+00> : vector<8x4xf32>
    %242 = tpu.matmul %240, %196, %cst_181 {dimension_numbers = #tpu.dot_dimension_numbers<[1], [0], [0], [1], [0, 0, 1, 1], [], []>} : vector<8x4xf32>, vector<4x4xf32>, vector<8x4xf32> -> vector<8x4xf32>
    %243 = arith.addf %241, %242 : vector<8x4xf32>
    %244 = vector.broadcast %202 : vector<1x4xf32> to vector<8x4xf32>
    %245 = arith.addf %243, %244 : vector<8x4xf32>
    %246 = arith.negf %245 : vector<8x4xf32>
    %247 = math.exp %246 : vector<8x4xf32>
    %cst_182 = arith.constant 1.000000e+00 : f32
    %248 = vector.broadcast %cst_182 : f32 to vector<8x4xf32>
    %249 = arith.addf %248, %247 : vector<8x4xf32>
    %250 = arith.divf %248, %249 : vector<8x4xf32>
    %c16_183 = arith.constant 16 : index
    %c0_184 = arith.constant 0 : index
    %251 = vector.load %arg9[%c16_183, %c0_184] : memref<32x4xf32, #tpu.memory_space<vmem>>, vector<8x4xf32>
    %cst_185 = arith.constant dense<0.000000e+00> : vector<8x4xf32>
    %252 = tpu.matmul %240, %198, %cst_185 {dimension_numbers = #tpu.dot_dimension_numbers<[1], [0], [0], [1], [0, 0, 1, 1], [], []>} : vector<8x4xf32>, vector<4x4xf32>, vector<8x4xf32> -> vector<8x4xf32>
    %253 = arith.addf %251, %252 : vector<8x4xf32>
    %254 = vector.broadcast %204 : vector<1x4xf32> to vector<8x4xf32>
    %255 = arith.addf %253, %254 : vector<8x4xf32>
    %256 = arith.negf %255 : vector<8x4xf32>
    %257 = math.exp %256 : vector<8x4xf32>
    %cst_186 = arith.constant 1.000000e+00 : f32
    %258 = vector.broadcast %cst_186 : f32 to vector<8x4xf32>
    %259 = arith.addf %258, %257 : vector<8x4xf32>
    %260 = arith.divf %258, %259 : vector<8x4xf32>
    %c16_187 = arith.constant 16 : index
    %c0_188 = arith.constant 0 : index
    %261 = vector.load %arg10[%c16_187, %c0_188] : memref<32x4xf32, #tpu.memory_space<vmem>>, vector<8x4xf32>
    %cst_189 = arith.constant dense<0.000000e+00> : vector<8x4xf32>
    %262 = tpu.matmul %240, %200, %cst_189 {dimension_numbers = #tpu.dot_dimension_numbers<[1], [0], [0], [1], [0, 0, 1, 1], [], []>} : vector<8x4xf32>, vector<4x4xf32>, vector<8x4xf32> -> vector<8x4xf32>
    %263 = vector.broadcast %206 : vector<1x4xf32> to vector<8x4xf32>
    %264 = arith.addf %262, %263 : vector<8x4xf32>
    %265 = arith.mulf %250, %264 : vector<8x4xf32>
    %266 = arith.addf %261, %265 : vector<8x4xf32>
    %267 = math.tanh %266 : vector<8x4xf32>
    %cst_190 = arith.constant 1.000000e+00 : f32
    %268 = vector.broadcast %cst_190 : f32 to vector<8x4xf32>
    %269 = arith.subf %268, %260 : vector<8x4xf32>
    %270 = arith.mulf %269, %267 : vector<8x4xf32>
    %271 = arith.mulf %260, %240 : vector<8x4xf32>
    %272 = arith.addf %270, %271 : vector<8x4xf32>
    %c8_191 = arith.constant 8 : index
    %c0_192 = arith.constant 0 : index
    %273 = vector.load %arg8[%c8_191, %c0_192] : memref<32x4xf32, #tpu.memory_space<vmem>>, vector<8x4xf32>
    %cst_193 = arith.constant dense<0.000000e+00> : vector<8x4xf32>
    %274 = tpu.matmul %272, %196, %cst_193 {dimension_numbers = #tpu.dot_dimension_numbers<[1], [0], [0], [1], [0, 0, 1, 1], [], []>} : vector<8x4xf32>, vector<4x4xf32>, vector<8x4xf32> -> vector<8x4xf32>
    %275 = arith.addf %273, %274 : vector<8x4xf32>
    %276 = vector.broadcast %202 : vector<1x4xf32> to vector<8x4xf32>
    %277 = arith.addf %275, %276 : vector<8x4xf32>
    %278 = arith.negf %277 : vector<8x4xf32>
    %279 = math.exp %278 : vector<8x4xf32>
    %cst_194 = arith.constant 1.000000e+00 : f32
    %280 = vector.broadcast %cst_194 : f32 to vector<8x4xf32>
    %281 = arith.addf %280, %279 : vector<8x4xf32>
    %282 = arith.divf %280, %281 : vector<8x4xf32>
    %c8_195 = arith.constant 8 : index
    %c0_196 = arith.constant 0 : index
    %283 = vector.load %arg9[%c8_195, %c0_196] : memref<32x4xf32, #tpu.memory_space<vmem>>, vector<8x4xf32>
    %cst_197 = arith.constant dense<0.000000e+00> : vector<8x4xf32>
    %284 = tpu.matmul %272, %198, %cst_197 {dimension_numbers = #tpu.dot_dimension_numbers<[1], [0], [0], [1], [0, 0, 1, 1], [], []>} : vector<8x4xf32>, vector<4x4xf32>, vector<8x4xf32> -> vector<8x4xf32>
    %285 = arith.addf %283, %284 : vector<8x4xf32>
    %286 = vector.broadcast %204 : vector<1x4xf32> to vector<8x4xf32>
    %287 = arith.addf %285, %286 : vector<8x4xf32>
    %288 = arith.negf %287 : vector<8x4xf32>
    %289 = math.exp %288 : vector<8x4xf32>
    %cst_198 = arith.constant 1.000000e+00 : f32
    %290 = vector.broadcast %cst_198 : f32 to vector<8x4xf32>
    %291 = arith.addf %290, %289 : vector<8x4xf32>
    %292 = arith.divf %290, %291 : vector<8x4xf32>
    %c8_199 = arith.constant 8 : index
    %c0_200 = arith.constant 0 : index
    %293 = vector.load %arg10[%c8_199, %c0_200] : memref<32x4xf32, #tpu.memory_space<vmem>>, vector<8x4xf32>
    %cst_201 = arith.constant dense<0.000000e+00> : vector<8x4xf32>
    %294 = tpu.matmul %272, %200, %cst_201 {dimension_numbers = #tpu.dot_dimension_numbers<[1], [0], [0], [1], [0, 0, 1, 1], [], []>} : vector<8x4xf32>, vector<4x4xf32>, vector<8x4xf32> -> vector<8x4xf32>
    %295 = vector.broadcast %206 : vector<1x4xf32> to vector<8x4xf32>
    %296 = arith.addf %294, %295 : vector<8x4xf32>
    %297 = arith.mulf %282, %296 : vector<8x4xf32>
    %298 = arith.addf %293, %297 : vector<8x4xf32>
    %299 = math.tanh %298 : vector<8x4xf32>
    %cst_202 = arith.constant 1.000000e+00 : f32
    %300 = vector.broadcast %cst_202 : f32 to vector<8x4xf32>
    %301 = arith.subf %300, %292 : vector<8x4xf32>
    %302 = arith.mulf %301, %299 : vector<8x4xf32>
    %303 = arith.mulf %292, %272 : vector<8x4xf32>
    %304 = arith.addf %302, %303 : vector<8x4xf32>
    %c0_203 = arith.constant 0 : index
    %c0_204 = arith.constant 0 : index
    %305 = vector.load %arg8[%c0_203, %c0_204] : memref<32x4xf32, #tpu.memory_space<vmem>>, vector<8x4xf32>
    %cst_205 = arith.constant dense<0.000000e+00> : vector<8x4xf32>
    %306 = tpu.matmul %304, %196, %cst_205 {dimension_numbers = #tpu.dot_dimension_numbers<[1], [0], [0], [1], [0, 0, 1, 1], [], []>} : vector<8x4xf32>, vector<4x4xf32>, vector<8x4xf32> -> vector<8x4xf32>
    %307 = arith.addf %305, %306 : vector<8x4xf32>
    %308 = vector.broadcast %202 : vector<1x4xf32> to vector<8x4xf32>
    %309 = arith.addf %307, %308 : vector<8x4xf32>
    %310 = arith.negf %309 : vector<8x4xf32>
    %311 = math.exp %310 : vector<8x4xf32>
    %cst_206 = arith.constant 1.000000e+00 : f32
    %312 = vector.broadcast %cst_206 : f32 to vector<8x4xf32>
    %313 = arith.addf %312, %311 : vector<8x4xf32>
    %314 = arith.divf %312, %313 : vector<8x4xf32>
    %c0_207 = arith.constant 0 : index
    %c0_208 = arith.constant 0 : index
    %315 = vector.load %arg9[%c0_207, %c0_208] : memref<32x4xf32, #tpu.memory_space<vmem>>, vector<8x4xf32>
    %cst_209 = arith.constant dense<0.000000e+00> : vector<8x4xf32>
    %316 = tpu.matmul %304, %198, %cst_209 {dimension_numbers = #tpu.dot_dimension_numbers<[1], [0], [0], [1], [0, 0, 1, 1], [], []>} : vector<8x4xf32>, vector<4x4xf32>, vector<8x4xf32> -> vector<8x4xf32>
    %317 = arith.addf %315, %316 : vector<8x4xf32>
    %318 = vector.broadcast %204 : vector<1x4xf32> to vector<8x4xf32>
    %319 = arith.addf %317, %318 : vector<8x4xf32>
    %320 = arith.negf %319 : vector<8x4xf32>
    %321 = math.exp %320 : vector<8x4xf32>
    %cst_210 = arith.constant 1.000000e+00 : f32
    %322 = vector.broadcast %cst_210 : f32 to vector<8x4xf32>
    %323 = arith.addf %322, %321 : vector<8x4xf32>
    %324 = arith.divf %322, %323 : vector<8x4xf32>
    %c0_211 = arith.constant 0 : index
    %c0_212 = arith.constant 0 : index
    %325 = vector.load %arg10[%c0_211, %c0_212] : memref<32x4xf32, #tpu.memory_space<vmem>>, vector<8x4xf32>
    %cst_213 = arith.constant dense<0.000000e+00> : vector<8x4xf32>
    %326 = tpu.matmul %304, %200, %cst_213 {dimension_numbers = #tpu.dot_dimension_numbers<[1], [0], [0], [1], [0, 0, 1, 1], [], []>} : vector<8x4xf32>, vector<4x4xf32>, vector<8x4xf32> -> vector<8x4xf32>
    %327 = vector.broadcast %206 : vector<1x4xf32> to vector<8x4xf32>
    %328 = arith.addf %326, %327 : vector<8x4xf32>
    %329 = arith.mulf %314, %328 : vector<8x4xf32>
    %330 = arith.addf %325, %329 : vector<8x4xf32>
    %331 = math.tanh %330 : vector<8x4xf32>
    %cst_214 = arith.constant 1.000000e+00 : f32
    %332 = vector.broadcast %cst_214 : f32 to vector<8x4xf32>
    %333 = arith.subf %332, %324 : vector<8x4xf32>
    %334 = arith.mulf %333, %331 : vector<8x4xf32>
    %335 = arith.mulf %324, %304 : vector<8x4xf32>
    %336 = arith.addf %334, %335 : vector<8x4xf32>
    %c1_215 = arith.constant 1 : index
    %c0_216 = arith.constant 0 : index
    %c0_217 = arith.constant 0 : index
    %337 = vector.load %arg7[%c1_215, %c0_216, %c0_217] : memref<2x8x4xf32, #tpu.memory_space<vmem>>, vector<1x8x4xf32>
    %338 = vector.shape_cast %337 : vector<1x8x4xf32> to vector<8x4xf32>
    %339 = vector.shape_cast %336 : vector<8x4xf32> to vector<1x8x4xf32>
    tpu.vector_store %arg7[%c1_215, %c0_216, %c0_217], %339 {strides = array<i32>} : memref<2x8x4xf32, #tpu.memory_space<vmem>>, vector<1x8x4xf32>,
    return
  }
  func.func @transform_0(%arg0: i32) -> (i32, i32, i32) {
    %c0_i32 = arith.constant 0 : i32
    %c0_i32_0 = arith.constant 0 : i32
    %c0_i32_1 = arith.constant 0 : i32
    return %c0_i32, %arg0, %c0_i32_0 : i32, i32, i32
  }
  func.func @transform_1(%arg0: i32) -> (i32, i32, i32) {
    %c0_i32 = arith.constant 0 : i32
    %c0_i32_0 = arith.constant 0 : i32
    %c0_i32_1 = arith.constant 0 : i32
    return %c0_i32, %arg0, %c0_i32_0 : i32, i32, i32
  }
  func.func @transform_2(%arg0: i32) -> (i32, i32, i32, i32) {
    %c0_i32 = arith.constant 0 : i32
    %c0_i32_0 = arith.constant 0 : i32
    %c0_i32_1 = arith.constant 0 : i32
    %c0_i32_2 = arith.constant 0 : i32
    %c0_i32_3 = arith.constant 0 : i32
    return %c0_i32, %c0_i32_0, %c0_i32_1, %c0_i32_2 : i32, i32, i32, i32
  }
  func.func @transform_3(%arg0: i32) -> (i32, i32, i32, i32) {
    %c0_i32 = arith.constant 0 : i32
    %c0_i32_0 = arith.constant 0 : i32
    %c0_i32_1 = arith.constant 0 : i32
    %c0_i32_2 = arith.constant 0 : i32
    %c0_i32_3 = arith.constant 0 : i32
    return %c0_i32, %c0_i32_0, %c0_i32_1, %c0_i32_2 : i32, i32, i32, i32
  }
  func.func @transform_4(%arg0: i32) -> (i32, i32, i32, i32) {
    %c0_i32 = arith.constant 0 : i32
    %c0_i32_0 = arith.constant 0 : i32
    %c0_i32_1 = arith.constant 0 : i32
    %c0_i32_2 = arith.constant 0 : i32
    %c0_i32_3 = arith.constant 0 : i32
    return %c0_i32, %c0_i32_0, %c0_i32_1, %c0_i32_2 : i32, i32, i32, i32
  }
  func.func @transform_5(%arg0: i32) -> (i32, i32, i32, i32) {
    %c0_i32 = arith.constant 0 : i32
    %c0_i32_0 = arith.constant 0 : i32
    %c0_i32_1 = arith.constant 0 : i32
    %c0_i32_2 = arith.constant 0 : i32
    %c0_i32_3 = arith.constant 0 : i32
    return %c0_i32, %c0_i32_0, %c0_i32_1, %c0_i32_2 : i32, i32, i32, i32
  }
  func.func @transform_6(%arg0: i32) -> (i32, i32, i32) {
    %c0_i32 = arith.constant 0 : i32
    %c0_i32_0 = arith.constant 0 : i32
    %c0_i32_1 = arith.constant 0 : i32
    return %c0_i32, %arg0, %c0_i32_0 : i32, i32, i32
  }
}

module attributes {stable_mosaic.version = 11 : i64} {
  func.func @kernel(%arg0: i32, %arg1: memref<2x8x4xf32, #tpu.memory_space<vmem>>, %arg2: memref<2x3x4x4xf32, #tpu.memory_space<vmem>>, %arg3: memref<2x3x1x4xf32, #tpu.memory_space<vmem>>, %arg4: memref<2x3x1x4xf32, #tpu.memory_space<vmem>>, %arg5: memref<4x32xf32, #tpu.memory_space<vmem>>, %arg6: memref<4x32xf32, #tpu.memory_space<vmem>>, %arg7: memref<1x32xf32, #tpu.memory_space<vmem>>, %arg8: memref<4x8x32xf32, #tpu.memory_space<vmem>>, %arg9: memref<32x4xf32, #tpu.memory_space<vmem>>, %arg10: memref<32x4xf32, #tpu.memory_space<vmem>>) attributes {dimension_semantics = [#tpu.dimension_semantics<parallel>], iteration_bounds = array<i64: 1>, scalar_prefetch = 0 : i64, scratch_operands = 2 : i64, tpu.core_type = #tpu.core_type<tc>, window_params = [{transform_indices = @transform_0, window_bounds = array<i64: 2, 8, 4>}, {pipeline_mode = #tpu.pipeline_mode<synchronous>, transform_indices = @transform_1, window_bounds = array<i64: 2, 3, 4, 4>}, {pipeline_mode = #tpu.pipeline_mode<synchronous>, transform_indices = @transform_2, window_bounds = array<i64: 2, 3, 1, 4>}, {pipeline_mode = #tpu.pipeline_mode<synchronous>, transform_indices = @transform_3, window_bounds = array<i64: 2, 3, 1, 4>}, {pipeline_mode = #tpu.pipeline_mode<synchronous>, transform_indices = @transform_4, window_bounds = array<i64: 4, 32>}, {pipeline_mode = #tpu.pipeline_mode<synchronous>, transform_indices = @transform_5, window_bounds = array<i64: 4, 32>}, {pipeline_mode = #tpu.pipeline_mode<synchronous>, transform_indices = @transform_6, window_bounds = array<i64: 1, 32>}, {transform_indices = @transform_7, window_bounds = array<i64: 4, 8, 32>}]} {
    %c0 = arith.constant 0 : index
    %c0_0 = arith.constant 0 : index
    %c0_1 = arith.constant 0 : index
    %c0_2 = arith.constant 0 : index
    %0 = vector.load %arg2[%c0, %c0_0, %c0_1, %c0_2] : memref<2x3x4x4xf32, #tpu.memory_space<vmem>>, vector<1x1x4x4xf32>
    %1 = vector.shape_cast %0 : vector<1x1x4x4xf32> to vector<4x4xf32>
    %c0_3 = arith.constant 0 : index
    %c1 = arith.constant 1 : index
    %c0_4 = arith.constant 0 : index
    %c0_5 = arith.constant 0 : index
    %2 = vector.load %arg2[%c0_3, %c1, %c0_4, %c0_5] : memref<2x3x4x4xf32, #tpu.memory_space<vmem>>, vector<1x1x4x4xf32>
    %3 = vector.shape_cast %2 : vector<1x1x4x4xf32> to vector<4x4xf32>
    %c0_6 = arith.constant 0 : index
    %c2 = arith.constant 2 : index
    %c0_7 = arith.constant 0 : index
    %c0_8 = arith.constant 0 : index
    %4 = vector.load %arg2[%c0_6, %c2, %c0_7, %c0_8] : memref<2x3x4x4xf32, #tpu.memory_space<vmem>>, vector<1x1x4x4xf32>
    %5 = vector.shape_cast %4 : vector<1x1x4x4xf32> to vector<4x4xf32>
    %c0_9 = arith.constant 0 : index
    %c0_10 = arith.constant 0 : index
    %c0_11 = arith.constant 0 : index
    %c0_12 = arith.constant 0 : index
    %6 = vector.load %arg3[%c0_9, %c0_10, %c0_11, %c0_12] : memref<2x3x1x4xf32, #tpu.memory_space<vmem>>, vector<1x1x1x4xf32>
    %7 = vector.shape_cast %6 : vector<1x1x1x4xf32> to vector<1x4xf32>
    %c0_13 = arith.constant 0 : index
    %c0_14 = arith.constant 0 : index
    %c0_15 = arith.constant 0 : index
    %c0_16 = arith.constant 0 : index
    %8 = vector.load %arg4[%c0_13, %c0_14, %c0_15, %c0_16] : memref<2x3x1x4xf32, #tpu.memory_space<vmem>>, vector<1x1x1x4xf32>
    %9 = vector.shape_cast %8 : vector<1x1x1x4xf32> to vector<1x4xf32>
    %10 = arith.addf %7, %9 : vector<1x4xf32>
    %c0_17 = arith.constant 0 : index
    %c1_18 = arith.constant 1 : index
    %c0_19 = arith.constant 0 : index
    %c0_20 = arith.constant 0 : index
    %11 = vector.load %arg3[%c0_17, %c1_18, %c0_19, %c0_20] : memref<2x3x1x4xf32, #tpu.memory_space<vmem>>, vector<1x1x1x4xf32>
    %12 = vector.shape_cast %11 : vector<1x1x1x4xf32> to vector<1x4xf32>
    %c0_21 = arith.constant 0 : index
    %c1_22 = arith.constant 1 : index
    %c0_23 = arith.constant 0 : index
    %c0_24 = arith.constant 0 : index
    %13 = vector.load %arg4[%c0_21, %c1_22, %c0_23, %c0_24] : memref<2x3x1x4xf32, #tpu.memory_space<vmem>>, vector<1x1x1x4xf32>
    %14 = vector.shape_cast %13 : vector<1x1x1x4xf32> to vector<1x4xf32>
    %15 = arith.addf %12, %14 : vector<1x4xf32>
    %c0_25 = arith.constant 0 : index
    %c2_26 = arith.constant 2 : index
    %c0_27 = arith.constant 0 : index
    %c0_28 = arith.constant 0 : index
    %16 = vector.load %arg3[%c0_25, %c2_26, %c0_27, %c0_28] : memref<2x3x1x4xf32, #tpu.memory_space<vmem>>, vector<1x1x1x4xf32>
    %17 = vector.shape_cast %16 : vector<1x1x1x4xf32> to vector<1x4xf32>
    %c0_29 = arith.constant 0 : index
    %c2_30 = arith.constant 2 : index
    %c0_31 = arith.constant 0 : index
    %c0_32 = arith.constant 0 : index
    %18 = vector.load %arg4[%c0_29, %c2_30, %c0_31, %c0_32] : memref<2x3x1x4xf32, #tpu.memory_space<vmem>>, vector<1x1x1x4xf32>
    %19 = vector.shape_cast %18 : vector<1x1x1x4xf32> to vector<1x4xf32>
    %c0_33 = arith.constant 0 : index
    %c0_34 = arith.constant 0 : index
    %c0_35 = arith.constant 0 : index
    %20 = vector.load %arg1[%c0_33, %c0_34, %c0_35] : memref<2x8x4xf32, #tpu.memory_space<vmem>>, vector<1x8x4xf32>
    %21 = vector.shape_cast %20 : vector<1x8x4xf32> to vector<8x4xf32>
    %cst = arith.constant dense<0.000000e+00> : vector<8x4xf32>
    %22 = tpu.matmul %21, %1, %cst {dimension_numbers = #tpu.dot_dimension_numbers<[1], [0], [0], [1], [0, 0, 1, 1], [], []>} : vector<8x4xf32>, vector<4x4xf32>, vector<8x4xf32> -> vector<8x4xf32>
    %23 = vector.broadcast %10 : vector<1x4xf32> to vector<8x4xf32>
    %24 = arith.addf %22, %23 : vector<8x4xf32>
    %25 = arith.negf %24 : vector<8x4xf32>
    %26 = math.exp %25 : vector<8x4xf32>
    %cst_36 = arith.constant 1.000000e+00 : f32
    %27 = vector.broadcast %cst_36 : f32 to vector<8x4xf32>
    %28 = arith.addf %27, %26 : vector<8x4xf32>
    %29 = arith.divf %27, %28 : vector<8x4xf32>
    %cst_37 = arith.constant dense<0.000000e+00> : vector<8x4xf32>
    %30 = tpu.matmul %21, %3, %cst_37 {dimension_numbers = #tpu.dot_dimension_numbers<[1], [0], [0], [1], [0, 0, 1, 1], [], []>} : vector<8x4xf32>, vector<4x4xf32>, vector<8x4xf32> -> vector<8x4xf32>
    %31 = vector.broadcast %15 : vector<1x4xf32> to vector<8x4xf32>
    %32 = arith.addf %30, %31 : vector<8x4xf32>
    %33 = arith.negf %32 : vector<8x4xf32>
    %34 = math.exp %33 : vector<8x4xf32>
    %cst_38 = arith.constant 1.000000e+00 : f32
    %35 = vector.broadcast %cst_38 : f32 to vector<8x4xf32>
    %36 = arith.addf %35, %34 : vector<8x4xf32>
    %37 = arith.divf %35, %36 : vector<8x4xf32>
    %cst_39 = arith.constant dense<0.000000e+00> : vector<8x4xf32>
    %38 = tpu.matmul %21, %5, %cst_39 {dimension_numbers = #tpu.dot_dimension_numbers<[1], [0], [0], [1], [0, 0, 1, 1], [], []>} : vector<8x4xf32>, vector<4x4xf32>, vector<8x4xf32> -> vector<8x4xf32>
    %39 = vector.broadcast %19 : vector<1x4xf32> to vector<8x4xf32>
    %40 = arith.addf %38, %39 : vector<8x4xf32>
    %41 = arith.mulf %29, %40 : vector<8x4xf32>
    %42 = vector.broadcast %17 : vector<1x4xf32> to vector<8x4xf32>
    %43 = arith.addf %42, %41 : vector<8x4xf32>
    %44 = math.tanh %43 : vector<8x4xf32>
    %cst_40 = arith.constant 1.000000e+00 : f32
    %45 = vector.broadcast %cst_40 : f32 to vector<8x4xf32>
    %46 = arith.subf %45, %37 : vector<8x4xf32>
    %47 = arith.mulf %46, %44 : vector<8x4xf32>
    %48 = arith.mulf %37, %21 : vector<8x4xf32>
    %49 = arith.addf %47, %48 : vector<8x4xf32>
    %c0_41 = arith.constant 0 : index
    %c0_42 = arith.constant 0 : index
    %50 = vector.load %arg9[%c0_41, %c0_42] : memref<32x4xf32, #tpu.memory_space<vmem>>, vector<8x4xf32>
    tpu.vector_store %arg9[%c0_41, %c0_42], %49 {strides = array<i32>} : memref<32x4xf32, #tpu.memory_space<vmem>>, vector<8x4xf32>,
    %cst_43 = arith.constant dense<0.000000e+00> : vector<8x4xf32>
    %51 = tpu.matmul %49, %1, %cst_43 {dimension_numbers = #tpu.dot_dimension_numbers<[1], [0], [0], [1], [0, 0, 1, 1], [], []>} : vector<8x4xf32>, vector<4x4xf32>, vector<8x4xf32> -> vector<8x4xf32>
    %52 = vector.broadcast %10 : vector<1x4xf32> to vector<8x4xf32>
    %53 = arith.addf %51, %52 : vector<8x4xf32>
    %54 = arith.negf %53 : vector<8x4xf32>
    %55 = math.exp %54 : vector<8x4xf32>
    %cst_44 = arith.constant 1.000000e+00 : f32
    %56 = vector.broadcast %cst_44 : f32 to vector<8x4xf32>
    %57 = arith.addf %56, %55 : vector<8x4xf32>
    %58 = arith.divf %56, %57 : vector<8x4xf32>
    %cst_45 = arith.constant dense<0.000000e+00> : vector<8x4xf32>
    %59 = tpu.matmul %49, %3, %cst_45 {dimension_numbers = #tpu.dot_dimension_numbers<[1], [0], [0], [1], [0, 0, 1, 1], [], []>} : vector<8x4xf32>, vector<4x4xf32>, vector<8x4xf32> -> vector<8x4xf32>
    %60 = vector.broadcast %15 : vector<1x4xf32> to vector<8x4xf32>
    %61 = arith.addf %59, %60 : vector<8x4xf32>
    %62 = arith.negf %61 : vector<8x4xf32>
    %63 = math.exp %62 : vector<8x4xf32>
    %cst_46 = arith.constant 1.000000e+00 : f32
    %64 = vector.broadcast %cst_46 : f32 to vector<8x4xf32>
    %65 = arith.addf %64, %63 : vector<8x4xf32>
    %66 = arith.divf %64, %65 : vector<8x4xf32>
    %cst_47 = arith.constant dense<0.000000e+00> : vector<8x4xf32>
    %67 = tpu.matmul %49, %5, %cst_47 {dimension_numbers = #tpu.dot_dimension_numbers<[1], [0], [0], [1], [0, 0, 1, 1], [], []>} : vector<8x4xf32>, vector<4x4xf32>, vector<8x4xf32> -> vector<8x4xf32>
    %68 = vector.broadcast %19 : vector<1x4xf32> to vector<8x4xf32>
    %69 = arith.addf %67, %68 : vector<8x4xf32>
    %70 = arith.mulf %58, %69 : vector<8x4xf32>
    %71 = vector.broadcast %17 : vector<1x4xf32> to vector<8x4xf32>
    %72 = arith.addf %71, %70 : vector<8x4xf32>
    %73 = math.tanh %72 : vector<8x4xf32>
    %cst_48 = arith.constant 1.000000e+00 : f32
    %74 = vector.broadcast %cst_48 : f32 to vector<8x4xf32>
    %75 = arith.subf %74, %66 : vector<8x4xf32>
    %76 = arith.mulf %75, %73 : vector<8x4xf32>
    %77 = arith.mulf %66, %49 : vector<8x4xf32>
    %78 = arith.addf %76, %77 : vector<8x4xf32>
    %c8 = arith.constant 8 : index
    %c0_49 = arith.constant 0 : index
    %79 = vector.load %arg9[%c8, %c0_49] : memref<32x4xf32, #tpu.memory_space<vmem>>, vector<8x4xf32>
    tpu.vector_store %arg9[%c8, %c0_49], %78 {strides = array<i32>} : memref<32x4xf32, #tpu.memory_space<vmem>>, vector<8x4xf32>,
    %cst_50 = arith.constant dense<0.000000e+00> : vector<8x4xf32>
    %80 = tpu.matmul %78, %1, %cst_50 {dimension_numbers = #tpu.dot_dimension_numbers<[1], [0], [0], [1], [0, 0, 1, 1], [], []>} : vector<8x4xf32>, vector<4x4xf32>, vector<8x4xf32> -> vector<8x4xf32>
    %81 = vector.broadcast %10 : vector<1x4xf32> to vector<8x4xf32>
    %82 = arith.addf %80, %81 : vector<8x4xf32>
    %83 = arith.negf %82 : vector<8x4xf32>
    %84 = math.exp %83 : vector<8x4xf32>
    %cst_51 = arith.constant 1.000000e+00 : f32
    %85 = vector.broadcast %cst_51 : f32 to vector<8x4xf32>
    %86 = arith.addf %85, %84 : vector<8x4xf32>
    %87 = arith.divf %85, %86 : vector<8x4xf32>
    %cst_52 = arith.constant dense<0.000000e+00> : vector<8x4xf32>
    %88 = tpu.matmul %78, %3, %cst_52 {dimension_numbers = #tpu.dot_dimension_numbers<[1], [0], [0], [1], [0, 0, 1, 1], [], []>} : vector<8x4xf32>, vector<4x4xf32>, vector<8x4xf32> -> vector<8x4xf32>
    %89 = vector.broadcast %15 : vector<1x4xf32> to vector<8x4xf32>
    %90 = arith.addf %88, %89 : vector<8x4xf32>
    %91 = arith.negf %90 : vector<8x4xf32>
    %92 = math.exp %91 : vector<8x4xf32>
    %cst_53 = arith.constant 1.000000e+00 : f32
    %93 = vector.broadcast %cst_53 : f32 to vector<8x4xf32>
    %94 = arith.addf %93, %92 : vector<8x4xf32>
    %95 = arith.divf %93, %94 : vector<8x4xf32>
    %cst_54 = arith.constant dense<0.000000e+00> : vector<8x4xf32>
    %96 = tpu.matmul %78, %5, %cst_54 {dimension_numbers = #tpu.dot_dimension_numbers<[1], [0], [0], [1], [0, 0, 1, 1], [], []>} : vector<8x4xf32>, vector<4x4xf32>, vector<8x4xf32> -> vector<8x4xf32>
    %97 = vector.broadcast %19 : vector<1x4xf32> to vector<8x4xf32>
    %98 = arith.addf %96, %97 : vector<8x4xf32>
    %99 = arith.mulf %87, %98 : vector<8x4xf32>
    %100 = vector.broadcast %17 : vector<1x4xf32> to vector<8x4xf32>
    %101 = arith.addf %100, %99 : vector<8x4xf32>
    %102 = math.tanh %101 : vector<8x4xf32>
    %cst_55 = arith.constant 1.000000e+00 : f32
    %103 = vector.broadcast %cst_55 : f32 to vector<8x4xf32>
    %104 = arith.subf %103, %95 : vector<8x4xf32>
    %105 = arith.mulf %104, %102 : vector<8x4xf32>
    %106 = arith.mulf %95, %78 : vector<8x4xf32>
    %107 = arith.addf %105, %106 : vector<8x4xf32>
    %c16 = arith.constant 16 : index
    %c0_56 = arith.constant 0 : index
    %108 = vector.load %arg9[%c16, %c0_56] : memref<32x4xf32, #tpu.memory_space<vmem>>, vector<8x4xf32>
    tpu.vector_store %arg9[%c16, %c0_56], %107 {strides = array<i32>} : memref<32x4xf32, #tpu.memory_space<vmem>>, vector<8x4xf32>,
    %cst_57 = arith.constant dense<0.000000e+00> : vector<8x4xf32>
    %109 = tpu.matmul %107, %1, %cst_57 {dimension_numbers = #tpu.dot_dimension_numbers<[1], [0], [0], [1], [0, 0, 1, 1], [], []>} : vector<8x4xf32>, vector<4x4xf32>, vector<8x4xf32> -> vector<8x4xf32>
    %110 = vector.broadcast %10 : vector<1x4xf32> to vector<8x4xf32>
    %111 = arith.addf %109, %110 : vector<8x4xf32>
    %112 = arith.negf %111 : vector<8x4xf32>
    %113 = math.exp %112 : vector<8x4xf32>
    %cst_58 = arith.constant 1.000000e+00 : f32
    %114 = vector.broadcast %cst_58 : f32 to vector<8x4xf32>
    %115 = arith.addf %114, %113 : vector<8x4xf32>
    %116 = arith.divf %114, %115 : vector<8x4xf32>
    %cst_59 = arith.constant dense<0.000000e+00> : vector<8x4xf32>
    %117 = tpu.matmul %107, %3, %cst_59 {dimension_numbers = #tpu.dot_dimension_numbers<[1], [0], [0], [1], [0, 0, 1, 1], [], []>} : vector<8x4xf32>, vector<4x4xf32>, vector<8x4xf32> -> vector<8x4xf32>
    %118 = vector.broadcast %15 : vector<1x4xf32> to vector<8x4xf32>
    %119 = arith.addf %117, %118 : vector<8x4xf32>
    %120 = arith.negf %119 : vector<8x4xf32>
    %121 = math.exp %120 : vector<8x4xf32>
    %cst_60 = arith.constant 1.000000e+00 : f32
    %122 = vector.broadcast %cst_60 : f32 to vector<8x4xf32>
    %123 = arith.addf %122, %121 : vector<8x4xf32>
    %124 = arith.divf %122, %123 : vector<8x4xf32>
    %cst_61 = arith.constant dense<0.000000e+00> : vector<8x4xf32>
    %125 = tpu.matmul %107, %5, %cst_61 {dimension_numbers = #tpu.dot_dimension_numbers<[1], [0], [0], [1], [0, 0, 1, 1], [], []>} : vector<8x4xf32>, vector<4x4xf32>, vector<8x4xf32> -> vector<8x4xf32>
    %126 = vector.broadcast %19 : vector<1x4xf32> to vector<8x4xf32>
    %127 = arith.addf %125, %126 : vector<8x4xf32>
    %128 = arith.mulf %116, %127 : vector<8x4xf32>
    %129 = vector.broadcast %17 : vector<1x4xf32> to vector<8x4xf32>
    %130 = arith.addf %129, %128 : vector<8x4xf32>
    %131 = math.tanh %130 : vector<8x4xf32>
    %cst_62 = arith.constant 1.000000e+00 : f32
    %132 = vector.broadcast %cst_62 : f32 to vector<8x4xf32>
    %133 = arith.subf %132, %124 : vector<8x4xf32>
    %134 = arith.mulf %133, %131 : vector<8x4xf32>
    %135 = arith.mulf %124, %107 : vector<8x4xf32>
    %136 = arith.addf %134, %135 : vector<8x4xf32>
    %c24 = arith.constant 24 : index
    %c0_63 = arith.constant 0 : index
    %137 = vector.load %arg9[%c24, %c0_63] : memref<32x4xf32, #tpu.memory_space<vmem>>, vector<8x4xf32>
    tpu.vector_store %arg9[%c24, %c0_63], %136 {strides = array<i32>} : memref<32x4xf32, #tpu.memory_space<vmem>>, vector<8x4xf32>,
    %c1_64 = arith.constant 1 : index
    %c0_65 = arith.constant 0 : index
    %c0_66 = arith.constant 0 : index
    %c0_67 = arith.constant 0 : index
    %138 = vector.load %arg2[%c1_64, %c0_65, %c0_66, %c0_67] : memref<2x3x4x4xf32, #tpu.memory_space<vmem>>, vector<1x1x4x4xf32>
    %139 = vector.shape_cast %138 : vector<1x1x4x4xf32> to vector<4x4xf32>
    %c1_68 = arith.constant 1 : index
    %c1_69 = arith.constant 1 : index
    %c0_70 = arith.constant 0 : index
    %c0_71 = arith.constant 0 : index
    %140 = vector.load %arg2[%c1_68, %c1_69, %c0_70, %c0_71] : memref<2x3x4x4xf32, #tpu.memory_space<vmem>>, vector<1x1x4x4xf32>
    %141 = vector.shape_cast %140 : vector<1x1x4x4xf32> to vector<4x4xf32>
    %c1_72 = arith.constant 1 : index
    %c2_73 = arith.constant 2 : index
    %c0_74 = arith.constant 0 : index
    %c0_75 = arith.constant 0 : index
    %142 = vector.load %arg2[%c1_72, %c2_73, %c0_74, %c0_75] : memref<2x3x4x4xf32, #tpu.memory_space<vmem>>, vector<1x1x4x4xf32>
    %143 = vector.shape_cast %142 : vector<1x1x4x4xf32> to vector<4x4xf32>
    %c1_76 = arith.constant 1 : index
    %c0_77 = arith.constant 0 : index
    %c0_78 = arith.constant 0 : index
    %c0_79 = arith.constant 0 : index
    %144 = vector.load %arg3[%c1_76, %c0_77, %c0_78, %c0_79] : memref<2x3x1x4xf32, #tpu.memory_space<vmem>>, vector<1x1x1x4xf32>
    %145 = vector.shape_cast %144 : vector<1x1x1x4xf32> to vector<1x4xf32>
    %c1_80 = arith.constant 1 : index
    %c0_81 = arith.constant 0 : index
    %c0_82 = arith.constant 0 : index
    %c0_83 = arith.constant 0 : index
    %146 = vector.load %arg4[%c1_80, %c0_81, %c0_82, %c0_83] : memref<2x3x1x4xf32, #tpu.memory_space<vmem>>, vector<1x1x1x4xf32>
    %147 = vector.shape_cast %146 : vector<1x1x1x4xf32> to vector<1x4xf32>
    %148 = arith.addf %145, %147 : vector<1x4xf32>
    %c1_84 = arith.constant 1 : index
    %c1_85 = arith.constant 1 : index
    %c0_86 = arith.constant 0 : index
    %c0_87 = arith.constant 0 : index
    %149 = vector.load %arg3[%c1_84, %c1_85, %c0_86, %c0_87] : memref<2x3x1x4xf32, #tpu.memory_space<vmem>>, vector<1x1x1x4xf32>
    %150 = vector.shape_cast %149 : vector<1x1x1x4xf32> to vector<1x4xf32>
    %c1_88 = arith.constant 1 : index
    %c1_89 = arith.constant 1 : index
    %c0_90 = arith.constant 0 : index
    %c0_91 = arith.constant 0 : index
    %151 = vector.load %arg4[%c1_88, %c1_89, %c0_90, %c0_91] : memref<2x3x1x4xf32, #tpu.memory_space<vmem>>, vector<1x1x1x4xf32>
    %152 = vector.shape_cast %151 : vector<1x1x1x4xf32> to vector<1x4xf32>
    %153 = arith.addf %150, %152 : vector<1x4xf32>
    %c1_92 = arith.constant 1 : index
    %c2_93 = arith.constant 2 : index
    %c0_94 = arith.constant 0 : index
    %c0_95 = arith.constant 0 : index
    %154 = vector.load %arg3[%c1_92, %c2_93, %c0_94, %c0_95] : memref<2x3x1x4xf32, #tpu.memory_space<vmem>>, vector<1x1x1x4xf32>
    %155 = vector.shape_cast %154 : vector<1x1x1x4xf32> to vector<1x4xf32>
    %c1_96 = arith.constant 1 : index
    %c2_97 = arith.constant 2 : index
    %c0_98 = arith.constant 0 : index
    %c0_99 = arith.constant 0 : index
    %156 = vector.load %arg4[%c1_96, %c2_97, %c0_98, %c0_99] : memref<2x3x1x4xf32, #tpu.memory_space<vmem>>, vector<1x1x1x4xf32>
    %157 = vector.shape_cast %156 : vector<1x1x1x4xf32> to vector<1x4xf32>
    %c1_100 = arith.constant 1 : index
    %c0_101 = arith.constant 0 : index
    %c0_102 = arith.constant 0 : index
    %158 = vector.load %arg1[%c1_100, %c0_101, %c0_102] : memref<2x8x4xf32, #tpu.memory_space<vmem>>, vector<1x8x4xf32>
    %159 = vector.shape_cast %158 : vector<1x8x4xf32> to vector<8x4xf32>
    %cst_103 = arith.constant dense<0.000000e+00> : vector<8x4xf32>
    %160 = tpu.matmul %159, %139, %cst_103 {dimension_numbers = #tpu.dot_dimension_numbers<[1], [0], [0], [1], [0, 0, 1, 1], [], []>} : vector<8x4xf32>, vector<4x4xf32>, vector<8x4xf32> -> vector<8x4xf32>
    %161 = vector.broadcast %148 : vector<1x4xf32> to vector<8x4xf32>
    %162 = arith.addf %160, %161 : vector<8x4xf32>
    %163 = arith.negf %162 : vector<8x4xf32>
    %164 = math.exp %163 : vector<8x4xf32>
    %cst_104 = arith.constant 1.000000e+00 : f32
    %165 = vector.broadcast %cst_104 : f32 to vector<8x4xf32>
    %166 = arith.addf %165, %164 : vector<8x4xf32>
    %167 = arith.divf %165, %166 : vector<8x4xf32>
    %cst_105 = arith.constant dense<0.000000e+00> : vector<8x4xf32>
    %168 = tpu.matmul %159, %141, %cst_105 {dimension_numbers = #tpu.dot_dimension_numbers<[1], [0], [0], [1], [0, 0, 1, 1], [], []>} : vector<8x4xf32>, vector<4x4xf32>, vector<8x4xf32> -> vector<8x4xf32>
    %169 = vector.broadcast %153 : vector<1x4xf32> to vector<8x4xf32>
    %170 = arith.addf %168, %169 : vector<8x4xf32>
    %171 = arith.negf %170 : vector<8x4xf32>
    %172 = math.exp %171 : vector<8x4xf32>
    %cst_106 = arith.constant 1.000000e+00 : f32
    %173 = vector.broadcast %cst_106 : f32 to vector<8x4xf32>
    %174 = arith.addf %173, %172 : vector<8x4xf32>
    %175 = arith.divf %173, %174 : vector<8x4xf32>
    %cst_107 = arith.constant dense<0.000000e+00> : vector<8x4xf32>
    %176 = tpu.matmul %159, %143, %cst_107 {dimension_numbers = #tpu.dot_dimension_numbers<[1], [0], [0], [1], [0, 0, 1, 1], [], []>} : vector<8x4xf32>, vector<4x4xf32>, vector<8x4xf32> -> vector<8x4xf32>
    %177 = vector.broadcast %157 : vector<1x4xf32> to vector<8x4xf32>
    %178 = arith.addf %176, %177 : vector<8x4xf32>
    %179 = arith.mulf %167, %178 : vector<8x4xf32>
    %180 = vector.broadcast %155 : vector<1x4xf32> to vector<8x4xf32>
    %181 = arith.addf %180, %179 : vector<8x4xf32>
    %182 = math.tanh %181 : vector<8x4xf32>
    %cst_108 = arith.constant 1.000000e+00 : f32
    %183 = vector.broadcast %cst_108 : f32 to vector<8x4xf32>
    %184 = arith.subf %183, %175 : vector<8x4xf32>
    %185 = arith.mulf %184, %182 : vector<8x4xf32>
    %186 = arith.mulf %175, %159 : vector<8x4xf32>
    %187 = arith.addf %185, %186 : vector<8x4xf32>
    %c24_109 = arith.constant 24 : index
    %c0_110 = arith.constant 0 : index
    %188 = vector.load %arg10[%c24_109, %c0_110] : memref<32x4xf32, #tpu.memory_space<vmem>>, vector<8x4xf32>
    tpu.vector_store %arg10[%c24_109, %c0_110], %187 {strides = array<i32>} : memref<32x4xf32, #tpu.memory_space<vmem>>, vector<8x4xf32>,
    %cst_111 = arith.constant dense<0.000000e+00> : vector<8x4xf32>
    %189 = tpu.matmul %187, %139, %cst_111 {dimension_numbers = #tpu.dot_dimension_numbers<[1], [0], [0], [1], [0, 0, 1, 1], [], []>} : vector<8x4xf32>, vector<4x4xf32>, vector<8x4xf32> -> vector<8x4xf32>
    %190 = vector.broadcast %148 : vector<1x4xf32> to vector<8x4xf32>
    %191 = arith.addf %189, %190 : vector<8x4xf32>
    %192 = arith.negf %191 : vector<8x4xf32>
    %193 = math.exp %192 : vector<8x4xf32>
    %cst_112 = arith.constant 1.000000e+00 : f32
    %194 = vector.broadcast %cst_112 : f32 to vector<8x4xf32>
    %195 = arith.addf %194, %193 : vector<8x4xf32>
    %196 = arith.divf %194, %195 : vector<8x4xf32>
    %cst_113 = arith.constant dense<0.000000e+00> : vector<8x4xf32>
    %197 = tpu.matmul %187, %141, %cst_113 {dimension_numbers = #tpu.dot_dimension_numbers<[1], [0], [0], [1], [0, 0, 1, 1], [], []>} : vector<8x4xf32>, vector<4x4xf32>, vector<8x4xf32> -> vector<8x4xf32>
    %198 = vector.broadcast %153 : vector<1x4xf32> to vector<8x4xf32>
    %199 = arith.addf %197, %198 : vector<8x4xf32>
    %200 = arith.negf %199 : vector<8x4xf32>
    %201 = math.exp %200 : vector<8x4xf32>
    %cst_114 = arith.constant 1.000000e+00 : f32
    %202 = vector.broadcast %cst_114 : f32 to vector<8x4xf32>
    %203 = arith.addf %202, %201 : vector<8x4xf32>
    %204 = arith.divf %202, %203 : vector<8x4xf32>
    %cst_115 = arith.constant dense<0.000000e+00> : vector<8x4xf32>
    %205 = tpu.matmul %187, %143, %cst_115 {dimension_numbers = #tpu.dot_dimension_numbers<[1], [0], [0], [1], [0, 0, 1, 1], [], []>} : vector<8x4xf32>, vector<4x4xf32>, vector<8x4xf32> -> vector<8x4xf32>
    %206 = vector.broadcast %157 : vector<1x4xf32> to vector<8x4xf32>
    %207 = arith.addf %205, %206 : vector<8x4xf32>
    %208 = arith.mulf %196, %207 : vector<8x4xf32>
    %209 = vector.broadcast %155 : vector<1x4xf32> to vector<8x4xf32>
    %210 = arith.addf %209, %208 : vector<8x4xf32>
    %211 = math.tanh %210 : vector<8x4xf32>
    %cst_116 = arith.constant 1.000000e+00 : f32
    %212 = vector.broadcast %cst_116 : f32 to vector<8x4xf32>
    %213 = arith.subf %212, %204 : vector<8x4xf32>
    %214 = arith.mulf %213, %211 : vector<8x4xf32>
    %215 = arith.mulf %204, %187 : vector<8x4xf32>
    %216 = arith.addf %214, %215 : vector<8x4xf32>
    %c16_117 = arith.constant 16 : index
    %c0_118 = arith.constant 0 : index
    %217 = vector.load %arg10[%c16_117, %c0_118] : memref<32x4xf32, #tpu.memory_space<vmem>>, vector<8x4xf32>
    tpu.vector_store %arg10[%c16_117, %c0_118], %216 {strides = array<i32>} : memref<32x4xf32, #tpu.memory_space<vmem>>, vector<8x4xf32>,
    %cst_119 = arith.constant dense<0.000000e+00> : vector<8x4xf32>
    %218 = tpu.matmul %216, %139, %cst_119 {dimension_numbers = #tpu.dot_dimension_numbers<[1], [0], [0], [1], [0, 0, 1, 1], [], []>} : vector<8x4xf32>, vector<4x4xf32>, vector<8x4xf32> -> vector<8x4xf32>
    %219 = vector.broadcast %148 : vector<1x4xf32> to vector<8x4xf32>
    %220 = arith.addf %218, %219 : vector<8x4xf32>
    %221 = arith.negf %220 : vector<8x4xf32>
    %222 = math.exp %221 : vector<8x4xf32>
    %cst_120 = arith.constant 1.000000e+00 : f32
    %223 = vector.broadcast %cst_120 : f32 to vector<8x4xf32>
    %224 = arith.addf %223, %222 : vector<8x4xf32>
    %225 = arith.divf %223, %224 : vector<8x4xf32>
    %cst_121 = arith.constant dense<0.000000e+00> : vector<8x4xf32>
    %226 = tpu.matmul %216, %141, %cst_121 {dimension_numbers = #tpu.dot_dimension_numbers<[1], [0], [0], [1], [0, 0, 1, 1], [], []>} : vector<8x4xf32>, vector<4x4xf32>, vector<8x4xf32> -> vector<8x4xf32>
    %227 = vector.broadcast %153 : vector<1x4xf32> to vector<8x4xf32>
    %228 = arith.addf %226, %227 : vector<8x4xf32>
    %229 = arith.negf %228 : vector<8x4xf32>
    %230 = math.exp %229 : vector<8x4xf32>
    %cst_122 = arith.constant 1.000000e+00 : f32
    %231 = vector.broadcast %cst_122 : f32 to vector<8x4xf32>
    %232 = arith.addf %231, %230 : vector<8x4xf32>
    %233 = arith.divf %231, %232 : vector<8x4xf32>
    %cst_123 = arith.constant dense<0.000000e+00> : vector<8x4xf32>
    %234 = tpu.matmul %216, %143, %cst_123 {dimension_numbers = #tpu.dot_dimension_numbers<[1], [0], [0], [1], [0, 0, 1, 1], [], []>} : vector<8x4xf32>, vector<4x4xf32>, vector<8x4xf32> -> vector<8x4xf32>
    %235 = vector.broadcast %157 : vector<1x4xf32> to vector<8x4xf32>
    %236 = arith.addf %234, %235 : vector<8x4xf32>
    %237 = arith.mulf %225, %236 : vector<8x4xf32>
    %238 = vector.broadcast %155 : vector<1x4xf32> to vector<8x4xf32>
    %239 = arith.addf %238, %237 : vector<8x4xf32>
    %240 = math.tanh %239 : vector<8x4xf32>
    %cst_124 = arith.constant 1.000000e+00 : f32
    %241 = vector.broadcast %cst_124 : f32 to vector<8x4xf32>
    %242 = arith.subf %241, %233 : vector<8x4xf32>
    %243 = arith.mulf %242, %240 : vector<8x4xf32>
    %244 = arith.mulf %233, %216 : vector<8x4xf32>
    %245 = arith.addf %243, %244 : vector<8x4xf32>
    %c8_125 = arith.constant 8 : index
    %c0_126 = arith.constant 0 : index
    %246 = vector.load %arg10[%c8_125, %c0_126] : memref<32x4xf32, #tpu.memory_space<vmem>>, vector<8x4xf32>
    tpu.vector_store %arg10[%c8_125, %c0_126], %245 {strides = array<i32>} : memref<32x4xf32, #tpu.memory_space<vmem>>, vector<8x4xf32>,
    %cst_127 = arith.constant dense<0.000000e+00> : vector<8x4xf32>
    %247 = tpu.matmul %245, %139, %cst_127 {dimension_numbers = #tpu.dot_dimension_numbers<[1], [0], [0], [1], [0, 0, 1, 1], [], []>} : vector<8x4xf32>, vector<4x4xf32>, vector<8x4xf32> -> vector<8x4xf32>
    %248 = vector.broadcast %148 : vector<1x4xf32> to vector<8x4xf32>
    %249 = arith.addf %247, %248 : vector<8x4xf32>
    %250 = arith.negf %249 : vector<8x4xf32>
    %251 = math.exp %250 : vector<8x4xf32>
    %cst_128 = arith.constant 1.000000e+00 : f32
    %252 = vector.broadcast %cst_128 : f32 to vector<8x4xf32>
    %253 = arith.addf %252, %251 : vector<8x4xf32>
    %254 = arith.divf %252, %253 : vector<8x4xf32>
    %cst_129 = arith.constant dense<0.000000e+00> : vector<8x4xf32>
    %255 = tpu.matmul %245, %141, %cst_129 {dimension_numbers = #tpu.dot_dimension_numbers<[1], [0], [0], [1], [0, 0, 1, 1], [], []>} : vector<8x4xf32>, vector<4x4xf32>, vector<8x4xf32> -> vector<8x4xf32>
    %256 = vector.broadcast %153 : vector<1x4xf32> to vector<8x4xf32>
    %257 = arith.addf %255, %256 : vector<8x4xf32>
    %258 = arith.negf %257 : vector<8x4xf32>
    %259 = math.exp %258 : vector<8x4xf32>
    %cst_130 = arith.constant 1.000000e+00 : f32
    %260 = vector.broadcast %cst_130 : f32 to vector<8x4xf32>
    %261 = arith.addf %260, %259 : vector<8x4xf32>
    %262 = arith.divf %260, %261 : vector<8x4xf32>
    %cst_131 = arith.constant dense<0.000000e+00> : vector<8x4xf32>
    %263 = tpu.matmul %245, %143, %cst_131 {dimension_numbers = #tpu.dot_dimension_numbers<[1], [0], [0], [1], [0, 0, 1, 1], [], []>} : vector<8x4xf32>, vector<4x4xf32>, vector<8x4xf32> -> vector<8x4xf32>
    %264 = vector.broadcast %157 : vector<1x4xf32> to vector<8x4xf32>
    %265 = arith.addf %263, %264 : vector<8x4xf32>
    %266 = arith.mulf %254, %265 : vector<8x4xf32>
    %267 = vector.broadcast %155 : vector<1x4xf32> to vector<8x4xf32>
    %268 = arith.addf %267, %266 : vector<8x4xf32>
    %269 = math.tanh %268 : vector<8x4xf32>
    %cst_132 = arith.constant 1.000000e+00 : f32
    %270 = vector.broadcast %cst_132 : f32 to vector<8x4xf32>
    %271 = arith.subf %270, %262 : vector<8x4xf32>
    %272 = arith.mulf %271, %269 : vector<8x4xf32>
    %273 = arith.mulf %262, %245 : vector<8x4xf32>
    %274 = arith.addf %272, %273 : vector<8x4xf32>
    %c0_133 = arith.constant 0 : index
    %c0_134 = arith.constant 0 : index
    %275 = vector.load %arg10[%c0_133, %c0_134] : memref<32x4xf32, #tpu.memory_space<vmem>>, vector<8x4xf32>
    tpu.vector_store %arg10[%c0_133, %c0_134], %274 {strides = array<i32>} : memref<32x4xf32, #tpu.memory_space<vmem>>, vector<8x4xf32>,
    %c0_135 = arith.constant 0 : index
    %c0_136 = arith.constant 0 : index
    %276 = vector.load %arg9[%c0_135, %c0_136] : memref<32x4xf32, #tpu.memory_space<vmem>>, vector<32x4xf32>
    %c0_137 = arith.constant 0 : index
    %c0_138 = arith.constant 0 : index
    %277 = vector.load %arg5[%c0_137, %c0_138] : memref<4x32xf32, #tpu.memory_space<vmem>>, vector<4x32xf32>
    %cst_139 = arith.constant dense<0.000000e+00> : vector<32x32xf32>
    %278 = tpu.matmul %276, %277, %cst_139 {dimension_numbers = #tpu.dot_dimension_numbers<[1], [0], [0], [1], [0, 0, 1, 1], [], []>} : vector<32x4xf32>, vector<4x32xf32>, vector<32x32xf32> -> vector<32x32xf32>
    %c0_140 = arith.constant 0 : index
    %c0_141 = arith.constant 0 : index
    %279 = vector.load %arg10[%c0_140, %c0_141] : memref<32x4xf32, #tpu.memory_space<vmem>>, vector<32x4xf32>
    %c0_142 = arith.constant 0 : index
    %c0_143 = arith.constant 0 : index
    %280 = vector.load %arg6[%c0_142, %c0_143] : memref<4x32xf32, #tpu.memory_space<vmem>>, vector<4x32xf32>
    %cst_144 = arith.constant dense<0.000000e+00> : vector<32x32xf32>
    %281 = tpu.matmul %279, %280, %cst_144 {dimension_numbers = #tpu.dot_dimension_numbers<[1], [0], [0], [1], [0, 0, 1, 1], [], []>} : vector<32x4xf32>, vector<4x32xf32>, vector<32x32xf32> -> vector<32x32xf32>
    %282 = arith.addf %278, %281 : vector<32x32xf32>
    %c0_145 = arith.constant 0 : index
    %c0_146 = arith.constant 0 : index
    %283 = vector.load %arg7[%c0_145, %c0_146] : memref<1x32xf32, #tpu.memory_space<vmem>>, vector<1x32xf32>
    %284 = vector.broadcast %283 : vector<1x32xf32> to vector<32x32xf32>
    %285 = arith.addf %282, %284 : vector<32x32xf32>
    %286 = vector.shape_cast %285 : vector<32x32xf32> to vector<4x8x32xf32>
    %c0_147 = arith.constant 0 : index
    %c0_148 = arith.constant 0 : index
    %c0_149 = arith.constant 0 : index
    %287 = vector.load %arg8[%c0_147, %c0_148, %c0_149] : memref<4x8x32xf32, #tpu.memory_space<vmem>>, vector<4x8x32xf32>
    tpu.vector_store %arg8[%c0_147, %c0_148, %c0_149], %286 {strides = array<i32>} : memref<4x8x32xf32, #tpu.memory_space<vmem>>, vector<4x8x32xf32>,
    return
  }
  func.func @transform_0(%arg0: i32) -> (i32, i32, i32) {
    %c0_i32 = arith.constant 0 : i32
    %c0_i32_0 = arith.constant 0 : i32
    %c0_i32_1 = arith.constant 0 : i32
    return %c0_i32, %arg0, %c0_i32_0 : i32, i32, i32
  }
  func.func @transform_1(%arg0: i32) -> (i32, i32, i32, i32) {
    %c0_i32 = arith.constant 0 : i32
    %c0_i32_0 = arith.constant 0 : i32
    %c0_i32_1 = arith.constant 0 : i32
    %c0_i32_2 = arith.constant 0 : i32
    %c0_i32_3 = arith.constant 0 : i32
    return %c0_i32, %c0_i32_0, %c0_i32_1, %c0_i32_2 : i32, i32, i32, i32
  }
  func.func @transform_2(%arg0: i32) -> (i32, i32, i32, i32) {
    %c0_i32 = arith.constant 0 : i32
    %c0_i32_0 = arith.constant 0 : i32
    %c0_i32_1 = arith.constant 0 : i32
    %c0_i32_2 = arith.constant 0 : i32
    %c0_i32_3 = arith.constant 0 : i32
    return %c0_i32, %c0_i32_0, %c0_i32_1, %c0_i32_2 : i32, i32, i32, i32
  }
  func.func @transform_3(%arg0: i32) -> (i32, i32, i32, i32) {
    %c0_i32 = arith.constant 0 : i32
    %c0_i32_0 = arith.constant 0 : i32
    %c0_i32_1 = arith.constant 0 : i32
    %c0_i32_2 = arith.constant 0 : i32
    %c0_i32_3 = arith.constant 0 : i32
    return %c0_i32, %c0_i32_0, %c0_i32_1, %c0_i32_2 : i32, i32, i32, i32
  }
  func.func @transform_4(%arg0: i32) -> (i32, i32) {
    %c0_i32 = arith.constant 0 : i32
    %c0_i32_0 = arith.constant 0 : i32
    %c0_i32_1 = arith.constant 0 : i32
    return %c0_i32, %c0_i32_0 : i32, i32
  }
  func.func @transform_5(%arg0: i32) -> (i32, i32) {
    %c0_i32 = arith.constant 0 : i32
    %c0_i32_0 = arith.constant 0 : i32
    %c0_i32_1 = arith.constant 0 : i32
    return %c0_i32, %c0_i32_0 : i32, i32
  }
  func.func @transform_6(%arg0: i32) -> (i32, i32) {
    %c0_i32 = arith.constant 0 : i32
    %c0_i32_0 = arith.constant 0 : i32
    %c0_i32_1 = arith.constant 0 : i32
    return %c0_i32, %c0_i32_0 : i32, i32
  }
  func.func @transform_7(%arg0: i32) -> (i32, i32, i32) {
    %c0_i32 = arith.constant 0 : i32
    %c0_i32_0 = arith.constant 0 : i32
    %c0_i32_1 = arith.constant 0 : i32
    return %c0_i32, %arg0, %c0_i32_0 : i32, i32, i32
  }
}

module attributes {stable_mosaic.version = 11 : i64} {
  func.func @kernel(%arg0: i32, %arg1: memref<2x8x16xf32, #tpu.memory_space<vmem>>, %arg2: memref<2x3x16x16xf32, #tpu.memory_space<vmem>>, %arg3: memref<2x3x1x16xf32, #tpu.memory_space<vmem>>, %arg4: memref<2x3x1x16xf32, #tpu.memory_space<vmem>>, %arg5: memref<16x3xf32, #tpu.memory_space<vmem>>, %arg6: memref<16x3xf32, #tpu.memory_space<vmem>>, %arg7: memref<1x3xf32, #tpu.memory_space<vmem>>, %arg8: memref<8x8x3xf32, #tpu.memory_space<vmem>>, %arg9: memref<64x16xf32, #tpu.memory_space<vmem>>, %arg10: memref<64x16xf32, #tpu.memory_space<vmem>>) attributes {dimension_semantics = [#tpu.dimension_semantics<parallel>], iteration_bounds = array<i64: 1>, scalar_prefetch = 0 : i64, scratch_operands = 2 : i64, tpu.core_type = #tpu.core_type<tc>, window_params = [{transform_indices = @transform_0, window_bounds = array<i64: 2, 8, 16>}, {pipeline_mode = #tpu.pipeline_mode<synchronous>, transform_indices = @transform_1, window_bounds = array<i64: 2, 3, 16, 16>}, {pipeline_mode = #tpu.pipeline_mode<synchronous>, transform_indices = @transform_2, window_bounds = array<i64: 2, 3, 1, 16>}, {pipeline_mode = #tpu.pipeline_mode<synchronous>, transform_indices = @transform_3, window_bounds = array<i64: 2, 3, 1, 16>}, {pipeline_mode = #tpu.pipeline_mode<synchronous>, transform_indices = @transform_4, window_bounds = array<i64: 16, 3>}, {pipeline_mode = #tpu.pipeline_mode<synchronous>, transform_indices = @transform_5, window_bounds = array<i64: 16, 3>}, {pipeline_mode = #tpu.pipeline_mode<synchronous>, transform_indices = @transform_6, window_bounds = array<i64: 1, 3>}, {transform_indices = @transform_7, window_bounds = array<i64: 8, 8, 3>}]} {
    %c0 = arith.constant 0 : index
    %c0_0 = arith.constant 0 : index
    %c0_1 = arith.constant 0 : index
    %c0_2 = arith.constant 0 : index
    %0 = vector.load %arg2[%c0, %c0_0, %c0_1, %c0_2] : memref<2x3x16x16xf32, #tpu.memory_space<vmem>>, vector<1x1x16x16xf32>
    %1 = vector.shape_cast %0 : vector<1x1x16x16xf32> to vector<16x16xf32>
    %c0_3 = arith.constant 0 : index
    %c1 = arith.constant 1 : index
    %c0_4 = arith.constant 0 : index
    %c0_5 = arith.constant 0 : index
    %2 = vector.load %arg2[%c0_3, %c1, %c0_4, %c0_5] : memref<2x3x16x16xf32, #tpu.memory_space<vmem>>, vector<1x1x16x16xf32>
    %3 = vector.shape_cast %2 : vector<1x1x16x16xf32> to vector<16x16xf32>
    %c0_6 = arith.constant 0 : index
    %c2 = arith.constant 2 : index
    %c0_7 = arith.constant 0 : index
    %c0_8 = arith.constant 0 : index
    %4 = vector.load %arg2[%c0_6, %c2, %c0_7, %c0_8] : memref<2x3x16x16xf32, #tpu.memory_space<vmem>>, vector<1x1x16x16xf32>
    %5 = vector.shape_cast %4 : vector<1x1x16x16xf32> to vector<16x16xf32>
    %c0_9 = arith.constant 0 : index
    %c0_10 = arith.constant 0 : index
    %c0_11 = arith.constant 0 : index
    %c0_12 = arith.constant 0 : index
    %6 = vector.load %arg3[%c0_9, %c0_10, %c0_11, %c0_12] : memref<2x3x1x16xf32, #tpu.memory_space<vmem>>, vector<1x1x1x16xf32>
    %7 = vector.shape_cast %6 : vector<1x1x1x16xf32> to vector<1x16xf32>
    %c0_13 = arith.constant 0 : index
    %c0_14 = arith.constant 0 : index
    %c0_15 = arith.constant 0 : index
    %c0_16 = arith.constant 0 : index
    %8 = vector.load %arg4[%c0_13, %c0_14, %c0_15, %c0_16] : memref<2x3x1x16xf32, #tpu.memory_space<vmem>>, vector<1x1x1x16xf32>
    %9 = vector.shape_cast %8 : vector<1x1x1x16xf32> to vector<1x16xf32>
    %10 = arith.addf %7, %9 : vector<1x16xf32>
    %c0_17 = arith.constant 0 : index
    %c1_18 = arith.constant 1 : index
    %c0_19 = arith.constant 0 : index
    %c0_20 = arith.constant 0 : index
    %11 = vector.load %arg3[%c0_17, %c1_18, %c0_19, %c0_20] : memref<2x3x1x16xf32, #tpu.memory_space<vmem>>, vector<1x1x1x16xf32>
    %12 = vector.shape_cast %11 : vector<1x1x1x16xf32> to vector<1x16xf32>
    %c0_21 = arith.constant 0 : index
    %c1_22 = arith.constant 1 : index
    %c0_23 = arith.constant 0 : index
    %c0_24 = arith.constant 0 : index
    %13 = vector.load %arg4[%c0_21, %c1_22, %c0_23, %c0_24] : memref<2x3x1x16xf32, #tpu.memory_space<vmem>>, vector<1x1x1x16xf32>
    %14 = vector.shape_cast %13 : vector<1x1x1x16xf32> to vector<1x16xf32>
    %15 = arith.addf %12, %14 : vector<1x16xf32>
    %c0_25 = arith.constant 0 : index
    %c2_26 = arith.constant 2 : index
    %c0_27 = arith.constant 0 : index
    %c0_28 = arith.constant 0 : index
    %16 = vector.load %arg3[%c0_25, %c2_26, %c0_27, %c0_28] : memref<2x3x1x16xf32, #tpu.memory_space<vmem>>, vector<1x1x1x16xf32>
    %17 = vector.shape_cast %16 : vector<1x1x1x16xf32> to vector<1x16xf32>
    %c0_29 = arith.constant 0 : index
    %c2_30 = arith.constant 2 : index
    %c0_31 = arith.constant 0 : index
    %c0_32 = arith.constant 0 : index
    %18 = vector.load %arg4[%c0_29, %c2_30, %c0_31, %c0_32] : memref<2x3x1x16xf32, #tpu.memory_space<vmem>>, vector<1x1x1x16xf32>
    %19 = vector.shape_cast %18 : vector<1x1x1x16xf32> to vector<1x16xf32>
    %c0_33 = arith.constant 0 : index
    %c0_34 = arith.constant 0 : index
    %c0_35 = arith.constant 0 : index
    %20 = vector.load %arg1[%c0_33, %c0_34, %c0_35] : memref<2x8x16xf32, #tpu.memory_space<vmem>>, vector<1x8x16xf32>
    %21 = vector.shape_cast %20 : vector<1x8x16xf32> to vector<8x16xf32>
    %cst = arith.constant dense<0.000000e+00> : vector<8x16xf32>
    %22 = tpu.matmul %21, %1, %cst {dimension_numbers = #tpu.dot_dimension_numbers<[1], [0], [0], [1], [0, 0, 1, 1], [], []>} : vector<8x16xf32>, vector<16x16xf32>, vector<8x16xf32> -> vector<8x16xf32>
    %23 = vector.broadcast %10 : vector<1x16xf32> to vector<8x16xf32>
    %24 = arith.addf %22, %23 : vector<8x16xf32>
    %25 = arith.negf %24 : vector<8x16xf32>
    %26 = math.exp %25 : vector<8x16xf32>
    %cst_36 = arith.constant 1.000000e+00 : f32
    %27 = vector.broadcast %cst_36 : f32 to vector<8x16xf32>
    %28 = arith.addf %27, %26 : vector<8x16xf32>
    %29 = arith.divf %27, %28 : vector<8x16xf32>
    %cst_37 = arith.constant dense<0.000000e+00> : vector<8x16xf32>
    %30 = tpu.matmul %21, %3, %cst_37 {dimension_numbers = #tpu.dot_dimension_numbers<[1], [0], [0], [1], [0, 0, 1, 1], [], []>} : vector<8x16xf32>, vector<16x16xf32>, vector<8x16xf32> -> vector<8x16xf32>
    %31 = vector.broadcast %15 : vector<1x16xf32> to vector<8x16xf32>
    %32 = arith.addf %30, %31 : vector<8x16xf32>
    %33 = arith.negf %32 : vector<8x16xf32>
    %34 = math.exp %33 : vector<8x16xf32>
    %cst_38 = arith.constant 1.000000e+00 : f32
    %35 = vector.broadcast %cst_38 : f32 to vector<8x16xf32>
    %36 = arith.addf %35, %34 : vector<8x16xf32>
    %37 = arith.divf %35, %36 : vector<8x16xf32>
    %cst_39 = arith.constant dense<0.000000e+00> : vector<8x16xf32>
    %38 = tpu.matmul %21, %5, %cst_39 {dimension_numbers = #tpu.dot_dimension_numbers<[1], [0], [0], [1], [0, 0, 1, 1], [], []>} : vector<8x16xf32>, vector<16x16xf32>, vector<8x16xf32> -> vector<8x16xf32>
    %39 = vector.broadcast %19 : vector<1x16xf32> to vector<8x16xf32>
    %40 = arith.addf %38, %39 : vector<8x16xf32>
    %41 = arith.mulf %29, %40 : vector<8x16xf32>
    %42 = vector.broadcast %17 : vector<1x16xf32> to vector<8x16xf32>
    %43 = arith.addf %42, %41 : vector<8x16xf32>
    %44 = math.tanh %43 : vector<8x16xf32>
    %cst_40 = arith.constant 1.000000e+00 : f32
    %45 = vector.broadcast %cst_40 : f32 to vector<8x16xf32>
    %46 = arith.subf %45, %37 : vector<8x16xf32>
    %47 = arith.mulf %46, %44 : vector<8x16xf32>
    %48 = arith.mulf %37, %21 : vector<8x16xf32>
    %49 = arith.addf %47, %48 : vector<8x16xf32>
    %c0_41 = arith.constant 0 : index
    %c0_42 = arith.constant 0 : index
    %50 = vector.load %arg9[%c0_41, %c0_42] : memref<64x16xf32, #tpu.memory_space<vmem>>, vector<8x16xf32>
    tpu.vector_store %arg9[%c0_41, %c0_42], %49 {strides = array<i32>} : memref<64x16xf32, #tpu.memory_space<vmem>>, vector<8x16xf32>,
    %cst_43 = arith.constant dense<0.000000e+00> : vector<8x16xf32>
    %51 = tpu.matmul %49, %1, %cst_43 {dimension_numbers = #tpu.dot_dimension_numbers<[1], [0], [0], [1], [0, 0, 1, 1], [], []>} : vector<8x16xf32>, vector<16x16xf32>, vector<8x16xf32> -> vector<8x16xf32>
    %52 = vector.broadcast %10 : vector<1x16xf32> to vector<8x16xf32>
    %53 = arith.addf %51, %52 : vector<8x16xf32>
    %54 = arith.negf %53 : vector<8x16xf32>
    %55 = math.exp %54 : vector<8x16xf32>
    %cst_44 = arith.constant 1.000000e+00 : f32
    %56 = vector.broadcast %cst_44 : f32 to vector<8x16xf32>
    %57 = arith.addf %56, %55 : vector<8x16xf32>
    %58 = arith.divf %56, %57 : vector<8x16xf32>
    %cst_45 = arith.constant dense<0.000000e+00> : vector<8x16xf32>
    %59 = tpu.matmul %49, %3, %cst_45 {dimension_numbers = #tpu.dot_dimension_numbers<[1], [0], [0], [1], [0, 0, 1, 1], [], []>} : vector<8x16xf32>, vector<16x16xf32>, vector<8x16xf32> -> vector<8x16xf32>
    %60 = vector.broadcast %15 : vector<1x16xf32> to vector<8x16xf32>
    %61 = arith.addf %59, %60 : vector<8x16xf32>
    %62 = arith.negf %61 : vector<8x16xf32>
    %63 = math.exp %62 : vector<8x16xf32>
    %cst_46 = arith.constant 1.000000e+00 : f32
    %64 = vector.broadcast %cst_46 : f32 to vector<8x16xf32>
    %65 = arith.addf %64, %63 : vector<8x16xf32>
    %66 = arith.divf %64, %65 : vector<8x16xf32>
    %cst_47 = arith.constant dense<0.000000e+00> : vector<8x16xf32>
    %67 = tpu.matmul %49, %5, %cst_47 {dimension_numbers = #tpu.dot_dimension_numbers<[1], [0], [0], [1], [0, 0, 1, 1], [], []>} : vector<8x16xf32>, vector<16x16xf32>, vector<8x16xf32> -> vector<8x16xf32>
    %68 = vector.broadcast %19 : vector<1x16xf32> to vector<8x16xf32>
    %69 = arith.addf %67, %68 : vector<8x16xf32>
    %70 = arith.mulf %58, %69 : vector<8x16xf32>
    %71 = vector.broadcast %17 : vector<1x16xf32> to vector<8x16xf32>
    %72 = arith.addf %71, %70 : vector<8x16xf32>
    %73 = math.tanh %72 : vector<8x16xf32>
    %cst_48 = arith.constant 1.000000e+00 : f32
    %74 = vector.broadcast %cst_48 : f32 to vector<8x16xf32>
    %75 = arith.subf %74, %66 : vector<8x16xf32>
    %76 = arith.mulf %75, %73 : vector<8x16xf32>
    %77 = arith.mulf %66, %49 : vector<8x16xf32>
    %78 = arith.addf %76, %77 : vector<8x16xf32>
    %c8 = arith.constant 8 : index
    %c0_49 = arith.constant 0 : index
    %79 = vector.load %arg9[%c8, %c0_49] : memref<64x16xf32, #tpu.memory_space<vmem>>, vector<8x16xf32>
    tpu.vector_store %arg9[%c8, %c0_49], %78 {strides = array<i32>} : memref<64x16xf32, #tpu.memory_space<vmem>>, vector<8x16xf32>,
    %cst_50 = arith.constant dense<0.000000e+00> : vector<8x16xf32>
    %80 = tpu.matmul %78, %1, %cst_50 {dimension_numbers = #tpu.dot_dimension_numbers<[1], [0], [0], [1], [0, 0, 1, 1], [], []>} : vector<8x16xf32>, vector<16x16xf32>, vector<8x16xf32> -> vector<8x16xf32>
    %81 = vector.broadcast %10 : vector<1x16xf32> to vector<8x16xf32>
    %82 = arith.addf %80, %81 : vector<8x16xf32>
    %83 = arith.negf %82 : vector<8x16xf32>
    %84 = math.exp %83 : vector<8x16xf32>
    %cst_51 = arith.constant 1.000000e+00 : f32
    %85 = vector.broadcast %cst_51 : f32 to vector<8x16xf32>
    %86 = arith.addf %85, %84 : vector<8x16xf32>
    %87 = arith.divf %85, %86 : vector<8x16xf32>
    %cst_52 = arith.constant dense<0.000000e+00> : vector<8x16xf32>
    %88 = tpu.matmul %78, %3, %cst_52 {dimension_numbers = #tpu.dot_dimension_numbers<[1], [0], [0], [1], [0, 0, 1, 1], [], []>} : vector<8x16xf32>, vector<16x16xf32>, vector<8x16xf32> -> vector<8x16xf32>
    %89 = vector.broadcast %15 : vector<1x16xf32> to vector<8x16xf32>
    %90 = arith.addf %88, %89 : vector<8x16xf32>
    %91 = arith.negf %90 : vector<8x16xf32>
    %92 = math.exp %91 : vector<8x16xf32>
    %cst_53 = arith.constant 1.000000e+00 : f32
    %93 = vector.broadcast %cst_53 : f32 to vector<8x16xf32>
    %94 = arith.addf %93, %92 : vector<8x16xf32>
    %95 = arith.divf %93, %94 : vector<8x16xf32>
    %cst_54 = arith.constant dense<0.000000e+00> : vector<8x16xf32>
    %96 = tpu.matmul %78, %5, %cst_54 {dimension_numbers = #tpu.dot_dimension_numbers<[1], [0], [0], [1], [0, 0, 1, 1], [], []>} : vector<8x16xf32>, vector<16x16xf32>, vector<8x16xf32> -> vector<8x16xf32>
    %97 = vector.broadcast %19 : vector<1x16xf32> to vector<8x16xf32>
    %98 = arith.addf %96, %97 : vector<8x16xf32>
    %99 = arith.mulf %87, %98 : vector<8x16xf32>
    %100 = vector.broadcast %17 : vector<1x16xf32> to vector<8x16xf32>
    %101 = arith.addf %100, %99 : vector<8x16xf32>
    %102 = math.tanh %101 : vector<8x16xf32>
    %cst_55 = arith.constant 1.000000e+00 : f32
    %103 = vector.broadcast %cst_55 : f32 to vector<8x16xf32>
    %104 = arith.subf %103, %95 : vector<8x16xf32>
    %105 = arith.mulf %104, %102 : vector<8x16xf32>
    %106 = arith.mulf %95, %78 : vector<8x16xf32>
    %107 = arith.addf %105, %106 : vector<8x16xf32>
    %c16 = arith.constant 16 : index
    %c0_56 = arith.constant 0 : index
    %108 = vector.load %arg9[%c16, %c0_56] : memref<64x16xf32, #tpu.memory_space<vmem>>, vector<8x16xf32>
    tpu.vector_store %arg9[%c16, %c0_56], %107 {strides = array<i32>} : memref<64x16xf32, #tpu.memory_space<vmem>>, vector<8x16xf32>,
    %cst_57 = arith.constant dense<0.000000e+00> : vector<8x16xf32>
    %109 = tpu.matmul %107, %1, %cst_57 {dimension_numbers = #tpu.dot_dimension_numbers<[1], [0], [0], [1], [0, 0, 1, 1], [], []>} : vector<8x16xf32>, vector<16x16xf32>, vector<8x16xf32> -> vector<8x16xf32>
    %110 = vector.broadcast %10 : vector<1x16xf32> to vector<8x16xf32>
    %111 = arith.addf %109, %110 : vector<8x16xf32>
    %112 = arith.negf %111 : vector<8x16xf32>
    %113 = math.exp %112 : vector<8x16xf32>
    %cst_58 = arith.constant 1.000000e+00 : f32
    %114 = vector.broadcast %cst_58 : f32 to vector<8x16xf32>
    %115 = arith.addf %114, %113 : vector<8x16xf32>
    %116 = arith.divf %114, %115 : vector<8x16xf32>
    %cst_59 = arith.constant dense<0.000000e+00> : vector<8x16xf32>
    %117 = tpu.matmul %107, %3, %cst_59 {dimension_numbers = #tpu.dot_dimension_numbers<[1], [0], [0], [1], [0, 0, 1, 1], [], []>} : vector<8x16xf32>, vector<16x16xf32>, vector<8x16xf32> -> vector<8x16xf32>
    %118 = vector.broadcast %15 : vector<1x16xf32> to vector<8x16xf32>
    %119 = arith.addf %117, %118 : vector<8x16xf32>
    %120 = arith.negf %119 : vector<8x16xf32>
    %121 = math.exp %120 : vector<8x16xf32>
    %cst_60 = arith.constant 1.000000e+00 : f32
    %122 = vector.broadcast %cst_60 : f32 to vector<8x16xf32>
    %123 = arith.addf %122, %121 : vector<8x16xf32>
    %124 = arith.divf %122, %123 : vector<8x16xf32>
    %cst_61 = arith.constant dense<0.000000e+00> : vector<8x16xf32>
    %125 = tpu.matmul %107, %5, %cst_61 {dimension_numbers = #tpu.dot_dimension_numbers<[1], [0], [0], [1], [0, 0, 1, 1], [], []>} : vector<8x16xf32>, vector<16x16xf32>, vector<8x16xf32> -> vector<8x16xf32>
    %126 = vector.broadcast %19 : vector<1x16xf32> to vector<8x16xf32>
    %127 = arith.addf %125, %126 : vector<8x16xf32>
    %128 = arith.mulf %116, %127 : vector<8x16xf32>
    %129 = vector.broadcast %17 : vector<1x16xf32> to vector<8x16xf32>
    %130 = arith.addf %129, %128 : vector<8x16xf32>
    %131 = math.tanh %130 : vector<8x16xf32>
    %cst_62 = arith.constant 1.000000e+00 : f32
    %132 = vector.broadcast %cst_62 : f32 to vector<8x16xf32>
    %133 = arith.subf %132, %124 : vector<8x16xf32>
    %134 = arith.mulf %133, %131 : vector<8x16xf32>
    %135 = arith.mulf %124, %107 : vector<8x16xf32>
    %136 = arith.addf %134, %135 : vector<8x16xf32>
    %c24 = arith.constant 24 : index
    %c0_63 = arith.constant 0 : index
    %137 = vector.load %arg9[%c24, %c0_63] : memref<64x16xf32, #tpu.memory_space<vmem>>, vector<8x16xf32>
    tpu.vector_store %arg9[%c24, %c0_63], %136 {strides = array<i32>} : memref<64x16xf32, #tpu.memory_space<vmem>>, vector<8x16xf32>,
    %cst_64 = arith.constant dense<0.000000e+00> : vector<8x16xf32>
    %138 = tpu.matmul %136, %1, %cst_64 {dimension_numbers = #tpu.dot_dimension_numbers<[1], [0], [0], [1], [0, 0, 1, 1], [], []>} : vector<8x16xf32>, vector<16x16xf32>, vector<8x16xf32> -> vector<8x16xf32>
    %139 = vector.broadcast %10 : vector<1x16xf32> to vector<8x16xf32>
    %140 = arith.addf %138, %139 : vector<8x16xf32>
    %141 = arith.negf %140 : vector<8x16xf32>
    %142 = math.exp %141 : vector<8x16xf32>
    %cst_65 = arith.constant 1.000000e+00 : f32
    %143 = vector.broadcast %cst_65 : f32 to vector<8x16xf32>
    %144 = arith.addf %143, %142 : vector<8x16xf32>
    %145 = arith.divf %143, %144 : vector<8x16xf32>
    %cst_66 = arith.constant dense<0.000000e+00> : vector<8x16xf32>
    %146 = tpu.matmul %136, %3, %cst_66 {dimension_numbers = #tpu.dot_dimension_numbers<[1], [0], [0], [1], [0, 0, 1, 1], [], []>} : vector<8x16xf32>, vector<16x16xf32>, vector<8x16xf32> -> vector<8x16xf32>
    %147 = vector.broadcast %15 : vector<1x16xf32> to vector<8x16xf32>
    %148 = arith.addf %146, %147 : vector<8x16xf32>
    %149 = arith.negf %148 : vector<8x16xf32>
    %150 = math.exp %149 : vector<8x16xf32>
    %cst_67 = arith.constant 1.000000e+00 : f32
    %151 = vector.broadcast %cst_67 : f32 to vector<8x16xf32>
    %152 = arith.addf %151, %150 : vector<8x16xf32>
    %153 = arith.divf %151, %152 : vector<8x16xf32>
    %cst_68 = arith.constant dense<0.000000e+00> : vector<8x16xf32>
    %154 = tpu.matmul %136, %5, %cst_68 {dimension_numbers = #tpu.dot_dimension_numbers<[1], [0], [0], [1], [0, 0, 1, 1], [], []>} : vector<8x16xf32>, vector<16x16xf32>, vector<8x16xf32> -> vector<8x16xf32>
    %155 = vector.broadcast %19 : vector<1x16xf32> to vector<8x16xf32>
    %156 = arith.addf %154, %155 : vector<8x16xf32>
    %157 = arith.mulf %145, %156 : vector<8x16xf32>
    %158 = vector.broadcast %17 : vector<1x16xf32> to vector<8x16xf32>
    %159 = arith.addf %158, %157 : vector<8x16xf32>
    %160 = math.tanh %159 : vector<8x16xf32>
    %cst_69 = arith.constant 1.000000e+00 : f32
    %161 = vector.broadcast %cst_69 : f32 to vector<8x16xf32>
    %162 = arith.subf %161, %153 : vector<8x16xf32>
    %163 = arith.mulf %162, %160 : vector<8x16xf32>
    %164 = arith.mulf %153, %136 : vector<8x16xf32>
    %165 = arith.addf %163, %164 : vector<8x16xf32>
    %c32 = arith.constant 32 : index
    %c0_70 = arith.constant 0 : index
    %166 = vector.load %arg9[%c32, %c0_70] : memref<64x16xf32, #tpu.memory_space<vmem>>, vector<8x16xf32>
    tpu.vector_store %arg9[%c32, %c0_70], %165 {strides = array<i32>} : memref<64x16xf32, #tpu.memory_space<vmem>>, vector<8x16xf32>,
    %cst_71 = arith.constant dense<0.000000e+00> : vector<8x16xf32>
    %167 = tpu.matmul %165, %1, %cst_71 {dimension_numbers = #tpu.dot_dimension_numbers<[1], [0], [0], [1], [0, 0, 1, 1], [], []>} : vector<8x16xf32>, vector<16x16xf32>, vector<8x16xf32> -> vector<8x16xf32>
    %168 = vector.broadcast %10 : vector<1x16xf32> to vector<8x16xf32>
    %169 = arith.addf %167, %168 : vector<8x16xf32>
    %170 = arith.negf %169 : vector<8x16xf32>
    %171 = math.exp %170 : vector<8x16xf32>
    %cst_72 = arith.constant 1.000000e+00 : f32
    %172 = vector.broadcast %cst_72 : f32 to vector<8x16xf32>
    %173 = arith.addf %172, %171 : vector<8x16xf32>
    %174 = arith.divf %172, %173 : vector<8x16xf32>
    %cst_73 = arith.constant dense<0.000000e+00> : vector<8x16xf32>
    %175 = tpu.matmul %165, %3, %cst_73 {dimension_numbers = #tpu.dot_dimension_numbers<[1], [0], [0], [1], [0, 0, 1, 1], [], []>} : vector<8x16xf32>, vector<16x16xf32>, vector<8x16xf32> -> vector<8x16xf32>
    %176 = vector.broadcast %15 : vector<1x16xf32> to vector<8x16xf32>
    %177 = arith.addf %175, %176 : vector<8x16xf32>
    %178 = arith.negf %177 : vector<8x16xf32>
    %179 = math.exp %178 : vector<8x16xf32>
    %cst_74 = arith.constant 1.000000e+00 : f32
    %180 = vector.broadcast %cst_74 : f32 to vector<8x16xf32>
    %181 = arith.addf %180, %179 : vector<8x16xf32>
    %182 = arith.divf %180, %181 : vector<8x16xf32>
    %cst_75 = arith.constant dense<0.000000e+00> : vector<8x16xf32>
    %183 = tpu.matmul %165, %5, %cst_75 {dimension_numbers = #tpu.dot_dimension_numbers<[1], [0], [0], [1], [0, 0, 1, 1], [], []>} : vector<8x16xf32>, vector<16x16xf32>, vector<8x16xf32> -> vector<8x16xf32>
    %184 = vector.broadcast %19 : vector<1x16xf32> to vector<8x16xf32>
    %185 = arith.addf %183, %184 : vector<8x16xf32>
    %186 = arith.mulf %174, %185 : vector<8x16xf32>
    %187 = vector.broadcast %17 : vector<1x16xf32> to vector<8x16xf32>
    %188 = arith.addf %187, %186 : vector<8x16xf32>
    %189 = math.tanh %188 : vector<8x16xf32>
    %cst_76 = arith.constant 1.000000e+00 : f32
    %190 = vector.broadcast %cst_76 : f32 to vector<8x16xf32>
    %191 = arith.subf %190, %182 : vector<8x16xf32>
    %192 = arith.mulf %191, %189 : vector<8x16xf32>
    %193 = arith.mulf %182, %165 : vector<8x16xf32>
    %194 = arith.addf %192, %193 : vector<8x16xf32>
    %c40 = arith.constant 40 : index
    %c0_77 = arith.constant 0 : index
    %195 = vector.load %arg9[%c40, %c0_77] : memref<64x16xf32, #tpu.memory_space<vmem>>, vector<8x16xf32>
    tpu.vector_store %arg9[%c40, %c0_77], %194 {strides = array<i32>} : memref<64x16xf32, #tpu.memory_space<vmem>>, vector<8x16xf32>,
    %cst_78 = arith.constant dense<0.000000e+00> : vector<8x16xf32>
    %196 = tpu.matmul %194, %1, %cst_78 {dimension_numbers = #tpu.dot_dimension_numbers<[1], [0], [0], [1], [0, 0, 1, 1], [], []>} : vector<8x16xf32>, vector<16x16xf32>, vector<8x16xf32> -> vector<8x16xf32>
    %197 = vector.broadcast %10 : vector<1x16xf32> to vector<8x16xf32>
    %198 = arith.addf %196, %197 : vector<8x16xf32>
    %199 = arith.negf %198 : vector<8x16xf32>
    %200 = math.exp %199 : vector<8x16xf32>
    %cst_79 = arith.constant 1.000000e+00 : f32
    %201 = vector.broadcast %cst_79 : f32 to vector<8x16xf32>
    %202 = arith.addf %201, %200 : vector<8x16xf32>
    %203 = arith.divf %201, %202 : vector<8x16xf32>
    %cst_80 = arith.constant dense<0.000000e+00> : vector<8x16xf32>
    %204 = tpu.matmul %194, %3, %cst_80 {dimension_numbers = #tpu.dot_dimension_numbers<[1], [0], [0], [1], [0, 0, 1, 1], [], []>} : vector<8x16xf32>, vector<16x16xf32>, vector<8x16xf32> -> vector<8x16xf32>
    %205 = vector.broadcast %15 : vector<1x16xf32> to vector<8x16xf32>
    %206 = arith.addf %204, %205 : vector<8x16xf32>
    %207 = arith.negf %206 : vector<8x16xf32>
    %208 = math.exp %207 : vector<8x16xf32>
    %cst_81 = arith.constant 1.000000e+00 : f32
    %209 = vector.broadcast %cst_81 : f32 to vector<8x16xf32>
    %210 = arith.addf %209, %208 : vector<8x16xf32>
    %211 = arith.divf %209, %210 : vector<8x16xf32>
    %cst_82 = arith.constant dense<0.000000e+00> : vector<8x16xf32>
    %212 = tpu.matmul %194, %5, %cst_82 {dimension_numbers = #tpu.dot_dimension_numbers<[1], [0], [0], [1], [0, 0, 1, 1], [], []>} : vector<8x16xf32>, vector<16x16xf32>, vector<8x16xf32> -> vector<8x16xf32>
    %213 = vector.broadcast %19 : vector<1x16xf32> to vector<8x16xf32>
    %214 = arith.addf %212, %213 : vector<8x16xf32>
    %215 = arith.mulf %203, %214 : vector<8x16xf32>
    %216 = vector.broadcast %17 : vector<1x16xf32> to vector<8x16xf32>
    %217 = arith.addf %216, %215 : vector<8x16xf32>
    %218 = math.tanh %217 : vector<8x16xf32>
    %cst_83 = arith.constant 1.000000e+00 : f32
    %219 = vector.broadcast %cst_83 : f32 to vector<8x16xf32>
    %220 = arith.subf %219, %211 : vector<8x16xf32>
    %221 = arith.mulf %220, %218 : vector<8x16xf32>
    %222 = arith.mulf %211, %194 : vector<8x16xf32>
    %223 = arith.addf %221, %222 : vector<8x16xf32>
    %c48 = arith.constant 48 : index
    %c0_84 = arith.constant 0 : index
    %224 = vector.load %arg9[%c48, %c0_84] : memref<64x16xf32, #tpu.memory_space<vmem>>, vector<8x16xf32>
    tpu.vector_store %arg9[%c48, %c0_84], %223 {strides = array<i32>} : memref<64x16xf32, #tpu.memory_space<vmem>>, vector<8x16xf32>,
    %cst_85 = arith.constant dense<0.000000e+00> : vector<8x16xf32>
    %225 = tpu.matmul %223, %1, %cst_85 {dimension_numbers = #tpu.dot_dimension_numbers<[1], [0], [0], [1], [0, 0, 1, 1], [], []>} : vector<8x16xf32>, vector<16x16xf32>, vector<8x16xf32> -> vector<8x16xf32>
    %226 = vector.broadcast %10 : vector<1x16xf32> to vector<8x16xf32>
    %227 = arith.addf %225, %226 : vector<8x16xf32>
    %228 = arith.negf %227 : vector<8x16xf32>
    %229 = math.exp %228 : vector<8x16xf32>
    %cst_86 = arith.constant 1.000000e+00 : f32
    %230 = vector.broadcast %cst_86 : f32 to vector<8x16xf32>
    %231 = arith.addf %230, %229 : vector<8x16xf32>
    %232 = arith.divf %230, %231 : vector<8x16xf32>
    %cst_87 = arith.constant dense<0.000000e+00> : vector<8x16xf32>
    %233 = tpu.matmul %223, %3, %cst_87 {dimension_numbers = #tpu.dot_dimension_numbers<[1], [0], [0], [1], [0, 0, 1, 1], [], []>} : vector<8x16xf32>, vector<16x16xf32>, vector<8x16xf32> -> vector<8x16xf32>
    %234 = vector.broadcast %15 : vector<1x16xf32> to vector<8x16xf32>
    %235 = arith.addf %233, %234 : vector<8x16xf32>
    %236 = arith.negf %235 : vector<8x16xf32>
    %237 = math.exp %236 : vector<8x16xf32>
    %cst_88 = arith.constant 1.000000e+00 : f32
    %238 = vector.broadcast %cst_88 : f32 to vector<8x16xf32>
    %239 = arith.addf %238, %237 : vector<8x16xf32>
    %240 = arith.divf %238, %239 : vector<8x16xf32>
    %cst_89 = arith.constant dense<0.000000e+00> : vector<8x16xf32>
    %241 = tpu.matmul %223, %5, %cst_89 {dimension_numbers = #tpu.dot_dimension_numbers<[1], [0], [0], [1], [0, 0, 1, 1], [], []>} : vector<8x16xf32>, vector<16x16xf32>, vector<8x16xf32> -> vector<8x16xf32>
    %242 = vector.broadcast %19 : vector<1x16xf32> to vector<8x16xf32>
    %243 = arith.addf %241, %242 : vector<8x16xf32>
    %244 = arith.mulf %232, %243 : vector<8x16xf32>
    %245 = vector.broadcast %17 : vector<1x16xf32> to vector<8x16xf32>
    %246 = arith.addf %245, %244 : vector<8x16xf32>
    %247 = math.tanh %246 : vector<8x16xf32>
    %cst_90 = arith.constant 1.000000e+00 : f32
    %248 = vector.broadcast %cst_90 : f32 to vector<8x16xf32>
    %249 = arith.subf %248, %240 : vector<8x16xf32>
    %250 = arith.mulf %249, %247 : vector<8x16xf32>
    %251 = arith.mulf %240, %223 : vector<8x16xf32>
    %252 = arith.addf %250, %251 : vector<8x16xf32>
    %c56 = arith.constant 56 : index
    %c0_91 = arith.constant 0 : index
    %253 = vector.load %arg9[%c56, %c0_91] : memref<64x16xf32, #tpu.memory_space<vmem>>, vector<8x16xf32>
    tpu.vector_store %arg9[%c56, %c0_91], %252 {strides = array<i32>} : memref<64x16xf32, #tpu.memory_space<vmem>>, vector<8x16xf32>,
    %c1_92 = arith.constant 1 : index
    %c0_93 = arith.constant 0 : index
    %c0_94 = arith.constant 0 : index
    %c0_95 = arith.constant 0 : index
    %254 = vector.load %arg2[%c1_92, %c0_93, %c0_94, %c0_95] : memref<2x3x16x16xf32, #tpu.memory_space<vmem>>, vector<1x1x16x16xf32>
    %255 = vector.shape_cast %254 : vector<1x1x16x16xf32> to vector<16x16xf32>
    %c1_96 = arith.constant 1 : index
    %c1_97 = arith.constant 1 : index
    %c0_98 = arith.constant 0 : index
    %c0_99 = arith.constant 0 : index
    %256 = vector.load %arg2[%c1_96, %c1_97, %c0_98, %c0_99] : memref<2x3x16x16xf32, #tpu.memory_space<vmem>>, vector<1x1x16x16xf32>
    %257 = vector.shape_cast %256 : vector<1x1x16x16xf32> to vector<16x16xf32>
    %c1_100 = arith.constant 1 : index
    %c2_101 = arith.constant 2 : index
    %c0_102 = arith.constant 0 : index
    %c0_103 = arith.constant 0 : index
    %258 = vector.load %arg2[%c1_100, %c2_101, %c0_102, %c0_103] : memref<2x3x16x16xf32, #tpu.memory_space<vmem>>, vector<1x1x16x16xf32>
    %259 = vector.shape_cast %258 : vector<1x1x16x16xf32> to vector<16x16xf32>
    %c1_104 = arith.constant 1 : index
    %c0_105 = arith.constant 0 : index
    %c0_106 = arith.constant 0 : index
    %c0_107 = arith.constant 0 : index
    %260 = vector.load %arg3[%c1_104, %c0_105, %c0_106, %c0_107] : memref<2x3x1x16xf32, #tpu.memory_space<vmem>>, vector<1x1x1x16xf32>
    %261 = vector.shape_cast %260 : vector<1x1x1x16xf32> to vector<1x16xf32>
    %c1_108 = arith.constant 1 : index
    %c0_109 = arith.constant 0 : index
    %c0_110 = arith.constant 0 : index
    %c0_111 = arith.constant 0 : index
    %262 = vector.load %arg4[%c1_108, %c0_109, %c0_110, %c0_111] : memref<2x3x1x16xf32, #tpu.memory_space<vmem>>, vector<1x1x1x16xf32>
    %263 = vector.shape_cast %262 : vector<1x1x1x16xf32> to vector<1x16xf32>
    %264 = arith.addf %261, %263 : vector<1x16xf32>
    %c1_112 = arith.constant 1 : index
    %c1_113 = arith.constant 1 : index
    %c0_114 = arith.constant 0 : index
    %c0_115 = arith.constant 0 : index
    %265 = vector.load %arg3[%c1_112, %c1_113, %c0_114, %c0_115] : memref<2x3x1x16xf32, #tpu.memory_space<vmem>>, vector<1x1x1x16xf32>
    %266 = vector.shape_cast %265 : vector<1x1x1x16xf32> to vector<1x16xf32>
    %c1_116 = arith.constant 1 : index
    %c1_117 = arith.constant 1 : index
    %c0_118 = arith.constant 0 : index
    %c0_119 = arith.constant 0 : index
    %267 = vector.load %arg4[%c1_116, %c1_117, %c0_118, %c0_119] : memref<2x3x1x16xf32, #tpu.memory_space<vmem>>, vector<1x1x1x16xf32>
    %268 = vector.shape_cast %267 : vector<1x1x1x16xf32> to vector<1x16xf32>
    %269 = arith.addf %266, %268 : vector<1x16xf32>
    %c1_120 = arith.constant 1 : index
    %c2_121 = arith.constant 2 : index
    %c0_122 = arith.constant 0 : index
    %c0_123 = arith.constant 0 : index
    %270 = vector.load %arg3[%c1_120, %c2_121, %c0_122, %c0_123] : memref<2x3x1x16xf32, #tpu.memory_space<vmem>>, vector<1x1x1x16xf32>
    %271 = vector.shape_cast %270 : vector<1x1x1x16xf32> to vector<1x16xf32>
    %c1_124 = arith.constant 1 : index
    %c2_125 = arith.constant 2 : index
    %c0_126 = arith.constant 0 : index
    %c0_127 = arith.constant 0 : index
    %272 = vector.load %arg4[%c1_124, %c2_125, %c0_126, %c0_127] : memref<2x3x1x16xf32, #tpu.memory_space<vmem>>, vector<1x1x1x16xf32>
    %273 = vector.shape_cast %272 : vector<1x1x1x16xf32> to vector<1x16xf32>
    %c1_128 = arith.constant 1 : index
    %c0_129 = arith.constant 0 : index
    %c0_130 = arith.constant 0 : index
    %274 = vector.load %arg1[%c1_128, %c0_129, %c0_130] : memref<2x8x16xf32, #tpu.memory_space<vmem>>, vector<1x8x16xf32>
    %275 = vector.shape_cast %274 : vector<1x8x16xf32> to vector<8x16xf32>
    %cst_131 = arith.constant dense<0.000000e+00> : vector<8x16xf32>
    %276 = tpu.matmul %275, %255, %cst_131 {dimension_numbers = #tpu.dot_dimension_numbers<[1], [0], [0], [1], [0, 0, 1, 1], [], []>} : vector<8x16xf32>, vector<16x16xf32>, vector<8x16xf32> -> vector<8x16xf32>
    %277 = vector.broadcast %264 : vector<1x16xf32> to vector<8x16xf32>
    %278 = arith.addf %276, %277 : vector<8x16xf32>
    %279 = arith.negf %278 : vector<8x16xf32>
    %280 = math.exp %279 : vector<8x16xf32>
    %cst_132 = arith.constant 1.000000e+00 : f32
    %281 = vector.broadcast %cst_132 : f32 to vector<8x16xf32>
    %282 = arith.addf %281, %280 : vector<8x16xf32>
    %283 = arith.divf %281, %282 : vector<8x16xf32>
    %cst_133 = arith.constant dense<0.000000e+00> : vector<8x16xf32>
    %284 = tpu.matmul %275, %257, %cst_133 {dimension_numbers = #tpu.dot_dimension_numbers<[1], [0], [0], [1], [0, 0, 1, 1], [], []>} : vector<8x16xf32>, vector<16x16xf32>, vector<8x16xf32> -> vector<8x16xf32>
    %285 = vector.broadcast %269 : vector<1x16xf32> to vector<8x16xf32>
    %286 = arith.addf %284, %285 : vector<8x16xf32>
    %287 = arith.negf %286 : vector<8x16xf32>
    %288 = math.exp %287 : vector<8x16xf32>
    %cst_134 = arith.constant 1.000000e+00 : f32
    %289 = vector.broadcast %cst_134 : f32 to vector<8x16xf32>
    %290 = arith.addf %289, %288 : vector<8x16xf32>
    %291 = arith.divf %289, %290 : vector<8x16xf32>
    %cst_135 = arith.constant dense<0.000000e+00> : vector<8x16xf32>
    %292 = tpu.matmul %275, %259, %cst_135 {dimension_numbers = #tpu.dot_dimension_numbers<[1], [0], [0], [1], [0, 0, 1, 1], [], []>} : vector<8x16xf32>, vector<16x16xf32>, vector<8x16xf32> -> vector<8x16xf32>
    %293 = vector.broadcast %273 : vector<1x16xf32> to vector<8x16xf32>
    %294 = arith.addf %292, %293 : vector<8x16xf32>
    %295 = arith.mulf %283, %294 : vector<8x16xf32>
    %296 = vector.broadcast %271 : vector<1x16xf32> to vector<8x16xf32>
    %297 = arith.addf %296, %295 : vector<8x16xf32>
    %298 = math.tanh %297 : vector<8x16xf32>
    %cst_136 = arith.constant 1.000000e+00 : f32
    %299 = vector.broadcast %cst_136 : f32 to vector<8x16xf32>
    %300 = arith.subf %299, %291 : vector<8x16xf32>
    %301 = arith.mulf %300, %298 : vector<8x16xf32>
    %302 = arith.mulf %291, %275 : vector<8x16xf32>
    %303 = arith.addf %301, %302 : vector<8x16xf32>
    %c56_137 = arith.constant 56 : index
    %c0_138 = arith.constant 0 : index
    %304 = vector.load %arg10[%c56_137, %c0_138] : memref<64x16xf32, #tpu.memory_space<vmem>>, vector<8x16xf32>
    tpu.vector_store %arg10[%c56_137, %c0_138], %303 {strides = array<i32>} : memref<64x16xf32, #tpu.memory_space<vmem>>, vector<8x16xf32>,
    %cst_139 = arith.constant dense<0.000000e+00> : vector<8x16xf32>
    %305 = tpu.matmul %303, %255, %cst_139 {dimension_numbers = #tpu.dot_dimension_numbers<[1], [0], [0], [1], [0, 0, 1, 1], [], []>} : vector<8x16xf32>, vector<16x16xf32>, vector<8x16xf32> -> vector<8x16xf32>
    %306 = vector.broadcast %264 : vector<1x16xf32> to vector<8x16xf32>
    %307 = arith.addf %305, %306 : vector<8x16xf32>
    %308 = arith.negf %307 : vector<8x16xf32>
    %309 = math.exp %308 : vector<8x16xf32>
    %cst_140 = arith.constant 1.000000e+00 : f32
    %310 = vector.broadcast %cst_140 : f32 to vector<8x16xf32>
    %311 = arith.addf %310, %309 : vector<8x16xf32>
    %312 = arith.divf %310, %311 : vector<8x16xf32>
    %cst_141 = arith.constant dense<0.000000e+00> : vector<8x16xf32>
    %313 = tpu.matmul %303, %257, %cst_141 {dimension_numbers = #tpu.dot_dimension_numbers<[1], [0], [0], [1], [0, 0, 1, 1], [], []>} : vector<8x16xf32>, vector<16x16xf32>, vector<8x16xf32> -> vector<8x16xf32>
    %314 = vector.broadcast %269 : vector<1x16xf32> to vector<8x16xf32>
    %315 = arith.addf %313, %314 : vector<8x16xf32>
    %316 = arith.negf %315 : vector<8x16xf32>
    %317 = math.exp %316 : vector<8x16xf32>
    %cst_142 = arith.constant 1.000000e+00 : f32
    %318 = vector.broadcast %cst_142 : f32 to vector<8x16xf32>
    %319 = arith.addf %318, %317 : vector<8x16xf32>
    %320 = arith.divf %318, %319 : vector<8x16xf32>
    %cst_143 = arith.constant dense<0.000000e+00> : vector<8x16xf32>
    %321 = tpu.matmul %303, %259, %cst_143 {dimension_numbers = #tpu.dot_dimension_numbers<[1], [0], [0], [1], [0, 0, 1, 1], [], []>} : vector<8x16xf32>, vector<16x16xf32>, vector<8x16xf32> -> vector<8x16xf32>
    %322 = vector.broadcast %273 : vector<1x16xf32> to vector<8x16xf32>
    %323 = arith.addf %321, %322 : vector<8x16xf32>
    %324 = arith.mulf %312, %323 : vector<8x16xf32>
    %325 = vector.broadcast %271 : vector<1x16xf32> to vector<8x16xf32>
    %326 = arith.addf %325, %324 : vector<8x16xf32>
    %327 = math.tanh %326 : vector<8x16xf32>
    %cst_144 = arith.constant 1.000000e+00 : f32
    %328 = vector.broadcast %cst_144 : f32 to vector<8x16xf32>
    %329 = arith.subf %328, %320 : vector<8x16xf32>
    %330 = arith.mulf %329, %327 : vector<8x16xf32>
    %331 = arith.mulf %320, %303 : vector<8x16xf32>
    %332 = arith.addf %330, %331 : vector<8x16xf32>
    %c48_145 = arith.constant 48 : index
    %c0_146 = arith.constant 0 : index
    %333 = vector.load %arg10[%c48_145, %c0_146] : memref<64x16xf32, #tpu.memory_space<vmem>>, vector<8x16xf32>
    tpu.vector_store %arg10[%c48_145, %c0_146], %332 {strides = array<i32>} : memref<64x16xf32, #tpu.memory_space<vmem>>, vector<8x16xf32>,
    %cst_147 = arith.constant dense<0.000000e+00> : vector<8x16xf32>
    %334 = tpu.matmul %332, %255, %cst_147 {dimension_numbers = #tpu.dot_dimension_numbers<[1], [0], [0], [1], [0, 0, 1, 1], [], []>} : vector<8x16xf32>, vector<16x16xf32>, vector<8x16xf32> -> vector<8x16xf32>
    %335 = vector.broadcast %264 : vector<1x16xf32> to vector<8x16xf32>
    %336 = arith.addf %334, %335 : vector<8x16xf32>
    %337 = arith.negf %336 : vector<8x16xf32>
    %338 = math.exp %337 : vector<8x16xf32>
    %cst_148 = arith.constant 1.000000e+00 : f32
    %339 = vector.broadcast %cst_148 : f32 to vector<8x16xf32>
    %340 = arith.addf %339, %338 : vector<8x16xf32>
    %341 = arith.divf %339, %340 : vector<8x16xf32>
    %cst_149 = arith.constant dense<0.000000e+00> : vector<8x16xf32>
    %342 = tpu.matmul %332, %257, %cst_149 {dimension_numbers = #tpu.dot_dimension_numbers<[1], [0], [0], [1], [0, 0, 1, 1], [], []>} : vector<8x16xf32>, vector<16x16xf32>, vector<8x16xf32> -> vector<8x16xf32>
    %343 = vector.broadcast %269 : vector<1x16xf32> to vector<8x16xf32>
    %344 = arith.addf %342, %343 : vector<8x16xf32>
    %345 = arith.negf %344 : vector<8x16xf32>
    %346 = math.exp %345 : vector<8x16xf32>
    %cst_150 = arith.constant 1.000000e+00 : f32
    %347 = vector.broadcast %cst_150 : f32 to vector<8x16xf32>
    %348 = arith.addf %347, %346 : vector<8x16xf32>
    %349 = arith.divf %347, %348 : vector<8x16xf32>
    %cst_151 = arith.constant dense<0.000000e+00> : vector<8x16xf32>
    %350 = tpu.matmul %332, %259, %cst_151 {dimension_numbers = #tpu.dot_dimension_numbers<[1], [0], [0], [1], [0, 0, 1, 1], [], []>} : vector<8x16xf32>, vector<16x16xf32>, vector<8x16xf32> -> vector<8x16xf32>
    %351 = vector.broadcast %273 : vector<1x16xf32> to vector<8x16xf32>
    %352 = arith.addf %350, %351 : vector<8x16xf32>
    %353 = arith.mulf %341, %352 : vector<8x16xf32>
    %354 = vector.broadcast %271 : vector<1x16xf32> to vector<8x16xf32>
    %355 = arith.addf %354, %353 : vector<8x16xf32>
    %356 = math.tanh %355 : vector<8x16xf32>
    %cst_152 = arith.constant 1.000000e+00 : f32
    %357 = vector.broadcast %cst_152 : f32 to vector<8x16xf32>
    %358 = arith.subf %357, %349 : vector<8x16xf32>
    %359 = arith.mulf %358, %356 : vector<8x16xf32>
    %360 = arith.mulf %349, %332 : vector<8x16xf32>
    %361 = arith.addf %359, %360 : vector<8x16xf32>
    %c40_153 = arith.constant 40 : index
    %c0_154 = arith.constant 0 : index
    %362 = vector.load %arg10[%c40_153, %c0_154] : memref<64x16xf32, #tpu.memory_space<vmem>>, vector<8x16xf32>
    tpu.vector_store %arg10[%c40_153, %c0_154], %361 {strides = array<i32>} : memref<64x16xf32, #tpu.memory_space<vmem>>, vector<8x16xf32>,
    %cst_155 = arith.constant dense<0.000000e+00> : vector<8x16xf32>
    %363 = tpu.matmul %361, %255, %cst_155 {dimension_numbers = #tpu.dot_dimension_numbers<[1], [0], [0], [1], [0, 0, 1, 1], [], []>} : vector<8x16xf32>, vector<16x16xf32>, vector<8x16xf32> -> vector<8x16xf32>
    %364 = vector.broadcast %264 : vector<1x16xf32> to vector<8x16xf32>
    %365 = arith.addf %363, %364 : vector<8x16xf32>
    %366 = arith.negf %365 : vector<8x16xf32>
    %367 = math.exp %366 : vector<8x16xf32>
    %cst_156 = arith.constant 1.000000e+00 : f32
    %368 = vector.broadcast %cst_156 : f32 to vector<8x16xf32>
    %369 = arith.addf %368, %367 : vector<8x16xf32>
    %370 = arith.divf %368, %369 : vector<8x16xf32>
    %cst_157 = arith.constant dense<0.000000e+00> : vector<8x16xf32>
    %371 = tpu.matmul %361, %257, %cst_157 {dimension_numbers = #tpu.dot_dimension_numbers<[1], [0], [0], [1], [0, 0, 1, 1], [], []>} : vector<8x16xf32>, vector<16x16xf32>, vector<8x16xf32> -> vector<8x16xf32>
    %372 = vector.broadcast %269 : vector<1x16xf32> to vector<8x16xf32>
    %373 = arith.addf %371, %372 : vector<8x16xf32>
    %374 = arith.negf %373 : vector<8x16xf32>
    %375 = math.exp %374 : vector<8x16xf32>
    %cst_158 = arith.constant 1.000000e+00 : f32
    %376 = vector.broadcast %cst_158 : f32 to vector<8x16xf32>
    %377 = arith.addf %376, %375 : vector<8x16xf32>
    %378 = arith.divf %376, %377 : vector<8x16xf32>
    %cst_159 = arith.constant dense<0.000000e+00> : vector<8x16xf32>
    %379 = tpu.matmul %361, %259, %cst_159 {dimension_numbers = #tpu.dot_dimension_numbers<[1], [0], [0], [1], [0, 0, 1, 1], [], []>} : vector<8x16xf32>, vector<16x16xf32>, vector<8x16xf32> -> vector<8x16xf32>
    %380 = vector.broadcast %273 : vector<1x16xf32> to vector<8x16xf32>
    %381 = arith.addf %379, %380 : vector<8x16xf32>
    %382 = arith.mulf %370, %381 : vector<8x16xf32>
    %383 = vector.broadcast %271 : vector<1x16xf32> to vector<8x16xf32>
    %384 = arith.addf %383, %382 : vector<8x16xf32>
    %385 = math.tanh %384 : vector<8x16xf32>
    %cst_160 = arith.constant 1.000000e+00 : f32
    %386 = vector.broadcast %cst_160 : f32 to vector<8x16xf32>
    %387 = arith.subf %386, %378 : vector<8x16xf32>
    %388 = arith.mulf %387, %385 : vector<8x16xf32>
    %389 = arith.mulf %378, %361 : vector<8x16xf32>
    %390 = arith.addf %388, %389 : vector<8x16xf32>
    %c32_161 = arith.constant 32 : index
    %c0_162 = arith.constant 0 : index
    %391 = vector.load %arg10[%c32_161, %c0_162] : memref<64x16xf32, #tpu.memory_space<vmem>>, vector<8x16xf32>
    tpu.vector_store %arg10[%c32_161, %c0_162], %390 {strides = array<i32>} : memref<64x16xf32, #tpu.memory_space<vmem>>, vector<8x16xf32>,
    %cst_163 = arith.constant dense<0.000000e+00> : vector<8x16xf32>
    %392 = tpu.matmul %390, %255, %cst_163 {dimension_numbers = #tpu.dot_dimension_numbers<[1], [0], [0], [1], [0, 0, 1, 1], [], []>} : vector<8x16xf32>, vector<16x16xf32>, vector<8x16xf32> -> vector<8x16xf32>
    %393 = vector.broadcast %264 : vector<1x16xf32> to vector<8x16xf32>
    %394 = arith.addf %392, %393 : vector<8x16xf32>
    %395 = arith.negf %394 : vector<8x16xf32>
    %396 = math.exp %395 : vector<8x16xf32>
    %cst_164 = arith.constant 1.000000e+00 : f32
    %397 = vector.broadcast %cst_164 : f32 to vector<8x16xf32>
    %398 = arith.addf %397, %396 : vector<8x16xf32>
    %399 = arith.divf %397, %398 : vector<8x16xf32>
    %cst_165 = arith.constant dense<0.000000e+00> : vector<8x16xf32>
    %400 = tpu.matmul %390, %257, %cst_165 {dimension_numbers = #tpu.dot_dimension_numbers<[1], [0], [0], [1], [0, 0, 1, 1], [], []>} : vector<8x16xf32>, vector<16x16xf32>, vector<8x16xf32> -> vector<8x16xf32>
    %401 = vector.broadcast %269 : vector<1x16xf32> to vector<8x16xf32>
    %402 = arith.addf %400, %401 : vector<8x16xf32>
    %403 = arith.negf %402 : vector<8x16xf32>
    %404 = math.exp %403 : vector<8x16xf32>
    %cst_166 = arith.constant 1.000000e+00 : f32
    %405 = vector.broadcast %cst_166 : f32 to vector<8x16xf32>
    %406 = arith.addf %405, %404 : vector<8x16xf32>
    %407 = arith.divf %405, %406 : vector<8x16xf32>
    %cst_167 = arith.constant dense<0.000000e+00> : vector<8x16xf32>
    %408 = tpu.matmul %390, %259, %cst_167 {dimension_numbers = #tpu.dot_dimension_numbers<[1], [0], [0], [1], [0, 0, 1, 1], [], []>} : vector<8x16xf32>, vector<16x16xf32>, vector<8x16xf32> -> vector<8x16xf32>
    %409 = vector.broadcast %273 : vector<1x16xf32> to vector<8x16xf32>
    %410 = arith.addf %408, %409 : vector<8x16xf32>
    %411 = arith.mulf %399, %410 : vector<8x16xf32>
    %412 = vector.broadcast %271 : vector<1x16xf32> to vector<8x16xf32>
    %413 = arith.addf %412, %411 : vector<8x16xf32>
    %414 = math.tanh %413 : vector<8x16xf32>
    %cst_168 = arith.constant 1.000000e+00 : f32
    %415 = vector.broadcast %cst_168 : f32 to vector<8x16xf32>
    %416 = arith.subf %415, %407 : vector<8x16xf32>
    %417 = arith.mulf %416, %414 : vector<8x16xf32>
    %418 = arith.mulf %407, %390 : vector<8x16xf32>
    %419 = arith.addf %417, %418 : vector<8x16xf32>
    %c24_169 = arith.constant 24 : index
    %c0_170 = arith.constant 0 : index
    %420 = vector.load %arg10[%c24_169, %c0_170] : memref<64x16xf32, #tpu.memory_space<vmem>>, vector<8x16xf32>
    tpu.vector_store %arg10[%c24_169, %c0_170], %419 {strides = array<i32>} : memref<64x16xf32, #tpu.memory_space<vmem>>, vector<8x16xf32>,
    %cst_171 = arith.constant dense<0.000000e+00> : vector<8x16xf32>
    %421 = tpu.matmul %419, %255, %cst_171 {dimension_numbers = #tpu.dot_dimension_numbers<[1], [0], [0], [1], [0, 0, 1, 1], [], []>} : vector<8x16xf32>, vector<16x16xf32>, vector<8x16xf32> -> vector<8x16xf32>
    %422 = vector.broadcast %264 : vector<1x16xf32> to vector<8x16xf32>
    %423 = arith.addf %421, %422 : vector<8x16xf32>
    %424 = arith.negf %423 : vector<8x16xf32>
    %425 = math.exp %424 : vector<8x16xf32>
    %cst_172 = arith.constant 1.000000e+00 : f32
    %426 = vector.broadcast %cst_172 : f32 to vector<8x16xf32>
    %427 = arith.addf %426, %425 : vector<8x16xf32>
    %428 = arith.divf %426, %427 : vector<8x16xf32>
    %cst_173 = arith.constant dense<0.000000e+00> : vector<8x16xf32>
    %429 = tpu.matmul %419, %257, %cst_173 {dimension_numbers = #tpu.dot_dimension_numbers<[1], [0], [0], [1], [0, 0, 1, 1], [], []>} : vector<8x16xf32>, vector<16x16xf32>, vector<8x16xf32> -> vector<8x16xf32>
    %430 = vector.broadcast %269 : vector<1x16xf32> to vector<8x16xf32>
    %431 = arith.addf %429, %430 : vector<8x16xf32>
    %432 = arith.negf %431 : vector<8x16xf32>
    %433 = math.exp %432 : vector<8x16xf32>
    %cst_174 = arith.constant 1.000000e+00 : f32
    %434 = vector.broadcast %cst_174 : f32 to vector<8x16xf32>
    %435 = arith.addf %434, %433 : vector<8x16xf32>
    %436 = arith.divf %434, %435 : vector<8x16xf32>
    %cst_175 = arith.constant dense<0.000000e+00> : vector<8x16xf32>
    %437 = tpu.matmul %419, %259, %cst_175 {dimension_numbers = #tpu.dot_dimension_numbers<[1], [0], [0], [1], [0, 0, 1, 1], [], []>} : vector<8x16xf32>, vector<16x16xf32>, vector<8x16xf32> -> vector<8x16xf32>
    %438 = vector.broadcast %273 : vector<1x16xf32> to vector<8x16xf32>
    %439 = arith.addf %437, %438 : vector<8x16xf32>
    %440 = arith.mulf %428, %439 : vector<8x16xf32>
    %441 = vector.broadcast %271 : vector<1x16xf32> to vector<8x16xf32>
    %442 = arith.addf %441, %440 : vector<8x16xf32>
    %443 = math.tanh %442 : vector<8x16xf32>
    %cst_176 = arith.constant 1.000000e+00 : f32
    %444 = vector.broadcast %cst_176 : f32 to vector<8x16xf32>
    %445 = arith.subf %444, %436 : vector<8x16xf32>
    %446 = arith.mulf %445, %443 : vector<8x16xf32>
    %447 = arith.mulf %436, %419 : vector<8x16xf32>
    %448 = arith.addf %446, %447 : vector<8x16xf32>
    %c16_177 = arith.constant 16 : index
    %c0_178 = arith.constant 0 : index
    %449 = vector.load %arg10[%c16_177, %c0_178] : memref<64x16xf32, #tpu.memory_space<vmem>>, vector<8x16xf32>
    tpu.vector_store %arg10[%c16_177, %c0_178], %448 {strides = array<i32>} : memref<64x16xf32, #tpu.memory_space<vmem>>, vector<8x16xf32>,
    %cst_179 = arith.constant dense<0.000000e+00> : vector<8x16xf32>
    %450 = tpu.matmul %448, %255, %cst_179 {dimension_numbers = #tpu.dot_dimension_numbers<[1], [0], [0], [1], [0, 0, 1, 1], [], []>} : vector<8x16xf32>, vector<16x16xf32>, vector<8x16xf32> -> vector<8x16xf32>
    %451 = vector.broadcast %264 : vector<1x16xf32> to vector<8x16xf32>
    %452 = arith.addf %450, %451 : vector<8x16xf32>
    %453 = arith.negf %452 : vector<8x16xf32>
    %454 = math.exp %453 : vector<8x16xf32>
    %cst_180 = arith.constant 1.000000e+00 : f32
    %455 = vector.broadcast %cst_180 : f32 to vector<8x16xf32>
    %456 = arith.addf %455, %454 : vector<8x16xf32>
    %457 = arith.divf %455, %456 : vector<8x16xf32>
    %cst_181 = arith.constant dense<0.000000e+00> : vector<8x16xf32>
    %458 = tpu.matmul %448, %257, %cst_181 {dimension_numbers = #tpu.dot_dimension_numbers<[1], [0], [0], [1], [0, 0, 1, 1], [], []>} : vector<8x16xf32>, vector<16x16xf32>, vector<8x16xf32> -> vector<8x16xf32>
    %459 = vector.broadcast %269 : vector<1x16xf32> to vector<8x16xf32>
    %460 = arith.addf %458, %459 : vector<8x16xf32>
    %461 = arith.negf %460 : vector<8x16xf32>
    %462 = math.exp %461 : vector<8x16xf32>
    %cst_182 = arith.constant 1.000000e+00 : f32
    %463 = vector.broadcast %cst_182 : f32 to vector<8x16xf32>
    %464 = arith.addf %463, %462 : vector<8x16xf32>
    %465 = arith.divf %463, %464 : vector<8x16xf32>
    %cst_183 = arith.constant dense<0.000000e+00> : vector<8x16xf32>
    %466 = tpu.matmul %448, %259, %cst_183 {dimension_numbers = #tpu.dot_dimension_numbers<[1], [0], [0], [1], [0, 0, 1, 1], [], []>} : vector<8x16xf32>, vector<16x16xf32>, vector<8x16xf32> -> vector<8x16xf32>
    %467 = vector.broadcast %273 : vector<1x16xf32> to vector<8x16xf32>
    %468 = arith.addf %466, %467 : vector<8x16xf32>
    %469 = arith.mulf %457, %468 : vector<8x16xf32>
    %470 = vector.broadcast %271 : vector<1x16xf32> to vector<8x16xf32>
    %471 = arith.addf %470, %469 : vector<8x16xf32>
    %472 = math.tanh %471 : vector<8x16xf32>
    %cst_184 = arith.constant 1.000000e+00 : f32
    %473 = vector.broadcast %cst_184 : f32 to vector<8x16xf32>
    %474 = arith.subf %473, %465 : vector<8x16xf32>
    %475 = arith.mulf %474, %472 : vector<8x16xf32>
    %476 = arith.mulf %465, %448 : vector<8x16xf32>
    %477 = arith.addf %475, %476 : vector<8x16xf32>
    %c8_185 = arith.constant 8 : index
    %c0_186 = arith.constant 0 : index
    %478 = vector.load %arg10[%c8_185, %c0_186] : memref<64x16xf32, #tpu.memory_space<vmem>>, vector<8x16xf32>
    tpu.vector_store %arg10[%c8_185, %c0_186], %477 {strides = array<i32>} : memref<64x16xf32, #tpu.memory_space<vmem>>, vector<8x16xf32>,
    %cst_187 = arith.constant dense<0.000000e+00> : vector<8x16xf32>
    %479 = tpu.matmul %477, %255, %cst_187 {dimension_numbers = #tpu.dot_dimension_numbers<[1], [0], [0], [1], [0, 0, 1, 1], [], []>} : vector<8x16xf32>, vector<16x16xf32>, vector<8x16xf32> -> vector<8x16xf32>
    %480 = vector.broadcast %264 : vector<1x16xf32> to vector<8x16xf32>
    %481 = arith.addf %479, %480 : vector<8x16xf32>
    %482 = arith.negf %481 : vector<8x16xf32>
    %483 = math.exp %482 : vector<8x16xf32>
    %cst_188 = arith.constant 1.000000e+00 : f32
    %484 = vector.broadcast %cst_188 : f32 to vector<8x16xf32>
    %485 = arith.addf %484, %483 : vector<8x16xf32>
    %486 = arith.divf %484, %485 : vector<8x16xf32>
    %cst_189 = arith.constant dense<0.000000e+00> : vector<8x16xf32>
    %487 = tpu.matmul %477, %257, %cst_189 {dimension_numbers = #tpu.dot_dimension_numbers<[1], [0], [0], [1], [0, 0, 1, 1], [], []>} : vector<8x16xf32>, vector<16x16xf32>, vector<8x16xf32> -> vector<8x16xf32>
    %488 = vector.broadcast %269 : vector<1x16xf32> to vector<8x16xf32>
    %489 = arith.addf %487, %488 : vector<8x16xf32>
    %490 = arith.negf %489 : vector<8x16xf32>
    %491 = math.exp %490 : vector<8x16xf32>
    %cst_190 = arith.constant 1.000000e+00 : f32
    %492 = vector.broadcast %cst_190 : f32 to vector<8x16xf32>
    %493 = arith.addf %492, %491 : vector<8x16xf32>
    %494 = arith.divf %492, %493 : vector<8x16xf32>
    %cst_191 = arith.constant dense<0.000000e+00> : vector<8x16xf32>
    %495 = tpu.matmul %477, %259, %cst_191 {dimension_numbers = #tpu.dot_dimension_numbers<[1], [0], [0], [1], [0, 0, 1, 1], [], []>} : vector<8x16xf32>, vector<16x16xf32>, vector<8x16xf32> -> vector<8x16xf32>
    %496 = vector.broadcast %273 : vector<1x16xf32> to vector<8x16xf32>
    %497 = arith.addf %495, %496 : vector<8x16xf32>
    %498 = arith.mulf %486, %497 : vector<8x16xf32>
    %499 = vector.broadcast %271 : vector<1x16xf32> to vector<8x16xf32>
    %500 = arith.addf %499, %498 : vector<8x16xf32>
    %501 = math.tanh %500 : vector<8x16xf32>
    %cst_192 = arith.constant 1.000000e+00 : f32
    %502 = vector.broadcast %cst_192 : f32 to vector<8x16xf32>
    %503 = arith.subf %502, %494 : vector<8x16xf32>
    %504 = arith.mulf %503, %501 : vector<8x16xf32>
    %505 = arith.mulf %494, %477 : vector<8x16xf32>
    %506 = arith.addf %504, %505 : vector<8x16xf32>
    %c0_193 = arith.constant 0 : index
    %c0_194 = arith.constant 0 : index
    %507 = vector.load %arg10[%c0_193, %c0_194] : memref<64x16xf32, #tpu.memory_space<vmem>>, vector<8x16xf32>
    tpu.vector_store %arg10[%c0_193, %c0_194], %506 {strides = array<i32>} : memref<64x16xf32, #tpu.memory_space<vmem>>, vector<8x16xf32>,
    %c0_195 = arith.constant 0 : index
    %c0_196 = arith.constant 0 : index
    %508 = vector.load %arg9[%c0_195, %c0_196] : memref<64x16xf32, #tpu.memory_space<vmem>>, vector<64x16xf32>
    %c0_197 = arith.constant 0 : index
    %c0_198 = arith.constant 0 : index
    %509 = vector.load %arg5[%c0_197, %c0_198] : memref<16x3xf32, #tpu.memory_space<vmem>>, vector<16x3xf32>
    %cst_199 = arith.constant dense<0.000000e+00> : vector<64x3xf32>
    %510 = tpu.matmul %508, %509, %cst_199 {dimension_numbers = #tpu.dot_dimension_numbers<[1], [0], [0], [1], [0, 0, 1, 1], [], []>} : vector<64x16xf32>, vector<16x3xf32>, vector<64x3xf32> -> vector<64x3xf32>
    %c0_200 = arith.constant 0 : index
    %c0_201 = arith.constant 0 : index
    %511 = vector.load %arg10[%c0_200, %c0_201] : memref<64x16xf32, #tpu.memory_space<vmem>>, vector<64x16xf32>
    %c0_202 = arith.constant 0 : index
    %c0_203 = arith.constant 0 : index
    %512 = vector.load %arg6[%c0_202, %c0_203] : memref<16x3xf32, #tpu.memory_space<vmem>>, vector<16x3xf32>
    %cst_204 = arith.constant dense<0.000000e+00> : vector<64x3xf32>
    %513 = tpu.matmul %511, %512, %cst_204 {dimension_numbers = #tpu.dot_dimension_numbers<[1], [0], [0], [1], [0, 0, 1, 1], [], []>} : vector<64x16xf32>, vector<16x3xf32>, vector<64x3xf32> -> vector<64x3xf32>
    %514 = arith.addf %510, %513 : vector<64x3xf32>
    %c0_205 = arith.constant 0 : index
    %c0_206 = arith.constant 0 : index
    %515 = vector.load %arg7[%c0_205, %c0_206] : memref<1x3xf32, #tpu.memory_space<vmem>>, vector<1x3xf32>
    %516 = vector.broadcast %515 : vector<1x3xf32> to vector<64x3xf32>
    %517 = arith.addf %514, %516 : vector<64x3xf32>
    %518 = math.tanh %517 : vector<64x3xf32>
    %519 = vector.shape_cast %518 : vector<64x3xf32> to vector<8x8x3xf32>
    %c0_207 = arith.constant 0 : index
    %c0_208 = arith.constant 0 : index
    %c0_209 = arith.constant 0 : index
    %520 = vector.load %arg8[%c0_207, %c0_208, %c0_209] : memref<8x8x3xf32, #tpu.memory_space<vmem>>, vector<8x8x3xf32>
    tpu.vector_store %arg8[%c0_207, %c0_208, %c0_209], %519 {strides = array<i32>} : memref<8x8x3xf32, #tpu.memory_space<vmem>>, vector<8x8x3xf32>,
    return
  }
  func.func @transform_0(%arg0: i32) -> (i32, i32, i32) {
    %c0_i32 = arith.constant 0 : i32
    %c0_i32_0 = arith.constant 0 : i32
    %c0_i32_1 = arith.constant 0 : i32
    return %c0_i32, %arg0, %c0_i32_0 : i32, i32, i32
  }
  func.func @transform_1(%arg0: i32) -> (i32, i32, i32, i32) {
    %c0_i32 = arith.constant 0 : i32
    %c0_i32_0 = arith.constant 0 : i32
    %c0_i32_1 = arith.constant 0 : i32
    %c0_i32_2 = arith.constant 0 : i32
    %c0_i32_3 = arith.constant 0 : i32
    return %c0_i32, %c0_i32_0, %c0_i32_1, %c0_i32_2 : i32, i32, i32, i32
  }
  func.func @transform_2(%arg0: i32) -> (i32, i32, i32, i32) {
    %c0_i32 = arith.constant 0 : i32
    %c0_i32_0 = arith.constant 0 : i32
    %c0_i32_1 = arith.constant 0 : i32
    %c0_i32_2 = arith.constant 0 : i32
    %c0_i32_3 = arith.constant 0 : i32
    return %c0_i32, %c0_i32_0, %c0_i32_1, %c0_i32_2 : i32, i32, i32, i32
  }
  func.func @transform_3(%arg0: i32) -> (i32, i32, i32, i32) {
    %c0_i32 = arith.constant 0 : i32
    %c0_i32_0 = arith.constant 0 : i32
    %c0_i32_1 = arith.constant 0 : i32
    %c0_i32_2 = arith.constant 0 : i32
    %c0_i32_3 = arith.constant 0 : i32
    return %c0_i32, %c0_i32_0, %c0_i32_1, %c0_i32_2 : i32, i32, i32, i32
  }
  func.func @transform_4(%arg0: i32) -> (i32, i32) {
    %c0_i32 = arith.constant 0 : i32
    %c0_i32_0 = arith.constant 0 : i32
    %c0_i32_1 = arith.constant 0 : i32
    return %c0_i32, %c0_i32_0 : i32, i32
  }
  func.func @transform_5(%arg0: i32) -> (i32, i32) {
    %c0_i32 = arith.constant 0 : i32
    %c0_i32_0 = arith.constant 0 : i32
    %c0_i32_1 = arith.constant 0 : i32
    return %c0_i32, %c0_i32_0 : i32, i32
  }
  func.func @transform_6(%arg0: i32) -> (i32, i32) {
    %c0_i32 = arith.constant 0 : i32
    %c0_i32_0 = arith.constant 0 : i32
    %c0_i32_1 = arith.constant 0 : i32
    return %c0_i32, %c0_i32_0 : i32, i32
  }
  func.func @transform_7(%arg0: i32) -> (i32, i32, i32) {
    %c0_i32 = arith.constant 0 : i32
    %c0_i32_0 = arith.constant 0 : i32
    %c0_i32_1 = arith.constant 0 : i32
    return %c0_i32, %arg0, %c0_i32_0 : i32, i32, i32
  }
}

</mosaic_0001>

<llo_original>
// kernel: _lambda_.6
$region0: #{_lambda_.6}
  #allocation0 [shape = 'u32[]', space=smem, size = 0x4, offset = 0x4, fixed_abs, tag = 'smem constant byte address 0x4 - core index']
  #allocation1 [shape = 'u32[72,128]{1,0:T(1,128)}', space=vmem, size = 0x9000, scoped, tag = 'internal scratch']
  #allocation2 [shape = 'f32[32,4]{1,0:T(8,128)}', space=vmem, size = 0x4000, scoped, tag = 'scratch operand']
  #allocation3 [shape = 'f32[32,4]{1,0:T(8,128)}', space=vmem, size = 0x4000, scoped, tag = 'scratch operand']
  %s0 = inlined_call_operand.vmem [shape: f32[2,8,4], index: 0, kind: input, shape index: {}]
  %s1 = inlined_call_operand.vmem [shape: f32[2,3,4,4], index: 1, kind: input, shape index: {}]
  %s2 = inlined_call_operand.vmem [shape: f32[2,3,1,4], index: 2, kind: input, shape index: {}]
  %s3 = inlined_call_operand.vmem [shape: f32[2,3,1,4], index: 3, kind: input, shape index: {}]
  %s4 = inlined_call_operand.vmem [shape: f32[4,32], index: 4, kind: input, shape index: {}]
  %s5 = inlined_call_operand.vmem [shape: f32[4,32], index: 5, kind: input, shape index: {}]
  %s6 = inlined_call_operand.vmem [shape: f32[1,32], index: 6, kind: input, shape index: {}]
  %s7 = inlined_call_operand.vmem [shape: f32[4,8,32], index: 7, kind: output, shape index: {}]
  %s8 = sld [smem:[#allocation0]]
  $region38: #{_lambda_.6} parent=0
    _
  %s10 = ssub.s32 1, %s8
  %s11 = scalar_select 0, %s10, %s8
  // Predicated region
  $region2: #{_lambda_.6} parent=0 // pred_check
    _
  $region3: #{_lambda_.6} parent=0 // pred_check_branch
    %13 = sbr.rel (0) target = $region5
  $region4: #{_lambda_.6} parent=0 // pred_region
    _
  $region5: #{_lambda_.6} parent=0 // pred_fallthru
    _
  // Predicated region
  $region6: #{_lambda_.6} parent=0 // pred_check
    _
  $region7: #{_lambda_.6} parent=0 // pred_check_branch
    %15 = sbr.rel (0) target = $region9
  $region8: #{_lambda_.6} parent=0 // pred_region
    _
  $region9: #{_lambda_.6} parent=0 // pred_fallthru
    _
  // Predicated region
  $region10: #{_lambda_.6} parent=0 // pred_check
    _
  $region11: #{_lambda_.6} parent=0 // pred_check_branch
    %17 = sbr.rel (0) target = $region13
  $region12: #{_lambda_.6} parent=0 // pred_region
    _
  $region13: #{_lambda_.6} parent=0 // pred_fallthru
    _
  // Predicated region
  $region14: #{_lambda_.6} parent=0 // pred_check
    _
  $region15: #{_lambda_.6} parent=0 // pred_check_branch
    %19 = sbr.rel (0) target = $region17
  $region16: #{_lambda_.6} parent=0 // pred_region
    _
  $region17: #{_lambda_.6} parent=0 // pred_fallthru
    _
  // Predicated region
  $region18: #{_lambda_.6} parent=0 // pred_check
    _
  $region19: #{_lambda_.6} parent=0 // pred_check_branch
    %21 = sbr.rel (0) target = $region21
  $region20: #{_lambda_.6} parent=0 // pred_region
    _
  $region21: #{_lambda_.6} parent=0 // pred_fallthru
    _
  // Predicated region
  $region22: #{_lambda_.6} parent=0 // pred_check
    _
  $region23: #{_lambda_.6} parent=0 // pred_check_branch
    %23 = sbr.rel (0) target = $region25
  $region24: #{_lambda_.6} parent=0 // pred_region
    _
  $region25: #{_lambda_.6} parent=0 // pred_fallthru
    _
  // Predicated region
  $region26: #{_lambda_.6} parent=0 // pred_check
    _
  $region27: #{_lambda_.6} parent=0 // pred_check_branch
    %25 = sbr.rel (0) target = $region29
  $region28: #{_lambda_.6} parent=0 // pred_region
    _
  $region29: #{_lambda_.6} parent=0 // pred_fallthru
    _
  %v26 = vld [vmem:[%s1] sm:$0xf]
  %s27 = scalar_lea.vmem %s1, 4
  %v28 = vld [vmem:[%s27] sm:$0xf]
  %s29 = scalar_lea.vmem %s1, 8
  %v30 = vld [vmem:[%s29] sm:$0xf]
  %v31 = vld [vmem:[%s2] sm:$0x1]
  %v32 = vld [vmem:[%s3] sm:$0x1]
  %v33 = vadd.f32 %v31, %v32
  %s34 = scalar_lea.vmem %s2, 1
  %v35 = vld [vmem:[%s34] sm:$0x1]
  %s36 = scalar_lea.vmem %s3, 1
  %v37 = vld [vmem:[%s36] sm:$0x1]
  %v38 = vadd.f32 %v35, %v37
  %s39 = scalar_lea.vmem %s2, 2
  %v40 = vld [vmem:[%s39] sm:$0x1]
  %s41 = scalar_lea.vmem %s3, 2
  %v42 = vld [vmem:[%s41] sm:$0x1]
  %v43 = vld [vmem:[%s0] sm:$0xff]
  %v45 = vperm.slane %v33, 0
  %vm47 = vcmask 31744
  %v49 = vsel %vm47, %v43, 0
  %vm51 = vcmask 1043456
  %v53 = vsel %vm51, %v26, 0
  %55 = vmatpush.msra.mxu0 0.0
  %56 = vmatpush.msra.mxu0 0.0
  %57 = vmatpush.msra.mxu0 0.0
  %58 = vmatpush.msra.mxu0 0.0
  %59 = vmatpush.msra.mxu0 0.0
  %60 = vmatpush.msra.mxu0 0.0
  %61 = vmatpush.msra.mxu0 0.0
  %62 = vmatpush.msra.mxu0 0.0
  %63 = vmatpush.msra.mxu0 0.0
  %64 = vmatpush.msra.mxu0 0.0
  %65 = vmatpush.msra.mxu0 0.0
  %66 = vmatpush.msra.mxu0 0.0
  %67 = vmatpush.msra.mxu0 0.0
  %68 = vmatpush.msra.mxu0 0.0
  %69 = vmatpush.msra.mxu0 0.0
  %70 = vmatpush.msra.mxu0 %v53
  %71 = vmatmul.f32.gmra.mxu0 %v49
  %v72 = vpop.f32.mrf.mxu0
  %v73 = vadd.f32 %v45, %v72
  %74 = vdwg.mxu0
  %v75 = vxor.u32 %v73, 2147483648
  %v76 = vmul.f32 %v75, 1.442695
  %v77 = vpow.pop %v76
  %v78 = vadd.f32 %v77, 1.0
  %v79 = vrcp.pop %v78
  %v80 = vmul.f32 %v78, %v79
  %v81 = vsub.f32 1.0, %v80
  %v82 = vmul.f32 %v79, %v81
  %v83 = vadd.f32 %v79, %v82
  %vm84 = vweird.f32 %v78
  %vm85 = vweird.f32 %v79
  %vm86 = vmor %vm84, %vm85
  %v87 = vsel %vm86, %v79, %v83
  %v88 = vand.u32 2147483647, %v78
  %vm89 = vcmp.eq.f32.partialorder %v88, 8.507059e+37
  %v90 = vand.u32 %v78, 2147483648
  %v91 = vor.u32 1.1754944e-38, %v90
  %v92 = vsel %vm89, %v91, %v87
  %v93 = vmul.f32 1.0, %v92
  %v95 = vperm.slane %v38, 0
  %v98 = vsel %vm51, %v28, 0
  %100 = vmatpush.msra.mxu0 0.0
  %101 = vmatpush.msra.mxu0 0.0
  %102 = vmatpush.msra.mxu0 0.0
  %103 = vmatpush.msra.mxu0 0.0
  %104 = vmatpush.msra.mxu0 0.0
  %105 = vmatpush.msra.mxu0 0.0
  %106 = vmatpush.msra.mxu0 0.0
  %107 = vmatpush.msra.mxu0 0.0
  %108 = vmatpush.msra.mxu0 0.0
  %109 = vmatpush.msra.mxu0 0.0
  %110 = vmatpush.msra.mxu0 0.0
  %111 = vmatpush.msra.mxu0 0.0
  %112 = vmatpush.msra.mxu0 0.0
  %113 = vmatpush.msra.mxu0 0.0
  %114 = vmatpush.msra.mxu0 0.0
  %115 = vmatpush.msra.mxu0 %v98
  %116 = vmatmul.f32.gmra.mxu0 %v49
  %v117 = vpop.f32.mrf.mxu0
  %v118 = vadd.f32 %v95, %v117
  %119 = vdwg.mxu0
  %v120 = vxor.u32 %v118, 2147483648
  %v121 = vmul.f32 %v120, 1.442695
  %v122 = vpow.pop %v121
  %v123 = vadd.f32 %v122, 1.0
  %v124 = vrcp.pop %v123
  %v125 = vmul.f32 %v123, %v124
  %v126 = vsub.f32 1.0, %v125
  %v127 = vmul.f32 %v124, %v126
  %v128 = vadd.f32 %v124, %v127
  %vm129 = vweird.f32 %v123
  %vm130 = vweird.f32 %v124
  %vm131 = vmor %vm129, %vm130
  %v132 = vsel %vm131, %v124, %v128
  %v133 = vand.u32 2147483647, %v123
  %vm134 = vcmp.eq.f32.partialorder %v133, 8.507059e+37
  %v135 = vand.u32 %v123, 2147483648
  %v136 = vor.u32 1.1754944e-38, %v135
  %v137 = vsel %vm134, %v136, %v132
  %v138 = vmul.f32 1.0, %v137
  %v140 = vperm.slane %v42, 0
  %v143 = vsel %vm51, %v30, 0
  %145 = vmatpush.msra.mxu0 0.0
  %146 = vmatpush.msra.mxu0 0.0
  %147 = vmatpush.msra.mxu0 0.0
  %148 = vmatpush.msra.mxu0 0.0
  %149 = vmatpush.msra.mxu0 0.0
  %150 = vmatpush.msra.mxu0 0.0
  %151 = vmatpush.msra.mxu0 0.0
  %152 = vmatpush.msra.mxu0 0.0
  %153 = vmatpush.msra.mxu0 0.0
  %154 = vmatpush.msra.mxu0 0.0
  %155 = vmatpush.msra.mxu0 0.0
  %156 = vmatpush.msra.mxu0 0.0
  %157 = vmatpush.msra.mxu0 0.0
  %158 = vmatpush.msra.mxu0 0.0
  %159 = vmatpush.msra.mxu0 0.0
  %160 = vmatpush.msra.mxu0 %v143
  %161 = vmatmul.f32.gmra.mxu0 %v49
  %v162 = vpop.f32.mrf.mxu0
  %v163 = vadd.f32 %v140, %v162
  %164 = vdwg.mxu0
  %v165 = vmul.f32 %v93, %v163
  %v167 = vperm.slane %v40, 0
  %v169 = vadd.f32 %v167, %v165
  %v170 = vtanh.pop %v169
  %v171 = vsub.f32 1.0, %v138
  %v172 = vmul.f32 %v171, %v170
  %v173 = vmul.f32 %v138, %v43
  %v174 = vadd.f32 %v172, %v173
  %175 = vst.msk [vmem:[#allocation2] sm:$0xff] %vm47, %v174
  %v177 = vsel %vm47, %v174, 0
  %179 = vmatpush.msra.mxu0 0.0
  %180 = vmatpush.msra.mxu0 0.0
  %181 = vmatpush.msra.mxu0 0.0
  %182 = vmatpush.msra.mxu0 0.0
  %183 = vmatpush.msra.mxu0 0.0
  %184 = vmatpush.msra.mxu0 0.0
  %185 = vmatpush.msra.mxu0 0.0
  %186 = vmatpush.msra.mxu0 0.0
  %187 = vmatpush.msra.mxu0 0.0
  %188 = vmatpush.msra.mxu0 0.0
  %189 = vmatpush.msra.mxu0 0.0
  %190 = vmatpush.msra.mxu0 0.0
  %191 = vmatpush.msra.mxu0 0.0
  %192 = vmatpush.msra.mxu0 0.0
  %193 = vmatpush.msra.mxu0 0.0
  %194 = vmatpush.msra.mxu0 %v53
  %195 = vmatmul.f32.gmra.mxu0 %v177
  %v196 = vpop.f32.mrf.mxu0
  %v197 = vadd.f32 %v45, %v196
  %198 = vdwg.mxu0
  %v199 = vxor.u32 %v197, 2147483648
  %v200 = vmul.f32 %v199, 1.442695
  %v201 = vpow.pop %v200
  %v202 = vadd.f32 %v201, 1.0
  %v203 = vrcp.pop %v202
  %v204 = vmul.f32 %v202, %v203
  %v205 = vsub.f32 1.0, %v204
  %v206 = vmul.f32 %v203, %v205
  %v207 = vadd.f32 %v203, %v206
  %vm208 = vweird.f32 %v202
  %vm209 = vweird.f32 %v203
  %vm210 = vmor %vm208, %vm209
  %v211 = vsel %vm210, %v203, %v207
  %v212 = vand.u32 2147483647, %v202
  %vm213 = vcmp.eq.f32.partialorder %v212, 8.507059e+37
  %v214 = vand.u32 %v202, 2147483648
  %v215 = vor.u32 1.1754944e-38, %v214
  %v216 = vsel %vm213, %v215, %v211
  %v217 = vmul.f32 1.0, %v216
  %218 = vmatpush.msra.mxu0 0.0
  %219 = vmatpush.msra.mxu0 0.0
  %220 = vmatpush.msra.mxu0 0.0
  %221 = vmatpush.msra.mxu0 0.0
  %222 = vmatpush.msra.mxu0 0.0
  %223 = vmatpush.msra.mxu0 0.0
  %224 = vmatpush.msra.mxu0 0.0
  %225 = vmatpush.msra.mxu0 0.0
  %226 = vmatpush.msra.mxu0 0.0
  %227 = vmatpush.msra.mxu0 0.0
  %228 = vmatpush.msra.mxu0 0.0
  %229 = vmatpush.msra.mxu0 0.0
  %230 = vmatpush.msra.mxu0 0.0
  %231 = vmatpush.msra.mxu0 0.0
  %232 = vmatpush.msra.mxu0 0.0
  %233 = vmatpush.msra.mxu0 %v98
  %234 = vmatmul.f32.gmra.mxu0 %v177
  %v235 = vpop.f32.mrf.mxu0
  %v236 = vadd.f32 %v95, %v235
  %237 = vdwg.mxu0
  %v238 = vxor.u32 %v236, 2147483648
  %v239 = vmul.f32 %v238, 1.442695
  %v240 = vpow.pop %v239
  %v241 = vadd.f32 %v240, 1.0
  %v242 = vrcp.pop %v241
  %v243 = vmul.f32 %v241, %v242
  %v244 = vsub.f32 1.0, %v243
  %v245 = vmul.f32 %v242, %v244
  %v246 = vadd.f32 %v242, %v245
  %vm247 = vweird.f32 %v241
  %vm248 = vweird.f32 %v242
  %vm249 = vmor %vm247, %vm248
  %v250 = vsel %vm249, %v242, %v246
  %v251 = vand.u32 2147483647, %v241
  %vm252 = vcmp.eq.f32.partialorder %v251, 8.507059e+37
  %v253 = vand.u32 %v241, 2147483648
  %v254 = vor.u32 1.1754944e-38, %v253
  %v255 = vsel %vm252, %v254, %v250
  %v256 = vmul.f32 1.0, %v255
  %257 = vmatpush.msra.mxu0 0.0
  %258 = vmatpush.msra.mxu0 0.0
  %259 = vmatpush.msra.mxu0 0.0
  %260 = vmatpush.msra.mxu0 0.0
  %261 = vmatpush.msra.mxu0 0.0
  %262 = vmatpush.msra.mxu0 0.0
  %263 = vmatpush.msra.mxu0 0.0
  %264 = vmatpush.msra.mxu0 0.0
  %265 = vmatpush.msra.mxu0 0.0
  %266 = vmatpush.msra.mxu0 0.0
  %267 = vmatpush.msra.mxu0 0.0
  %268 = vmatpush.msra.mxu0 0.0
  %269 = vmatpush.msra.mxu0 0.0
  %270 = vmatpush.msra.mxu0 0.0
  %271 = vmatpush.msra.mxu0 0.0
  %272 = vmatpush.msra.mxu0 %v143
  %273 = vmatmul.f32.gmra.mxu0 %v177
  %v274 = vpop.f32.mrf.mxu0
  %v275 = vadd.f32 %v140, %v274
  %276 = vdwg.mxu0
  %v277 = vmul.f32 %v217, %v275
  %v278 = vadd.f32 %v167, %v277
  %v279 = vtanh.pop %v278
  %v280 = vsub.f32 1.0, %v256
  %v281 = vmul.f32 %v280, %v279
  %v282 = vmul.f32 %v256, %v174
  %v283 = vadd.f32 %v281, %v282
  %284 = vst.msk [vmem:[#allocation2 + $0x8] sm:$0xff] %vm47, %v283
  %v286 = vsel %vm47, %v283, 0
  %288 = vmatpush.msra.mxu0 0.0
  %289 = vmatpush.msra.mxu0 0.0
  %290 = vmatpush.msra.mxu0 0.0
  %291 = vmatpush.msra.mxu0 0.0
  %292 = vmatpush.msra.mxu0 0.0
  %293 = vmatpush.msra.mxu0 0.0
  %294 = vmatpush.msra.mxu0 0.0
  %295 = vmatpush.msra.mxu0 0.0
  %296 = vmatpush.msra.mxu0 0.0
  %297 = vmatpush.msra.mxu0 0.0
  %298 = vmatpush.msra.mxu0 0.0
  %299 = vmatpush.msra.mxu0 0.0
  %300 = vmatpush.msra.mxu0 0.0
  %301 = vmatpush.msra.mxu0 0.0
  %302 = vmatpush.msra.mxu0 0.0
  %303 = vmatpush.msra.mxu0 %v53
  %304 = vmatmul.f32.gmra.mxu0 %v286
  %v305 = vpop.f32.mrf.mxu0
  %v306 = vadd.f32 %v45, %v305
  %307 = vdwg.mxu0
  %v308 = vxor.u32 %v306, 2147483648
  %v309 = vmul.f32 %v308, 1.442695
  %v310 = vpow.pop %v309
  %v311 = vadd.f32 %v310, 1.0
  %v312 = vrcp.pop %v311
  %v313 = vmul.f32 %v311, %v312
  %v314 = vsub.f32 1.0, %v313
  %v315 = vmul.f32 %v312, %v314
  %v316 = vadd.f32 %v312, %v315
  %vm317 = vweird.f32 %v311
  %vm318 = vweird.f32 %v312
  %vm319 = vmor %vm317, %vm318
  %v320 = vsel %vm319, %v312, %v316
  %v321 = vand.u32 2147483647, %v311
  %vm322 = vcmp.eq.f32.partialorder %v321, 8.507059e+37
  %v323 = vand.u32 %v311, 2147483648
  %v324 = vor.u32 1.1754944e-38, %v323
  %v325 = vsel %vm322, %v324, %v320
  %v326 = vmul.f32 1.0, %v325
  %327 = vmatpush.msra.mxu0 0.0
  %328 = vmatpush.msra.mxu0 0.0
  %329 = vmatpush.msra.mxu0 0.0
  %330 = vmatpush.msra.mxu0 0.0
  %331 = vmatpush.msra.mxu0 0.0
  %332 = vmatpush.msra.mxu0 0.0
  %333 = vmatpush.msra.mxu0 0.0
  %334 = vmatpush.msra.mxu0 0.0
  %335 = vmatpush.msra.mxu0 0.0
  %336 = vmatpush.msra.mxu0 0.0
  %337 = vmatpush.msra.mxu0 0.0
  %338 = vmatpush.msra.mxu0 0.0
  %339 = vmatpush.msra.mxu0 0.0
  %340 = vmatpush.msra.mxu0 0.0
  %341 = vmatpush.msra.mxu0 0.0
  %342 = vmatpush.msra.mxu0 %v98
  %343 = vmatmul.f32.gmra.mxu0 %v286
  %v344 = vpop.f32.mrf.mxu0
  %v345 = vadd.f32 %v95, %v344
  %346 = vdwg.mxu0
  %v347 = vxor.u32 %v345, 2147483648
  %v348 = vmul.f32 %v347, 1.442695
  %v349 = vpow.pop %v348
  %v350 = vadd.f32 %v349, 1.0
  %v351 = vrcp.pop %v350
  %v352 = vmul.f32 %v350, %v351
  %v353 = vsub.f32 1.0, %v352
  %v354 = vmul.f32 %v351, %v353
  %v355 = vadd.f32 %v351, %v354
  %vm356 = vweird.f32 %v350
  %vm357 = vweird.f32 %v351
  %vm358 = vmor %vm356, %vm357
  %v359 = vsel %vm358, %v351, %v355
  %v360 = vand.u32 2147483647, %v350
  %vm361 = vcmp.eq.f32.partialorder %v360, 8.507059e+37
  %v362 = vand.u32 %v350, 2147483648
  %v363 = vor.u32 1.1754944e-38, %v362
  %v364 = vsel %vm361, %v363, %v359
  %v365 = vmul.f32 1.0, %v364
  %366 = vmatpush.msra.mxu0 0.0
  %367 = vmatpush.msra.mxu0 0.0
  %368 = vmatpush.msra.mxu0 0.0
  %369 = vmatpush.msra.mxu0 0.0
  %370 = vmatpush.msra.mxu0 0.0
  %371 = vmatpush.msra.mxu0 0.0
  %372 = vmatpush.msra.mxu0 0.0
  %373 = vmatpush.msra.mxu0 0.0
  %374 = vmatpush.msra.mxu0 0.0
  %375 = vmatpush.msra.mxu0 0.0
  %376 = vmatpush.msra.mxu0 0.0
  %377 = vmatpush.msra.mxu0 0.0
  %378 = vmatpush.msra.mxu0 0.0
  %379 = vmatpush.msra.mxu0 0.0
  %380 = vmatpush.msra.mxu0 0.0
  %381 = vmatpush.msra.mxu0 %v143
  %382 = vmatmul.f32.gmra.mxu0 %v286
  %v383 = vpop.f32.mrf.mxu0
  %v384 = vadd.f32 %v140, %v383
  %385 = vdwg.mxu0
  %v386 = vmul.f32 %v326, %v384
  %v387 = vadd.f32 %v167, %v386
  %v388 = vtanh.pop %v387
  %v389 = vsub.f32 1.0, %v365
  %v390 = vmul.f32 %v389, %v388
  %v391 = vmul.f32 %v365, %v283
  %v392 = vadd.f32 %v390, %v391
  %393 = vst.msk [vmem:[#allocation2 + $0x10] sm:$0xff] %vm47, %v392
  %v395 = vsel %vm47, %v392, 0
  %397 = vmatpush.msra.mxu0 0.0
  %398 = vmatpush.msra.mxu0 0.0
  %399 = vmatpush.msra.mxu0 0.0
  %400 = vmatpush.msra.mxu0 0.0
  %401 = vmatpush.msra.mxu0 0.0
  %402 = vmatpush.msra.mxu0 0.0
  %403 = vmatpush.msra.mxu0 0.0
  %404 = vmatpush.msra.mxu0 0.0
  %405 = vmatpush.msra.mxu0 0.0
  %406 = vmatpush.msra.mxu0 0.0
  %407 = vmatpush.msra.mxu0 0.0
  %408 = vmatpush.msra.mxu0 0.0
  %409 = vmatpush.msra.mxu0 0.0
  %410 = vmatpush.msra.mxu0 0.0
  %411 = vmatpush.msra.mxu0 0.0
  %412 = vmatpush.msra.mxu0 %v53
  %413 = vmatmul.f32.gmra.mxu0 %v395
  %v414 = vpop.f32.mrf.mxu0
  %v415 = vadd.f32 %v45, %v414
  %416 = vdwg.mxu0
  %v417 = vxor.u32 %v415, 2147483648
  %v418 = vmul.f32 %v417, 1.442695
  %v419 = vpow.pop %v418
  %v420 = vadd.f32 %v419, 1.0
  %v421 = vrcp.pop %v420
  %v422 = vmul.f32 %v420, %v421
  %v423 = vsub.f32 1.0, %v422
  %v424 = vmul.f32 %v421, %v423
  %v425 = vadd.f32 %v421, %v424
  %vm426 = vweird.f32 %v420
  %vm427 = vweird.f32 %v421
  %vm428 = vmor %vm426, %vm427
  %v429 = vsel %vm428, %v421, %v425
  %v430 = vand.u32 2147483647, %v420
  %vm431 = vcmp.eq.f32.partialorder %v430, 8.507059e+37
  %v432 = vand.u32 %v420, 2147483648
  %v433 = vor.u32 1.1754944e-38, %v432
  %v434 = vsel %vm431, %v433, %v429
  %v435 = vmul.f32 1.0, %v434
  %436 = vmatpush.msra.mxu0 0.0
  %437 = vmatpush.msra.mxu0 0.0
  %438 = vmatpush.msra.mxu0 0.0
  %439 = vmatpush.msra.mxu0 0.0
  %440 = vmatpush.msra.mxu0 0.0
  %441 = vmatpush.msra.mxu0 0.0
  %442 = vmatpush.msra.mxu0 0.0
  %443 = vmatpush.msra.mxu0 0.0
  %444 = vmatpush.msra.mxu0 0.0
  %445 = vmatpush.msra.mxu0 0.0
  %446 = vmatpush.msra.mxu0 0.0
  %447 = vmatpush.msra.mxu0 0.0
  %448 = vmatpush.msra.mxu0 0.0
  %449 = vmatpush.msra.mxu0 0.0
  %450 = vmatpush.msra.mxu0 0.0
  %451 = vmatpush.msra.mxu0 %v98
  %452 = vmatmul.f32.gmra.mxu0 %v395
  %v453 = vpop.f32.mrf.mxu0
  %v454 = vadd.f32 %v95, %v453
  %455 = vdwg.mxu0
  %v456 = vxor.u32 %v454, 2147483648
  %v457 = vmul.f32 %v456, 1.442695
  %v458 = vpow.pop %v457
  %v459 = vadd.f32 %v458, 1.0
  %v460 = vrcp.pop %v459
  %v461 = vmul.f32 %v459, %v460
  %v462 = vsub.f32 1.0, %v461
  %v463 = vmul.f32 %v460, %v462
  %v464 = vadd.f32 %v460, %v463
  %vm465 = vweird.f32 %v459
  %vm466 = vweird.f32 %v460
  %vm467 = vmor %vm465, %vm466
  %v468 = vsel %vm467, %v460, %v464
  %v469 = vand.u32 2147483647, %v459
  %vm470 = vcmp.eq.f32.partialorder %v469, 8.507059e+37
  %v471 = vand.u32 %v459, 2147483648
  %v472 = vor.u32 1.1754944e-38, %v471
  %v473 = vsel %vm470, %v472, %v468
  %v474 = vmul.f32 1.0, %v473
  %475 = vmatpush.msra.mxu0 0.0
  %476 = vmatpush.msra.mxu0 0.0
  %477 = vmatpush.msra.mxu0 0.0
  %478 = vmatpush.msra.mxu0 0.0
  %479 = vmatpush.msra.mxu0 0.0
  %480 = vmatpush.msra.mxu0 0.0
  %481 = vmatpush.msra.mxu0 0.0
  %482 = vmatpush.msra.mxu0 0.0
  %483 = vmatpush.msra.mxu0 0.0
  %484 = vmatpush.msra.mxu0 0.0
  %485 = vmatpush.msra.mxu0 0.0
  %486 = vmatpush.msra.mxu0 0.0
  %487 = vmatpush.msra.mxu0 0.0
  %488 = vmatpush.msra.mxu0 0.0
  %489 = vmatpush.msra.mxu0 0.0
  %490 = vmatpush.msra.mxu0 %v143
  %491 = vmatmul.f32.gmra.mxu0 %v395
  %v492 = vpop.f32.mrf.mxu0
  %v493 = vadd.f32 %v140, %v492
  %494 = vdwg.mxu0
  %v495 = vmul.f32 %v435, %v493
  %v496 = vadd.f32 %v167, %v495
  %v497 = vtanh.pop %v496
  %v498 = vsub.f32 1.0, %v474
  %v499 = vmul.f32 %v498, %v497
  %v500 = vmul.f32 %v474, %v392
  %v501 = vadd.f32 %v499, %v500
  %502 = vst.msk [vmem:[#allocation2 + $0x18] sm:$0xff] %vm47, %v501
  %s503 = scalar_lea.vmem %s1, 12
  %v504 = vld [vmem:[%s503] sm:$0xf]
  %s505 = scalar_lea.vmem %s1, 16
  %v506 = vld [vmem:[%s505] sm:$0xf]
  %s507 = scalar_lea.vmem %s1, 20
  %v508 = vld [vmem:[%s507] sm:$0xf]
  %s509 = scalar_lea.vmem %s2, 3
  %v510 = vld [vmem:[%s509] sm:$0x1]
  %s511 = scalar_lea.vmem %s3, 3
  %v512 = vld [vmem:[%s511] sm:$0x1]
  %v513 = vadd.f32 %v510, %v512
  %s514 = scalar_lea.vmem %s2, 4
  %v515 = vld [vmem:[%s514] sm:$0x1]
  %s516 = scalar_lea.vmem %s3, 4
  %v517 = vld [vmem:[%s516] sm:$0x1]
  %v518 = vadd.f32 %v515, %v517
  %s519 = scalar_lea.vmem %s2, 5
  %v520 = vld [vmem:[%s519] sm:$0x1]
  %s521 = scalar_lea.vmem %s3, 5
  %v522 = vld [vmem:[%s521] sm:$0x1]
  %s523 = scalar_lea.vmem %s0, 8
  %v524 = vld [vmem:[%s523] sm:$0xff]
  %v526 = vperm.slane %v513, 0
  %v529 = vsel %vm47, %v524, 0
  %v532 = vsel %vm51, %v504, 0
  %534 = vmatpush.msra.mxu0 0.0
  %535 = vmatpush.msra.mxu0 0.0
  %536 = vmatpush.msra.mxu0 0.0
  %537 = vmatpush.msra.mxu0 0.0
  %538 = vmatpush.msra.mxu0 0.0
  %539 = vmatpush.msra.mxu0 0.0
  %540 = vmatpush.msra.mxu0 0.0
  %541 = vmatpush.msra.mxu0 0.0
  %542 = vmatpush.msra.mxu0 0.0
  %543 = vmatpush.msra.mxu0 0.0
  %544 = vmatpush.msra.mxu0 0.0
  %545 = vmatpush.msra.mxu0 0.0
  %546 = vmatpush.msra.mxu0 0.0
  %547 = vmatpush.msra.mxu0 0.0
  %548 = vmatpush.msra.mxu0 0.0
  %549 = vmatpush.msra.mxu0 %v532
  %550 = vmatmul.f32.gmra.mxu0 %v529
  %v551 = vpop.f32.mrf.mxu0
  %v552 = vadd.f32 %v526, %v551
  %553 = vdwg.mxu0
  %v554 = vxor.u32 %v552, 2147483648
  %v555 = vmul.f32 %v554, 1.442695
  %v556 = vpow.pop %v555
  %v557 = vadd.f32 %v556, 1.0
  %v558 = vrcp.pop %v557
  %v559 = vmul.f32 %v557, %v558
  %v560 = vsub.f32 1.0, %v559
  %v561 = vmul.f32 %v558, %v560
  %v562 = vadd.f32 %v558, %v561
  %vm563 = vweird.f32 %v557
  %vm564 = vweird.f32 %v558
  %vm565 = vmor %vm563, %vm564
  %v566 = vsel %vm565, %v558, %v562
  %v567 = vand.u32 2147483647, %v557
  %vm568 = vcmp.eq.f32.partialorder %v567, 8.507059e+37
  %v569 = vand.u32 %v557, 2147483648
  %v570 = vor.u32 1.1754944e-38, %v569
  %v571 = vsel %vm568, %v570, %v566
  %v572 = vmul.f32 1.0, %v571
  %v574 = vperm.slane %v518, 0
  %v577 = vsel %vm51, %v506, 0
  %579 = vmatpush.msra.mxu0 0.0
  %580 = vmatpush.msra.mxu0 0.0
  %581 = vmatpush.msra.mxu0 0.0
  %582 = vmatpush.msra.mxu0 0.0
  %583 = vmatpush.msra.mxu0 0.0
  %584 = vmatpush.msra.mxu0 0.0
  %585 = vmatpush.msra.mxu0 0.0
  %586 = vmatpush.msra.mxu0 0.0
  %587 = vmatpush.msra.mxu0 0.0
  %588 = vmatpush.msra.mxu0 0.0
  %589 = vmatpush.msra.mxu0 0.0
  %590 = vmatpush.msra.mxu0 0.0
  %591 = vmatpush.msra.mxu0 0.0
  %592 = vmatpush.msra.mxu0 0.0
  %593 = vmatpush.msra.mxu0 0.0
  %594 = vmatpush.msra.mxu0 %v577
  %595 = vmatmul.f32.gmra.mxu0 %v529
  %v596 = vpop.f32.mrf.mxu0
  %v597 = vadd.f32 %v574, %v596
  %598 = vdwg.mxu0
  %v599 = vxor.u32 %v597, 2147483648
  %v600 = vmul.f32 %v599, 1.442695
  %v601 = vpow.pop %v600
  %v602 = vadd.f32 %v601, 1.0
  %v603 = vrcp.pop %v602
  %v604 = vmul.f32 %v602, %v603
  %v605 = vsub.f32 1.0, %v604
  %v606 = vmul.f32 %v603, %v605
  %v607 = vadd.f32 %v603, %v606
  %vm608 = vweird.f32 %v602
  %vm609 = vweird.f32 %v603
  %vm610 = vmor %vm608, %vm609
  %v611 = vsel %vm610, %v603, %v607
  %v612 = vand.u32 2147483647, %v602
  %vm613 = vcmp.eq.f32.partialorder %v612, 8.507059e+37
  %v614 = vand.u32 %v602, 2147483648
  %v615 = vor.u32 1.1754944e-38, %v614
  %v616 = vsel %vm613, %v615, %v611
  %v617 = vmul.f32 1.0, %v616
  %v619 = vperm.slane %v522, 0
  %v622 = vsel %vm51, %v508, 0
  %624 = vmatpush.msra.mxu0 0.0
  %625 = vmatpush.msra.mxu0 0.0
  %626 = vmatpush.msra.mxu0 0.0
  %627 = vmatpush.msra.mxu0 0.0
  %628 = vmatpush.msra.mxu0 0.0
  %629 = vmatpush.msra.mxu0 0.0
  %630 = vmatpush.msra.mxu0 0.0
  %631 = vmatpush.msra.mxu0 0.0
  %632 = vmatpush.msra.mxu0 0.0
  %633 = vmatpush.msra.mxu0 0.0
  %634 = vmatpush.msra.mxu0 0.0
  %635 = vmatpush.msra.mxu0 0.0
  %636 = vmatpush.msra.mxu0 0.0
  %637 = vmatpush.msra.mxu0 0.0
  %638 = vmatpush.msra.mxu0 0.0
  %639 = vmatpush.msra.mxu0 %v622
  %640 = vmatmul.f32.gmra.mxu0 %v529
  %v641 = vpop.f32.mrf.mxu0
  %v642 = vadd.f32 %v619, %v641
  %643 = vdwg.mxu0
  %v644 = vmul.f32 %v572, %v642
  %v646 = vperm.slane %v520, 0
  %v648 = vadd.f32 %v646, %v644
  %v649 = vtanh.pop %v648
  %v650 = vsub.f32 1.0, %v617
  %v651 = vmul.f32 %v650, %v649
  %v652 = vmul.f32 %v617, %v524
  %v653 = vadd.f32 %v651, %v652
  %654 = vst.msk [vmem:[#allocation3 + $0x18] sm:$0xff] %vm47, %v653
  %v656 = vsel %vm47, %v653, 0
  %658 = vmatpush.msra.mxu0 0.0
  %659 = vmatpush.msra.mxu0 0.0
  %660 = vmatpush.msra.mxu0 0.0
  %661 = vmatpush.msra.mxu0 0.0
  %662 = vmatpush.msra.mxu0 0.0
  %663 = vmatpush.msra.mxu0 0.0
  %664 = vmatpush.msra.mxu0 0.0
  %665 = vmatpush.msra.mxu0 0.0
  %666 = vmatpush.msra.mxu0 0.0
  %667 = vmatpush.msra.mxu0 0.0
  %668 = vmatpush.msra.mxu0 0.0
  %669 = vmatpush.msra.mxu0 0.0
  %670 = vmatpush.msra.mxu0 0.0
  %671 = vmatpush.msra.mxu0 0.0
  %672 = vmatpush.msra.mxu0 0.0
  %673 = vmatpush.msra.mxu0 %v532
  %674 = vmatmul.f32.gmra.mxu0 %v656
  %v675 = vpop.f32.mrf.mxu0
  %v676 = vadd.f32 %v526, %v675
  %677 = vdwg.mxu0
  %v678 = vxor.u32 %v676, 2147483648
  %v679 = vmul.f32 %v678, 1.442695
  %v680 = vpow.pop %v679
  %v681 = vadd.f32 %v680, 1.0
  %v682 = vrcp.pop %v681
  %v683 = vmul.f32 %v681, %v682
  %v684 = vsub.f32 1.0, %v683
  %v685 = vmul.f32 %v682, %v684
  %v686 = vadd.f32 %v682, %v685
  %vm687 = vweird.f32 %v681
  %vm688 = vweird.f32 %v682
  %vm689 = vmor %vm687, %vm688
  %v690 = vsel %vm689, %v682, %v686
  %v691 = vand.u32 2147483647, %v681
  %vm692 = vcmp.eq.f32.partialorder %v691, 8.507059e+37
  %v693 = vand.u32 %v681, 2147483648
  %v694 = vor.u32 1.1754944e-38, %v693
  %v695 = vsel %vm692, %v694, %v690
  %v696 = vmul.f32 1.0, %v695
  %697 = vmatpush.msra.mxu0 0.0
  %698 = vmatpush.msra.mxu0 0.0
  %699 = vmatpush.msra.mxu0 0.0
  %700 = vmatpush.msra.mxu0 0.0
  %701 = vmatpush.msra.mxu0 0.0
  %702 = vmatpush.msra.mxu0 0.0
  %703 = vmatpush.msra.mxu0 0.0
  %704 = vmatpush.msra.mxu0 0.0
  %705 = vmatpush.msra.mxu0 0.0
  %706 = vmatpush.msra.mxu0 0.0
  %707 = vmatpush.msra.mxu0 0.0
  %708 = vmatpush.msra.mxu0 0.0
  %709 = vmatpush.msra.mxu0 0.0
  %710 = vmatpush.msra.mxu0 0.0
  %711 = vmatpush.msra.mxu0 0.0
  %712 = vmatpush.msra.mxu0 %v577
  %713 = vmatmul.f32.gmra.mxu0 %v656
  %v714 = vpop.f32.mrf.mxu0
  %v715 = vadd.f32 %v574, %v714
  %716 = vdwg.mxu0
  %v717 = vxor.u32 %v715, 2147483648
  %v718 = vmul.f32 %v717, 1.442695
  %v719 = vpow.pop %v718
  %v720 = vadd.f32 %v719, 1.0
  %v721 = vrcp.pop %v720
  %v722 = vmul.f32 %v720, %v721
  %v723 = vsub.f32 1.0, %v722
  %v724 = vmul.f32 %v721, %v723
  %v725 = vadd.f32 %v721, %v724
  %vm726 = vweird.f32 %v720
  %vm727 = vweird.f32 %v721
  %vm728 = vmor %vm726, %vm727
  %v729 = vsel %vm728, %v721, %v725
  %v730 = vand.u32 2147483647, %v720
  %vm731 = vcmp.eq.f32.partialorder %v730, 8.507059e+37
  %v732 = vand.u32 %v720, 2147483648
  %v733 = vor.u32 1.1754944e-38, %v732
  %v734 = vsel %vm731, %v733, %v729
  %v735 = vmul.f32 1.0, %v734
  %736 = vmatpush.msra.mxu0 0.0
  %737 = vmatpush.msra.mxu0 0.0
  %738 = vmatpush.msra.mxu0 0.0
  %739 = vmatpush.msra.mxu0 0.0
  %740 = vmatpush.msra.mxu0 0.0
  %741 = vmatpush.msra.mxu0 0.0
  %742 = vmatpush.msra.mxu0 0.0
  %743 = vmatpush.msra.mxu0 0.0
  %744 = vmatpush.msra.mxu0 0.0
  %745 = vmatpush.msra.mxu0 0.0
  %746 = vmatpush.msra.mxu0 0.0
  %747 = vmatpush.msra.mxu0 0.0
  %748 = vmatpush.msra.mxu0 0.0
  %749 = vmatpush.msra.mxu0 0.0
  %750 = vmatpush.msra.mxu0 0.0
  %751 = vmatpush.msra.mxu0 %v622
  %752 = vmatmul.f32.gmra.mxu0 %v656
  %v753 = vpop.f32.mrf.mxu0
  %v754 = vadd.f32 %v619, %v753
  %755 = vdwg.mxu0
  %v756 = vmul.f32 %v696, %v754
  %v757 = vadd.f32 %v646, %v756
  %v758 = vtanh.pop %v757
  %v759 = vsub.f32 1.0, %v735
  %v760 = vmul.f32 %v759, %v758
  %v761 = vmul.f32 %v735, %v653
  %v762 = vadd.f32 %v760, %v761
  %763 = vst.msk [vmem:[#allocation3 + $0x10] sm:$0xff] %vm47, %v762
  %v765 = vsel %vm47, %v762, 0
  %767 = vmatpush.msra.mxu0 0.0
  %768 = vmatpush.msra.mxu0 0.0
  %769 = vmatpush.msra.mxu0 0.0
  %770 = vmatpush.msra.mxu0 0.0
  %771 = vmatpush.msra.mxu0 0.0
  %772 = vmatpush.msra.mxu0 0.0
  %773 = vmatpush.msra.mxu0 0.0
  %774 = vmatpush.msra.mxu0 0.0
  %775 = vmatpush.msra.mxu0 0.0
  %776 = vmatpush.msra.mxu0 0.0
  %777 = vmatpush.msra.mxu0 0.0
  %778 = vmatpush.msra.mxu0 0.0
  %779 = vmatpush.msra.mxu0 0.0
  %780 = vmatpush.msra.mxu0 0.0
  %781 = vmatpush.msra.mxu0 0.0
  %782 = vmatpush.msra.mxu0 %v532
  %783 = vmatmul.f32.gmra.mxu0 %v765
  %v784 = vpop.f32.mrf.mxu0
  %v785 = vadd.f32 %v526, %v784
  %786 = vdwg.mxu0
  %v787 = vxor.u32 %v785, 2147483648
  %v788 = vmul.f32 %v787, 1.442695
  %v789 = vpow.pop %v788
  %v790 = vadd.f32 %v789, 1.0
  %v791 = vrcp.pop %v790
  %v792 = vmul.f32 %v790, %v791
  %v793 = vsub.f32 1.0, %v792
  %v794 = vmul.f32 %v791, %v793
  %v795 = vadd.f32 %v791, %v794
  %vm796 = vweird.f32 %v790
  %vm797 = vweird.f32 %v791
  %vm798 = vmor %vm796, %vm797
  %v799 = vsel %vm798, %v791, %v795
  %v800 = vand.u32 2147483647, %v790
  %vm801 = vcmp.eq.f32.partialorder %v800, 8.507059e+37
  %v802 = vand.u32 %v790, 2147483648
  %v803 = vor.u32 1.1754944e-38, %v802
  %v804 = vsel %vm801, %v803, %v799
  %v805 = vmul.f32 1.0, %v804
  %806 = vmatpush.msra.mxu0 0.0
  %807 = vmatpush.msra.mxu0 0.0
  %808 = vmatpush.msra.mxu0 0.0
  %809 = vmatpush.msra.mxu0 0.0
  %810 = vmatpush.msra.mxu0 0.0
  %811 = vmatpush.msra.mxu0 0.0
  %812 = vmatpush.msra.mxu0 0.0
  %813 = vmatpush.msra.mxu0 0.0
  %814 = vmatpush.msra.mxu0 0.0
  %815 = vmatpush.msra.mxu0 0.0
  %816 = vmatpush.msra.mxu0 0.0
  %817 = vmatpush.msra.mxu0 0.0
  %818 = vmatpush.msra.mxu0 0.0
  %819 = vmatpush.msra.mxu0 0.0
  %820 = vmatpush.msra.mxu0 0.0
  %821 = vmatpush.msra.mxu0 %v577
  %822 = vmatmul.f32.gmra.mxu0 %v765
  %v823 = vpop.f32.mrf.mxu0
  %v824 = vadd.f32 %v574, %v823
  %825 = vdwg.mxu0
  %v826 = vxor.u32 %v824, 2147483648
  %v827 = vmul.f32 %v826, 1.442695
  %v828 = vpow.pop %v827
  %v829 = vadd.f32 %v828, 1.0
  %v830 = vrcp.pop %v829
  %v831 = vmul.f32 %v829, %v830
  %v832 = vsub.f32 1.0, %v831
  %v833 = vmul.f32 %v830, %v832
  %v834 = vadd.f32 %v830, %v833
  %vm835 = vweird.f32 %v829
  %vm836 = vweird.f32 %v830
  %vm837 = vmor %vm835, %vm836
  %v838 = vsel %vm837, %v830, %v834
  %v839 = vand.u32 2147483647, %v829
  %vm840 = vcmp.eq.f32.partialorder %v839, 8.507059e+37
  %v841 = vand.u32 %v829, 2147483648
  %v842 = vor.u32 1.1754944e-38, %v841
  %v843 = vsel %vm840, %v842, %v838
  %v844 = vmul.f32 1.0, %v843
  %845 = vmatpush.msra.mxu0 0.0
  %846 = vmatpush.msra.mxu0 0.0
  %847 = vmatpush.msra.mxu0 0.0
  %848 = vmatpush.msra.mxu0 0.0
  %849 = vmatpush.msra.mxu0 0.0
  %850 = vmatpush.msra.mxu0 0.0
  %851 = vmatpush.msra.mxu0 0.0
  %852 = vmatpush.msra.mxu0 0.0
  %853 = vmatpush.msra.mxu0 0.0
  %854 = vmatpush.msra.mxu0 0.0
  %855 = vmatpush.msra.mxu0 0.0
  %856 = vmatpush.msra.mxu0 0.0
  %857 = vmatpush.msra.mxu0 0.0
  %858 = vmatpush.msra.mxu0 0.0
  %859 = vmatpush.msra.mxu0 0.0
  %860 = vmatpush.msra.mxu0 %v622
  %861 = vmatmul.f32.gmra.mxu0 %v765
  %v862 = vpop.f32.mrf.mxu0
  %v863 = vadd.f32 %v619, %v862
  %864 = vdwg.mxu0
  %v865 = vmul.f32 %v805, %v863
  %v866 = vadd.f32 %v646, %v865
  %v867 = vtanh.pop %v866
  %v868 = vsub.f32 1.0, %v844
  %v869 = vmul.f32 %v868, %v867
  %v870 = vmul.f32 %v844, %v762
  %v871 = vadd.f32 %v869, %v870
  %872 = vst.msk [vmem:[#allocation3 + $0x8] sm:$0xff] %vm47, %v871
  %v874 = vsel %vm47, %v871, 0
  %876 = vmatpush.msra.mxu0 0.0
  %877 = vmatpush.msra.mxu0 0.0
  %878 = vmatpush.msra.mxu0 0.0
  %879 = vmatpush.msra.mxu0 0.0
  %880 = vmatpush.msra.mxu0 0.0
  %881 = vmatpush.msra.mxu0 0.0
  %882 = vmatpush.msra.mxu0 0.0
  %883 = vmatpush.msra.mxu0 0.0
  %884 = vmatpush.msra.mxu0 0.0
  %885 = vmatpush.msra.mxu0 0.0
  %886 = vmatpush.msra.mxu0 0.0
  %887 = vmatpush.msra.mxu0 0.0
  %888 = vmatpush.msra.mxu0 0.0
  %889 = vmatpush.msra.mxu0 0.0
  %890 = vmatpush.msra.mxu0 0.0
  %891 = vmatpush.msra.mxu0 %v532
  %892 = vmatmul.f32.gmra.mxu0 %v874
  %v893 = vpop.f32.mrf.mxu0
  %v894 = vadd.f32 %v526, %v893
  %895 = vdwg.mxu0
  %v896 = vxor.u32 %v894, 2147483648
  %v897 = vmul.f32 %v896, 1.442695
  %v898 = vpow.pop %v897
  %v899 = vadd.f32 %v898, 1.0
  %v900 = vrcp.pop %v899
  %v901 = vmul.f32 %v899, %v900
  %v902 = vsub.f32 1.0, %v901
  %v903 = vmul.f32 %v900, %v902
  %v904 = vadd.f32 %v900, %v903
  %vm905 = vweird.f32 %v899
  %vm906 = vweird.f32 %v900
  %vm907 = vmor %vm905, %vm906
  %v908 = vsel %vm907, %v900, %v904
  %v909 = vand.u32 2147483647, %v899
  %vm910 = vcmp.eq.f32.partialorder %v909, 8.507059e+37
  %v911 = vand.u32 %v899, 2147483648
  %v912 = vor.u32 1.1754944e-38, %v911
  %v913 = vsel %vm910, %v912, %v908
  %v914 = vmul.f32 1.0, %v913
  %915 = vmatpush.msra.mxu0 0.0
  %916 = vmatpush.msra.mxu0 0.0
  %917 = vmatpush.msra.mxu0 0.0
  %918 = vmatpush.msra.mxu0 0.0
  %919 = vmatpush.msra.mxu0 0.0
  %920 = vmatpush.msra.mxu0 0.0
  %921 = vmatpush.msra.mxu0 0.0
  %922 = vmatpush.msra.mxu0 0.0
  %923 = vmatpush.msra.mxu0 0.0
  %924 = vmatpush.msra.mxu0 0.0
  %925 = vmatpush.msra.mxu0 0.0
  %926 = vmatpush.msra.mxu0 0.0
  %927 = vmatpush.msra.mxu0 0.0
  %928 = vmatpush.msra.mxu0 0.0
  %929 = vmatpush.msra.mxu0 0.0
  %930 = vmatpush.msra.mxu0 %v577
  %931 = vmatmul.f32.gmra.mxu0 %v874
  %v932 = vpop.f32.mrf.mxu0
  %v933 = vadd.f32 %v574, %v932
  %934 = vdwg.mxu0
  %v935 = vxor.u32 %v933, 2147483648
  %v936 = vmul.f32 %v935, 1.442695
  %v937 = vpow.pop %v936
  %v938 = vadd.f32 %v937, 1.0
  %v939 = vrcp.pop %v938
  %v940 = vmul.f32 %v938, %v939
  %v941 = vsub.f32 1.0, %v940
  %v942 = vmul.f32 %v939, %v941
  %v943 = vadd.f32 %v939, %v942
  %vm944 = vweird.f32 %v938
  %vm945 = vweird.f32 %v939
  %vm946 = vmor %vm944, %vm945
  %v947 = vsel %vm946, %v939, %v943
  %v948 = vand.u32 2147483647, %v938
  %vm949 = vcmp.eq.f32.partialorder %v948, 8.507059e+37
  %v950 = vand.u32 %v938, 2147483648
  %v951 = vor.u32 1.1754944e-38, %v950
  %v952 = vsel %vm949, %v951, %v947
  %v953 = vmul.f32 1.0, %v952
  %954 = vmatpush.msra.mxu0 0.0
  %955 = vmatpush.msra.mxu0 0.0
  %956 = vmatpush.msra.mxu0 0.0
  %957 = vmatpush.msra.mxu0 0.0
  %958 = vmatpush.msra.mxu0 0.0
  %959 = vmatpush.msra.mxu0 0.0
  %960 = vmatpush.msra.mxu0 0.0
  %961 = vmatpush.msra.mxu0 0.0
  %962 = vmatpush.msra.mxu0 0.0
  %963 = vmatpush.msra.mxu0 0.0
  %964 = vmatpush.msra.mxu0 0.0
  %965 = vmatpush.msra.mxu0 0.0
  %966 = vmatpush.msra.mxu0 0.0
  %967 = vmatpush.msra.mxu0 0.0
  %968 = vmatpush.msra.mxu0 0.0
  %969 = vmatpush.msra.mxu0 %v622
  %970 = vmatmul.f32.gmra.mxu0 %v874
  %v971 = vpop.f32.mrf.mxu0
  %v972 = vadd.f32 %v619, %v971
  %973 = vdwg.mxu0
  %v974 = vmul.f32 %v914, %v972
  %v975 = vadd.f32 %v646, %v974
  %v976 = vtanh.pop %v975
  %v977 = vsub.f32 1.0, %v953
  %v978 = vmul.f32 %v977, %v976
  %v979 = vmul.f32 %v953, %v871
  %v980 = vadd.f32 %v978, %v979
  %981 = vst.msk [vmem:[#allocation3] sm:$0xff] %vm47, %v980
  %v982 = vld [vmem:[#allocation2] sm:$0xff]
  %v983 = vld [vmem:[#allocation2 + $0x8] sm:$0xff]
  %v984 = vld [vmem:[#allocation2 + $0x10] sm:$0xff]
  %v985 = vld [vmem:[#allocation2 + $0x18] sm:$0xff]
  %v986 = vld [vmem:[%s4] sm:$0xf]
  %v987 = vld [vmem:[#allocation3] sm:$0xff]
  %v988 = vld [vmem:[#allocation3 + $0x8] sm:$0xff]
  %v989 = vld [vmem:[#allocation3 + $0x10] sm:$0xff]
  %v990 = vld [vmem:[#allocation3 + $0x18] sm:$0xff]
  %v991 = vld [vmem:[%s5] sm:$0xf]
  %v993 = vsel %vm47, %v987, 0
  %v996 = vsel %vm47, %v988, 0
  %v999 = vsel %vm47, %v989, 0
  %v1002 = vsel %vm47, %v990, 0
  %v1005 = vsel %vm51, %v991, 0
  %1007 = vmatpush.msra.mxu0 0.0
  %1008 = vmatpush.msra.mxu0 0.0
  %1009 = vmatpush.msra.mxu0 0.0
  %1010 = vmatpush.msra.mxu0 0.0
  %1011 = vmatpush.msra.mxu0 0.0
  %1012 = vmatpush.msra.mxu0 0.0
  %1013 = vmatpush.msra.mxu0 0.0
  %1014 = vmatpush.msra.mxu0 0.0
  %1015 = vmatpush.msra.mxu0 0.0
  %1016 = vmatpush.msra.mxu0 0.0
  %1017 = vmatpush.msra.mxu0 0.0
  %1018 = vmatpush.msra.mxu0 0.0
  %1019 = vmatpush.msra.mxu0 0.0
  %1020 = vmatpush.msra.mxu0 0.0
  %1021 = vmatpush.msra.mxu0 0.0
  %1022 = vmatpush.msra.mxu0 %v1005
  %1023 = vmatmul.f32.gmra.mxu0 %v993
  %v1024 = vpop.f32.mrf.mxu0
  %v1025 = vadd.f32 0.0, %v1024
  %1026 = vmatmul.f32.gmra.mxu0 %v996
  %v1027 = vpop.f32.mrf.mxu0
  %v1028 = vadd.f32 0.0, %v1027
  %1029 = vmatmul.f32.gmra.mxu0 %v999
  %v1030 = vpop.f32.mrf.mxu0
  %v1031 = vadd.f32 0.0, %v1030
  %1032 = vmatmul.f32.gmra.mxu0 %v1002
  %v1033 = vpop.f32.mrf.mxu0
  %v1034 = vadd.f32 0.0, %v1033
  %1035 = vdwg.mxu0
  %v1037 = vsel %vm47, %v982, 0
  %v1040 = vsel %vm47, %v983, 0
  %v1043 = vsel %vm47, %v984, 0
  %v1046 = vsel %vm47, %v985, 0
  %v1049 = vsel %vm51, %v986, 0
  %1051 = vmatpush.msra.mxu0 0.0
  %1052 = vmatpush.msra.mxu0 0.0
  %1053 = vmatpush.msra.mxu0 0.0
  %1054 = vmatpush.msra.mxu0 0.0
  %1055 = vmatpush.msra.mxu0 0.0
  %1056 = vmatpush.msra.mxu0 0.0
  %1057 = vmatpush.msra.mxu0 0.0
  %1058 = vmatpush.msra.mxu0 0.0
  %1059 = vmatpush.msra.mxu0 0.0
  %1060 = vmatpush.msra.mxu0 0.0
  %1061 = vmatpush.msra.mxu0 0.0
  %1062 = vmatpush.msra.mxu0 0.0
  %1063 = vmatpush.msra.mxu0 0.0
  %1064 = vmatpush.msra.mxu0 0.0
  %1065 = vmatpush.msra.mxu0 0.0
  %1066 = vmatpush.msra.mxu0 %v1049
  %1067 = vmatmul.f32.gmra.mxu0 %v1037
  %v1068 = vpop.f32.mrf.mxu0
  %v1069 = vadd.f32 %v1025, %v1068
  %1070 = vmatmul.f32.gmra.mxu0 %v1040
  %v1071 = vpop.f32.mrf.mxu0
  %v1072 = vadd.f32 %v1028, %v1071
  %1073 = vmatmul.f32.gmra.mxu0 %v1043
  %v1074 = vpop.f32.mrf.mxu0
  %v1075 = vadd.f32 %v1031, %v1074
  %1076 = vmatmul.f32.gmra.mxu0 %v1046
  %v1077 = vpop.f32.mrf.mxu0
  %v1078 = vadd.f32 %v1034, %v1077
  %1079 = vdwg.mxu0
  %v1080 = vld [vmem:[%s6] sm:$0x1]
  %v1082 = vperm.slane %v1080, 0
  %v1084 = vadd.f32 %v1069, %v1082
  %v1085 = vadd.f32 %v1072, %v1082
  %v1086 = vadd.f32 %v1075, %v1082
  %v1087 = vadd.f32 %v1078, %v1082
  %vm1088 = vcmask 261120
  %1089 = vst.msk [vmem:[%s7] sm:$0xff] %vm1088, %v1084
  %1090 = vst.msk [vmem:[%s7 + $0x8] sm:$0xff] %vm1088, %v1085
  %1091 = vst.msk [vmem:[%s7 + $0x10] sm:$0xff] %vm1088, %v1086
  %1092 = vst.msk [vmem:[%s7 + $0x18] sm:$0xff] %vm1088, %v1087
  // Predicated region
  $region30: #{_lambda_.6} parent=0 // pred_check
    _
  $region31: #{_lambda_.6} parent=0 // pred_check_branch
    %1094 = sbr.rel (0) target = $region33
  $region32: #{_lambda_.6} parent=0 // pred_region
    _
  $region33: #{_lambda_.6} parent=0 // pred_fallthru
    _
  // Predicated region
  $region34: #{_lambda_.6} parent=0 // pred_check
    _
  $region35: #{_lambda_.6} parent=0 // pred_check_branch
    %1096 = sbr.rel (0) target = $region37
  $region36: #{_lambda_.6} parent=0 // pred_region
    _
  $region37: #{_lambda_.6} parent=0 // pred_fallthru
    _

// kernel: _lambda_.5
$region0: #{_lambda_.5}
  #allocation0 [shape = 'u32[]', space=smem, size = 0x4, offset = 0x4, fixed_abs, tag = 'smem constant byte address 0x4 - core index']
  #allocation1 [shape = 'u32[72,128]{1,0:T(1,128)}', space=vmem, size = 0x9000, scoped, tag = 'internal scratch']
  #allocation2 [shape = 'f32[32,4]{1,0:T(8,128)}', space=vmem, size = 0x4000, scoped, tag = 'scratch operand']
  #allocation3 [shape = 'f32[32,4]{1,0:T(8,128)}', space=vmem, size = 0x4000, scoped, tag = 'scratch operand']
  #allocation4 [shape = 'f32[32,4]{1,0:T(8,128)}', space=vmem, size = 0x4000, scoped, tag = 'scratch operand']
  %s0 = inlined_call_operand.vmem [shape: f32[4,8,32], index: 0, kind: input, shape index: {}]
  %s1 = inlined_call_operand.vmem [shape: f32[2,8,4], index: 1, kind: input, shape index: {}]
  %s2 = inlined_call_operand.vmem [shape: f32[2,3,32,4], index: 2, kind: input, shape index: {}]
  %s3 = inlined_call_operand.vmem [shape: f32[2,3,4,4], index: 3, kind: input, shape index: {}]
  %s4 = inlined_call_operand.vmem [shape: f32[2,3,1,4], index: 4, kind: input, shape index: {}]
  %s5 = inlined_call_operand.vmem [shape: f32[2,3,1,4], index: 5, kind: input, shape index: {}]
  %s6 = inlined_call_operand.vmem [shape: f32[2,8,4], index: 6, kind: output, shape index: {}]
  %s7 = sld [smem:[#allocation0]]
  $region34: #{_lambda_.5} parent=0
    _
  %s9 = ssub.s32 1, %s7
  %s10 = scalar_select 0, %s9, %s7
  // Predicated region
  $region2: #{_lambda_.5} parent=0 // pred_check
    _
  $region3: #{_lambda_.5} parent=0 // pred_check_branch
    %12 = sbr.rel (0) target = $region5
  $region4: #{_lambda_.5} parent=0 // pred_region
    _
  $region5: #{_lambda_.5} parent=0 // pred_fallthru
    _
  // Predicated region
  $region6: #{_lambda_.5} parent=0 // pred_check
    _
  $region7: #{_lambda_.5} parent=0 // pred_check_branch
    %14 = sbr.rel (0) target = $region9
  $region8: #{_lambda_.5} parent=0 // pred_region
    _
  $region9: #{_lambda_.5} parent=0 // pred_fallthru
    _
  // Predicated region
  $region10: #{_lambda_.5} parent=0 // pred_check
    _
  $region11: #{_lambda_.5} parent=0 // pred_check_branch
    %16 = sbr.rel (0) target = $region13
  $region12: #{_lambda_.5} parent=0 // pred_region
    _
  $region13: #{_lambda_.5} parent=0 // pred_fallthru
    _
  // Predicated region
  $region14: #{_lambda_.5} parent=0 // pred_check
    _
  $region15: #{_lambda_.5} parent=0 // pred_check_branch
    %18 = sbr.rel (0) target = $region17
  $region16: #{_lambda_.5} parent=0 // pred_region
    _
  $region17: #{_lambda_.5} parent=0 // pred_fallthru
    _
  // Predicated region
  $region18: #{_lambda_.5} parent=0 // pred_check
    _
  $region19: #{_lambda_.5} parent=0 // pred_check_branch
    %20 = sbr.rel (0) target = $region21
  $region20: #{_lambda_.5} parent=0 // pred_region
    _
  $region21: #{_lambda_.5} parent=0 // pred_fallthru
    _
  // Predicated region
  $region22: #{_lambda_.5} parent=0 // pred_check
    _
  $region23: #{_lambda_.5} parent=0 // pred_check_branch
    %22 = sbr.rel (0) target = $region25
  $region24: #{_lambda_.5} parent=0 // pred_region
    _
  $region25: #{_lambda_.5} parent=0 // pred_fallthru
    _
  %v23 = vld [vmem:[%s0] sm:$0xff]
  %v24 = vld [vmem:[%s0 + $0x8] sm:$0xff]
  %v25 = vld [vmem:[%s0 + $0x10] sm:$0xff]
  %v26 = vld [vmem:[%s0 + $0x18] sm:$0xff]
  %v27 = vld [vmem:[%s2] sm:$0xff]
  %v28 = vld [vmem:[%s2 + $0x8] sm:$0xff]
  %v29 = vld [vmem:[%s2 + $0x10] sm:$0xff]
  %v30 = vld [vmem:[%s2 + $0x18] sm:$0xff]
  %v31 = vld [vmem:[%s4] sm:$0x1]
  %v33 = vperm.slane %v31, 0
  %vm35 = vcmask 261120
  %v37 = vsel %vm35, %v23, 0
  %v40 = vsel %vm35, %v24, 0
  %v43 = vsel %vm35, %v25, 0
  %v46 = vsel %vm35, %v26, 0
  %48 = vmatpush.msra.mxu0 0.0
  %49 = vmatpush.msra.mxu0 0.0
  %50 = vmatpush.msra.mxu0 0.0
  %51 = vmatpush.msra.mxu0 0.0
  %52 = vmatpush.msra.mxu0 0.0
  %53 = vmatpush.msra.mxu0 0.0
  %54 = vmatpush.msra.mxu0 0.0
  %55 = vmatpush.msra.mxu0 0.0
  %56 = vmatpush.msra.mxu0 0.0
  %57 = vmatpush.msra.mxu0 0.0
  %58 = vmatpush.msra.mxu0 0.0
  %59 = vmatpush.msra.mxu0 0.0
  %60 = vmatpush.msra.mxu0 %v30
  %61 = vmatpush.msra.mxu0 %v29
  %62 = vmatpush.msra.mxu0 %v28
  %63 = vmatpush.msra.mxu0 %v27
  %64 = vmatmul.f32.gmra.mxu0 %v37
  %v65 = vpop.f32.mrf.mxu0
  %v66 = vadd.f32 %v33, %v65
  %67 = vmatmul.f32.gmra.mxu0 %v40
  %v68 = vpop.f32.mrf.mxu0
  %v69 = vadd.f32 %v33, %v68
  %70 = vmatmul.f32.gmra.mxu0 %v43
  %v71 = vpop.f32.mrf.mxu0
  %v72 = vadd.f32 %v33, %v71
  %73 = vmatmul.f32.gmra.mxu0 %v46
  %v74 = vpop.f32.mrf.mxu0
  %v75 = vadd.f32 %v33, %v74
  %76 = vdwg.mxu0
  %vm77 = vcmask 31744
  %78 = vst.msk [vmem:[#allocation2] sm:$0xff] %vm77, %v66
  %79 = vst.msk [vmem:[#allocation2 + $0x8] sm:$0xff] %vm77, %v69
  %80 = vst.msk [vmem:[#allocation2 + $0x10] sm:$0xff] %vm77, %v72
  %81 = vst.msk [vmem:[#allocation2 + $0x18] sm:$0xff] %vm77, %v75
  %s82 = scalar_lea.vmem %s2, 32
  %v83 = vld [vmem:[%s82] sm:$0xff]
  %v84 = vld [vmem:[%s82 + $0x8] sm:$0xff]
  %v85 = vld [vmem:[%s82 + $0x10] sm:$0xff]
  %v86 = vld [vmem:[%s82 + $0x18] sm:$0xff]
  %s87 = scalar_lea.vmem %s4, 1
  %v88 = vld [vmem:[%s87] sm:$0x1]
  %v90 = vperm.slane %v88, 0
  %92 = vmatpush.msra.mxu0 0.0
  %93 = vmatpush.msra.mxu0 0.0
  %94 = vmatpush.msra.mxu0 0.0
  %95 = vmatpush.msra.mxu0 0.0
  %96 = vmatpush.msra.mxu0 0.0
  %97 = vmatpush.msra.mxu0 0.0
  %98 = vmatpush.msra.mxu0 0.0
  %99 = vmatpush.msra.mxu0 0.0
  %100 = vmatpush.msra.mxu0 0.0
  %101 = vmatpush.msra.mxu0 0.0
  %102 = vmatpush.msra.mxu0 0.0
  %103 = vmatpush.msra.mxu0 0.0
  %104 = vmatpush.msra.mxu0 %v86
  %105 = vmatpush.msra.mxu0 %v85
  %106 = vmatpush.msra.mxu0 %v84
  %107 = vmatpush.msra.mxu0 %v83
  %108 = vmatmul.f32.gmra.mxu0 %v37
  %v109 = vpop.f32.mrf.mxu0
  %v110 = vadd.f32 %v90, %v109
  %111 = vmatmul.f32.gmra.mxu0 %v40
  %v112 = vpop.f32.mrf.mxu0
  %v113 = vadd.f32 %v90, %v112
  %114 = vmatmul.f32.gmra.mxu0 %v43
  %v115 = vpop.f32.mrf.mxu0
  %v116 = vadd.f32 %v90, %v115
  %117 = vmatmul.f32.gmra.mxu0 %v46
  %v118 = vpop.f32.mrf.mxu0
  %v119 = vadd.f32 %v90, %v118
  %120 = vdwg.mxu0
  %121 = vst.msk [vmem:[#allocation3] sm:$0xff] %vm77, %v110
  %122 = vst.msk [vmem:[#allocation3 + $0x8] sm:$0xff] %vm77, %v113
  %123 = vst.msk [vmem:[#allocation3 + $0x10] sm:$0xff] %vm77, %v116
  %124 = vst.msk [vmem:[#allocation3 + $0x18] sm:$0xff] %vm77, %v119
  %s125 = scalar_lea.vmem %s2, 64
  %v126 = vld [vmem:[%s125] sm:$0xff]
  %v127 = vld [vmem:[%s125 + $0x8] sm:$0xff]
  %v128 = vld [vmem:[%s125 + $0x10] sm:$0xff]
  %v129 = vld [vmem:[%s125 + $0x18] sm:$0xff]
  %s130 = scalar_lea.vmem %s4, 2
  %v131 = vld [vmem:[%s130] sm:$0x1]
  %v133 = vperm.slane %v131, 0
  %135 = vmatpush.msra.mxu0 0.0
  %136 = vmatpush.msra.mxu0 0.0
  %137 = vmatpush.msra.mxu0 0.0
  %138 = vmatpush.msra.mxu0 0.0
  %139 = vmatpush.msra.mxu0 0.0
  %140 = vmatpush.msra.mxu0 0.0
  %141 = vmatpush.msra.mxu0 0.0
  %142 = vmatpush.msra.mxu0 0.0
  %143 = vmatpush.msra.mxu0 0.0
  %144 = vmatpush.msra.mxu0 0.0
  %145 = vmatpush.msra.mxu0 0.0
  %146 = vmatpush.msra.mxu0 0.0
  %147 = vmatpush.msra.mxu0 %v129
  %148 = vmatpush.msra.mxu0 %v128
  %149 = vmatpush.msra.mxu0 %v127
  %150 = vmatpush.msra.mxu0 %v126
  %151 = vmatmul.f32.gmra.mxu0 %v37
  %v152 = vpop.f32.mrf.mxu0
  %v153 = vadd.f32 %v133, %v152
  %154 = vmatmul.f32.gmra.mxu0 %v40
  %v155 = vpop.f32.mrf.mxu0
  %v156 = vadd.f32 %v133, %v155
  %157 = vmatmul.f32.gmra.mxu0 %v43
  %v158 = vpop.f32.mrf.mxu0
  %v159 = vadd.f32 %v133, %v158
  %160 = vmatmul.f32.gmra.mxu0 %v46
  %v161 = vpop.f32.mrf.mxu0
  %v162 = vadd.f32 %v133, %v161
  %163 = vdwg.mxu0
  %164 = vst.msk [vmem:[#allocation4] sm:$0xff] %vm77, %v153
  %165 = vst.msk [vmem:[#allocation4 + $0x8] sm:$0xff] %vm77, %v156
  %166 = vst.msk [vmem:[#allocation4 + $0x10] sm:$0xff] %vm77, %v159
  %167 = vst.msk [vmem:[#allocation4 + $0x18] sm:$0xff] %vm77, %v162
  %v168 = vld [vmem:[%s3] sm:$0xf]
  %s169 = scalar_lea.vmem %s3, 4
  %v170 = vld [vmem:[%s169] sm:$0xf]
  %s171 = scalar_lea.vmem %s3, 8
  %v172 = vld [vmem:[%s171] sm:$0xf]
  %v173 = vld [vmem:[%s5] sm:$0x1]
  %s174 = scalar_lea.vmem %s5, 1
  %v175 = vld [vmem:[%s174] sm:$0x1]
  %s176 = scalar_lea.vmem %s5, 2
  %v177 = vld [vmem:[%s176] sm:$0x1]
  %v178 = vld [vmem:[%s1] sm:$0xff]
  %v179 = vld [vmem:[#allocation2] sm:$0xff]
  %v181 = vsel %vm77, %v178, 0
  %vm183 = vcmask 1043456
  %v185 = vsel %vm183, %v168, 0
  %187 = vmatpush.msra.mxu0 0.0
  %188 = vmatpush.msra.mxu0 0.0
  %189 = vmatpush.msra.mxu0 0.0
  %190 = vmatpush.msra.mxu0 0.0
  %191 = vmatpush.msra.mxu0 0.0
  %192 = vmatpush.msra.mxu0 0.0
  %193 = vmatpush.msra.mxu0 0.0
  %194 = vmatpush.msra.mxu0 0.0
  %195 = vmatpush.msra.mxu0 0.0
  %196 = vmatpush.msra.mxu0 0.0
  %197 = vmatpush.msra.mxu0 0.0
  %198 = vmatpush.msra.mxu0 0.0
  %199 = vmatpush.msra.mxu0 0.0
  %200 = vmatpush.msra.mxu0 0.0
  %201 = vmatpush.msra.mxu0 0.0
  %202 = vmatpush.msra.mxu0 %v185
  %203 = vmatmul.f32.gmra.mxu0 %v181
  %v204 = vpop.f32.mrf.mxu0
  %v205 = vadd.f32 0.0, %v204
  %206 = vdwg.mxu0
  %v207 = vadd.f32 %v179, %v205
  %v209 = vperm.slane %v173, 0
  %v211 = vadd.f32 %v207, %v209
  %v212 = vxor.u32 %v211, 2147483648
  %v213 = vmul.f32 %v212, 1.442695
  %v214 = vpow.pop %v213
  %v215 = vadd.f32 %v214, 1.0
  %v216 = vrcp.pop %v215
  %v217 = vmul.f32 %v215, %v216
  %v218 = vsub.f32 1.0, %v217
  %v219 = vmul.f32 %v216, %v218
  %v220 = vadd.f32 %v216, %v219
  %vm221 = vweird.f32 %v215
  %vm222 = vweird.f32 %v216
  %vm223 = vmor %vm221, %vm222
  %v224 = vsel %vm223, %v216, %v220
  %v225 = vand.u32 2147483647, %v215
  %vm226 = vcmp.eq.f32.partialorder %v225, 8.507059e+37
  %v227 = vand.u32 %v215, 2147483648
  %v228 = vor.u32 1.1754944e-38, %v227
  %v229 = vsel %vm226, %v228, %v224
  %v230 = vmul.f32 1.0, %v229
  %v231 = vld [vmem:[#allocation3] sm:$0xff]
  %v233 = vsel %vm183, %v170, 0
  %235 = vmatpush.msra.mxu0 0.0
  %236 = vmatpush.msra.mxu0 0.0
  %237 = vmatpush.msra.mxu0 0.0
  %238 = vmatpush.msra.mxu0 0.0
  %239 = vmatpush.msra.mxu0 0.0
  %240 = vmatpush.msra.mxu0 0.0
  %241 = vmatpush.msra.mxu0 0.0
  %242 = vmatpush.msra.mxu0 0.0
  %243 = vmatpush.msra.mxu0 0.0
  %244 = vmatpush.msra.mxu0 0.0
  %245 = vmatpush.msra.mxu0 0.0
  %246 = vmatpush.msra.mxu0 0.0
  %247 = vmatpush.msra.mxu0 0.0
  %248 = vmatpush.msra.mxu0 0.0
  %249 = vmatpush.msra.mxu0 0.0
  %250 = vmatpush.msra.mxu0 %v233
  %251 = vmatmul.f32.gmra.mxu0 %v181
  %v252 = vpop.f32.mrf.mxu0
  %v253 = vadd.f32 0.0, %v252
  %254 = vdwg.mxu0
  %v255 = vadd.f32 %v231, %v253
  %v257 = vperm.slane %v175, 0
  %v259 = vadd.f32 %v255, %v257
  %v260 = vxor.u32 %v259, 2147483648
  %v261 = vmul.f32 %v260, 1.442695
  %v262 = vpow.pop %v261
  %v263 = vadd.f32 %v262, 1.0
  %v264 = vrcp.pop %v263
  %v265 = vmul.f32 %v263, %v264
  %v266 = vsub.f32 1.0, %v265
  %v267 = vmul.f32 %v264, %v266
  %v268 = vadd.f32 %v264, %v267
  %vm269 = vweird.f32 %v263
  %vm270 = vweird.f32 %v264
  %vm271 = vmor %vm269, %vm270
  %v272 = vsel %vm271, %v264, %v268
  %v273 = vand.u32 2147483647, %v263
  %vm274 = vcmp.eq.f32.partialorder %v273, 8.507059e+37
  %v275 = vand.u32 %v263, 2147483648
  %v276 = vor.u32 1.1754944e-38, %v275
  %v277 = vsel %vm274, %v276, %v272
  %v278 = vmul.f32 1.0, %v277
  %v279 = vld [vmem:[#allocation4] sm:$0xff]
  %v281 = vperm.slane %v177, 0
  %v284 = vsel %vm183, %v172, 0
  %286 = vmatpush.msra.mxu0 0.0
  %287 = vmatpush.msra.mxu0 0.0
  %288 = vmatpush.msra.mxu0 0.0
  %289 = vmatpush.msra.mxu0 0.0
  %290 = vmatpush.msra.mxu0 0.0
  %291 = vmatpush.msra.mxu0 0.0
  %292 = vmatpush.msra.mxu0 0.0
  %293 = vmatpush.msra.mxu0 0.0
  %294 = vmatpush.msra.mxu0 0.0
  %295 = vmatpush.msra.mxu0 0.0
  %296 = vmatpush.msra.mxu0 0.0
  %297 = vmatpush.msra.mxu0 0.0
  %298 = vmatpush.msra.mxu0 0.0
  %299 = vmatpush.msra.mxu0 0.0
  %300 = vmatpush.msra.mxu0 0.0
  %301 = vmatpush.msra.mxu0 %v284
  %302 = vmatmul.f32.gmra.mxu0 %v181
  %v303 = vpop.f32.mrf.mxu0
  %v304 = vadd.f32 %v281, %v303
  %305 = vdwg.mxu0
  %v306 = vmul.f32 %v230, %v304
  %v307 = vadd.f32 %v279, %v306
  %v308 = vtanh.pop %v307
  %v309 = vsub.f32 1.0, %v278
  %v310 = vmul.f32 %v309, %v308
  %v311 = vmul.f32 %v278, %v178
  %v312 = vadd.f32 %v310, %v311
  %v313 = vld [vmem:[#allocation2 + $0x8] sm:$0xff]
  %v315 = vsel %vm77, %v312, 0
  %317 = vmatpush.msra.mxu0 0.0
  %318 = vmatpush.msra.mxu0 0.0
  %319 = vmatpush.msra.mxu0 0.0
  %320 = vmatpush.msra.mxu0 0.0
  %321 = vmatpush.msra.mxu0 0.0
  %322 = vmatpush.msra.mxu0 0.0
  %323 = vmatpush.msra.mxu0 0.0
  %324 = vmatpush.msra.mxu0 0.0
  %325 = vmatpush.msra.mxu0 0.0
  %326 = vmatpush.msra.mxu0 0.0
  %327 = vmatpush.msra.mxu0 0.0
  %328 = vmatpush.msra.mxu0 0.0
  %329 = vmatpush.msra.mxu0 0.0
  %330 = vmatpush.msra.mxu0 0.0
  %331 = vmatpush.msra.mxu0 0.0
  %332 = vmatpush.msra.mxu0 %v185
  %333 = vmatmul.f32.gmra.mxu0 %v315
  %v334 = vpop.f32.mrf.mxu0
  %v335 = vadd.f32 0.0, %v334
  %336 = vdwg.mxu0
  %v337 = vadd.f32 %v313, %v335
  %v338 = vadd.f32 %v337, %v209
  %v339 = vxor.u32 %v338, 2147483648
  %v340 = vmul.f32 %v339, 1.442695
  %v341 = vpow.pop %v340
  %v342 = vadd.f32 %v341, 1.0
  %v343 = vrcp.pop %v342
  %v344 = vmul.f32 %v342, %v343
  %v345 = vsub.f32 1.0, %v344
  %v346 = vmul.f32 %v343, %v345
  %v347 = vadd.f32 %v343, %v346
  %vm348 = vweird.f32 %v342
  %vm349 = vweird.f32 %v343
  %vm350 = vmor %vm348, %vm349
  %v351 = vsel %vm350, %v343, %v347
  %v352 = vand.u32 2147483647, %v342
  %vm353 = vcmp.eq.f32.partialorder %v352, 8.507059e+37
  %v354 = vand.u32 %v342, 2147483648
  %v355 = vor.u32 1.1754944e-38, %v354
  %v356 = vsel %vm353, %v355, %v351
  %v357 = vmul.f32 1.0, %v356
  %v358 = vld [vmem:[#allocation3 + $0x8] sm:$0xff]
  %359 = vmatpush.msra.mxu0 0.0
  %360 = vmatpush.msra.mxu0 0.0
  %361 = vmatpush.msra.mxu0 0.0
  %362 = vmatpush.msra.mxu0 0.0
  %363 = vmatpush.msra.mxu0 0.0
  %364 = vmatpush.msra.mxu0 0.0
  %365 = vmatpush.msra.mxu0 0.0
  %366 = vmatpush.msra.mxu0 0.0
  %367 = vmatpush.msra.mxu0 0.0
  %368 = vmatpush.msra.mxu0 0.0
  %369 = vmatpush.msra.mxu0 0.0
  %370 = vmatpush.msra.mxu0 0.0
  %371 = vmatpush.msra.mxu0 0.0
  %372 = vmatpush.msra.mxu0 0.0
  %373 = vmatpush.msra.mxu0 0.0
  %374 = vmatpush.msra.mxu0 %v233
  %375 = vmatmul.f32.gmra.mxu0 %v315
  %v376 = vpop.f32.mrf.mxu0
  %v377 = vadd.f32 0.0, %v376
  %378 = vdwg.mxu0
  %v379 = vadd.f32 %v358, %v377
  %v380 = vadd.f32 %v379, %v257
  %v381 = vxor.u32 %v380, 2147483648
  %v382 = vmul.f32 %v381, 1.442695
  %v383 = vpow.pop %v382
  %v384 = vadd.f32 %v383, 1.0
  %v385 = vrcp.pop %v384
  %v386 = vmul.f32 %v384, %v385
  %v387 = vsub.f32 1.0, %v386
  %v388 = vmul.f32 %v385, %v387
  %v389 = vadd.f32 %v385, %v388
  %vm390 = vweird.f32 %v384
  %vm391 = vweird.f32 %v385
  %vm392 = vmor %vm390, %vm391
  %v393 = vsel %vm392, %v385, %v389
  %v394 = vand.u32 2147483647, %v384
  %vm395 = vcmp.eq.f32.partialorder %v394, 8.507059e+37
  %v396 = vand.u32 %v384, 2147483648
  %v397 = vor.u32 1.1754944e-38, %v396
  %v398 = vsel %vm395, %v397, %v393
  %v399 = vmul.f32 1.0, %v398
  %v400 = vld [vmem:[#allocation4 + $0x8] sm:$0xff]
  %401 = vmatpush.msra.mxu0 0.0
  %402 = vmatpush.msra.mxu0 0.0
  %403 = vmatpush.msra.mxu0 0.0
  %404 = vmatpush.msra.mxu0 0.0
  %405 = vmatpush.msra.mxu0 0.0
  %406 = vmatpush.msra.mxu0 0.0
  %407 = vmatpush.msra.mxu0 0.0
  %408 = vmatpush.msra.mxu0 0.0
  %409 = vmatpush.msra.mxu0 0.0
  %410 = vmatpush.msra.mxu0 0.0
  %411 = vmatpush.msra.mxu0 0.0
  %412 = vmatpush.msra.mxu0 0.0
  %413 = vmatpush.msra.mxu0 0.0
  %414 = vmatpush.msra.mxu0 0.0
  %415 = vmatpush.msra.mxu0 0.0
  %416 = vmatpush.msra.mxu0 %v284
  %417 = vmatmul.f32.gmra.mxu0 %v315
  %v418 = vpop.f32.mrf.mxu0
  %v419 = vadd.f32 %v281, %v418
  %420 = vdwg.mxu0
  %v421 = vmul.f32 %v357, %v419
  %v422 = vadd.f32 %v400, %v421
  %v423 = vtanh.pop %v422
  %v424 = vsub.f32 1.0, %v399
  %v425 = vmul.f32 %v424, %v423
  %v426 = vmul.f32 %v399, %v312
  %v427 = vadd.f32 %v425, %v426
  %v428 = vld [vmem:[#allocation2 + $0x10] sm:$0xff]
  %v430 = vsel %vm77, %v427, 0
  %432 = vmatpush.msra.mxu0 0.0
  %433 = vmatpush.msra.mxu0 0.0
  %434 = vmatpush.msra.mxu0 0.0
  %435 = vmatpush.msra.mxu0 0.0
  %436 = vmatpush.msra.mxu0 0.0
  %437 = vmatpush.msra.mxu0 0.0
  %438 = vmatpush.msra.mxu0 0.0
  %439 = vmatpush.msra.mxu0 0.0
  %440 = vmatpush.msra.mxu0 0.0
  %441 = vmatpush.msra.mxu0 0.0
  %442 = vmatpush.msra.mxu0 0.0
  %443 = vmatpush.msra.mxu0 0.0
  %444 = vmatpush.msra.mxu0 0.0
  %445 = vmatpush.msra.mxu0 0.0
  %446 = vmatpush.msra.mxu0 0.0
  %447 = vmatpush.msra.mxu0 %v185
  %448 = vmatmul.f32.gmra.mxu0 %v430
  %v449 = vpop.f32.mrf.mxu0
  %v450 = vadd.f32 0.0, %v449
  %451 = vdwg.mxu0
  %v452 = vadd.f32 %v428, %v450
  %v453 = vadd.f32 %v452, %v209
  %v454 = vxor.u32 %v453, 2147483648
  %v455 = vmul.f32 %v454, 1.442695
  %v456 = vpow.pop %v455
  %v457 = vadd.f32 %v456, 1.0
  %v458 = vrcp.pop %v457
  %v459 = vmul.f32 %v457, %v458
  %v460 = vsub.f32 1.0, %v459
  %v461 = vmul.f32 %v458, %v460
  %v462 = vadd.f32 %v458, %v461
  %vm463 = vweird.f32 %v457
  %vm464 = vweird.f32 %v458
  %vm465 = vmor %vm463, %vm464
  %v466 = vsel %vm465, %v458, %v462
  %v467 = vand.u32 2147483647, %v457
  %vm468 = vcmp.eq.f32.partialorder %v467, 8.507059e+37
  %v469 = vand.u32 %v457, 2147483648
  %v470 = vor.u32 1.1754944e-38, %v469
  %v471 = vsel %vm468, %v470, %v466
  %v472 = vmul.f32 1.0, %v471
  %v473 = vld [vmem:[#allocation3 + $0x10] sm:$0xff]
  %474 = vmatpush.msra.mxu0 0.0
  %475 = vmatpush.msra.mxu0 0.0
  %476 = vmatpush.msra.mxu0 0.0
  %477 = vmatpush.msra.mxu0 0.0
  %478 = vmatpush.msra.mxu0 0.0
  %479 = vmatpush.msra.mxu0 0.0
  %480 = vmatpush.msra.mxu0 0.0
  %481 = vmatpush.msra.mxu0 0.0
  %482 = vmatpush.msra.mxu0 0.0
  %483 = vmatpush.msra.mxu0 0.0
  %484 = vmatpush.msra.mxu0 0.0
  %485 = vmatpush.msra.mxu0 0.0
  %486 = vmatpush.msra.mxu0 0.0
  %487 = vmatpush.msra.mxu0 0.0
  %488 = vmatpush.msra.mxu0 0.0
  %489 = vmatpush.msra.mxu0 %v233
  %490 = vmatmul.f32.gmra.mxu0 %v430
  %v491 = vpop.f32.mrf.mxu0
  %v492 = vadd.f32 0.0, %v491
  %493 = vdwg.mxu0
  %v494 = vadd.f32 %v473, %v492
  %v495 = vadd.f32 %v494, %v257
  %v496 = vxor.u32 %v495, 2147483648
  %v497 = vmul.f32 %v496, 1.442695
  %v498 = vpow.pop %v497
  %v499 = vadd.f32 %v498, 1.0
  %v500 = vrcp.pop %v499
  %v501 = vmul.f32 %v499, %v500
  %v502 = vsub.f32 1.0, %v501
  %v503 = vmul.f32 %v500, %v502
  %v504 = vadd.f32 %v500, %v503
  %vm505 = vweird.f32 %v499
  %vm506 = vweird.f32 %v500
  %vm507 = vmor %vm505, %vm506
  %v508 = vsel %vm507, %v500, %v504
  %v509 = vand.u32 2147483647, %v499
  %vm510 = vcmp.eq.f32.partialorder %v509, 8.507059e+37
  %v511 = vand.u32 %v499, 2147483648
  %v512 = vor.u32 1.1754944e-38, %v511
  %v513 = vsel %vm510, %v512, %v508
  %v514 = vmul.f32 1.0, %v513
  %v515 = vld [vmem:[#allocation4 + $0x10] sm:$0xff]
  %516 = vmatpush.msra.mxu0 0.0
  %517 = vmatpush.msra.mxu0 0.0
  %518 = vmatpush.msra.mxu0 0.0
  %519 = vmatpush.msra.mxu0 0.0
  %520 = vmatpush.msra.mxu0 0.0
  %521 = vmatpush.msra.mxu0 0.0
  %522 = vmatpush.msra.mxu0 0.0
  %523 = vmatpush.msra.mxu0 0.0
  %524 = vmatpush.msra.mxu0 0.0
  %525 = vmatpush.msra.mxu0 0.0
  %526 = vmatpush.msra.mxu0 0.0
  %527 = vmatpush.msra.mxu0 0.0
  %528 = vmatpush.msra.mxu0 0.0
  %529 = vmatpush.msra.mxu0 0.0
  %530 = vmatpush.msra.mxu0 0.0
  %531 = vmatpush.msra.mxu0 %v284
  %532 = vmatmul.f32.gmra.mxu0 %v430
  %v533 = vpop.f32.mrf.mxu0
  %v534 = vadd.f32 %v281, %v533
  %535 = vdwg.mxu0
  %v536 = vmul.f32 %v472, %v534
  %v537 = vadd.f32 %v515, %v536
  %v538 = vtanh.pop %v537
  %v539 = vsub.f32 1.0, %v514
  %v540 = vmul.f32 %v539, %v538
  %v541 = vmul.f32 %v514, %v427
  %v542 = vadd.f32 %v540, %v541
  %v543 = vld [vmem:[#allocation2 + $0x18] sm:$0xff]
  %v545 = vsel %vm77, %v542, 0
  %547 = vmatpush.msra.mxu0 0.0
  %548 = vmatpush.msra.mxu0 0.0
  %549 = vmatpush.msra.mxu0 0.0
  %550 = vmatpush.msra.mxu0 0.0
  %551 = vmatpush.msra.mxu0 0.0
  %552 = vmatpush.msra.mxu0 0.0
  %553 = vmatpush.msra.mxu0 0.0
  %554 = vmatpush.msra.mxu0 0.0
  %555 = vmatpush.msra.mxu0 0.0
  %556 = vmatpush.msra.mxu0 0.0
  %557 = vmatpush.msra.mxu0 0.0
  %558 = vmatpush.msra.mxu0 0.0
  %559 = vmatpush.msra.mxu0 0.0
  %560 = vmatpush.msra.mxu0 0.0
  %561 = vmatpush.msra.mxu0 0.0
  %562 = vmatpush.msra.mxu0 %v185
  %563 = vmatmul.f32.gmra.mxu0 %v545
  %v564 = vpop.f32.mrf.mxu0
  %v565 = vadd.f32 0.0, %v564
  %566 = vdwg.mxu0
  %v567 = vadd.f32 %v543, %v565
  %v568 = vadd.f32 %v567, %v209
  %v569 = vxor.u32 %v568, 2147483648
  %v570 = vmul.f32 %v569, 1.442695
  %v571 = vpow.pop %v570
  %v572 = vadd.f32 %v571, 1.0
  %v573 = vrcp.pop %v572
  %v574 = vmul.f32 %v572, %v573
  %v575 = vsub.f32 1.0, %v574
  %v576 = vmul.f32 %v573, %v575
  %v577 = vadd.f32 %v573, %v576
  %vm578 = vweird.f32 %v572
  %vm579 = vweird.f32 %v573
  %vm580 = vmor %vm578, %vm579
  %v581 = vsel %vm580, %v573, %v577
  %v582 = vand.u32 2147483647, %v572
  %vm583 = vcmp.eq.f32.partialorder %v582, 8.507059e+37
  %v584 = vand.u32 %v572, 2147483648
  %v585 = vor.u32 1.1754944e-38, %v584
  %v586 = vsel %vm583, %v585, %v581
  %v587 = vmul.f32 1.0, %v586
  %v588 = vld [vmem:[#allocation3 + $0x18] sm:$0xff]
  %589 = vmatpush.msra.mxu0 0.0
  %590 = vmatpush.msra.mxu0 0.0
  %591 = vmatpush.msra.mxu0 0.0
  %592 = vmatpush.msra.mxu0 0.0
  %593 = vmatpush.msra.mxu0 0.0
  %594 = vmatpush.msra.mxu0 0.0
  %595 = vmatpush.msra.mxu0 0.0
  %596 = vmatpush.msra.mxu0 0.0
  %597 = vmatpush.msra.mxu0 0.0
  %598 = vmatpush.msra.mxu0 0.0
  %599 = vmatpush.msra.mxu0 0.0
  %600 = vmatpush.msra.mxu0 0.0
  %601 = vmatpush.msra.mxu0 0.0
  %602 = vmatpush.msra.mxu0 0.0
  %603 = vmatpush.msra.mxu0 0.0
  %604 = vmatpush.msra.mxu0 %v233
  %605 = vmatmul.f32.gmra.mxu0 %v545
  %v606 = vpop.f32.mrf.mxu0
  %v607 = vadd.f32 0.0, %v606
  %608 = vdwg.mxu0
  %v609 = vadd.f32 %v588, %v607
  %v610 = vadd.f32 %v609, %v257
  %v611 = vxor.u32 %v610, 2147483648
  %v612 = vmul.f32 %v611, 1.442695
  %v613 = vpow.pop %v612
  %v614 = vadd.f32 %v613, 1.0
  %v615 = vrcp.pop %v614
  %v616 = vmul.f32 %v614, %v615
  %v617 = vsub.f32 1.0, %v616
  %v618 = vmul.f32 %v615, %v617
  %v619 = vadd.f32 %v615, %v618
  %vm620 = vweird.f32 %v614
  %vm621 = vweird.f32 %v615
  %vm622 = vmor %vm620, %vm621
  %v623 = vsel %vm622, %v615, %v619
  %v624 = vand.u32 2147483647, %v614
  %vm625 = vcmp.eq.f32.partialorder %v624, 8.507059e+37
  %v626 = vand.u32 %v614, 2147483648
  %v627 = vor.u32 1.1754944e-38, %v626
  %v628 = vsel %vm625, %v627, %v623
  %v629 = vmul.f32 1.0, %v628
  %v630 = vld [vmem:[#allocation4 + $0x18] sm:$0xff]
  %631 = vmatpush.msra.mxu0 0.0
  %632 = vmatpush.msra.mxu0 0.0
  %633 = vmatpush.msra.mxu0 0.0
  %634 = vmatpush.msra.mxu0 0.0
  %635 = vmatpush.msra.mxu0 0.0
  %636 = vmatpush.msra.mxu0 0.0
  %637 = vmatpush.msra.mxu0 0.0
  %638 = vmatpush.msra.mxu0 0.0
  %639 = vmatpush.msra.mxu0 0.0
  %640 = vmatpush.msra.mxu0 0.0
  %641 = vmatpush.msra.mxu0 0.0
  %642 = vmatpush.msra.mxu0 0.0
  %643 = vmatpush.msra.mxu0 0.0
  %644 = vmatpush.msra.mxu0 0.0
  %645 = vmatpush.msra.mxu0 0.0
  %646 = vmatpush.msra.mxu0 %v284
  %647 = vmatmul.f32.gmra.mxu0 %v545
  %v648 = vpop.f32.mrf.mxu0
  %v649 = vadd.f32 %v281, %v648
  %650 = vdwg.mxu0
  %v651 = vmul.f32 %v587, %v649
  %v652 = vadd.f32 %v630, %v651
  %v653 = vtanh.pop %v652
  %v654 = vsub.f32 1.0, %v629
  %v655 = vmul.f32 %v654, %v653
  %v656 = vmul.f32 %v629, %v542
  %v657 = vadd.f32 %v655, %v656
  %658 = vst.msk [vmem:[%s6] sm:$0xff] %vm77, %v657
  %s659 = scalar_lea.vmem %s2, 96
  %v660 = vld [vmem:[%s659] sm:$0xff]
  %v661 = vld [vmem:[%s659 + $0x8] sm:$0xff]
  %v662 = vld [vmem:[%s659 + $0x10] sm:$0xff]
  %v663 = vld [vmem:[%s659 + $0x18] sm:$0xff]
  %s664 = scalar_lea.vmem %s4, 3
  %v665 = vld [vmem:[%s664] sm:$0x1]
  %v667 = vperm.slane %v665, 0
  %669 = vmatpush.msra.mxu0 0.0
  %670 = vmatpush.msra.mxu0 0.0
  %671 = vmatpush.msra.mxu0 0.0
  %672 = vmatpush.msra.mxu0 0.0
  %673 = vmatpush.msra.mxu0 0.0
  %674 = vmatpush.msra.mxu0 0.0
  %675 = vmatpush.msra.mxu0 0.0
  %676 = vmatpush.msra.mxu0 0.0
  %677 = vmatpush.msra.mxu0 0.0
  %678 = vmatpush.msra.mxu0 0.0
  %679 = vmatpush.msra.mxu0 0.0
  %680 = vmatpush.msra.mxu0 0.0
  %681 = vmatpush.msra.mxu0 %v663
  %682 = vmatpush.msra.mxu0 %v662
  %683 = vmatpush.msra.mxu0 %v661
  %684 = vmatpush.msra.mxu0 %v660
  %685 = vmatmul.f32.gmra.mxu0 %v37
  %v686 = vpop.f32.mrf.mxu0
  %v687 = vadd.f32 %v667, %v686
  %688 = vmatmul.f32.gmra.mxu0 %v40
  %v689 = vpop.f32.mrf.mxu0
  %v690 = vadd.f32 %v667, %v689
  %691 = vmatmul.f32.gmra.mxu0 %v43
  %v692 = vpop.f32.mrf.mxu0
  %v693 = vadd.f32 %v667, %v692
  %694 = vmatmul.f32.gmra.mxu0 %v46
  %v695 = vpop.f32.mrf.mxu0
  %v696 = vadd.f32 %v667, %v695
  %697 = vdwg.mxu0
  %698 = vst.msk [vmem:[#allocation2] sm:$0xff] %vm77, %v687
  %699 = vst.msk [vmem:[#allocation2 + $0x8] sm:$0xff] %vm77, %v690
  %700 = vst.msk [vmem:[#allocation2 + $0x10] sm:$0xff] %vm77, %v693
  %701 = vst.msk [vmem:[#allocation2 + $0x18] sm:$0xff] %vm77, %v696
  %s702 = scalar_lea.vmem %s2, 128
  %v703 = vld [vmem:[%s702] sm:$0xff]
  %v704 = vld [vmem:[%s702 + $0x8] sm:$0xff]
  %v705 = vld [vmem:[%s702 + $0x10] sm:$0xff]
  %v706 = vld [vmem:[%s702 + $0x18] sm:$0xff]
  %s707 = scalar_lea.vmem %s4, 4
  %v708 = vld [vmem:[%s707] sm:$0x1]
  %v710 = vperm.slane %v708, 0
  %712 = vmatpush.msra.mxu0 0.0
  %713 = vmatpush.msra.mxu0 0.0
  %714 = vmatpush.msra.mxu0 0.0
  %715 = vmatpush.msra.mxu0 0.0
  %716 = vmatpush.msra.mxu0 0.0
  %717 = vmatpush.msra.mxu0 0.0
  %718 = vmatpush.msra.mxu0 0.0
  %719 = vmatpush.msra.mxu0 0.0
  %720 = vmatpush.msra.mxu0 0.0
  %721 = vmatpush.msra.mxu0 0.0
  %722 = vmatpush.msra.mxu0 0.0
  %723 = vmatpush.msra.mxu0 0.0
  %724 = vmatpush.msra.mxu0 %v706
  %725 = vmatpush.msra.mxu0 %v705
  %726 = vmatpush.msra.mxu0 %v704
  %727 = vmatpush.msra.mxu0 %v703
  %728 = vmatmul.f32.gmra.mxu0 %v37
  %v729 = vpop.f32.mrf.mxu0
  %v730 = vadd.f32 %v710, %v729
  %731 = vmatmul.f32.gmra.mxu0 %v40
  %v732 = vpop.f32.mrf.mxu0
  %v733 = vadd.f32 %v710, %v732
  %734 = vmatmul.f32.gmra.mxu0 %v43
  %v735 = vpop.f32.mrf.mxu0
  %v736 = vadd.f32 %v710, %v735
  %737 = vmatmul.f32.gmra.mxu0 %v46
  %v738 = vpop.f32.mrf.mxu0
  %v739 = vadd.f32 %v710, %v738
  %740 = vdwg.mxu0
  %741 = vst.msk [vmem:[#allocation3] sm:$0xff] %vm77, %v730
  %742 = vst.msk [vmem:[#allocation3 + $0x8] sm:$0xff] %vm77, %v733
  %743 = vst.msk [vmem:[#allocation3 + $0x10] sm:$0xff] %vm77, %v736
  %744 = vst.msk [vmem:[#allocation3 + $0x18] sm:$0xff] %vm77, %v739
  %s745 = scalar_lea.vmem %s2, 160
  %v746 = vld [vmem:[%s745] sm:$0xff]
  %v747 = vld [vmem:[%s745 + $0x8] sm:$0xff]
  %v748 = vld [vmem:[%s745 + $0x10] sm:$0xff]
  %v749 = vld [vmem:[%s745 + $0x18] sm:$0xff]
  %s750 = scalar_lea.vmem %s4, 5
  %v751 = vld [vmem:[%s750] sm:$0x1]
  %v753 = vperm.slane %v751, 0
  %755 = vmatpush.msra.mxu0 0.0
  %756 = vmatpush.msra.mxu0 0.0
  %757 = vmatpush.msra.mxu0 0.0
  %758 = vmatpush.msra.mxu0 0.0
  %759 = vmatpush.msra.mxu0 0.0
  %760 = vmatpush.msra.mxu0 0.0
  %761 = vmatpush.msra.mxu0 0.0
  %762 = vmatpush.msra.mxu0 0.0
  %763 = vmatpush.msra.mxu0 0.0
  %764 = vmatpush.msra.mxu0 0.0
  %765 = vmatpush.msra.mxu0 0.0
  %766 = vmatpush.msra.mxu0 0.0
  %767 = vmatpush.msra.mxu0 %v749
  %768 = vmatpush.msra.mxu0 %v748
  %769 = vmatpush.msra.mxu0 %v747
  %770 = vmatpush.msra.mxu0 %v746
  %771 = vmatmul.f32.gmra.mxu0 %v37
  %v772 = vpop.f32.mrf.mxu0
  %v773 = vadd.f32 %v753, %v772
  %774 = vmatmul.f32.gmra.mxu0 %v40
  %v775 = vpop.f32.mrf.mxu0
  %v776 = vadd.f32 %v753, %v775
  %777 = vmatmul.f32.gmra.mxu0 %v43
  %v778 = vpop.f32.mrf.mxu0
  %v779 = vadd.f32 %v753, %v778
  %780 = vmatmul.f32.gmra.mxu0 %v46
  %v781 = vpop.f32.mrf.mxu0
  %v782 = vadd.f32 %v753, %v781
  %783 = vdwg.mxu0
  %784 = vst.msk [vmem:[#allocation4] sm:$0xff] %vm77, %v773
  %785 = vst.msk [vmem:[#allocation4 + $0x8] sm:$0xff] %vm77, %v776
  %786 = vst.msk [vmem:[#allocation4 + $0x10] sm:$0xff] %vm77, %v779
  %787 = vst.msk [vmem:[#allocation4 + $0x18] sm:$0xff] %vm77, %v782
  %s788 = scalar_lea.vmem %s3, 12
  %v789 = vld [vmem:[%s788] sm:$0xf]
  %s790 = scalar_lea.vmem %s3, 16
  %v791 = vld [vmem:[%s790] sm:$0xf]
  %s792 = scalar_lea.vmem %s3, 20
  %v793 = vld [vmem:[%s792] sm:$0xf]
  %s794 = scalar_lea.vmem %s5, 3
  %v795 = vld [vmem:[%s794] sm:$0x1]
  %s796 = scalar_lea.vmem %s5, 4
  %v797 = vld [vmem:[%s796] sm:$0x1]
  %s798 = scalar_lea.vmem %s5, 5
  %v799 = vld [vmem:[%s798] sm:$0x1]
  %s800 = scalar_lea.vmem %s1, 8
  %v801 = vld [vmem:[%s800] sm:$0xff]
  %v802 = vld [vmem:[#allocation2 + $0x18] sm:$0xff]
  %v804 = vsel %vm77, %v801, 0
  %v807 = vsel %vm183, %v789, 0
  %809 = vmatpush.msra.mxu0 0.0
  %810 = vmatpush.msra.mxu0 0.0
  %811 = vmatpush.msra.mxu0 0.0
  %812 = vmatpush.msra.mxu0 0.0
  %813 = vmatpush.msra.mxu0 0.0
  %814 = vmatpush.msra.mxu0 0.0
  %815 = vmatpush.msra.mxu0 0.0
  %816 = vmatpush.msra.mxu0 0.0
  %817 = vmatpush.msra.mxu0 0.0
  %818 = vmatpush.msra.mxu0 0.0
  %819 = vmatpush.msra.mxu0 0.0
  %820 = vmatpush.msra.mxu0 0.0
  %821 = vmatpush.msra.mxu0 0.0
  %822 = vmatpush.msra.mxu0 0.0
  %823 = vmatpush.msra.mxu0 0.0
  %824 = vmatpush.msra.mxu0 %v807
  %825 = vmatmul.f32.gmra.mxu0 %v804
  %v826 = vpop.f32.mrf.mxu0
  %v827 = vadd.f32 0.0, %v826
  %828 = vdwg.mxu0
  %v829 = vadd.f32 %v802, %v827
  %v831 = vperm.slane %v795, 0
  %v833 = vadd.f32 %v829, %v831
  %v834 = vxor.u32 %v833, 2147483648
  %v835 = vmul.f32 %v834, 1.442695
  %v836 = vpow.pop %v835
  %v837 = vadd.f32 %v836, 1.0
  %v838 = vrcp.pop %v837
  %v839 = vmul.f32 %v837, %v838
  %v840 = vsub.f32 1.0, %v839
  %v841 = vmul.f32 %v838, %v840
  %v842 = vadd.f32 %v838, %v841
  %vm843 = vweird.f32 %v837
  %vm844 = vweird.f32 %v838
  %vm845 = vmor %vm843, %vm844
  %v846 = vsel %vm845, %v838, %v842
  %v847 = vand.u32 2147483647, %v837
  %vm848 = vcmp.eq.f32.partialorder %v847, 8.507059e+37
  %v849 = vand.u32 %v837, 2147483648
  %v850 = vor.u32 1.1754944e-38, %v849
  %v851 = vsel %vm848, %v850, %v846
  %v852 = vmul.f32 1.0, %v851
  %v853 = vld [vmem:[#allocation3 + $0x18] sm:$0xff]
  %v855 = vsel %vm183, %v791, 0
  %857 = vmatpush.msra.mxu0 0.0
  %858 = vmatpush.msra.mxu0 0.0
  %859 = vmatpush.msra.mxu0 0.0
  %860 = vmatpush.msra.mxu0 0.0
  %861 = vmatpush.msra.mxu0 0.0
  %862 = vmatpush.msra.mxu0 0.0
  %863 = vmatpush.msra.mxu0 0.0
  %864 = vmatpush.msra.mxu0 0.0
  %865 = vmatpush.msra.mxu0 0.0
  %866 = vmatpush.msra.mxu0 0.0
  %867 = vmatpush.msra.mxu0 0.0
  %868 = vmatpush.msra.mxu0 0.0
  %869 = vmatpush.msra.mxu0 0.0
  %870 = vmatpush.msra.mxu0 0.0
  %871 = vmatpush.msra.mxu0 0.0
  %872 = vmatpush.msra.mxu0 %v855
  %873 = vmatmul.f32.gmra.mxu0 %v804
  %v874 = vpop.f32.mrf.mxu0
  %v875 = vadd.f32 0.0, %v874
  %876 = vdwg.mxu0
  %v877 = vadd.f32 %v853, %v875
  %v879 = vperm.slane %v797, 0
  %v881 = vadd.f32 %v877, %v879
  %v882 = vxor.u32 %v881, 2147483648
  %v883 = vmul.f32 %v882, 1.442695
  %v884 = vpow.pop %v883
  %v885 = vadd.f32 %v884, 1.0
  %v886 = vrcp.pop %v885
  %v887 = vmul.f32 %v885, %v886
  %v888 = vsub.f32 1.0, %v887
  %v889 = vmul.f32 %v886, %v888
  %v890 = vadd.f32 %v886, %v889
  %vm891 = vweird.f32 %v885
  %vm892 = vweird.f32 %v886
  %vm893 = vmor %vm891, %vm892
  %v894 = vsel %vm893, %v886, %v890
  %v895 = vand.u32 2147483647, %v885
  %vm896 = vcmp.eq.f32.partialorder %v895, 8.507059e+37
  %v897 = vand.u32 %v885, 2147483648
  %v898 = vor.u32 1.1754944e-38, %v897
  %v899 = vsel %vm896, %v898, %v894
  %v900 = vmul.f32 1.0, %v899
  %v901 = vld [vmem:[#allocation4 + $0x18] sm:$0xff]
  %v903 = vperm.slane %v799, 0
  %v906 = vsel %vm183, %v793, 0
  %908 = vmatpush.msra.mxu0 0.0
  %909 = vmatpush.msra.mxu0 0.0
  %910 = vmatpush.msra.mxu0 0.0
  %911 = vmatpush.msra.mxu0 0.0
  %912 = vmatpush.msra.mxu0 0.0
  %913 = vmatpush.msra.mxu0 0.0
  %914 = vmatpush.msra.mxu0 0.0
  %915 = vmatpush.msra.mxu0 0.0
  %916 = vmatpush.msra.mxu0 0.0
  %917 = vmatpush.msra.mxu0 0.0
  %918 = vmatpush.msra.mxu0 0.0
  %919 = vmatpush.msra.mxu0 0.0
  %920 = vmatpush.msra.mxu0 0.0
  %921 = vmatpush.msra.mxu0 0.0
  %922 = vmatpush.msra.mxu0 0.0
  %923 = vmatpush.msra.mxu0 %v906
  %924 = vmatmul.f32.gmra.mxu0 %v804
  %v925 = vpop.f32.mrf.mxu0
  %v926 = vadd.f32 %v903, %v925
  %927 = vdwg.mxu0
  %v928 = vmul.f32 %v852, %v926
  %v929 = vadd.f32 %v901, %v928
  %v930 = vtanh.pop %v929
  %v931 = vsub.f32 1.0, %v900
  %v932 = vmul.f32 %v931, %v930
  %v933 = vmul.f32 %v900, %v801
  %v934 = vadd.f32 %v932, %v933
  %v935 = vld [vmem:[#allocation2 + $0x10] sm:$0xff]
  %v937 = vsel %vm77, %v934, 0
  %939 = vmatpush.msra.mxu0 0.0
  %940 = vmatpush.msra.mxu0 0.0
  %941 = vmatpush.msra.mxu0 0.0
  %942 = vmatpush.msra.mxu0 0.0
  %943 = vmatpush.msra.mxu0 0.0
  %944 = vmatpush.msra.mxu0 0.0
  %945 = vmatpush.msra.mxu0 0.0
  %946 = vmatpush.msra.mxu0 0.0
  %947 = vmatpush.msra.mxu0 0.0
  %948 = vmatpush.msra.mxu0 0.0
  %949 = vmatpush.msra.mxu0 0.0
  %950 = vmatpush.msra.mxu0 0.0
  %951 = vmatpush.msra.mxu0 0.0
  %952 = vmatpush.msra.mxu0 0.0
  %953 = vmatpush.msra.mxu0 0.0
  %954 = vmatpush.msra.mxu0 %v807
  %955 = vmatmul.f32.gmra.mxu0 %v937
  %v956 = vpop.f32.mrf.mxu0
  %v957 = vadd.f32 0.0, %v956
  %958 = vdwg.mxu0
  %v959 = vadd.f32 %v935, %v957
  %v960 = vadd.f32 %v959, %v831
  %v961 = vxor.u32 %v960, 2147483648
  %v962 = vmul.f32 %v961, 1.442695
  %v963 = vpow.pop %v962
  %v964 = vadd.f32 %v963, 1.0
  %v965 = vrcp.pop %v964
  %v966 = vmul.f32 %v964, %v965
  %v967 = vsub.f32 1.0, %v966
  %v968 = vmul.f32 %v965, %v967
  %v969 = vadd.f32 %v965, %v968
  %vm970 = vweird.f32 %v964
  %vm971 = vweird.f32 %v965
  %vm972 = vmor %vm970, %vm971
  %v973 = vsel %vm972, %v965, %v969
  %v974 = vand.u32 2147483647, %v964
  %vm975 = vcmp.eq.f32.partialorder %v974, 8.507059e+37
  %v976 = vand.u32 %v964, 2147483648
  %v977 = vor.u32 1.1754944e-38, %v976
  %v978 = vsel %vm975, %v977, %v973
  %v979 = vmul.f32 1.0, %v978
  %v980 = vld [vmem:[#allocation3 + $0x10] sm:$0xff]
  %981 = vmatpush.msra.mxu0 0.0
  %982 = vmatpush.msra.mxu0 0.0
  %983 = vmatpush.msra.mxu0 0.0
  %984 = vmatpush.msra.mxu0 0.0
  %985 = vmatpush.msra.mxu0 0.0
  %986 = vmatpush.msra.mxu0 0.0
  %987 = vmatpush.msra.mxu0 0.0
  %988 = vmatpush.msra.mxu0 0.0
  %989 = vmatpush.msra.mxu0 0.0
  %990 = vmatpush.msra.mxu0 0.0
  %991 = vmatpush.msra.mxu0 0.0
  %992 = vmatpush.msra.mxu0 0.0
  %993 = vmatpush.msra.mxu0 0.0
  %994 = vmatpush.msra.mxu0 0.0
  %995 = vmatpush.msra.mxu0 0.0
  %996 = vmatpush.msra.mxu0 %v855
  %997 = vmatmul.f32.gmra.mxu0 %v937
  %v998 = vpop.f32.mrf.mxu0
  %v999 = vadd.f32 0.0, %v998
  %1000 = vdwg.mxu0
  %v1001 = vadd.f32 %v980, %v999
  %v1002 = vadd.f32 %v1001, %v879
  %v1003 = vxor.u32 %v1002, 2147483648
  %v1004 = vmul.f32 %v1003, 1.442695
  %v1005 = vpow.pop %v1004
  %v1006 = vadd.f32 %v1005, 1.0
  %v1007 = vrcp.pop %v1006
  %v1008 = vmul.f32 %v1006, %v1007
  %v1009 = vsub.f32 1.0, %v1008
  %v1010 = vmul.f32 %v1007, %v1009
  %v1011 = vadd.f32 %v1007, %v1010
  %vm1012 = vweird.f32 %v1006
  %vm1013 = vweird.f32 %v1007
  %vm1014 = vmor %vm1012, %vm1013
  %v1015 = vsel %vm1014, %v1007, %v1011
  %v1016 = vand.u32 2147483647, %v1006
  %vm1017 = vcmp.eq.f32.partialorder %v1016, 8.507059e+37
  %v1018 = vand.u32 %v1006, 2147483648
  %v1019 = vor.u32 1.1754944e-38, %v1018
  %v1020 = vsel %vm1017, %v1019, %v1015
  %v1021 = vmul.f32 1.0, %v1020
  %v1022 = vld [vmem:[#allocation4 + $0x10] sm:$0xff]
  %1023 = vmatpush.msra.mxu0 0.0
  %1024 = vmatpush.msra.mxu0 0.0
  %1025 = vmatpush.msra.mxu0 0.0
  %1026 = vmatpush.msra.mxu0 0.0
  %1027 = vmatpush.msra.mxu0 0.0
  %1028 = vmatpush.msra.mxu0 0.0
  %1029 = vmatpush.msra.mxu0 0.0
  %1030 = vmatpush.msra.mxu0 0.0
  %1031 = vmatpush.msra.mxu0 0.0
  %1032 = vmatpush.msra.mxu0 0.0
  %1033 = vmatpush.msra.mxu0 0.0
  %1034 = vmatpush.msra.mxu0 0.0
  %1035 = vmatpush.msra.mxu0 0.0
  %1036 = vmatpush.msra.mxu0 0.0
  %1037 = vmatpush.msra.mxu0 0.0
  %1038 = vmatpush.msra.mxu0 %v906
  %1039 = vmatmul.f32.gmra.mxu0 %v937
  %v1040 = vpop.f32.mrf.mxu0
  %v1041 = vadd.f32 %v903, %v1040
  %1042 = vdwg.mxu0
  %v1043 = vmul.f32 %v979, %v1041
  %v1044 = vadd.f32 %v1022, %v1043
  %v1045 = vtanh.pop %v1044
  %v1046 = vsub.f32 1.0, %v1021
  %v1047 = vmul.f32 %v1046, %v1045
  %v1048 = vmul.f32 %v1021, %v934
  %v1049 = vadd.f32 %v1047, %v1048
  %v1050 = vld [vmem:[#allocation2 + $0x8] sm:$0xff]
  %v1052 = vsel %vm77, %v1049, 0
  %1054 = vmatpush.msra.mxu0 0.0
  %1055 = vmatpush.msra.mxu0 0.0
  %1056 = vmatpush.msra.mxu0 0.0
  %1057 = vmatpush.msra.mxu0 0.0
  %1058 = vmatpush.msra.mxu0 0.0
  %1059 = vmatpush.msra.mxu0 0.0
  %1060 = vmatpush.msra.mxu0 0.0
  %1061 = vmatpush.msra.mxu0 0.0
  %1062 = vmatpush.msra.mxu0 0.0
  %1063 = vmatpush.msra.mxu0 0.0
  %1064 = vmatpush.msra.mxu0 0.0
  %1065 = vmatpush.msra.mxu0 0.0
  %1066 = vmatpush.msra.mxu0 0.0
  %1067 = vmatpush.msra.mxu0 0.0
  %1068 = vmatpush.msra.mxu0 0.0
  %1069 = vmatpush.msra.mxu0 %v807
  %1070 = vmatmul.f32.gmra.mxu0 %v1052
  %v1071 = vpop.f32.mrf.mxu0
  %v1072 = vadd.f32 0.0, %v1071
  %1073 = vdwg.mxu0
  %v1074 = vadd.f32 %v1050, %v1072
  %v1075 = vadd.f32 %v1074, %v831
  %v1076 = vxor.u32 %v1075, 2147483648
  %v1077 = vmul.f32 %v1076, 1.442695
  %v1078 = vpow.pop %v1077
  %v1079 = vadd.f32 %v1078, 1.0
  %v1080 = vrcp.pop %v1079
  %v1081 = vmul.f32 %v1079, %v1080
  %v1082 = vsub.f32 1.0, %v1081
  %v1083 = vmul.f32 %v1080, %v1082
  %v1084 = vadd.f32 %v1080, %v1083
  %vm1085 = vweird.f32 %v1079
  %vm1086 = vweird.f32 %v1080
  %vm1087 = vmor %vm1085, %vm1086
  %v1088 = vsel %vm1087, %v1080, %v1084
  %v1089 = vand.u32 2147483647, %v1079
  %vm1090 = vcmp.eq.f32.partialorder %v1089, 8.507059e+37
  %v1091 = vand.u32 %v1079, 2147483648
  %v1092 = vor.u32 1.1754944e-38, %v1091
  %v1093 = vsel %vm1090, %v1092, %v1088
  %v1094 = vmul.f32 1.0, %v1093
  %v1095 = vld [vmem:[#allocation3 + $0x8] sm:$0xff]
  %1096 = vmatpush.msra.mxu0 0.0
  %1097 = vmatpush.msra.mxu0 0.0
  %1098 = vmatpush.msra.mxu0 0.0
  %1099 = vmatpush.msra.mxu0 0.0
  %1100 = vmatpush.msra.mxu0 0.0
  %1101 = vmatpush.msra.mxu0 0.0
  %1102 = vmatpush.msra.mxu0 0.0
  %1103 = vmatpush.msra.mxu0 0.0
  %1104 = vmatpush.msra.mxu0 0.0
  %1105 = vmatpush.msra.mxu0 0.0
  %1106 = vmatpush.msra.mxu0 0.0
  %1107 = vmatpush.msra.mxu0 0.0
  %1108 = vmatpush.msra.mxu0 0.0
  %1109 = vmatpush.msra.mxu0 0.0
  %1110 = vmatpush.msra.mxu0 0.0
  %1111 = vmatpush.msra.mxu0 %v855
  %1112 = vmatmul.f32.gmra.mxu0 %v1052
  %v1113 = vpop.f32.mrf.mxu0
  %v1114 = vadd.f32 0.0, %v1113
  %1115 = vdwg.mxu0
  %v1116 = vadd.f32 %v1095, %v1114
  %v1117 = vadd.f32 %v1116, %v879
  %v1118 = vxor.u32 %v1117, 2147483648
  %v1119 = vmul.f32 %v1118, 1.442695
  %v1120 = vpow.pop %v1119
  %v1121 = vadd.f32 %v1120, 1.0
  %v1122 = vrcp.pop %v1121
  %v1123 = vmul.f32 %v1121, %v1122
  %v1124 = vsub.f32 1.0, %v1123
  %v1125 = vmul.f32 %v1122, %v1124
  %v1126 = vadd.f32 %v1122, %v1125
  %vm1127 = vweird.f32 %v1121
  %vm1128 = vweird.f32 %v1122
  %vm1129 = vmor %vm1127, %vm1128
  %v1130 = vsel %vm1129, %v1122, %v1126
  %v1131 = vand.u32 2147483647, %v1121
  %vm1132 = vcmp.eq.f32.partialorder %v1131, 8.507059e+37
  %v1133 = vand.u32 %v1121, 2147483648
  %v1134 = vor.u32 1.1754944e-38, %v1133
  %v1135 = vsel %vm1132, %v1134, %v1130
  %v1136 = vmul.f32 1.0, %v1135
  %v1137 = vld [vmem:[#allocation4 + $0x8] sm:$0xff]
  %1138 = vmatpush.msra.mxu0 0.0
  %1139 = vmatpush.msra.mxu0 0.0
  %1140 = vmatpush.msra.mxu0 0.0
  %1141 = vmatpush.msra.mxu0 0.0
  %1142 = vmatpush.msra.mxu0 0.0
  %1143 = vmatpush.msra.mxu0 0.0
  %1144 = vmatpush.msra.mxu0 0.0
  %1145 = vmatpush.msra.mxu0 0.0
  %1146 = vmatpush.msra.mxu0 0.0
  %1147 = vmatpush.msra.mxu0 0.0
  %1148 = vmatpush.msra.mxu0 0.0
  %1149 = vmatpush.msra.mxu0 0.0
  %1150 = vmatpush.msra.mxu0 0.0
  %1151 = vmatpush.msra.mxu0 0.0
  %1152 = vmatpush.msra.mxu0 0.0
  %1153 = vmatpush.msra.mxu0 %v906
  %1154 = vmatmul.f32.gmra.mxu0 %v1052
  %v1155 = vpop.f32.mrf.mxu0
  %v1156 = vadd.f32 %v903, %v1155
  %1157 = vdwg.mxu0
  %v1158 = vmul.f32 %v1094, %v1156
  %v1159 = vadd.f32 %v1137, %v1158
  %v1160 = vtanh.pop %v1159
  %v1161 = vsub.f32 1.0, %v1136
  %v1162 = vmul.f32 %v1161, %v1160
  %v1163 = vmul.f32 %v1136, %v1049
  %v1164 = vadd.f32 %v1162, %v1163
  %v1165 = vld [vmem:[#allocation2] sm:$0xff]
  %v1167 = vsel %vm77, %v1164, 0
  %1169 = vmatpush.msra.mxu0 0.0
  %1170 = vmatpush.msra.mxu0 0.0
  %1171 = vmatpush.msra.mxu0 0.0
  %1172 = vmatpush.msra.mxu0 0.0
  %1173 = vmatpush.msra.mxu0 0.0
  %1174 = vmatpush.msra.mxu0 0.0
  %1175 = vmatpush.msra.mxu0 0.0
  %1176 = vmatpush.msra.mxu0 0.0
  %1177 = vmatpush.msra.mxu0 0.0
  %1178 = vmatpush.msra.mxu0 0.0
  %1179 = vmatpush.msra.mxu0 0.0
  %1180 = vmatpush.msra.mxu0 0.0
  %1181 = vmatpush.msra.mxu0 0.0
  %1182 = vmatpush.msra.mxu0 0.0
  %1183 = vmatpush.msra.mxu0 0.0
  %1184 = vmatpush.msra.mxu0 %v807
  %1185 = vmatmul.f32.gmra.mxu0 %v1167
  %v1186 = vpop.f32.mrf.mxu0
  %v1187 = vadd.f32 0.0, %v1186
  %1188 = vdwg.mxu0
  %v1189 = vadd.f32 %v1165, %v1187
  %v1190 = vadd.f32 %v1189, %v831
  %v1191 = vxor.u32 %v1190, 2147483648
  %v1192 = vmul.f32 %v1191, 1.442695
  %v1193 = vpow.pop %v1192
  %v1194 = vadd.f32 %v1193, 1.0
  %v1195 = vrcp.pop %v1194
  %v1196 = vmul.f32 %v1194, %v1195
  %v1197 = vsub.f32 1.0, %v1196
  %v1198 = vmul.f32 %v1195, %v1197
  %v1199 = vadd.f32 %v1195, %v1198
  %vm1200 = vweird.f32 %v1194
  %vm1201 = vweird.f32 %v1195
  %vm1202 = vmor %vm1200, %vm1201
  %v1203 = vsel %vm1202, %v1195, %v1199
  %v1204 = vand.u32 2147483647, %v1194
  %vm1205 = vcmp.eq.f32.partialorder %v1204, 8.507059e+37
  %v1206 = vand.u32 %v1194, 2147483648
  %v1207 = vor.u32 1.1754944e-38, %v1206
  %v1208 = vsel %vm1205, %v1207, %v1203
  %v1209 = vmul.f32 1.0, %v1208
  %v1210 = vld [vmem:[#allocation3] sm:$0xff]
  %1211 = vmatpush.msra.mxu0 0.0
  %1212 = vmatpush.msra.mxu0 0.0
  %1213 = vmatpush.msra.mxu0 0.0
  %1214 = vmatpush.msra.mxu0 0.0
  %1215 = vmatpush.msra.mxu0 0.0
  %1216 = vmatpush.msra.mxu0 0.0
  %1217 = vmatpush.msra.mxu0 0.0
  %1218 = vmatpush.msra.mxu0 0.0
  %1219 = vmatpush.msra.mxu0 0.0
  %1220 = vmatpush.msra.mxu0 0.0
  %1221 = vmatpush.msra.mxu0 0.0
  %1222 = vmatpush.msra.mxu0 0.0
  %1223 = vmatpush.msra.mxu0 0.0
  %1224 = vmatpush.msra.mxu0 0.0
  %1225 = vmatpush.msra.mxu0 0.0
  %1226 = vmatpush.msra.mxu0 %v855
  %1227 = vmatmul.f32.gmra.mxu0 %v1167
  %v1228 = vpop.f32.mrf.mxu0
  %v1229 = vadd.f32 0.0, %v1228
  %1230 = vdwg.mxu0
  %v1231 = vadd.f32 %v1210, %v1229
  %v1232 = vadd.f32 %v1231, %v879
  %v1233 = vxor.u32 %v1232, 2147483648
  %v1234 = vmul.f32 %v1233, 1.442695
  %v1235 = vpow.pop %v1234
  %v1236 = vadd.f32 %v1235, 1.0
  %v1237 = vrcp.pop %v1236
  %v1238 = vmul.f32 %v1236, %v1237
  %v1239 = vsub.f32 1.0, %v1238
  %v1240 = vmul.f32 %v1237, %v1239
  %v1241 = vadd.f32 %v1237, %v1240
  %vm1242 = vweird.f32 %v1236
  %vm1243 = vweird.f32 %v1237
  %vm1244 = vmor %vm1242, %vm1243
  %v1245 = vsel %vm1244, %v1237, %v1241
  %v1246 = vand.u32 2147483647, %v1236
  %vm1247 = vcmp.eq.f32.partialorder %v1246, 8.507059e+37
  %v1248 = vand.u32 %v1236, 2147483648
  %v1249 = vor.u32 1.1754944e-38, %v1248
  %v1250 = vsel %vm1247, %v1249, %v1245
  %v1251 = vmul.f32 1.0, %v1250
  %v1252 = vld [vmem:[#allocation4] sm:$0xff]
  %1253 = vmatpush.msra.mxu0 0.0
  %1254 = vmatpush.msra.mxu0 0.0
  %1255 = vmatpush.msra.mxu0 0.0
  %1256 = vmatpush.msra.mxu0 0.0
  %1257 = vmatpush.msra.mxu0 0.0
  %1258 = vmatpush.msra.mxu0 0.0
  %1259 = vmatpush.msra.mxu0 0.0
  %1260 = vmatpush.msra.mxu0 0.0
  %1261 = vmatpush.msra.mxu0 0.0
  %1262 = vmatpush.msra.mxu0 0.0
  %1263 = vmatpush.msra.mxu0 0.0
  %1264 = vmatpush.msra.mxu0 0.0
  %1265 = vmatpush.msra.mxu0 0.0
  %1266 = vmatpush.msra.mxu0 0.0
  %1267 = vmatpush.msra.mxu0 0.0
  %1268 = vmatpush.msra.mxu0 %v906
  %1269 = vmatmul.f32.gmra.mxu0 %v1167
  %v1270 = vpop.f32.mrf.mxu0
  %v1271 = vadd.f32 %v903, %v1270
  %1272 = vdwg.mxu0
  %v1273 = vmul.f32 %v1209, %v1271
  %v1274 = vadd.f32 %v1252, %v1273
  %v1275 = vtanh.pop %v1274
  %v1276 = vsub.f32 1.0, %v1251
  %v1277 = vmul.f32 %v1276, %v1275
  %v1278 = vmul.f32 %v1251, %v1164
  %v1279 = vadd.f32 %v1277, %v1278
  %s1280 = scalar_lea.vmem %s6, 8
  %1281 = vst.msk [vmem:[%s1280] sm:$0xff] %vm77, %v1279
  // Predicated region
  $region26: #{_lambda_.5} parent=0 // pred_check
    _
  $region27: #{_lambda_.5} parent=0 // pred_check_branch
    %1283 = sbr.rel (0) target = $region29
  $region28: #{_lambda_.5} parent=0 // pred_region
    _
  $region29: #{_lambda_.5} parent=0 // pred_fallthru
    _
  // Predicated region
  $region30: #{_lambda_.5} parent=0 // pred_check
    _
  $region31: #{_lambda_.5} parent=0 // pred_check_branch
    %1285 = sbr.rel (0) target = $region33
  $region32: #{_lambda_.5} parent=0 // pred_region
    _
  $region33: #{_lambda_.5} parent=0 // pred_fallthru
    _

// kernel: _lambda_.4
$region0: #{_lambda_.4}
  #allocation0 [shape = 'u32[]', space=smem, size = 0x4, offset = 0x4, fixed_abs, tag = 'smem constant byte address 0x4 - core index']
  #allocation1 [shape = 'u32[72,128]{1,0:T(1,128)}', space=vmem, size = 0x9000, scoped, tag = 'internal scratch']
  #allocation2 [shape = 'f32[64,16]{1,0:T(8,128)}', space=vmem, size = 0x8000, scoped, tag = 'scratch operand']
  #allocation3 [shape = 'f32[64,16]{1,0:T(8,128)}', space=vmem, size = 0x8000, scoped, tag = 'scratch operand']
  #allocation4 [shape = 'f32[64,16]{1,0:T(8,128)}', space=vmem, size = 0x8000, scoped, tag = 'scratch operand']
  %s0 = inlined_call_operand.vmem [shape: f32[8,8,3], index: 0, kind: input, shape index: {}]
  %s1 = inlined_call_operand.vmem [shape: f32[2,8,16], index: 1, kind: input, shape index: {}]
  %s2 = inlined_call_operand.vmem [shape: f32[2,3,3,16], index: 2, kind: input, shape index: {}]
  %s3 = inlined_call_operand.vmem [shape: f32[2,3,16,16], index: 3, kind: input, shape index: {}]
  %s4 = inlined_call_operand.vmem [shape: f32[2,3,1,16], index: 4, kind: input, shape index: {}]
  %s5 = inlined_call_operand.vmem [shape: f32[2,3,1,16], index: 5, kind: input, shape index: {}]
  %s6 = inlined_call_operand.vmem [shape: f32[2,8,16], index: 6, kind: output, shape index: {}]
  %s7 = sld [smem:[#allocation0]]
  $region34: #{_lambda_.4} parent=0
    _
  %s9 = ssub.s32 1, %s7
  %s10 = scalar_select 0, %s9, %s7
  // Predicated region
  $region2: #{_lambda_.4} parent=0 // pred_check
    _
  $region3: #{_lambda_.4} parent=0 // pred_check_branch
    %12 = sbr.rel (0) target = $region5
  $region4: #{_lambda_.4} parent=0 // pred_region
    _
  $region5: #{_lambda_.4} parent=0 // pred_fallthru
    _
  // Predicated region
  $region6: #{_lambda_.4} parent=0 // pred_check
    _
  $region7: #{_lambda_.4} parent=0 // pred_check_branch
    %14 = sbr.rel (0) target = $region9
  $region8: #{_lambda_.4} parent=0 // pred_region
    _
  $region9: #{_lambda_.4} parent=0 // pred_fallthru
    _
  // Predicated region
  $region10: #{_lambda_.4} parent=0 // pred_check
    _
  $region11: #{_lambda_.4} parent=0 // pred_check_branch
    %16 = sbr.rel (0) target = $region13
  $region12: #{_lambda_.4} parent=0 // pred_region
    _
  $region13: #{_lambda_.4} parent=0 // pred_fallthru
    _
  // Predicated region
  $region14: #{_lambda_.4} parent=0 // pred_check
    _
  $region15: #{_lambda_.4} parent=0 // pred_check_branch
    %18 = sbr.rel (0) target = $region17
  $region16: #{_lambda_.4} parent=0 // pred_region
    _
  $region17: #{_lambda_.4} parent=0 // pred_fallthru
    _
  // Predicated region
  $region18: #{_lambda_.4} parent=0 // pred_check
    _
  $region19: #{_lambda_.4} parent=0 // pred_check_branch
    %20 = sbr.rel (0) target = $region21
  $region20: #{_lambda_.4} parent=0 // pred_region
    _
  $region21: #{_lambda_.4} parent=0 // pred_fallthru
    _
  // Predicated region
  $region22: #{_lambda_.4} parent=0 // pred_check
    _
  $region23: #{_lambda_.4} parent=0 // pred_check_branch
    %22 = sbr.rel (0) target = $region25
  $region24: #{_lambda_.4} parent=0 // pred_region
    _
  $region25: #{_lambda_.4} parent=0 // pred_fallthru
    _
  %v23 = vld [vmem:[%s0] sm:$0xff]
  %v24 = vld [vmem:[%s0 + $0x8] sm:$0xff]
  %v25 = vld [vmem:[%s0 + $0x10] sm:$0xff]
  %v26 = vld [vmem:[%s0 + $0x18] sm:$0xff]
  %v27 = vld [vmem:[%s0 + $0x20] sm:$0xff]
  %v28 = vld [vmem:[%s0 + $0x28] sm:$0xff]
  %v29 = vld [vmem:[%s0 + $0x30] sm:$0xff]
  %v30 = vld [vmem:[%s0 + $0x38] sm:$0xff]
  %v31 = vld [vmem:[%s2] sm:$0x7]
  %v32 = vld [vmem:[%s4] sm:$0x1]
  %v34 = vperm.slane %v32, 0
  %vm36 = vcmask 23552
  %v38 = vsel %vm36, %v23, 0
  %v41 = vsel %vm36, %v24, 0
  %v44 = vsel %vm36, %v25, 0
  %v47 = vsel %vm36, %v26, 0
  %v50 = vsel %vm36, %v27, 0
  %v53 = vsel %vm36, %v28, 0
  %v56 = vsel %vm36, %v29, 0
  %v59 = vsel %vm36, %v30, 0
  %vm61 = vcmask 1042432
  %v63 = vsel %vm61, %v31, 0
  %65 = vmatpush.msra.mxu0 0.0
  %66 = vmatpush.msra.mxu0 0.0
  %67 = vmatpush.msra.mxu0 0.0
  %68 = vmatpush.msra.mxu0 0.0
  %69 = vmatpush.msra.mxu0 0.0
  %70 = vmatpush.msra.mxu0 0.0
  %71 = vmatpush.msra.mxu0 0.0
  %72 = vmatpush.msra.mxu0 0.0
  %73 = vmatpush.msra.mxu0 0.0
  %74 = vmatpush.msra.mxu0 0.0
  %75 = vmatpush.msra.mxu0 0.0
  %76 = vmatpush.msra.mxu0 0.0
  %77 = vmatpush.msra.mxu0 0.0
  %78 = vmatpush.msra.mxu0 0.0
  %79 = vmatpush.msra.mxu0 0.0
  %80 = vmatpush.msra.mxu0 %v63
  %81 = vmatmul.f32.gmra.mxu0 %v38
  %v82 = vpop.f32.mrf.mxu0
  %v83 = vadd.f32 %v34, %v82
  %84 = vmatmul.f32.gmra.mxu0 %v41
  %v85 = vpop.f32.mrf.mxu0
  %v86 = vadd.f32 %v34, %v85
  %87 = vmatmul.f32.gmra.mxu0 %v44
  %v88 = vpop.f32.mrf.mxu0
  %v89 = vadd.f32 %v34, %v88
  %90 = vmatmul.f32.gmra.mxu0 %v47
  %v91 = vpop.f32.mrf.mxu0
  %v92 = vadd.f32 %v34, %v91
  %93 = vmatmul.f32.gmra.mxu0 %v50
  %v94 = vpop.f32.mrf.mxu0
  %v95 = vadd.f32 %v34, %v94
  %96 = vmatmul.f32.gmra.mxu0 %v53
  %v97 = vpop.f32.mrf.mxu0
  %v98 = vadd.f32 %v34, %v97
  %99 = vmatmul.f32.gmra.mxu0 %v56
  %v100 = vpop.f32.mrf.mxu0
  %v101 = vadd.f32 %v34, %v100
  %102 = vmatmul.f32.gmra.mxu0 %v59
  %v103 = vpop.f32.mrf.mxu0
  %v104 = vadd.f32 %v34, %v103
  %105 = vdwg.mxu0
  %vm106 = vcmask 130048
  %107 = vst.msk [vmem:[#allocation2] sm:$0xff] %vm106, %v83
  %108 = vst.msk [vmem:[#allocation2 + $0x8] sm:$0xff] %vm106, %v86
  %109 = vst.msk [vmem:[#allocation2 + $0x10] sm:$0xff] %vm106, %v89
  %110 = vst.msk [vmem:[#allocation2 + $0x18] sm:$0xff] %vm106, %v92
  %111 = vst.msk [vmem:[#allocation2 + $0x20] sm:$0xff] %vm106, %v95
  %112 = vst.msk [vmem:[#allocation2 + $0x28] sm:$0xff] %vm106, %v98
  %113 = vst.msk [vmem:[#allocation2 + $0x30] sm:$0xff] %vm106, %v101
  %114 = vst.msk [vmem:[#allocation2 + $0x38] sm:$0xff] %vm106, %v104
  %s115 = scalar_lea.vmem %s2, 4
  %v116 = vld [vmem:[%s115] sm:$0x7]
  %s117 = scalar_lea.vmem %s4, 1
  %v118 = vld [vmem:[%s117] sm:$0x1]
  %v120 = vperm.slane %v118, 0
  %v123 = vsel %vm61, %v116, 0
  %125 = vmatpush.msra.mxu0 0.0
  %126 = vmatpush.msra.mxu0 0.0
  %127 = vmatpush.msra.mxu0 0.0
  %128 = vmatpush.msra.mxu0 0.0
  %129 = vmatpush.msra.mxu0 0.0
  %130 = vmatpush.msra.mxu0 0.0
  %131 = vmatpush.msra.mxu0 0.0
  %132 = vmatpush.msra.mxu0 0.0
  %133 = vmatpush.msra.mxu0 0.0
  %134 = vmatpush.msra.mxu0 0.0
  %135 = vmatpush.msra.mxu0 0.0
  %136 = vmatpush.msra.mxu0 0.0
  %137 = vmatpush.msra.mxu0 0.0
  %138 = vmatpush.msra.mxu0 0.0
  %139 = vmatpush.msra.mxu0 0.0
  %140 = vmatpush.msra.mxu0 %v123
  %141 = vmatmul.f32.gmra.mxu0 %v38
  %v142 = vpop.f32.mrf.mxu0
  %v143 = vadd.f32 %v120, %v142
  %144 = vmatmul.f32.gmra.mxu0 %v41
  %v145 = vpop.f32.mrf.mxu0
  %v146 = vadd.f32 %v120, %v145
  %147 = vmatmul.f32.gmra.mxu0 %v44
  %v148 = vpop.f32.mrf.mxu0
  %v149 = vadd.f32 %v120, %v148
  %150 = vmatmul.f32.gmra.mxu0 %v47
  %v151 = vpop.f32.mrf.mxu0
  %v152 = vadd.f32 %v120, %v151
  %153 = vmatmul.f32.gmra.mxu0 %v50
  %v154 = vpop.f32.mrf.mxu0
  %v155 = vadd.f32 %v120, %v154
  %156 = vmatmul.f32.gmra.mxu0 %v53
  %v157 = vpop.f32.mrf.mxu0
  %v158 = vadd.f32 %v120, %v157
  %159 = vmatmul.f32.gmra.mxu0 %v56
  %v160 = vpop.f32.mrf.mxu0
  %v161 = vadd.f32 %v120, %v160
  %162 = vmatmul.f32.gmra.mxu0 %v59
  %v163 = vpop.f32.mrf.mxu0
  %v164 = vadd.f32 %v120, %v163
  %165 = vdwg.mxu0
  %166 = vst.msk [vmem:[#allocation3] sm:$0xff] %vm106, %v143
  %167 = vst.msk [vmem:[#allocation3 + $0x8] sm:$0xff] %vm106, %v146
  %168 = vst.msk [vmem:[#allocation3 + $0x10] sm:$0xff] %vm106, %v149
  %169 = vst.msk [vmem:[#allocation3 + $0x18] sm:$0xff] %vm106, %v152
  %170 = vst.msk [vmem:[#allocation3 + $0x20] sm:$0xff] %vm106, %v155
  %171 = vst.msk [vmem:[#allocation3 + $0x28] sm:$0xff] %vm106, %v158
  %172 = vst.msk [vmem:[#allocation3 + $0x30] sm:$0xff] %vm106, %v161
  %173 = vst.msk [vmem:[#allocation3 + $0x38] sm:$0xff] %vm106, %v164
  %s174 = scalar_lea.vmem %s2, 8
  %v175 = vld [vmem:[%s174] sm:$0x7]
  %s176 = scalar_lea.vmem %s4, 2
  %v177 = vld [vmem:[%s176] sm:$0x1]
  %v179 = vperm.slane %v177, 0
  %v182 = vsel %vm61, %v175, 0
  %184 = vmatpush.msra.mxu0 0.0
  %185 = vmatpush.msra.mxu0 0.0
  %186 = vmatpush.msra.mxu0 0.0
  %187 = vmatpush.msra.mxu0 0.0
  %188 = vmatpush.msra.mxu0 0.0
  %189 = vmatpush.msra.mxu0 0.0
  %190 = vmatpush.msra.mxu0 0.0
  %191 = vmatpush.msra.mxu0 0.0
  %192 = vmatpush.msra.mxu0 0.0
  %193 = vmatpush.msra.mxu0 0.0
  %194 = vmatpush.msra.mxu0 0.0
  %195 = vmatpush.msra.mxu0 0.0
  %196 = vmatpush.msra.mxu0 0.0
  %197 = vmatpush.msra.mxu0 0.0
  %198 = vmatpush.msra.mxu0 0.0
  %199 = vmatpush.msra.mxu0 %v182
  %200 = vmatmul.f32.gmra.mxu0 %v38
  %v201 = vpop.f32.mrf.mxu0
  %v202 = vadd.f32 %v179, %v201
  %203 = vmatmul.f32.gmra.mxu0 %v41
  %v204 = vpop.f32.mrf.mxu0
  %v205 = vadd.f32 %v179, %v204
  %206 = vmatmul.f32.gmra.mxu0 %v44
  %v207 = vpop.f32.mrf.mxu0
  %v208 = vadd.f32 %v179, %v207
  %209 = vmatmul.f32.gmra.mxu0 %v47
  %v210 = vpop.f32.mrf.mxu0
  %v211 = vadd.f32 %v179, %v210
  %212 = vmatmul.f32.gmra.mxu0 %v50
  %v213 = vpop.f32.mrf.mxu0
  %v214 = vadd.f32 %v179, %v213
  %215 = vmatmul.f32.gmra.mxu0 %v53
  %v216 = vpop.f32.mrf.mxu0
  %v217 = vadd.f32 %v179, %v216
  %218 = vmatmul.f32.gmra.mxu0 %v56
  %v219 = vpop.f32.mrf.mxu0
  %v220 = vadd.f32 %v179, %v219
  %221 = vmatmul.f32.gmra.mxu0 %v59
  %v222 = vpop.f32.mrf.mxu0
  %v223 = vadd.f32 %v179, %v222
  %224 = vdwg.mxu0
  %225 = vst.msk [vmem:[#allocation4] sm:$0xff] %vm106, %v202
  %226 = vst.msk [vmem:[#allocation4 + $0x8] sm:$0xff] %vm106, %v205
  %227 = vst.msk [vmem:[#allocation4 + $0x10] sm:$0xff] %vm106, %v208
  %228 = vst.msk [vmem:[#allocation4 + $0x18] sm:$0xff] %vm106, %v211
  %229 = vst.msk [vmem:[#allocation4 + $0x20] sm:$0xff] %vm106, %v214
  %230 = vst.msk [vmem:[#allocation4 + $0x28] sm:$0xff] %vm106, %v217
  %231 = vst.msk [vmem:[#allocation4 + $0x30] sm:$0xff] %vm106, %v220
  %232 = vst.msk [vmem:[#allocation4 + $0x38] sm:$0xff] %vm106, %v223
  %v233 = vld [vmem:[%s3] sm:$0xff]
  %v234 = vld [vmem:[%s3 + $0x8] sm:$0xff]
  %s235 = scalar_lea.vmem %s3, 16
  %v236 = vld [vmem:[%s235] sm:$0xff]
  %v237 = vld [vmem:[%s235 + $0x8] sm:$0xff]
  %s238 = scalar_lea.vmem %s3, 32
  %v239 = vld [vmem:[%s238] sm:$0xff]
  %v240 = vld [vmem:[%s238 + $0x8] sm:$0xff]
  %v241 = vld [vmem:[%s5] sm:$0x1]
  %s242 = scalar_lea.vmem %s5, 1
  %v243 = vld [vmem:[%s242] sm:$0x1]
  %s244 = scalar_lea.vmem %s5, 2
  %v245 = vld [vmem:[%s244] sm:$0x1]
  %v246 = vld [vmem:[%s1] sm:$0xff]
  %v247 = vld [vmem:[#allocation2] sm:$0xff]
  %v249 = vsel %vm106, %v246, 0
  %251 = vmatpush.msra.mxu0 0.0
  %252 = vmatpush.msra.mxu0 0.0
  %253 = vmatpush.msra.mxu0 0.0
  %254 = vmatpush.msra.mxu0 0.0
  %255 = vmatpush.msra.mxu0 0.0
  %256 = vmatpush.msra.mxu0 0.0
  %257 = vmatpush.msra.mxu0 0.0
  %258 = vmatpush.msra.mxu0 0.0
  %259 = vmatpush.msra.mxu0 0.0
  %260 = vmatpush.msra.mxu0 0.0
  %261 = vmatpush.msra.mxu0 0.0
  %262 = vmatpush.msra.mxu0 0.0
  %263 = vmatpush.msra.mxu0 0.0
  %264 = vmatpush.msra.mxu0 0.0
  %265 = vmatpush.msra.mxu0 %v234
  %266 = vmatpush.msra.mxu0 %v233
  %267 = vmatmul.f32.gmra.mxu0 %v249
  %v268 = vpop.f32.mrf.mxu0
  %v269 = vadd.f32 0.0, %v268
  %270 = vdwg.mxu0
  %v271 = vadd.f32 %v247, %v269
  %v273 = vperm.slane %v241, 0
  %v275 = vadd.f32 %v271, %v273
  %v276 = vxor.u32 %v275, 2147483648
  %v277 = vmul.f32 %v276, 1.442695
  %v278 = vpow.pop %v277
  %v279 = vadd.f32 %v278, 1.0
  %v280 = vrcp.pop %v279
  %v281 = vmul.f32 %v279, %v280
  %v282 = vsub.f32 1.0, %v281
  %v283 = vmul.f32 %v280, %v282
  %v284 = vadd.f32 %v280, %v283
  %vm285 = vweird.f32 %v279
  %vm286 = vweird.f32 %v280
  %vm287 = vmor %vm285, %vm286
  %v288 = vsel %vm287, %v280, %v284
  %v289 = vand.u32 2147483647, %v279
  %vm290 = vcmp.eq.f32.partialorder %v289, 8.507059e+37
  %v291 = vand.u32 %v279, 2147483648
  %v292 = vor.u32 1.1754944e-38, %v291
  %v293 = vsel %vm290, %v292, %v288
  %v294 = vmul.f32 1.0, %v293
  %v295 = vld [vmem:[#allocation3] sm:$0xff]
  %296 = vmatpush.msra.mxu0 0.0
  %297 = vmatpush.msra.mxu0 0.0
  %298 = vmatpush.msra.mxu0 0.0
  %299 = vmatpush.msra.mxu0 0.0
  %300 = vmatpush.msra.mxu0 0.0
  %301 = vmatpush.msra.mxu0 0.0
  %302 = vmatpush.msra.mxu0 0.0
  %303 = vmatpush.msra.mxu0 0.0
  %304 = vmatpush.msra.mxu0 0.0
  %305 = vmatpush.msra.mxu0 0.0
  %306 = vmatpush.msra.mxu0 0.0
  %307 = vmatpush.msra.mxu0 0.0
  %308 = vmatpush.msra.mxu0 0.0
  %309 = vmatpush.msra.mxu0 0.0
  %310 = vmatpush.msra.mxu0 %v237
  %311 = vmatpush.msra.mxu0 %v236
  %312 = vmatmul.f32.gmra.mxu0 %v249
  %v313 = vpop.f32.mrf.mxu0
  %v314 = vadd.f32 0.0, %v313
  %315 = vdwg.mxu0
  %v316 = vadd.f32 %v295, %v314
  %v318 = vperm.slane %v243, 0
  %v320 = vadd.f32 %v316, %v318
  %v321 = vxor.u32 %v320, 2147483648
  %v322 = vmul.f32 %v321, 1.442695
  %v323 = vpow.pop %v322
  %v324 = vadd.f32 %v323, 1.0
  %v325 = vrcp.pop %v324
  %v326 = vmul.f32 %v324, %v325
  %v327 = vsub.f32 1.0, %v326
  %v328 = vmul.f32 %v325, %v327
  %v329 = vadd.f32 %v325, %v328
  %vm330 = vweird.f32 %v324
  %vm331 = vweird.f32 %v325
  %vm332 = vmor %vm330, %vm331
  %v333 = vsel %vm332, %v325, %v329
  %v334 = vand.u32 2147483647, %v324
  %vm335 = vcmp.eq.f32.partialorder %v334, 8.507059e+37
  %v336 = vand.u32 %v324, 2147483648
  %v337 = vor.u32 1.1754944e-38, %v336
  %v338 = vsel %vm335, %v337, %v333
  %v339 = vmul.f32 1.0, %v338
  %v340 = vld [vmem:[#allocation4] sm:$0xff]
  %v342 = vperm.slane %v245, 0
  %344 = vmatpush.msra.mxu0 0.0
  %345 = vmatpush.msra.mxu0 0.0
  %346 = vmatpush.msra.mxu0 0.0
  %347 = vmatpush.msra.mxu0 0.0
  %348 = vmatpush.msra.mxu0 0.0
  %349 = vmatpush.msra.mxu0 0.0
  %350 = vmatpush.msra.mxu0 0.0
  %351 = vmatpush.msra.mxu0 0.0
  %352 = vmatpush.msra.mxu0 0.0
  %353 = vmatpush.msra.mxu0 0.0
  %354 = vmatpush.msra.mxu0 0.0
  %355 = vmatpush.msra.mxu0 0.0
  %356 = vmatpush.msra.mxu0 0.0
  %357 = vmatpush.msra.mxu0 0.0
  %358 = vmatpush.msra.mxu0 %v240
  %359 = vmatpush.msra.mxu0 %v239
  %360 = vmatmul.f32.gmra.mxu0 %v249
  %v361 = vpop.f32.mrf.mxu0
  %v362 = vadd.f32 %v342, %v361
  %363 = vdwg.mxu0
  %v364 = vmul.f32 %v294, %v362
  %v365 = vadd.f32 %v340, %v364
  %v366 = vtanh.pop %v365
  %v367 = vsub.f32 1.0, %v339
  %v368 = vmul.f32 %v367, %v366
  %v369 = vmul.f32 %v339, %v246
  %v370 = vadd.f32 %v368, %v369
  %v371 = vld [vmem:[#allocation2 + $0x8] sm:$0xff]
  %v373 = vsel %vm106, %v370, 0
  %375 = vmatpush.msra.mxu0 0.0
  %376 = vmatpush.msra.mxu0 0.0
  %377 = vmatpush.msra.mxu0 0.0
  %378 = vmatpush.msra.mxu0 0.0
  %379 = vmatpush.msra.mxu0 0.0
  %380 = vmatpush.msra.mxu0 0.0
  %381 = vmatpush.msra.mxu0 0.0
  %382 = vmatpush.msra.mxu0 0.0
  %383 = vmatpush.msra.mxu0 0.0
  %384 = vmatpush.msra.mxu0 0.0
  %385 = vmatpush.msra.mxu0 0.0
  %386 = vmatpush.msra.mxu0 0.0
  %387 = vmatpush.msra.mxu0 0.0
  %388 = vmatpush.msra.mxu0 0.0
  %389 = vmatpush.msra.mxu0 %v234
  %390 = vmatpush.msra.mxu0 %v233
  %391 = vmatmul.f32.gmra.mxu0 %v373
  %v392 = vpop.f32.mrf.mxu0
  %v393 = vadd.f32 0.0, %v392
  %394 = vdwg.mxu0
  %v395 = vadd.f32 %v371, %v393
  %v396 = vadd.f32 %v395, %v273
  %v397 = vxor.u32 %v396, 2147483648
  %v398 = vmul.f32 %v397, 1.442695
  %v399 = vpow.pop %v398
  %v400 = vadd.f32 %v399, 1.0
  %v401 = vrcp.pop %v400
  %v402 = vmul.f32 %v400, %v401
  %v403 = vsub.f32 1.0, %v402
  %v404 = vmul.f32 %v401, %v403
  %v405 = vadd.f32 %v401, %v404
  %vm406 = vweird.f32 %v400
  %vm407 = vweird.f32 %v401
  %vm408 = vmor %vm406, %vm407
  %v409 = vsel %vm408, %v401, %v405
  %v410 = vand.u32 2147483647, %v400
  %vm411 = vcmp.eq.f32.partialorder %v410, 8.507059e+37
  %v412 = vand.u32 %v400, 2147483648
  %v413 = vor.u32 1.1754944e-38, %v412
  %v414 = vsel %vm411, %v413, %v409
  %v415 = vmul.f32 1.0, %v414
  %v416 = vld [vmem:[#allocation3 + $0x8] sm:$0xff]
  %417 = vmatpush.msra.mxu0 0.0
  %418 = vmatpush.msra.mxu0 0.0
  %419 = vmatpush.msra.mxu0 0.0
  %420 = vmatpush.msra.mxu0 0.0
  %421 = vmatpush.msra.mxu0 0.0
  %422 = vmatpush.msra.mxu0 0.0
  %423 = vmatpush.msra.mxu0 0.0
  %424 = vmatpush.msra.mxu0 0.0
  %425 = vmatpush.msra.mxu0 0.0
  %426 = vmatpush.msra.mxu0 0.0
  %427 = vmatpush.msra.mxu0 0.0
  %428 = vmatpush.msra.mxu0 0.0
  %429 = vmatpush.msra.mxu0 0.0
  %430 = vmatpush.msra.mxu0 0.0
  %431 = vmatpush.msra.mxu0 %v237
  %432 = vmatpush.msra.mxu0 %v236
  %433 = vmatmul.f32.gmra.mxu0 %v373
  %v434 = vpop.f32.mrf.mxu0
  %v435 = vadd.f32 0.0, %v434
  %436 = vdwg.mxu0
  %v437 = vadd.f32 %v416, %v435
  %v438 = vadd.f32 %v437, %v318
  %v439 = vxor.u32 %v438, 2147483648
  %v440 = vmul.f32 %v439, 1.442695
  %v441 = vpow.pop %v440
  %v442 = vadd.f32 %v441, 1.0
  %v443 = vrcp.pop %v442
  %v444 = vmul.f32 %v442, %v443
  %v445 = vsub.f32 1.0, %v444
  %v446 = vmul.f32 %v443, %v445
  %v447 = vadd.f32 %v443, %v446
  %vm448 = vweird.f32 %v442
  %vm449 = vweird.f32 %v443
  %vm450 = vmor %vm448, %vm449
  %v451 = vsel %vm450, %v443, %v447
  %v452 = vand.u32 2147483647, %v442
  %vm453 = vcmp.eq.f32.partialorder %v452, 8.507059e+37
  %v454 = vand.u32 %v442, 2147483648
  %v455 = vor.u32 1.1754944e-38, %v454
  %v456 = vsel %vm453, %v455, %v451
  %v457 = vmul.f32 1.0, %v456
  %v458 = vld [vmem:[#allocation4 + $0x8] sm:$0xff]
  %459 = vmatpush.msra.mxu0 0.0
  %460 = vmatpush.msra.mxu0 0.0
  %461 = vmatpush.msra.mxu0 0.0
  %462 = vmatpush.msra.mxu0 0.0
  %463 = vmatpush.msra.mxu0 0.0
  %464 = vmatpush.msra.mxu0 0.0
  %465 = vmatpush.msra.mxu0 0.0
  %466 = vmatpush.msra.mxu0 0.0
  %467 = vmatpush.msra.mxu0 0.0
  %468 = vmatpush.msra.mxu0 0.0
  %469 = vmatpush.msra.mxu0 0.0
  %470 = vmatpush.msra.mxu0 0.0
  %471 = vmatpush.msra.mxu0 0.0
  %472 = vmatpush.msra.mxu0 0.0
  %473 = vmatpush.msra.mxu0 %v240
  %474 = vmatpush.msra.mxu0 %v239
  %475 = vmatmul.f32.gmra.mxu0 %v373
  %v476 = vpop.f32.mrf.mxu0
  %v477 = vadd.f32 %v342, %v476
  %478 = vdwg.mxu0
  %v479 = vmul.f32 %v415, %v477
  %v480 = vadd.f32 %v458, %v479
  %v481 = vtanh.pop %v480
  %v482 = vsub.f32 1.0, %v457
  %v483 = vmul.f32 %v482, %v481
  %v484 = vmul.f32 %v457, %v370
  %v485 = vadd.f32 %v483, %v484
  %v486 = vld [vmem:[#allocation2 + $0x10] sm:$0xff]
  %v488 = vsel %vm106, %v485, 0
  %490 = vmatpush.msra.mxu0 0.0
  %491 = vmatpush.msra.mxu0 0.0
  %492 = vmatpush.msra.mxu0 0.0
  %493 = vmatpush.msra.mxu0 0.0
  %494 = vmatpush.msra.mxu0 0.0
  %495 = vmatpush.msra.mxu0 0.0
  %496 = vmatpush.msra.mxu0 0.0
  %497 = vmatpush.msra.mxu0 0.0
  %498 = vmatpush.msra.mxu0 0.0
  %499 = vmatpush.msra.mxu0 0.0
  %500 = vmatpush.msra.mxu0 0.0
  %501 = vmatpush.msra.mxu0 0.0
  %502 = vmatpush.msra.mxu0 0.0
  %503 = vmatpush.msra.mxu0 0.0
  %504 = vmatpush.msra.mxu0 %v234
  %505 = vmatpush.msra.mxu0 %v233
  %506 = vmatmul.f32.gmra.mxu0 %v488
  %v507 = vpop.f32.mrf.mxu0
  %v508 = vadd.f32 0.0, %v507
  %509 = vdwg.mxu0
  %v510 = vadd.f32 %v486, %v508
  %v511 = vadd.f32 %v510, %v273
  %v512 = vxor.u32 %v511, 2147483648
  %v513 = vmul.f32 %v512, 1.442695
  %v514 = vpow.pop %v513
  %v515 = vadd.f32 %v514, 1.0
  %v516 = vrcp.pop %v515
  %v517 = vmul.f32 %v515, %v516
  %v518 = vsub.f32 1.0, %v517
  %v519 = vmul.f32 %v516, %v518
  %v520 = vadd.f32 %v516, %v519
  %vm521 = vweird.f32 %v515
  %vm522 = vweird.f32 %v516
  %vm523 = vmor %vm521, %vm522
  %v524 = vsel %vm523, %v516, %v520
  %v525 = vand.u32 2147483647, %v515
  %vm526 = vcmp.eq.f32.partialorder %v525, 8.507059e+37
  %v527 = vand.u32 %v515, 2147483648
  %v528 = vor.u32 1.1754944e-38, %v527
  %v529 = vsel %vm526, %v528, %v524
  %v530 = vmul.f32 1.0, %v529
  %v531 = vld [vmem:[#allocation3 + $0x10] sm:$0xff]
  %532 = vmatpush.msra.mxu0 0.0
  %533 = vmatpush.msra.mxu0 0.0
  %534 = vmatpush.msra.mxu0 0.0
  %535 = vmatpush.msra.mxu0 0.0
  %536 = vmatpush.msra.mxu0 0.0
  %537 = vmatpush.msra.mxu0 0.0
  %538 = vmatpush.msra.mxu0 0.0
  %539 = vmatpush.msra.mxu0 0.0
  %540 = vmatpush.msra.mxu0 0.0
  %541 = vmatpush.msra.mxu0 0.0
  %542 = vmatpush.msra.mxu0 0.0
  %543 = vmatpush.msra.mxu0 0.0
  %544 = vmatpush.msra.mxu0 0.0
  %545 = vmatpush.msra.mxu0 0.0
  %546 = vmatpush.msra.mxu0 %v237
  %547 = vmatpush.msra.mxu0 %v236
  %548 = vmatmul.f32.gmra.mxu0 %v488
  %v549 = vpop.f32.mrf.mxu0
  %v550 = vadd.f32 0.0, %v549
  %551 = vdwg.mxu0
  %v552 = vadd.f32 %v531, %v550
  %v553 = vadd.f32 %v552, %v318
  %v554 = vxor.u32 %v553, 2147483648
  %v555 = vmul.f32 %v554, 1.442695
  %v556 = vpow.pop %v555
  %v557 = vadd.f32 %v556, 1.0
  %v558 = vrcp.pop %v557
  %v559 = vmul.f32 %v557, %v558
  %v560 = vsub.f32 1.0, %v559
  %v561 = vmul.f32 %v558, %v560
  %v562 = vadd.f32 %v558, %v561
  %vm563 = vweird.f32 %v557
  %vm564 = vweird.f32 %v558
  %vm565 = vmor %vm563, %vm564
  %v566 = vsel %vm565, %v558, %v562
  %v567 = vand.u32 2147483647, %v557
  %vm568 = vcmp.eq.f32.partialorder %v567, 8.507059e+37
  %v569 = vand.u32 %v557, 2147483648
  %v570 = vor.u32 1.1754944e-38, %v569
  %v571 = vsel %vm568, %v570, %v566
  %v572 = vmul.f32 1.0, %v571
  %v573 = vld [vmem:[#allocation4 + $0x10] sm:$0xff]
  %574 = vmatpush.msra.mxu0 0.0
  %575 = vmatpush.msra.mxu0 0.0
  %576 = vmatpush.msra.mxu0 0.0
  %577 = vmatpush.msra.mxu0 0.0
  %578 = vmatpush.msra.mxu0 0.0
  %579 = vmatpush.msra.mxu0 0.0
  %580 = vmatpush.msra.mxu0 0.0
  %581 = vmatpush.msra.mxu0 0.0
  %582 = vmatpush.msra.mxu0 0.0
  %583 = vmatpush.msra.mxu0 0.0
  %584 = vmatpush.msra.mxu0 0.0
  %585 = vmatpush.msra.mxu0 0.0
  %586 = vmatpush.msra.mxu0 0.0
  %587 = vmatpush.msra.mxu0 0.0
  %588 = vmatpush.msra.mxu0 %v240
  %589 = vmatpush.msra.mxu0 %v239
  %590 = vmatmul.f32.gmra.mxu0 %v488
  %v591 = vpop.f32.mrf.mxu0
  %v592 = vadd.f32 %v342, %v591
  %593 = vdwg.mxu0
  %v594 = vmul.f32 %v530, %v592
  %v595 = vadd.f32 %v573, %v594
  %v596 = vtanh.pop %v595
  %v597 = vsub.f32 1.0, %v572
  %v598 = vmul.f32 %v597, %v596
  %v599 = vmul.f32 %v572, %v485
  %v600 = vadd.f32 %v598, %v599
  %v601 = vld [vmem:[#allocation2 + $0x18] sm:$0xff]
  %v603 = vsel %vm106, %v600, 0
  %605 = vmatpush.msra.mxu0 0.0
  %606 = vmatpush.msra.mxu0 0.0
  %607 = vmatpush.msra.mxu0 0.0
  %608 = vmatpush.msra.mxu0 0.0
  %609 = vmatpush.msra.mxu0 0.0
  %610 = vmatpush.msra.mxu0 0.0
  %611 = vmatpush.msra.mxu0 0.0
  %612 = vmatpush.msra.mxu0 0.0
  %613 = vmatpush.msra.mxu0 0.0
  %614 = vmatpush.msra.mxu0 0.0
  %615 = vmatpush.msra.mxu0 0.0
  %616 = vmatpush.msra.mxu0 0.0
  %617 = vmatpush.msra.mxu0 0.0
  %618 = vmatpush.msra.mxu0 0.0
  %619 = vmatpush.msra.mxu0 %v234
  %620 = vmatpush.msra.mxu0 %v233
  %621 = vmatmul.f32.gmra.mxu0 %v603
  %v622 = vpop.f32.mrf.mxu0
  %v623 = vadd.f32 0.0, %v622
  %624 = vdwg.mxu0
  %v625 = vadd.f32 %v601, %v623
  %v626 = vadd.f32 %v625, %v273
  %v627 = vxor.u32 %v626, 2147483648
  %v628 = vmul.f32 %v627, 1.442695
  %v629 = vpow.pop %v628
  %v630 = vadd.f32 %v629, 1.0
  %v631 = vrcp.pop %v630
  %v632 = vmul.f32 %v630, %v631
  %v633 = vsub.f32 1.0, %v632
  %v634 = vmul.f32 %v631, %v633
  %v635 = vadd.f32 %v631, %v634
  %vm636 = vweird.f32 %v630
  %vm637 = vweird.f32 %v631
  %vm638 = vmor %vm636, %vm637
  %v639 = vsel %vm638, %v631, %v635
  %v640 = vand.u32 2147483647, %v630
  %vm641 = vcmp.eq.f32.partialorder %v640, 8.507059e+37
  %v642 = vand.u32 %v630, 2147483648
  %v643 = vor.u32 1.1754944e-38, %v642
  %v644 = vsel %vm641, %v643, %v639
  %v645 = vmul.f32 1.0, %v644
  %v646 = vld [vmem:[#allocation3 + $0x18] sm:$0xff]
  %647 = vmatpush.msra.mxu0 0.0
  %648 = vmatpush.msra.mxu0 0.0
  %649 = vmatpush.msra.mxu0 0.0
  %650 = vmatpush.msra.mxu0 0.0
  %651 = vmatpush.msra.mxu0 0.0
  %652 = vmatpush.msra.mxu0 0.0
  %653 = vmatpush.msra.mxu0 0.0
  %654 = vmatpush.msra.mxu0 0.0
  %655 = vmatpush.msra.mxu0 0.0
  %656 = vmatpush.msra.mxu0 0.0
  %657 = vmatpush.msra.mxu0 0.0
  %658 = vmatpush.msra.mxu0 0.0
  %659 = vmatpush.msra.mxu0 0.0
  %660 = vmatpush.msra.mxu0 0.0
  %661 = vmatpush.msra.mxu0 %v237
  %662 = vmatpush.msra.mxu0 %v236
  %663 = vmatmul.f32.gmra.mxu0 %v603
  %v664 = vpop.f32.mrf.mxu0
  %v665 = vadd.f32 0.0, %v664
  %666 = vdwg.mxu0
  %v667 = vadd.f32 %v646, %v665
  %v668 = vadd.f32 %v667, %v318
  %v669 = vxor.u32 %v668, 2147483648
  %v670 = vmul.f32 %v669, 1.442695
  %v671 = vpow.pop %v670
  %v672 = vadd.f32 %v671, 1.0
  %v673 = vrcp.pop %v672
  %v674 = vmul.f32 %v672, %v673
  %v675 = vsub.f32 1.0, %v674
  %v676 = vmul.f32 %v673, %v675
  %v677 = vadd.f32 %v673, %v676
  %vm678 = vweird.f32 %v672
  %vm679 = vweird.f32 %v673
  %vm680 = vmor %vm678, %vm679
  %v681 = vsel %vm680, %v673, %v677
  %v682 = vand.u32 2147483647, %v672
  %vm683 = vcmp.eq.f32.partialorder %v682, 8.507059e+37
  %v684 = vand.u32 %v672, 2147483648
  %v685 = vor.u32 1.1754944e-38, %v684
  %v686 = vsel %vm683, %v685, %v681
  %v687 = vmul.f32 1.0, %v686
  %v688 = vld [vmem:[#allocation4 + $0x18] sm:$0xff]
  %689 = vmatpush.msra.mxu0 0.0
  %690 = vmatpush.msra.mxu0 0.0
  %691 = vmatpush.msra.mxu0 0.0
  %692 = vmatpush.msra.mxu0 0.0
  %693 = vmatpush.msra.mxu0 0.0
  %694 = vmatpush.msra.mxu0 0.0
  %695 = vmatpush.msra.mxu0 0.0
  %696 = vmatpush.msra.mxu0 0.0
  %697 = vmatpush.msra.mxu0 0.0
  %698 = vmatpush.msra.mxu0 0.0
  %699 = vmatpush.msra.mxu0 0.0
  %700 = vmatpush.msra.mxu0 0.0
  %701 = vmatpush.msra.mxu0 0.0
  %702 = vmatpush.msra.mxu0 0.0
  %703 = vmatpush.msra.mxu0 %v240
  %704 = vmatpush.msra.mxu0 %v239
  %705 = vmatmul.f32.gmra.mxu0 %v603
  %v706 = vpop.f32.mrf.mxu0
  %v707 = vadd.f32 %v342, %v706
  %708 = vdwg.mxu0
  %v709 = vmul.f32 %v645, %v707
  %v710 = vadd.f32 %v688, %v709
  %v711 = vtanh.pop %v710
  %v712 = vsub.f32 1.0, %v687
  %v713 = vmul.f32 %v712, %v711
  %v714 = vmul.f32 %v687, %v600
  %v715 = vadd.f32 %v713, %v714
  %v716 = vld [vmem:[#allocation2 + $0x20] sm:$0xff]
  %v718 = vsel %vm106, %v715, 0
  %720 = vmatpush.msra.mxu0 0.0
  %721 = vmatpush.msra.mxu0 0.0
  %722 = vmatpush.msra.mxu0 0.0
  %723 = vmatpush.msra.mxu0 0.0
  %724 = vmatpush.msra.mxu0 0.0
  %725 = vmatpush.msra.mxu0 0.0
  %726 = vmatpush.msra.mxu0 0.0
  %727 = vmatpush.msra.mxu0 0.0
  %728 = vmatpush.msra.mxu0 0.0
  %729 = vmatpush.msra.mxu0 0.0
  %730 = vmatpush.msra.mxu0 0.0
  %731 = vmatpush.msra.mxu0 0.0
  %732 = vmatpush.msra.mxu0 0.0
  %733 = vmatpush.msra.mxu0 0.0
  %734 = vmatpush.msra.mxu0 %v234
  %735 = vmatpush.msra.mxu0 %v233
  %736 = vmatmul.f32.gmra.mxu0 %v718
  %v737 = vpop.f32.mrf.mxu0
  %v738 = vadd.f32 0.0, %v737
  %739 = vdwg.mxu0
  %v740 = vadd.f32 %v716, %v738
  %v741 = vadd.f32 %v740, %v273
  %v742 = vxor.u32 %v741, 2147483648
  %v743 = vmul.f32 %v742, 1.442695
  %v744 = vpow.pop %v743
  %v745 = vadd.f32 %v744, 1.0
  %v746 = vrcp.pop %v745
  %v747 = vmul.f32 %v745, %v746
  %v748 = vsub.f32 1.0, %v747
  %v749 = vmul.f32 %v746, %v748
  %v750 = vadd.f32 %v746, %v749
  %vm751 = vweird.f32 %v745
  %vm752 = vweird.f32 %v746
  %vm753 = vmor %vm751, %vm752
  %v754 = vsel %vm753, %v746, %v750
  %v755 = vand.u32 2147483647, %v745
  %vm756 = vcmp.eq.f32.partialorder %v755, 8.507059e+37
  %v757 = vand.u32 %v745, 2147483648
  %v758 = vor.u32 1.1754944e-38, %v757
  %v759 = vsel %vm756, %v758, %v754
  %v760 = vmul.f32 1.0, %v759
  %v761 = vld [vmem:[#allocation3 + $0x20] sm:$0xff]
  %762 = vmatpush.msra.mxu0 0.0
  %763 = vmatpush.msra.mxu0 0.0
  %764 = vmatpush.msra.mxu0 0.0
  %765 = vmatpush.msra.mxu0 0.0
  %766 = vmatpush.msra.mxu0 0.0
  %767 = vmatpush.msra.mxu0 0.0
  %768 = vmatpush.msra.mxu0 0.0
  %769 = vmatpush.msra.mxu0 0.0
  %770 = vmatpush.msra.mxu0 0.0
  %771 = vmatpush.msra.mxu0 0.0
  %772 = vmatpush.msra.mxu0 0.0
  %773 = vmatpush.msra.mxu0 0.0
  %774 = vmatpush.msra.mxu0 0.0
  %775 = vmatpush.msra.mxu0 0.0
  %776 = vmatpush.msra.mxu0 %v237
  %777 = vmatpush.msra.mxu0 %v236
  %778 = vmatmul.f32.gmra.mxu0 %v718
  %v779 = vpop.f32.mrf.mxu0
  %v780 = vadd.f32 0.0, %v779
  %781 = vdwg.mxu0
  %v782 = vadd.f32 %v761, %v780
  %v783 = vadd.f32 %v782, %v318
  %v784 = vxor.u32 %v783, 2147483648
  %v785 = vmul.f32 %v784, 1.442695
  %v786 = vpow.pop %v785
  %v787 = vadd.f32 %v786, 1.0
  %v788 = vrcp.pop %v787
  %v789 = vmul.f32 %v787, %v788
  %v790 = vsub.f32 1.0, %v789
  %v791 = vmul.f32 %v788, %v790
  %v792 = vadd.f32 %v788, %v791
  %vm793 = vweird.f32 %v787
  %vm794 = vweird.f32 %v788
  %vm795 = vmor %vm793, %vm794
  %v796 = vsel %vm795, %v788, %v792
  %v797 = vand.u32 2147483647, %v787
  %vm798 = vcmp.eq.f32.partialorder %v797, 8.507059e+37
  %v799 = vand.u32 %v787, 2147483648
  %v800 = vor.u32 1.1754944e-38, %v799
  %v801 = vsel %vm798, %v800, %v796
  %v802 = vmul.f32 1.0, %v801
  %v803 = vld [vmem:[#allocation4 + $0x20] sm:$0xff]
  %804 = vmatpush.msra.mxu0 0.0
  %805 = vmatpush.msra.mxu0 0.0
  %806 = vmatpush.msra.mxu0 0.0
  %807 = vmatpush.msra.mxu0 0.0
  %808 = vmatpush.msra.mxu0 0.0
  %809 = vmatpush.msra.mxu0 0.0
  %810 = vmatpush.msra.mxu0 0.0
  %811 = vmatpush.msra.mxu0 0.0
  %812 = vmatpush.msra.mxu0 0.0
  %813 = vmatpush.msra.mxu0 0.0
  %814 = vmatpush.msra.mxu0 0.0
  %815 = vmatpush.msra.mxu0 0.0
  %816 = vmatpush.msra.mxu0 0.0
  %817 = vmatpush.msra.mxu0 0.0
  %818 = vmatpush.msra.mxu0 %v240
  %819 = vmatpush.msra.mxu0 %v239
  %820 = vmatmul.f32.gmra.mxu0 %v718
  %v821 = vpop.f32.mrf.mxu0
  %v822 = vadd.f32 %v342, %v821
  %823 = vdwg.mxu0
  %v824 = vmul.f32 %v760, %v822
  %v825 = vadd.f32 %v803, %v824
  %v826 = vtanh.pop %v825
  %v827 = vsub.f32 1.0, %v802
  %v828 = vmul.f32 %v827, %v826
  %v829 = vmul.f32 %v802, %v715
  %v830 = vadd.f32 %v828, %v829
  %v831 = vld [vmem:[#allocation2 + $0x28] sm:$0xff]
  %v833 = vsel %vm106, %v830, 0
  %835 = vmatpush.msra.mxu0 0.0
  %836 = vmatpush.msra.mxu0 0.0
  %837 = vmatpush.msra.mxu0 0.0
  %838 = vmatpush.msra.mxu0 0.0
  %839 = vmatpush.msra.mxu0 0.0
  %840 = vmatpush.msra.mxu0 0.0
  %841 = vmatpush.msra.mxu0 0.0
  %842 = vmatpush.msra.mxu0 0.0
  %843 = vmatpush.msra.mxu0 0.0
  %844 = vmatpush.msra.mxu0 0.0
  %845 = vmatpush.msra.mxu0 0.0
  %846 = vmatpush.msra.mxu0 0.0
  %847 = vmatpush.msra.mxu0 0.0
  %848 = vmatpush.msra.mxu0 0.0
  %849 = vmatpush.msra.mxu0 %v234
  %850 = vmatpush.msra.mxu0 %v233
  %851 = vmatmul.f32.gmra.mxu0 %v833
  %v852 = vpop.f32.mrf.mxu0
  %v853 = vadd.f32 0.0, %v852
  %854 = vdwg.mxu0
  %v855 = vadd.f32 %v831, %v853
  %v856 = vadd.f32 %v855, %v273
  %v857 = vxor.u32 %v856, 2147483648
  %v858 = vmul.f32 %v857, 1.442695
  %v859 = vpow.pop %v858
  %v860 = vadd.f32 %v859, 1.0
  %v861 = vrcp.pop %v860
  %v862 = vmul.f32 %v860, %v861
  %v863 = vsub.f32 1.0, %v862
  %v864 = vmul.f32 %v861, %v863
  %v865 = vadd.f32 %v861, %v864
  %vm866 = vweird.f32 %v860
  %vm867 = vweird.f32 %v861
  %vm868 = vmor %vm866, %vm867
  %v869 = vsel %vm868, %v861, %v865
  %v870 = vand.u32 2147483647, %v860
  %vm871 = vcmp.eq.f32.partialorder %v870, 8.507059e+37
  %v872 = vand.u32 %v860, 2147483648
  %v873 = vor.u32 1.1754944e-38, %v872
  %v874 = vsel %vm871, %v873, %v869
  %v875 = vmul.f32 1.0, %v874
  %v876 = vld [vmem:[#allocation3 + $0x28] sm:$0xff]
  %877 = vmatpush.msra.mxu0 0.0
  %878 = vmatpush.msra.mxu0 0.0
  %879 = vmatpush.msra.mxu0 0.0
  %880 = vmatpush.msra.mxu0 0.0
  %881 = vmatpush.msra.mxu0 0.0
  %882 = vmatpush.msra.mxu0 0.0
  %883 = vmatpush.msra.mxu0 0.0
  %884 = vmatpush.msra.mxu0 0.0
  %885 = vmatpush.msra.mxu0 0.0
  %886 = vmatpush.msra.mxu0 0.0
  %887 = vmatpush.msra.mxu0 0.0
  %888 = vmatpush.msra.mxu0 0.0
  %889 = vmatpush.msra.mxu0 0.0
  %890 = vmatpush.msra.mxu0 0.0
  %891 = vmatpush.msra.mxu0 %v237
  %892 = vmatpush.msra.mxu0 %v236
  %893 = vmatmul.f32.gmra.mxu0 %v833
  %v894 = vpop.f32.mrf.mxu0
  %v895 = vadd.f32 0.0, %v894
  %896 = vdwg.mxu0
  %v897 = vadd.f32 %v876, %v895
  %v898 = vadd.f32 %v897, %v318
  %v899 = vxor.u32 %v898, 2147483648
  %v900 = vmul.f32 %v899, 1.442695
  %v901 = vpow.pop %v900
  %v902 = vadd.f32 %v901, 1.0
  %v903 = vrcp.pop %v902
  %v904 = vmul.f32 %v902, %v903
  %v905 = vsub.f32 1.0, %v904
  %v906 = vmul.f32 %v903, %v905
  %v907 = vadd.f32 %v903, %v906
  %vm908 = vweird.f32 %v902
  %vm909 = vweird.f32 %v903
  %vm910 = vmor %vm908, %vm909
  %v911 = vsel %vm910, %v903, %v907
  %v912 = vand.u32 2147483647, %v902
  %vm913 = vcmp.eq.f32.partialorder %v912, 8.507059e+37
  %v914 = vand.u32 %v902, 2147483648
  %v915 = vor.u32 1.1754944e-38, %v914
  %v916 = vsel %vm913, %v915, %v911
  %v917 = vmul.f32 1.0, %v916
  %v918 = vld [vmem:[#allocation4 + $0x28] sm:$0xff]
  %919 = vmatpush.msra.mxu0 0.0
  %920 = vmatpush.msra.mxu0 0.0
  %921 = vmatpush.msra.mxu0 0.0
  %922 = vmatpush.msra.mxu0 0.0
  %923 = vmatpush.msra.mxu0 0.0
  %924 = vmatpush.msra.mxu0 0.0
  %925 = vmatpush.msra.mxu0 0.0
  %926 = vmatpush.msra.mxu0 0.0
  %927 = vmatpush.msra.mxu0 0.0
  %928 = vmatpush.msra.mxu0 0.0
  %929 = vmatpush.msra.mxu0 0.0
  %930 = vmatpush.msra.mxu0 0.0
  %931 = vmatpush.msra.mxu0 0.0
  %932 = vmatpush.msra.mxu0 0.0
  %933 = vmatpush.msra.mxu0 %v240
  %934 = vmatpush.msra.mxu0 %v239
  %935 = vmatmul.f32.gmra.mxu0 %v833
  %v936 = vpop.f32.mrf.mxu0
  %v937 = vadd.f32 %v342, %v936
  %938 = vdwg.mxu0
  %v939 = vmul.f32 %v875, %v937
  %v940 = vadd.f32 %v918, %v939
  %v941 = vtanh.pop %v940
  %v942 = vsub.f32 1.0, %v917
  %v943 = vmul.f32 %v942, %v941
  %v944 = vmul.f32 %v917, %v830
  %v945 = vadd.f32 %v943, %v944
  %v946 = vld [vmem:[#allocation2 + $0x30] sm:$0xff]
  %v948 = vsel %vm106, %v945, 0
  %950 = vmatpush.msra.mxu0 0.0
  %951 = vmatpush.msra.mxu0 0.0
  %952 = vmatpush.msra.mxu0 0.0
  %953 = vmatpush.msra.mxu0 0.0
  %954 = vmatpush.msra.mxu0 0.0
  %955 = vmatpush.msra.mxu0 0.0
  %956 = vmatpush.msra.mxu0 0.0
  %957 = vmatpush.msra.mxu0 0.0
  %958 = vmatpush.msra.mxu0 0.0
  %959 = vmatpush.msra.mxu0 0.0
  %960 = vmatpush.msra.mxu0 0.0
  %961 = vmatpush.msra.mxu0 0.0
  %962 = vmatpush.msra.mxu0 0.0
  %963 = vmatpush.msra.mxu0 0.0
  %964 = vmatpush.msra.mxu0 %v234
  %965 = vmatpush.msra.mxu0 %v233
  %966 = vmatmul.f32.gmra.mxu0 %v948
  %v967 = vpop.f32.mrf.mxu0
  %v968 = vadd.f32 0.0, %v967
  %969 = vdwg.mxu0
  %v970 = vadd.f32 %v946, %v968
  %v971 = vadd.f32 %v970, %v273
  %v972 = vxor.u32 %v971, 2147483648
  %v973 = vmul.f32 %v972, 1.442695
  %v974 = vpow.pop %v973
  %v975 = vadd.f32 %v974, 1.0
  %v976 = vrcp.pop %v975
  %v977 = vmul.f32 %v975, %v976
  %v978 = vsub.f32 1.0, %v977
  %v979 = vmul.f32 %v976, %v978
  %v980 = vadd.f32 %v976, %v979
  %vm981 = vweird.f32 %v975
  %vm982 = vweird.f32 %v976
  %vm983 = vmor %vm981, %vm982
  %v984 = vsel %vm983, %v976, %v980
  %v985 = vand.u32 2147483647, %v975
  %vm986 = vcmp.eq.f32.partialorder %v985, 8.507059e+37
  %v987 = vand.u32 %v975, 2147483648
  %v988 = vor.u32 1.1754944e-38, %v987
  %v989 = vsel %vm986, %v988, %v984
  %v990 = vmul.f32 1.0, %v989
  %v991 = vld [vmem:[#allocation3 + $0x30] sm:$0xff]
  %992 = vmatpush.msra.mxu0 0.0
  %993 = vmatpush.msra.mxu0 0.0
  %994 = vmatpush.msra.mxu0 0.0
  %995 = vmatpush.msra.mxu0 0.0
  %996 = vmatpush.msra.mxu0 0.0
  %997 = vmatpush.msra.mxu0 0.0
  %998 = vmatpush.msra.mxu0 0.0
  %999 = vmatpush.msra.mxu0 0.0
  %1000 = vmatpush.msra.mxu0 0.0
  %1001 = vmatpush.msra.mxu0 0.0
  %1002 = vmatpush.msra.mxu0 0.0
  %1003 = vmatpush.msra.mxu0 0.0
  %1004 = vmatpush.msra.mxu0 0.0
  %1005 = vmatpush.msra.mxu0 0.0
  %1006 = vmatpush.msra.mxu0 %v237
  %1007 = vmatpush.msra.mxu0 %v236
  %1008 = vmatmul.f32.gmra.mxu0 %v948
  %v1009 = vpop.f32.mrf.mxu0
  %v1010 = vadd.f32 0.0, %v1009
  %1011 = vdwg.mxu0
  %v1012 = vadd.f32 %v991, %v1010
  %v1013 = vadd.f32 %v1012, %v318
  %v1014 = vxor.u32 %v1013, 2147483648
  %v1015 = vmul.f32 %v1014, 1.442695
  %v1016 = vpow.pop %v1015
  %v1017 = vadd.f32 %v1016, 1.0
  %v1018 = vrcp.pop %v1017
  %v1019 = vmul.f32 %v1017, %v1018
  %v1020 = vsub.f32 1.0, %v1019
  %v1021 = vmul.f32 %v1018, %v1020
  %v1022 = vadd.f32 %v1018, %v1021
  %vm1023 = vweird.f32 %v1017
  %vm1024 = vweird.f32 %v1018
  %vm1025 = vmor %vm1023, %vm1024
  %v1026 = vsel %vm1025, %v1018, %v1022
  %v1027 = vand.u32 2147483647, %v1017
  %vm1028 = vcmp.eq.f32.partialorder %v1027, 8.507059e+37
  %v1029 = vand.u32 %v1017, 2147483648
  %v1030 = vor.u32 1.1754944e-38, %v1029
  %v1031 = vsel %vm1028, %v1030, %v1026
  %v1032 = vmul.f32 1.0, %v1031
  %v1033 = vld [vmem:[#allocation4 + $0x30] sm:$0xff]
  %1034 = vmatpush.msra.mxu0 0.0
  %1035 = vmatpush.msra.mxu0 0.0
  %1036 = vmatpush.msra.mxu0 0.0
  %1037 = vmatpush.msra.mxu0 0.0
  %1038 = vmatpush.msra.mxu0 0.0
  %1039 = vmatpush.msra.mxu0 0.0
  %1040 = vmatpush.msra.mxu0 0.0
  %1041 = vmatpush.msra.mxu0 0.0
  %1042 = vmatpush.msra.mxu0 0.0
  %1043 = vmatpush.msra.mxu0 0.0
  %1044 = vmatpush.msra.mxu0 0.0
  %1045 = vmatpush.msra.mxu0 0.0
  %1046 = vmatpush.msra.mxu0 0.0
  %1047 = vmatpush.msra.mxu0 0.0
  %1048 = vmatpush.msra.mxu0 %v240
  %1049 = vmatpush.msra.mxu0 %v239
  %1050 = vmatmul.f32.gmra.mxu0 %v948
  %v1051 = vpop.f32.mrf.mxu0
  %v1052 = vadd.f32 %v342, %v1051
  %1053 = vdwg.mxu0
  %v1054 = vmul.f32 %v990, %v1052
  %v1055 = vadd.f32 %v1033, %v1054
  %v1056 = vtanh.pop %v1055
  %v1057 = vsub.f32 1.0, %v1032
  %v1058 = vmul.f32 %v1057, %v1056
  %v1059 = vmul.f32 %v1032, %v945
  %v1060 = vadd.f32 %v1058, %v1059
  %v1061 = vld [vmem:[#allocation2 + $0x38] sm:$0xff]
  %v1063 = vsel %vm106, %v1060, 0
  %1065 = vmatpush.msra.mxu0 0.0
  %1066 = vmatpush.msra.mxu0 0.0
  %1067 = vmatpush.msra.mxu0 0.0
  %1068 = vmatpush.msra.mxu0 0.0
  %1069 = vmatpush.msra.mxu0 0.0
  %1070 = vmatpush.msra.mxu0 0.0
  %1071 = vmatpush.msra.mxu0 0.0
  %1072 = vmatpush.msra.mxu0 0.0
  %1073 = vmatpush.msra.mxu0 0.0
  %1074 = vmatpush.msra.mxu0 0.0
  %1075 = vmatpush.msra.mxu0 0.0
  %1076 = vmatpush.msra.mxu0 0.0
  %1077 = vmatpush.msra.mxu0 0.0
  %1078 = vmatpush.msra.mxu0 0.0
  %1079 = vmatpush.msra.mxu0 %v234
  %1080 = vmatpush.msra.mxu0 %v233
  %1081 = vmatmul.f32.gmra.mxu0 %v1063
  %v1082 = vpop.f32.mrf.mxu0
  %v1083 = vadd.f32 0.0, %v1082
  %1084 = vdwg.mxu0
  %v1085 = vadd.f32 %v1061, %v1083
  %v1086 = vadd.f32 %v1085, %v273
  %v1087 = vxor.u32 %v1086, 2147483648
  %v1088 = vmul.f32 %v1087, 1.442695
  %v1089 = vpow.pop %v1088
  %v1090 = vadd.f32 %v1089, 1.0
  %v1091 = vrcp.pop %v1090
  %v1092 = vmul.f32 %v1090, %v1091
  %v1093 = vsub.f32 1.0, %v1092
  %v1094 = vmul.f32 %v1091, %v1093
  %v1095 = vadd.f32 %v1091, %v1094
  %vm1096 = vweird.f32 %v1090
  %vm1097 = vweird.f32 %v1091
  %vm1098 = vmor %vm1096, %vm1097
  %v1099 = vsel %vm1098, %v1091, %v1095
  %v1100 = vand.u32 2147483647, %v1090
  %vm1101 = vcmp.eq.f32.partialorder %v1100, 8.507059e+37
  %v1102 = vand.u32 %v1090, 2147483648
  %v1103 = vor.u32 1.1754944e-38, %v1102
  %v1104 = vsel %vm1101, %v1103, %v1099
  %v1105 = vmul.f32 1.0, %v1104
  %v1106 = vld [vmem:[#allocation3 + $0x38] sm:$0xff]
  %1107 = vmatpush.msra.mxu0 0.0
  %1108 = vmatpush.msra.mxu0 0.0
  %1109 = vmatpush.msra.mxu0 0.0
  %1110 = vmatpush.msra.mxu0 0.0
  %1111 = vmatpush.msra.mxu0 0.0
  %1112 = vmatpush.msra.mxu0 0.0
  %1113 = vmatpush.msra.mxu0 0.0
  %1114 = vmatpush.msra.mxu0 0.0
  %1115 = vmatpush.msra.mxu0 0.0
  %1116 = vmatpush.msra.mxu0 0.0
  %1117 = vmatpush.msra.mxu0 0.0
  %1118 = vmatpush.msra.mxu0 0.0
  %1119 = vmatpush.msra.mxu0 0.0
  %1120 = vmatpush.msra.mxu0 0.0
  %1121 = vmatpush.msra.mxu0 %v237
  %1122 = vmatpush.msra.mxu0 %v236
  %1123 = vmatmul.f32.gmra.mxu0 %v1063
  %v1124 = vpop.f32.mrf.mxu0
  %v1125 = vadd.f32 0.0, %v1124
  %1126 = vdwg.mxu0
  %v1127 = vadd.f32 %v1106, %v1125
  %v1128 = vadd.f32 %v1127, %v318
  %v1129 = vxor.u32 %v1128, 2147483648
  %v1130 = vmul.f32 %v1129, 1.442695
  %v1131 = vpow.pop %v1130
  %v1132 = vadd.f32 %v1131, 1.0
  %v1133 = vrcp.pop %v1132
  %v1134 = vmul.f32 %v1132, %v1133
  %v1135 = vsub.f32 1.0, %v1134
  %v1136 = vmul.f32 %v1133, %v1135
  %v1137 = vadd.f32 %v1133, %v1136
  %vm1138 = vweird.f32 %v1132
  %vm1139 = vweird.f32 %v1133
  %vm1140 = vmor %vm1138, %vm1139
  %v1141 = vsel %vm1140, %v1133, %v1137
  %v1142 = vand.u32 2147483647, %v1132
  %vm1143 = vcmp.eq.f32.partialorder %v1142, 8.507059e+37
  %v1144 = vand.u32 %v1132, 2147483648
  %v1145 = vor.u32 1.1754944e-38, %v1144
  %v1146 = vsel %vm1143, %v1145, %v1141
  %v1147 = vmul.f32 1.0, %v1146
  %v1148 = vld [vmem:[#allocation4 + $0x38] sm:$0xff]
  %1149 = vmatpush.msra.mxu0 0.0
  %1150 = vmatpush.msra.mxu0 0.0
  %1151 = vmatpush.msra.mxu0 0.0
  %1152 = vmatpush.msra.mxu0 0.0
  %1153 = vmatpush.msra.mxu0 0.0
  %1154 = vmatpush.msra.mxu0 0.0
  %1155 = vmatpush.msra.mxu0 0.0
  %1156 = vmatpush.msra.mxu0 0.0
  %1157 = vmatpush.msra.mxu0 0.0
  %1158 = vmatpush.msra.mxu0 0.0
  %1159 = vmatpush.msra.mxu0 0.0
  %1160 = vmatpush.msra.mxu0 0.0
  %1161 = vmatpush.msra.mxu0 0.0
  %1162 = vmatpush.msra.mxu0 0.0
  %1163 = vmatpush.msra.mxu0 %v240
  %1164 = vmatpush.msra.mxu0 %v239
  %1165 = vmatmul.f32.gmra.mxu0 %v1063
  %v1166 = vpop.f32.mrf.mxu0
  %v1167 = vadd.f32 %v342, %v1166
  %1168 = vdwg.mxu0
  %v1169 = vmul.f32 %v1105, %v1167
  %v1170 = vadd.f32 %v1148, %v1169
  %v1171 = vtanh.pop %v1170
  %v1172 = vsub.f32 1.0, %v1147
  %v1173 = vmul.f32 %v1172, %v1171
  %v1174 = vmul.f32 %v1147, %v1060
  %v1175 = vadd.f32 %v1173, %v1174
  %1176 = vst.msk [vmem:[%s6] sm:$0xff] %vm106, %v1175
  %s1177 = scalar_lea.vmem %s2, 12
  %v1178 = vld [vmem:[%s1177] sm:$0x7]
  %s1179 = scalar_lea.vmem %s4, 3
  %v1180 = vld [vmem:[%s1179] sm:$0x1]
  %v1182 = vperm.slane %v1180, 0
  %v1185 = vsel %vm61, %v1178, 0
  %1187 = vmatpush.msra.mxu0 0.0
  %1188 = vmatpush.msra.mxu0 0.0
  %1189 = vmatpush.msra.mxu0 0.0
  %1190 = vmatpush.msra.mxu0 0.0
  %1191 = vmatpush.msra.mxu0 0.0
  %1192 = vmatpush.msra.mxu0 0.0
  %1193 = vmatpush.msra.mxu0 0.0
  %1194 = vmatpush.msra.mxu0 0.0
  %1195 = vmatpush.msra.mxu0 0.0
  %1196 = vmatpush.msra.mxu0 0.0
  %1197 = vmatpush.msra.mxu0 0.0
  %1198 = vmatpush.msra.mxu0 0.0
  %1199 = vmatpush.msra.mxu0 0.0
  %1200 = vmatpush.msra.mxu0 0.0
  %1201 = vmatpush.msra.mxu0 0.0
  %1202 = vmatpush.msra.mxu0 %v1185
  %1203 = vmatmul.f32.gmra.mxu0 %v38
  %v1204 = vpop.f32.mrf.mxu0
  %v1205 = vadd.f32 %v1182, %v1204
  %1206 = vmatmul.f32.gmra.mxu0 %v41
  %v1207 = vpop.f32.mrf.mxu0
  %v1208 = vadd.f32 %v1182, %v1207
  %1209 = vmatmul.f32.gmra.mxu0 %v44
  %v1210 = vpop.f32.mrf.mxu0
  %v1211 = vadd.f32 %v1182, %v1210
  %1212 = vmatmul.f32.gmra.mxu0 %v47
  %v1213 = vpop.f32.mrf.mxu0
  %v1214 = vadd.f32 %v1182, %v1213
  %1215 = vmatmul.f32.gmra.mxu0 %v50
  %v1216 = vpop.f32.mrf.mxu0
  %v1217 = vadd.f32 %v1182, %v1216
  %1218 = vmatmul.f32.gmra.mxu0 %v53
  %v1219 = vpop.f32.mrf.mxu0
  %v1220 = vadd.f32 %v1182, %v1219
  %1221 = vmatmul.f32.gmra.mxu0 %v56
  %v1222 = vpop.f32.mrf.mxu0
  %v1223 = vadd.f32 %v1182, %v1222
  %1224 = vmatmul.f32.gmra.mxu0 %v59
  %v1225 = vpop.f32.mrf.mxu0
  %v1226 = vadd.f32 %v1182, %v1225
  %1227 = vdwg.mxu0
  %1228 = vst.msk [vmem:[#allocation2] sm:$0xff] %vm106, %v1205
  %1229 = vst.msk [vmem:[#allocation2 + $0x8] sm:$0xff] %vm106, %v1208
  %1230 = vst.msk [vmem:[#allocation2 + $0x10] sm:$0xff] %vm106, %v1211
  %1231 = vst.msk [vmem:[#allocation2 + $0x18] sm:$0xff] %vm106, %v1214
  %1232 = vst.msk [vmem:[#allocation2 + $0x20] sm:$0xff] %vm106, %v1217
  %1233 = vst.msk [vmem:[#allocation2 + $0x28] sm:$0xff] %vm106, %v1220
  %1234 = vst.msk [vmem:[#allocation2 + $0x30] sm:$0xff] %vm106, %v1223
  %1235 = vst.msk [vmem:[#allocation2 + $0x38] sm:$0xff] %vm106, %v1226
  %s1236 = scalar_lea.vmem %s2, 16
  %v1237 = vld [vmem:[%s1236] sm:$0x7]
  %s1238 = scalar_lea.vmem %s4, 4
  %v1239 = vld [vmem:[%s1238] sm:$0x1]
  %v1241 = vperm.slane %v1239, 0
  %v1244 = vsel %vm61, %v1237, 0
  %1246 = vmatpush.msra.mxu0 0.0
  %1247 = vmatpush.msra.mxu0 0.0
  %1248 = vmatpush.msra.mxu0 0.0
  %1249 = vmatpush.msra.mxu0 0.0
  %1250 = vmatpush.msra.mxu0 0.0
  %1251 = vmatpush.msra.mxu0 0.0
  %1252 = vmatpush.msra.mxu0 0.0
  %1253 = vmatpush.msra.mxu0 0.0
  %1254 = vmatpush.msra.mxu0 0.0
  %1255 = vmatpush.msra.mxu0 0.0
  %1256 = vmatpush.msra.mxu0 0.0
  %1257 = vmatpush.msra.mxu0 0.0
  %1258 = vmatpush.msra.mxu0 0.0
  %1259 = vmatpush.msra.mxu0 0.0
  %1260 = vmatpush.msra.mxu0 0.0
  %1261 = vmatpush.msra.mxu0 %v1244
  %1262 = vmatmul.f32.gmra.mxu0 %v38
  %v1263 = vpop.f32.mrf.mxu0
  %v1264 = vadd.f32 %v1241, %v1263
  %1265 = vmatmul.f32.gmra.mxu0 %v41
  %v1266 = vpop.f32.mrf.mxu0
  %v1267 = vadd.f32 %v1241, %v1266
  %1268 = vmatmul.f32.gmra.mxu0 %v44
  %v1269 = vpop.f32.mrf.mxu0
  %v1270 = vadd.f32 %v1241, %v1269
  %1271 = vmatmul.f32.gmra.mxu0 %v47
  %v1272 = vpop.f32.mrf.mxu0
  %v1273 = vadd.f32 %v1241, %v1272
  %1274 = vmatmul.f32.gmra.mxu0 %v50
  %v1275 = vpop.f32.mrf.mxu0
  %v1276 = vadd.f32 %v1241, %v1275
  %1277 = vmatmul.f32.gmra.mxu0 %v53
  %v1278 = vpop.f32.mrf.mxu0
  %v1279 = vadd.f32 %v1241, %v1278
  %1280 = vmatmul.f32.gmra.mxu0 %v56
  %v1281 = vpop.f32.mrf.mxu0
  %v1282 = vadd.f32 %v1241, %v1281
  %1283 = vmatmul.f32.gmra.mxu0 %v59
  %v1284 = vpop.f32.mrf.mxu0
  %v1285 = vadd.f32 %v1241, %v1284
  %1286 = vdwg.mxu0
  %1287 = vst.msk [vmem:[#allocation3] sm:$0xff] %vm106, %v1264
  %1288 = vst.msk [vmem:[#allocation3 + $0x8] sm:$0xff] %vm106, %v1267
  %1289 = vst.msk [vmem:[#allocation3 + $0x10] sm:$0xff] %vm106, %v1270
  %1290 = vst.msk [vmem:[#allocation3 + $0x18] sm:$0xff] %vm106, %v1273
  %1291 = vst.msk [vmem:[#allocation3 + $0x20] sm:$0xff] %vm106, %v1276
  %1292 = vst.msk [vmem:[#allocation3 + $0x28] sm:$0xff] %vm106, %v1279
  %1293 = vst.msk [vmem:[#allocation3 + $0x30] sm:$0xff] %vm106, %v1282
  %1294 = vst.msk [vmem:[#allocation3 + $0x38] sm:$0xff] %vm106, %v1285
  %s1295 = scalar_lea.vmem %s2, 20
  %v1296 = vld [vmem:[%s1295] sm:$0x7]
  %s1297 = scalar_lea.vmem %s4, 5
  %v1298 = vld [vmem:[%s1297] sm:$0x1]
  %v1300 = vperm.slane %v1298, 0
  %v1303 = vsel %vm61, %v1296, 0
  %1305 = vmatpush.msra.mxu0 0.0
  %1306 = vmatpush.msra.mxu0 0.0
  %1307 = vmatpush.msra.mxu0 0.0
  %1308 = vmatpush.msra.mxu0 0.0
  %1309 = vmatpush.msra.mxu0 0.0
  %1310 = vmatpush.msra.mxu0 0.0
  %1311 = vmatpush.msra.mxu0 0.0
  %1312 = vmatpush.msra.mxu0 0.0
  %1313 = vmatpush.msra.mxu0 0.0
  %1314 = vmatpush.msra.mxu0 0.0
  %1315 = vmatpush.msra.mxu0 0.0
  %1316 = vmatpush.msra.mxu0 0.0
  %1317 = vmatpush.msra.mxu0 0.0
  %1318 = vmatpush.msra.mxu0 0.0
  %1319 = vmatpush.msra.mxu0 0.0
  %1320 = vmatpush.msra.mxu0 %v1303
  %1321 = vmatmul.f32.gmra.mxu0 %v38
  %v1322 = vpop.f32.mrf.mxu0
  %v1323 = vadd.f32 %v1300, %v1322
  %1324 = vmatmul.f32.gmra.mxu0 %v41
  %v1325 = vpop.f32.mrf.mxu0
  %v1326 = vadd.f32 %v1300, %v1325
  %1327 = vmatmul.f32.gmra.mxu0 %v44
  %v1328 = vpop.f32.mrf.mxu0
  %v1329 = vadd.f32 %v1300, %v1328
  %1330 = vmatmul.f32.gmra.mxu0 %v47
  %v1331 = vpop.f32.mrf.mxu0
  %v1332 = vadd.f32 %v1300, %v1331
  %1333 = vmatmul.f32.gmra.mxu0 %v50
  %v1334 = vpop.f32.mrf.mxu0
  %v1335 = vadd.f32 %v1300, %v1334
  %1336 = vmatmul.f32.gmra.mxu0 %v53
  %v1337 = vpop.f32.mrf.mxu0
  %v1338 = vadd.f32 %v1300, %v1337
  %1339 = vmatmul.f32.gmra.mxu0 %v56
  %v1340 = vpop.f32.mrf.mxu0
  %v1341 = vadd.f32 %v1300, %v1340
  %1342 = vmatmul.f32.gmra.mxu0 %v59
  %v1343 = vpop.f32.mrf.mxu0
  %v1344 = vadd.f32 %v1300, %v1343
  %1345 = vdwg.mxu0
  %1346 = vst.msk [vmem:[#allocation4] sm:$0xff] %vm106, %v1323
  %1347 = vst.msk [vmem:[#allocation4 + $0x8] sm:$0xff] %vm106, %v1326
  %1348 = vst.msk [vmem:[#allocation4 + $0x10] sm:$0xff] %vm106, %v1329
  %1349 = vst.msk [vmem:[#allocation4 + $0x18] sm:$0xff] %vm106, %v1332
  %1350 = vst.msk [vmem:[#allocation4 + $0x20] sm:$0xff] %vm106, %v1335
  %1351 = vst.msk [vmem:[#allocation4 + $0x28] sm:$0xff] %vm106, %v1338
  %1352 = vst.msk [vmem:[#allocation4 + $0x30] sm:$0xff] %vm106, %v1341
  %1353 = vst.msk [vmem:[#allocation4 + $0x38] sm:$0xff] %vm106, %v1344
  %s1354 = scalar_lea.vmem %s3, 48
  %v1355 = vld [vmem:[%s1354] sm:$0xff]
  %v1356 = vld [vmem:[%s1354 + $0x8] sm:$0xff]
  %s1357 = scalar_lea.vmem %s3, 64
  %v1358 = vld [vmem:[%s1357] sm:$0xff]
  %v1359 = vld [vmem:[%s1357 + $0x8] sm:$0xff]
  %s1360 = scalar_lea.vmem %s3, 80
  %v1361 = vld [vmem:[%s1360] sm:$0xff]
  %v1362 = vld [vmem:[%s1360 + $0x8] sm:$0xff]
  %s1363 = scalar_lea.vmem %s5, 3
  %v1364 = vld [vmem:[%s1363] sm:$0x1]
  %s1365 = scalar_lea.vmem %s5, 4
  %v1366 = vld [vmem:[%s1365] sm:$0x1]
  %s1367 = scalar_lea.vmem %s5, 5
  %v1368 = vld [vmem:[%s1367] sm:$0x1]
  %s1369 = scalar_lea.vmem %s1, 8
  %v1370 = vld [vmem:[%s1369] sm:$0xff]
  %v1371 = vld [vmem:[#allocation2 + $0x38] sm:$0xff]
  %v1373 = vsel %vm106, %v1370, 0
  %1375 = vmatpush.msra.mxu0 0.0
  %1376 = vmatpush.msra.mxu0 0.0
  %1377 = vmatpush.msra.mxu0 0.0
  %1378 = vmatpush.msra.mxu0 0.0
  %1379 = vmatpush.msra.mxu0 0.0
  %1380 = vmatpush.msra.mxu0 0.0
  %1381 = vmatpush.msra.mxu0 0.0
  %1382 = vmatpush.msra.mxu0 0.0
  %1383 = vmatpush.msra.mxu0 0.0
  %1384 = vmatpush.msra.mxu0 0.0
  %1385 = vmatpush.msra.mxu0 0.0
  %1386 = vmatpush.msra.mxu0 0.0
  %1387 = vmatpush.msra.mxu0 0.0
  %1388 = vmatpush.msra.mxu0 0.0
  %1389 = vmatpush.msra.mxu0 %v1356
  %1390 = vmatpush.msra.mxu0 %v1355
  %1391 = vmatmul.f32.gmra.mxu0 %v1373
  %v1392 = vpop.f32.mrf.mxu0
  %v1393 = vadd.f32 0.0, %v1392
  %1394 = vdwg.mxu0
  %v1395 = vadd.f32 %v1371, %v1393
  %v1397 = vperm.slane %v1364, 0
  %v1399 = vadd.f32 %v1395, %v1397
  %v1400 = vxor.u32 %v1399, 2147483648
  %v1401 = vmul.f32 %v1400, 1.442695
  %v1402 = vpow.pop %v1401
  %v1403 = vadd.f32 %v1402, 1.0
  %v1404 = vrcp.pop %v1403
  %v1405 = vmul.f32 %v1403, %v1404
  %v1406 = vsub.f32 1.0, %v1405
  %v1407 = vmul.f32 %v1404, %v1406
  %v1408 = vadd.f32 %v1404, %v1407
  %vm1409 = vweird.f32 %v1403
  %vm1410 = vweird.f32 %v1404
  %vm1411 = vmor %vm1409, %vm1410
  %v1412 = vsel %vm1411, %v1404, %v1408
  %v1413 = vand.u32 2147483647, %v1403
  %vm1414 = vcmp.eq.f32.partialorder %v1413, 8.507059e+37
  %v1415 = vand.u32 %v1403, 2147483648
  %v1416 = vor.u32 1.1754944e-38, %v1415
  %v1417 = vsel %vm1414, %v1416, %v1412
  %v1418 = vmul.f32 1.0, %v1417
  %v1419 = vld [vmem:[#allocation3 + $0x38] sm:$0xff]
  %1420 = vmatpush.msra.mxu0 0.0
  %1421 = vmatpush.msra.mxu0 0.0
  %1422 = vmatpush.msra.mxu0 0.0
  %1423 = vmatpush.msra.mxu0 0.0
  %1424 = vmatpush.msra.mxu0 0.0
  %1425 = vmatpush.msra.mxu0 0.0
  %1426 = vmatpush.msra.mxu0 0.0
  %1427 = vmatpush.msra.mxu0 0.0
  %1428 = vmatpush.msra.mxu0 0.0
  %1429 = vmatpush.msra.mxu0 0.0
  %1430 = vmatpush.msra.mxu0 0.0
  %1431 = vmatpush.msra.mxu0 0.0
  %1432 = vmatpush.msra.mxu0 0.0
  %1433 = vmatpush.msra.mxu0 0.0
  %1434 = vmatpush.msra.mxu0 %v1359
  %1435 = vmatpush.msra.mxu0 %v1358
  %1436 = vmatmul.f32.gmra.mxu0 %v1373
  %v1437 = vpop.f32.mrf.mxu0
  %v1438 = vadd.f32 0.0, %v1437
  %1439 = vdwg.mxu0
  %v1440 = vadd.f32 %v1419, %v1438
  %v1442 = vperm.slane %v1366, 0
  %v1444 = vadd.f32 %v1440, %v1442
  %v1445 = vxor.u32 %v1444, 2147483648
  %v1446 = vmul.f32 %v1445, 1.442695
  %v1447 = vpow.pop %v1446
  %v1448 = vadd.f32 %v1447, 1.0
  %v1449 = vrcp.pop %v1448
  %v1450 = vmul.f32 %v1448, %v1449
  %v1451 = vsub.f32 1.0, %v1450
  %v1452 = vmul.f32 %v1449, %v1451
  %v1453 = vadd.f32 %v1449, %v1452
  %vm1454 = vweird.f32 %v1448
  %vm1455 = vweird.f32 %v1449
  %vm1456 = vmor %vm1454, %vm1455
  %v1457 = vsel %vm1456, %v1449, %v1453
  %v1458 = vand.u32 2147483647, %v1448
  %vm1459 = vcmp.eq.f32.partialorder %v1458, 8.507059e+37
  %v1460 = vand.u32 %v1448, 2147483648
  %v1461 = vor.u32 1.1754944e-38, %v1460
  %v1462 = vsel %vm1459, %v1461, %v1457
  %v1463 = vmul.f32 1.0, %v1462
  %v1464 = vld [vmem:[#allocation4 + $0x38] sm:$0xff]
  %v1466 = vperm.slane %v1368, 0
  %1468 = vmatpush.msra.mxu0 0.0
  %1469 = vmatpush.msra.mxu0 0.0
  %1470 = vmatpush.msra.mxu0 0.0
  %1471 = vmatpush.msra.mxu0 0.0
  %1472 = vmatpush.msra.mxu0 0.0
  %1473 = vmatpush.msra.mxu0 0.0
  %1474 = vmatpush.msra.mxu0 0.0
  %1475 = vmatpush.msra.mxu0 0.0
  %1476 = vmatpush.msra.mxu0 0.0
  %1477 = vmatpush.msra.mxu0 0.0
  %1478 = vmatpush.msra.mxu0 0.0
  %1479 = vmatpush.msra.mxu0 0.0
  %1480 = vmatpush.msra.mxu0 0.0
  %1481 = vmatpush.msra.mxu0 0.0
  %1482 = vmatpush.msra.mxu0 %v1362
  %1483 = vmatpush.msra.mxu0 %v1361
  %1484 = vmatmul.f32.gmra.mxu0 %v1373
  %v1485 = vpop.f32.mrf.mxu0
  %v1486 = vadd.f32 %v1466, %v1485
  %1487 = vdwg.mxu0
  %v1488 = vmul.f32 %v1418, %v1486
  %v1489 = vadd.f32 %v1464, %v1488
  %v1490 = vtanh.pop %v1489
  %v1491 = vsub.f32 1.0, %v1463
  %v1492 = vmul.f32 %v1491, %v1490
  %v1493 = vmul.f32 %v1463, %v1370
  %v1494 = vadd.f32 %v1492, %v1493
  %v1495 = vld [vmem:[#allocation2 + $0x30] sm:$0xff]
  %v1497 = vsel %vm106, %v1494, 0
  %1499 = vmatpush.msra.mxu0 0.0
  %1500 = vmatpush.msra.mxu0 0.0
  %1501 = vmatpush.msra.mxu0 0.0
  %1502 = vmatpush.msra.mxu0 0.0
  %1503 = vmatpush.msra.mxu0 0.0
  %1504 = vmatpush.msra.mxu0 0.0
  %1505 = vmatpush.msra.mxu0 0.0
  %1506 = vmatpush.msra.mxu0 0.0
  %1507 = vmatpush.msra.mxu0 0.0
  %1508 = vmatpush.msra.mxu0 0.0
  %1509 = vmatpush.msra.mxu0 0.0
  %1510 = vmatpush.msra.mxu0 0.0
  %1511 = vmatpush.msra.mxu0 0.0
  %1512 = vmatpush.msra.mxu0 0.0
  %1513 = vmatpush.msra.mxu0 %v1356
  %1514 = vmatpush.msra.mxu0 %v1355
  %1515 = vmatmul.f32.gmra.mxu0 %v1497
  %v1516 = vpop.f32.mrf.mxu0
  %v1517 = vadd.f32 0.0, %v1516
  %1518 = vdwg.mxu0
  %v1519 = vadd.f32 %v1495, %v1517
  %v1520 = vadd.f32 %v1519, %v1397
  %v1521 = vxor.u32 %v1520, 2147483648
  %v1522 = vmul.f32 %v1521, 1.442695
  %v1523 = vpow.pop %v1522
  %v1524 = vadd.f32 %v1523, 1.0
  %v1525 = vrcp.pop %v1524
  %v1526 = vmul.f32 %v1524, %v1525
  %v1527 = vsub.f32 1.0, %v1526
  %v1528 = vmul.f32 %v1525, %v1527
  %v1529 = vadd.f32 %v1525, %v1528
  %vm1530 = vweird.f32 %v1524
  %vm1531 = vweird.f32 %v1525
  %vm1532 = vmor %vm1530, %vm1531
  %v1533 = vsel %vm1532, %v1525, %v1529
  %v1534 = vand.u32 2147483647, %v1524
  %vm1535 = vcmp.eq.f32.partialorder %v1534, 8.507059e+37
  %v1536 = vand.u32 %v1524, 2147483648
  %v1537 = vor.u32 1.1754944e-38, %v1536
  %v1538 = vsel %vm1535, %v1537, %v1533
  %v1539 = vmul.f32 1.0, %v1538
  %v1540 = vld [vmem:[#allocation3 + $0x30] sm:$0xff]
  %1541 = vmatpush.msra.mxu0 0.0
  %1542 = vmatpush.msra.mxu0 0.0
  %1543 = vmatpush.msra.mxu0 0.0
  %1544 = vmatpush.msra.mxu0 0.0
  %1545 = vmatpush.msra.mxu0 0.0
  %1546 = vmatpush.msra.mxu0 0.0
  %1547 = vmatpush.msra.mxu0 0.0
  %1548 = vmatpush.msra.mxu0 0.0
  %1549 = vmatpush.msra.mxu0 0.0
  %1550 = vmatpush.msra.mxu0 0.0
  %1551 = vmatpush.msra.mxu0 0.0
  %1552 = vmatpush.msra.mxu0 0.0
  %1553 = vmatpush.msra.mxu0 0.0
  %1554 = vmatpush.msra.mxu0 0.0
  %1555 = vmatpush.msra.mxu0 %v1359
  %1556 = vmatpush.msra.mxu0 %v1358
  %1557 = vmatmul.f32.gmra.mxu0 %v1497
  %v1558 = vpop.f32.mrf.mxu0
  %v1559 = vadd.f32 0.0, %v1558
  %1560 = vdwg.mxu0
  %v1561 = vadd.f32 %v1540, %v1559
  %v1562 = vadd.f32 %v1561, %v1442
  %v1563 = vxor.u32 %v1562, 2147483648
  %v1564 = vmul.f32 %v1563, 1.442695
  %v1565 = vpow.pop %v1564
  %v1566 = vadd.f32 %v1565, 1.0
  %v1567 = vrcp.pop %v1566
  %v1568 = vmul.f32 %v1566, %v1567
  %v1569 = vsub.f32 1.0, %v1568
  %v1570 = vmul.f32 %v1567, %v1569
  %v1571 = vadd.f32 %v1567, %v1570
  %vm1572 = vweird.f32 %v1566
  %vm1573 = vweird.f32 %v1567
  %vm1574 = vmor %vm1572, %vm1573
  %v1575 = vsel %vm1574, %v1567, %v1571
  %v1576 = vand.u32 2147483647, %v1566
  %vm1577 = vcmp.eq.f32.partialorder %v1576, 8.507059e+37
  %v1578 = vand.u32 %v1566, 2147483648
  %v1579 = vor.u32 1.1754944e-38, %v1578
  %v1580 = vsel %vm1577, %v1579, %v1575
  %v1581 = vmul.f32 1.0, %v1580
  %v1582 = vld [vmem:[#allocation4 + $0x30] sm:$0xff]
  %1583 = vmatpush.msra.mxu0 0.0
  %1584 = vmatpush.msra.mxu0 0.0
  %1585 = vmatpush.msra.mxu0 0.0
  %1586 = vmatpush.msra.mxu0 0.0
  %1587 = vmatpush.msra.mxu0 0.0
  %1588 = vmatpush.msra.mxu0 0.0
  %1589 = vmatpush.msra.mxu0 0.0
  %1590 = vmatpush.msra.mxu0 0.0
  %1591 = vmatpush.msra.mxu0 0.0
  %1592 = vmatpush.msra.mxu0 0.0
  %1593 = vmatpush.msra.mxu0 0.0
  %1594 = vmatpush.msra.mxu0 0.0
  %1595 = vmatpush.msra.mxu0 0.0
  %1596 = vmatpush.msra.mxu0 0.0
  %1597 = vmatpush.msra.mxu0 %v1362
  %1598 = vmatpush.msra.mxu0 %v1361
  %1599 = vmatmul.f32.gmra.mxu0 %v1497
  %v1600 = vpop.f32.mrf.mxu0
  %v1601 = vadd.f32 %v1466, %v1600
  %1602 = vdwg.mxu0
  %v1603 = vmul.f32 %v1539, %v1601
  %v1604 = vadd.f32 %v1582, %v1603
  %v1605 = vtanh.pop %v1604
  %v1606 = vsub.f32 1.0, %v1581
  %v1607 = vmul.f32 %v1606, %v1605
  %v1608 = vmul.f32 %v1581, %v1494
  %v1609 = vadd.f32 %v1607, %v1608
  %v1610 = vld [vmem:[#allocation2 + $0x28] sm:$0xff]
  %v1612 = vsel %vm106, %v1609, 0
  %1614 = vmatpush.msra.mxu0 0.0
  %1615 = vmatpush.msra.mxu0 0.0
  %1616 = vmatpush.msra.mxu0 0.0
  %1617 = vmatpush.msra.mxu0 0.0
  %1618 = vmatpush.msra.mxu0 0.0
  %1619 = vmatpush.msra.mxu0 0.0
  %1620 = vmatpush.msra.mxu0 0.0
  %1621 = vmatpush.msra.mxu0 0.0
  %1622 = vmatpush.msra.mxu0 0.0
  %1623 = vmatpush.msra.mxu0 0.0
  %1624 = vmatpush.msra.mxu0 0.0
  %1625 = vmatpush.msra.mxu0 0.0
  %1626 = vmatpush.msra.mxu0 0.0
  %1627 = vmatpush.msra.mxu0 0.0
  %1628 = vmatpush.msra.mxu0 %v1356
  %1629 = vmatpush.msra.mxu0 %v1355
  %1630 = vmatmul.f32.gmra.mxu0 %v1612
  %v1631 = vpop.f32.mrf.mxu0
  %v1632 = vadd.f32 0.0, %v1631
  %1633 = vdwg.mxu0
  %v1634 = vadd.f32 %v1610, %v1632
  %v1635 = vadd.f32 %v1634, %v1397
  %v1636 = vxor.u32 %v1635, 2147483648
  %v1637 = vmul.f32 %v1636, 1.442695
  %v1638 = vpow.pop %v1637
  %v1639 = vadd.f32 %v1638, 1.0
  %v1640 = vrcp.pop %v1639
  %v1641 = vmul.f32 %v1639, %v1640
  %v1642 = vsub.f32 1.0, %v1641
  %v1643 = vmul.f32 %v1640, %v1642
  %v1644 = vadd.f32 %v1640, %v1643
  %vm1645 = vweird.f32 %v1639
  %vm1646 = vweird.f32 %v1640
  %vm1647 = vmor %vm1645, %vm1646
  %v1648 = vsel %vm1647, %v1640, %v1644
  %v1649 = vand.u32 2147483647, %v1639
  %vm1650 = vcmp.eq.f32.partialorder %v1649, 8.507059e+37
  %v1651 = vand.u32 %v1639, 2147483648
  %v1652 = vor.u32 1.1754944e-38, %v1651
  %v1653 = vsel %vm1650, %v1652, %v1648
  %v1654 = vmul.f32 1.0, %v1653
  %v1655 = vld [vmem:[#allocation3 + $0x28] sm:$0xff]
  %1656 = vmatpush.msra.mxu0 0.0
  %1657 = vmatpush.msra.mxu0 0.0
  %1658 = vmatpush.msra.mxu0 0.0
  %1659 = vmatpush.msra.mxu0 0.0
  %1660 = vmatpush.msra.mxu0 0.0
  %1661 = vmatpush.msra.mxu0 0.0
  %1662 = vmatpush.msra.mxu0 0.0
  %1663 = vmatpush.msra.mxu0 0.0
  %1664 = vmatpush.msra.mxu0 0.0
  %1665 = vmatpush.msra.mxu0 0.0
  %1666 = vmatpush.msra.mxu0 0.0
  %1667 = vmatpush.msra.mxu0 0.0
  %1668 = vmatpush.msra.mxu0 0.0
  %1669 = vmatpush.msra.mxu0 0.0
  %1670 = vmatpush.msra.mxu0 %v1359
  %1671 = vmatpush.msra.mxu0 %v1358
  %1672 = vmatmul.f32.gmra.mxu0 %v1612
  %v1673 = vpop.f32.mrf.mxu0
  %v1674 = vadd.f32 0.0, %v1673
  %1675 = vdwg.mxu0
  %v1676 = vadd.f32 %v1655, %v1674
  %v1677 = vadd.f32 %v1676, %v1442
  %v1678 = vxor.u32 %v1677, 2147483648
  %v1679 = vmul.f32 %v1678, 1.442695
  %v1680 = vpow.pop %v1679
  %v1681 = vadd.f32 %v1680, 1.0
  %v1682 = vrcp.pop %v1681
  %v1683 = vmul.f32 %v1681, %v1682
  %v1684 = vsub.f32 1.0, %v1683
  %v1685 = vmul.f32 %v1682, %v1684
  %v1686 = vadd.f32 %v1682, %v1685
  %vm1687 = vweird.f32 %v1681
  %vm1688 = vweird.f32 %v1682
  %vm1689 = vmor %vm1687, %vm1688
  %v1690 = vsel %vm1689, %v1682, %v1686
  %v1691 = vand.u32 2147483647, %v1681
  %vm1692 = vcmp.eq.f32.partialorder %v1691, 8.507059e+37
  %v1693 = vand.u32 %v1681, 2147483648
  %v1694 = vor.u32 1.1754944e-38, %v1693
  %v1695 = vsel %vm1692, %v1694, %v1690
  %v1696 = vmul.f32 1.0, %v1695
  %v1697 = vld [vmem:[#allocation4 + $0x28] sm:$0xff]
  %1698 = vmatpush.msra.mxu0 0.0
  %1699 = vmatpush.msra.mxu0 0.0
  %1700 = vmatpush.msra.mxu0 0.0
  %1701 = vmatpush.msra.mxu0 0.0
  %1702 = vmatpush.msra.mxu0 0.0
  %1703 = vmatpush.msra.mxu0 0.0
  %1704 = vmatpush.msra.mxu0 0.0
  %1705 = vmatpush.msra.mxu0 0.0
  %1706 = vmatpush.msra.mxu0 0.0
  %1707 = vmatpush.msra.mxu0 0.0
  %1708 = vmatpush.msra.mxu0 0.0
  %1709 = vmatpush.msra.mxu0 0.0
  %1710 = vmatpush.msra.mxu0 0.0
  %1711 = vmatpush.msra.mxu0 0.0
  %1712 = vmatpush.msra.mxu0 %v1362
  %1713 = vmatpush.msra.mxu0 %v1361
  %1714 = vmatmul.f32.gmra.mxu0 %v1612
  %v1715 = vpop.f32.mrf.mxu0
  %v1716 = vadd.f32 %v1466, %v1715
  %1717 = vdwg.mxu0
  %v1718 = vmul.f32 %v1654, %v1716
  %v1719 = vadd.f32 %v1697, %v1718
  %v1720 = vtanh.pop %v1719
  %v1721 = vsub.f32 1.0, %v1696
  %v1722 = vmul.f32 %v1721, %v1720
  %v1723 = vmul.f32 %v1696, %v1609
  %v1724 = vadd.f32 %v1722, %v1723
  %v1725 = vld [vmem:[#allocation2 + $0x20] sm:$0xff]
  %v1727 = vsel %vm106, %v1724, 0
  %1729 = vmatpush.msra.mxu0 0.0
  %1730 = vmatpush.msra.mxu0 0.0
  %1731 = vmatpush.msra.mxu0 0.0
  %1732 = vmatpush.msra.mxu0 0.0
  %1733 = vmatpush.msra.mxu0 0.0
  %1734 = vmatpush.msra.mxu0 0.0
  %1735 = vmatpush.msra.mxu0 0.0
  %1736 = vmatpush.msra.mxu0 0.0
  %1737 = vmatpush.msra.mxu0 0.0
  %1738 = vmatpush.msra.mxu0 0.0
  %1739 = vmatpush.msra.mxu0 0.0
  %1740 = vmatpush.msra.mxu0 0.0
  %1741 = vmatpush.msra.mxu0 0.0
  %1742 = vmatpush.msra.mxu0 0.0
  %1743 = vmatpush.msra.mxu0 %v1356
  %1744 = vmatpush.msra.mxu0 %v1355
  %1745 = vmatmul.f32.gmra.mxu0 %v1727
  %v1746 = vpop.f32.mrf.mxu0
  %v1747 = vadd.f32 0.0, %v1746
  %1748 = vdwg.mxu0
  %v1749 = vadd.f32 %v1725, %v1747
  %v1750 = vadd.f32 %v1749, %v1397
  %v1751 = vxor.u32 %v1750, 2147483648
  %v1752 = vmul.f32 %v1751, 1.442695
  %v1753 = vpow.pop %v1752
  %v1754 = vadd.f32 %v1753, 1.0
  %v1755 = vrcp.pop %v1754
  %v1756 = vmul.f32 %v1754, %v1755
  %v1757 = vsub.f32 1.0, %v1756
  %v1758 = vmul.f32 %v1755, %v1757
  %v1759 = vadd.f32 %v1755, %v1758
  %vm1760 = vweird.f32 %v1754
  %vm1761 = vweird.f32 %v1755
  %vm1762 = vmor %vm1760, %vm1761
  %v1763 = vsel %vm1762, %v1755, %v1759
  %v1764 = vand.u32 2147483647, %v1754
  %vm1765 = vcmp.eq.f32.partialorder %v1764, 8.507059e+37
  %v1766 = vand.u32 %v1754, 2147483648
  %v1767 = vor.u32 1.1754944e-38, %v1766
  %v1768 = vsel %vm1765, %v1767, %v1763
  %v1769 = vmul.f32 1.0, %v1768
  %v1770 = vld [vmem:[#allocation3 + $0x20] sm:$0xff]
  %1771 = vmatpush.msra.mxu0 0.0
  %1772 = vmatpush.msra.mxu0 0.0
  %1773 = vmatpush.msra.mxu0 0.0
  %1774 = vmatpush.msra.mxu0 0.0
  %1775 = vmatpush.msra.mxu0 0.0
  %1776 = vmatpush.msra.mxu0 0.0
  %1777 = vmatpush.msra.mxu0 0.0
  %1778 = vmatpush.msra.mxu0 0.0
  %1779 = vmatpush.msra.mxu0 0.0
  %1780 = vmatpush.msra.mxu0 0.0
  %1781 = vmatpush.msra.mxu0 0.0
  %1782 = vmatpush.msra.mxu0 0.0
  %1783 = vmatpush.msra.mxu0 0.0
  %1784 = vmatpush.msra.mxu0 0.0
  %1785 = vmatpush.msra.mxu0 %v1359
  %1786 = vmatpush.msra.mxu0 %v1358
  %1787 = vmatmul.f32.gmra.mxu0 %v1727
  %v1788 = vpop.f32.mrf.mxu0
  %v1789 = vadd.f32 0.0, %v1788
  %1790 = vdwg.mxu0
  %v1791 = vadd.f32 %v1770, %v1789
  %v1792 = vadd.f32 %v1791, %v1442
  %v1793 = vxor.u32 %v1792, 2147483648
  %v1794 = vmul.f32 %v1793, 1.442695
  %v1795 = vpow.pop %v1794
  %v1796 = vadd.f32 %v1795, 1.0
  %v1797 = vrcp.pop %v1796
  %v1798 = vmul.f32 %v1796, %v1797
  %v1799 = vsub.f32 1.0, %v1798
  %v1800 = vmul.f32 %v1797, %v1799
  %v1801 = vadd.f32 %v1797, %v1800
  %vm1802 = vweird.f32 %v1796
  %vm1803 = vweird.f32 %v1797
  %vm1804 = vmor %vm1802, %vm1803
  %v1805 = vsel %vm1804, %v1797, %v1801
  %v1806 = vand.u32 2147483647, %v1796
  %vm1807 = vcmp.eq.f32.partialorder %v1806, 8.507059e+37
  %v1808 = vand.u32 %v1796, 2147483648
  %v1809 = vor.u32 1.1754944e-38, %v1808
  %v1810 = vsel %vm1807, %v1809, %v1805
  %v1811 = vmul.f32 1.0, %v1810
  %v1812 = vld [vmem:[#allocation4 + $0x20] sm:$0xff]
  %1813 = vmatpush.msra.mxu0 0.0
  %1814 = vmatpush.msra.mxu0 0.0
  %1815 = vmatpush.msra.mxu0 0.0
  %1816 = vmatpush.msra.mxu0 0.0
  %1817 = vmatpush.msra.mxu0 0.0
  %1818 = vmatpush.msra.mxu0 0.0
  %1819 = vmatpush.msra.mxu0 0.0
  %1820 = vmatpush.msra.mxu0 0.0
  %1821 = vmatpush.msra.mxu0 0.0
  %1822 = vmatpush.msra.mxu0 0.0
  %1823 = vmatpush.msra.mxu0 0.0
  %1824 = vmatpush.msra.mxu0 0.0
  %1825 = vmatpush.msra.mxu0 0.0
  %1826 = vmatpush.msra.mxu0 0.0
  %1827 = vmatpush.msra.mxu0 %v1362
  %1828 = vmatpush.msra.mxu0 %v1361
  %1829 = vmatmul.f32.gmra.mxu0 %v1727
  %v1830 = vpop.f32.mrf.mxu0
  %v1831 = vadd.f32 %v1466, %v1830
  %1832 = vdwg.mxu0
  %v1833 = vmul.f32 %v1769, %v1831
  %v1834 = vadd.f32 %v1812, %v1833
  %v1835 = vtanh.pop %v1834
  %v1836 = vsub.f32 1.0, %v1811
  %v1837 = vmul.f32 %v1836, %v1835
  %v1838 = vmul.f32 %v1811, %v1724
  %v1839 = vadd.f32 %v1837, %v1838
  %v1840 = vld [vmem:[#allocation2 + $0x18] sm:$0xff]
  %v1842 = vsel %vm106, %v1839, 0
  %1844 = vmatpush.msra.mxu0 0.0
  %1845 = vmatpush.msra.mxu0 0.0
  %1846 = vmatpush.msra.mxu0 0.0
  %1847 = vmatpush.msra.mxu0 0.0
  %1848 = vmatpush.msra.mxu0 0.0
  %1849 = vmatpush.msra.mxu0 0.0
  %1850 = vmatpush.msra.mxu0 0.0
  %1851 = vmatpush.msra.mxu0 0.0
  %1852 = vmatpush.msra.mxu0 0.0
  %1853 = vmatpush.msra.mxu0 0.0
  %1854 = vmatpush.msra.mxu0 0.0
  %1855 = vmatpush.msra.mxu0 0.0
  %1856 = vmatpush.msra.mxu0 0.0
  %1857 = vmatpush.msra.mxu0 0.0
  %1858 = vmatpush.msra.mxu0 %v1356
  %1859 = vmatpush.msra.mxu0 %v1355
  %1860 = vmatmul.f32.gmra.mxu0 %v1842
  %v1861 = vpop.f32.mrf.mxu0
  %v1862 = vadd.f32 0.0, %v1861
  %1863 = vdwg.mxu0
  %v1864 = vadd.f32 %v1840, %v1862
  %v1865 = vadd.f32 %v1864, %v1397
  %v1866 = vxor.u32 %v1865, 2147483648
  %v1867 = vmul.f32 %v1866, 1.442695
  %v1868 = vpow.pop %v1867
  %v1869 = vadd.f32 %v1868, 1.0
  %v1870 = vrcp.pop %v1869
  %v1871 = vmul.f32 %v1869, %v1870
  %v1872 = vsub.f32 1.0, %v1871
  %v1873 = vmul.f32 %v1870, %v1872
  %v1874 = vadd.f32 %v1870, %v1873
  %vm1875 = vweird.f32 %v1869
  %vm1876 = vweird.f32 %v1870
  %vm1877 = vmor %vm1875, %vm1876
  %v1878 = vsel %vm1877, %v1870, %v1874
  %v1879 = vand.u32 2147483647, %v1869
  %vm1880 = vcmp.eq.f32.partialorder %v1879, 8.507059e+37
  %v1881 = vand.u32 %v1869, 2147483648
  %v1882 = vor.u32 1.1754944e-38, %v1881
  %v1883 = vsel %vm1880, %v1882, %v1878
  %v1884 = vmul.f32 1.0, %v1883
  %v1885 = vld [vmem:[#allocation3 + $0x18] sm:$0xff]
  %1886 = vmatpush.msra.mxu0 0.0
  %1887 = vmatpush.msra.mxu0 0.0
  %1888 = vmatpush.msra.mxu0 0.0
  %1889 = vmatpush.msra.mxu0 0.0
  %1890 = vmatpush.msra.mxu0 0.0
  %1891 = vmatpush.msra.mxu0 0.0
  %1892 = vmatpush.msra.mxu0 0.0
  %1893 = vmatpush.msra.mxu0 0.0
  %1894 = vmatpush.msra.mxu0 0.0
  %1895 = vmatpush.msra.mxu0 0.0
  %1896 = vmatpush.msra.mxu0 0.0
  %1897 = vmatpush.msra.mxu0 0.0
  %1898 = vmatpush.msra.mxu0 0.0
  %1899 = vmatpush.msra.mxu0 0.0
  %1900 = vmatpush.msra.mxu0 %v1359
  %1901 = vmatpush.msra.mxu0 %v1358
  %1902 = vmatmul.f32.gmra.mxu0 %v1842
  %v1903 = vpop.f32.mrf.mxu0
  %v1904 = vadd.f32 0.0, %v1903
  %1905 = vdwg.mxu0
  %v1906 = vadd.f32 %v1885, %v1904
  %v1907 = vadd.f32 %v1906, %v1442
  %v1908 = vxor.u32 %v1907, 2147483648
  %v1909 = vmul.f32 %v1908, 1.442695
  %v1910 = vpow.pop %v1909
  %v1911 = vadd.f32 %v1910, 1.0
  %v1912 = vrcp.pop %v1911
  %v1913 = vmul.f32 %v1911, %v1912
  %v1914 = vsub.f32 1.0, %v1913
  %v1915 = vmul.f32 %v1912, %v1914
  %v1916 = vadd.f32 %v1912, %v1915
  %vm1917 = vweird.f32 %v1911
  %vm1918 = vweird.f32 %v1912
  %vm1919 = vmor %vm1917, %vm1918
  %v1920 = vsel %vm1919, %v1912, %v1916
  %v1921 = vand.u32 2147483647, %v1911
  %vm1922 = vcmp.eq.f32.partialorder %v1921, 8.507059e+37
  %v1923 = vand.u32 %v1911, 2147483648
  %v1924 = vor.u32 1.1754944e-38, %v1923
  %v1925 = vsel %vm1922, %v1924, %v1920
  %v1926 = vmul.f32 1.0, %v1925
  %v1927 = vld [vmem:[#allocation4 + $0x18] sm:$0xff]
  %1928 = vmatpush.msra.mxu0 0.0
  %1929 = vmatpush.msra.mxu0 0.0
  %1930 = vmatpush.msra.mxu0 0.0
  %1931 = vmatpush.msra.mxu0 0.0
  %1932 = vmatpush.msra.mxu0 0.0
  %1933 = vmatpush.msra.mxu0 0.0
  %1934 = vmatpush.msra.mxu0 0.0
  %1935 = vmatpush.msra.mxu0 0.0
  %1936 = vmatpush.msra.mxu0 0.0
  %1937 = vmatpush.msra.mxu0 0.0
  %1938 = vmatpush.msra.mxu0 0.0
  %1939 = vmatpush.msra.mxu0 0.0
  %1940 = vmatpush.msra.mxu0 0.0
  %1941 = vmatpush.msra.mxu0 0.0
  %1942 = vmatpush.msra.mxu0 %v1362
  %1943 = vmatpush.msra.mxu0 %v1361
  %1944 = vmatmul.f32.gmra.mxu0 %v1842
  %v1945 = vpop.f32.mrf.mxu0
  %v1946 = vadd.f32 %v1466, %v1945
  %1947 = vdwg.mxu0
  %v1948 = vmul.f32 %v1884, %v1946
  %v1949 = vadd.f32 %v1927, %v1948
  %v1950 = vtanh.pop %v1949
  %v1951 = vsub.f32 1.0, %v1926
  %v1952 = vmul.f32 %v1951, %v1950
  %v1953 = vmul.f32 %v1926, %v1839
  %v1954 = vadd.f32 %v1952, %v1953
  %v1955 = vld [vmem:[#allocation2 + $0x10] sm:$0xff]
  %v1957 = vsel %vm106, %v1954, 0
  %1959 = vmatpush.msra.mxu0 0.0
  %1960 = vmatpush.msra.mxu0 0.0
  %1961 = vmatpush.msra.mxu0 0.0
  %1962 = vmatpush.msra.mxu0 0.0
  %1963 = vmatpush.msra.mxu0 0.0
  %1964 = vmatpush.msra.mxu0 0.0
  %1965 = vmatpush.msra.mxu0 0.0
  %1966 = vmatpush.msra.mxu0 0.0
  %1967 = vmatpush.msra.mxu0 0.0
  %1968 = vmatpush.msra.mxu0 0.0
  %1969 = vmatpush.msra.mxu0 0.0
  %1970 = vmatpush.msra.mxu0 0.0
  %1971 = vmatpush.msra.mxu0 0.0
  %1972 = vmatpush.msra.mxu0 0.0
  %1973 = vmatpush.msra.mxu0 %v1356
  %1974 = vmatpush.msra.mxu0 %v1355
  %1975 = vmatmul.f32.gmra.mxu0 %v1957
  %v1976 = vpop.f32.mrf.mxu0
  %v1977 = vadd.f32 0.0, %v1976
  %1978 = vdwg.mxu0
  %v1979 = vadd.f32 %v1955, %v1977
  %v1980 = vadd.f32 %v1979, %v1397
  %v1981 = vxor.u32 %v1980, 2147483648
  %v1982 = vmul.f32 %v1981, 1.442695
  %v1983 = vpow.pop %v1982
  %v1984 = vadd.f32 %v1983, 1.0
  %v1985 = vrcp.pop %v1984
  %v1986 = vmul.f32 %v1984, %v1985
  %v1987 = vsub.f32 1.0, %v1986
  %v1988 = vmul.f32 %v1985, %v1987
  %v1989 = vadd.f32 %v1985, %v1988
  %vm1990 = vweird.f32 %v1984
  %vm1991 = vweird.f32 %v1985
  %vm1992 = vmor %vm1990, %vm1991
  %v1993 = vsel %vm1992, %v1985, %v1989
  %v1994 = vand.u32 2147483647, %v1984
  %vm1995 = vcmp.eq.f32.partialorder %v1994, 8.507059e+37
  %v1996 = vand.u32 %v1984, 2147483648
  %v1997 = vor.u32 1.1754944e-38, %v1996
  %v1998 = vsel %vm1995, %v1997, %v1993
  %v1999 = vmul.f32 1.0, %v1998
  %v2000 = vld [vmem:[#allocation3 + $0x10] sm:$0xff]
  %2001 = vmatpush.msra.mxu0 0.0
  %2002 = vmatpush.msra.mxu0 0.0
  %2003 = vmatpush.msra.mxu0 0.0
  %2004 = vmatpush.msra.mxu0 0.0
  %2005 = vmatpush.msra.mxu0 0.0
  %2006 = vmatpush.msra.mxu0 0.0
  %2007 = vmatpush.msra.mxu0 0.0
  %2008 = vmatpush.msra.mxu0 0.0
  %2009 = vmatpush.msra.mxu0 0.0
  %2010 = vmatpush.msra.mxu0 0.0
  %2011 = vmatpush.msra.mxu0 0.0
  %2012 = vmatpush.msra.mxu0 0.0
  %2013 = vmatpush.msra.mxu0 0.0
  %2014 = vmatpush.msra.mxu0 0.0
  %2015 = vmatpush.msra.mxu0 %v1359
  %2016 = vmatpush.msra.mxu0 %v1358
  %2017 = vmatmul.f32.gmra.mxu0 %v1957
  %v2018 = vpop.f32.mrf.mxu0
  %v2019 = vadd.f32 0.0, %v2018
  %2020 = vdwg.mxu0
  %v2021 = vadd.f32 %v2000, %v2019
  %v2022 = vadd.f32 %v2021, %v1442
  %v2023 = vxor.u32 %v2022, 2147483648
  %v2024 = vmul.f32 %v2023, 1.442695
  %v2025 = vpow.pop %v2024
  %v2026 = vadd.f32 %v2025, 1.0
  %v2027 = vrcp.pop %v2026
  %v2028 = vmul.f32 %v2026, %v2027
  %v2029 = vsub.f32 1.0, %v2028
  %v2030 = vmul.f32 %v2027, %v2029
  %v2031 = vadd.f32 %v2027, %v2030
  %vm2032 = vweird.f32 %v2026
  %vm2033 = vweird.f32 %v2027
  %vm2034 = vmor %vm2032, %vm2033
  %v2035 = vsel %vm2034, %v2027, %v2031
  %v2036 = vand.u32 2147483647, %v2026
  %vm2037 = vcmp.eq.f32.partialorder %v2036, 8.507059e+37
  %v2038 = vand.u32 %v2026, 2147483648
  %v2039 = vor.u32 1.1754944e-38, %v2038
  %v2040 = vsel %vm2037, %v2039, %v2035
  %v2041 = vmul.f32 1.0, %v2040
  %v2042 = vld [vmem:[#allocation4 + $0x10] sm:$0xff]
  %2043 = vmatpush.msra.mxu0 0.0
  %2044 = vmatpush.msra.mxu0 0.0
  %2045 = vmatpush.msra.mxu0 0.0
  %2046 = vmatpush.msra.mxu0 0.0
  %2047 = vmatpush.msra.mxu0 0.0
  %2048 = vmatpush.msra.mxu0 0.0
  %2049 = vmatpush.msra.mxu0 0.0
  %2050 = vmatpush.msra.mxu0 0.0
  %2051 = vmatpush.msra.mxu0 0.0
  %2052 = vmatpush.msra.mxu0 0.0
  %2053 = vmatpush.msra.mxu0 0.0
  %2054 = vmatpush.msra.mxu0 0.0
  %2055 = vmatpush.msra.mxu0 0.0
  %2056 = vmatpush.msra.mxu0 0.0
  %2057 = vmatpush.msra.mxu0 %v1362
  %2058 = vmatpush.msra.mxu0 %v1361
  %2059 = vmatmul.f32.gmra.mxu0 %v1957
  %v2060 = vpop.f32.mrf.mxu0
  %v2061 = vadd.f32 %v1466, %v2060
  %2062 = vdwg.mxu0
  %v2063 = vmul.f32 %v1999, %v2061
  %v2064 = vadd.f32 %v2042, %v2063
  %v2065 = vtanh.pop %v2064
  %v2066 = vsub.f32 1.0, %v2041
  %v2067 = vmul.f32 %v2066, %v2065
  %v2068 = vmul.f32 %v2041, %v1954
  %v2069 = vadd.f32 %v2067, %v2068
  %v2070 = vld [vmem:[#allocation2 + $0x8] sm:$0xff]
  %v2072 = vsel %vm106, %v2069, 0
  %2074 = vmatpush.msra.mxu0 0.0
  %2075 = vmatpush.msra.mxu0 0.0
  %2076 = vmatpush.msra.mxu0 0.0
  %2077 = vmatpush.msra.mxu0 0.0
  %2078 = vmatpush.msra.mxu0 0.0
  %2079 = vmatpush.msra.mxu0 0.0
  %2080 = vmatpush.msra.mxu0 0.0
  %2081 = vmatpush.msra.mxu0 0.0
  %2082 = vmatpush.msra.mxu0 0.0
  %2083 = vmatpush.msra.mxu0 0.0
  %2084 = vmatpush.msra.mxu0 0.0
  %2085 = vmatpush.msra.mxu0 0.0
  %2086 = vmatpush.msra.mxu0 0.0
  %2087 = vmatpush.msra.mxu0 0.0
  %2088 = vmatpush.msra.mxu0 %v1356
  %2089 = vmatpush.msra.mxu0 %v1355
  %2090 = vmatmul.f32.gmra.mxu0 %v2072
  %v2091 = vpop.f32.mrf.mxu0
  %v2092 = vadd.f32 0.0, %v2091
  %2093 = vdwg.mxu0
  %v2094 = vadd.f32 %v2070, %v2092
  %v2095 = vadd.f32 %v2094, %v1397
  %v2096 = vxor.u32 %v2095, 2147483648
  %v2097 = vmul.f32 %v2096, 1.442695
  %v2098 = vpow.pop %v2097
  %v2099 = vadd.f32 %v2098, 1.0
  %v2100 = vrcp.pop %v2099
  %v2101 = vmul.f32 %v2099, %v2100
  %v2102 = vsub.f32 1.0, %v2101
  %v2103 = vmul.f32 %v2100, %v2102
  %v2104 = vadd.f32 %v2100, %v2103
  %vm2105 = vweird.f32 %v2099
  %vm2106 = vweird.f32 %v2100
  %vm2107 = vmor %vm2105, %vm2106
  %v2108 = vsel %vm2107, %v2100, %v2104
  %v2109 = vand.u32 2147483647, %v2099
  %vm2110 = vcmp.eq.f32.partialorder %v2109, 8.507059e+37
  %v2111 = vand.u32 %v2099, 2147483648
  %v2112 = vor.u32 1.1754944e-38, %v2111
  %v2113 = vsel %vm2110, %v2112, %v2108
  %v2114 = vmul.f32 1.0, %v2113
  %v2115 = vld [vmem:[#allocation3 + $0x8] sm:$0xff]
  %2116 = vmatpush.msra.mxu0 0.0
  %2117 = vmatpush.msra.mxu0 0.0
  %2118 = vmatpush.msra.mxu0 0.0
  %2119 = vmatpush.msra.mxu0 0.0
  %2120 = vmatpush.msra.mxu0 0.0
  %2121 = vmatpush.msra.mxu0 0.0
  %2122 = vmatpush.msra.mxu0 0.0
  %2123 = vmatpush.msra.mxu0 0.0
  %2124 = vmatpush.msra.mxu0 0.0
  %2125 = vmatpush.msra.mxu0 0.0
  %2126 = vmatpush.msra.mxu0 0.0
  %2127 = vmatpush.msra.mxu0 0.0
  %2128 = vmatpush.msra.mxu0 0.0
  %2129 = vmatpush.msra.mxu0 0.0
  %2130 = vmatpush.msra.mxu0 %v1359
  %2131 = vmatpush.msra.mxu0 %v1358
  %2132 = vmatmul.f32.gmra.mxu0 %v2072
  %v2133 = vpop.f32.mrf.mxu0
  %v2134 = vadd.f32 0.0, %v2133
  %2135 = vdwg.mxu0
  %v2136 = vadd.f32 %v2115, %v2134
  %v2137 = vadd.f32 %v2136, %v1442
  %v2138 = vxor.u32 %v2137, 2147483648
  %v2139 = vmul.f32 %v2138, 1.442695
  %v2140 = vpow.pop %v2139
  %v2141 = vadd.f32 %v2140, 1.0
  %v2142 = vrcp.pop %v2141
  %v2143 = vmul.f32 %v2141, %v2142
  %v2144 = vsub.f32 1.0, %v2143
  %v2145 = vmul.f32 %v2142, %v2144
  %v2146 = vadd.f32 %v2142, %v2145
  %vm2147 = vweird.f32 %v2141
  %vm2148 = vweird.f32 %v2142
  %vm2149 = vmor %vm2147, %vm2148
  %v2150 = vsel %vm2149, %v2142, %v2146
  %v2151 = vand.u32 2147483647, %v2141
  %vm2152 = vcmp.eq.f32.partialorder %v2151, 8.507059e+37
  %v2153 = vand.u32 %v2141, 2147483648
  %v2154 = vor.u32 1.1754944e-38, %v2153
  %v2155 = vsel %vm2152, %v2154, %v2150
  %v2156 = vmul.f32 1.0, %v2155
  %v2157 = vld [vmem:[#allocation4 + $0x8] sm:$0xff]
  %2158 = vmatpush.msra.mxu0 0.0
  %2159 = vmatpush.msra.mxu0 0.0
  %2160 = vmatpush.msra.mxu0 0.0
  %2161 = vmatpush.msra.mxu0 0.0
  %2162 = vmatpush.msra.mxu0 0.0
  %2163 = vmatpush.msra.mxu0 0.0
  %2164 = vmatpush.msra.mxu0 0.0
  %2165 = vmatpush.msra.mxu0 0.0
  %2166 = vmatpush.msra.mxu0 0.0
  %2167 = vmatpush.msra.mxu0 0.0
  %2168 = vmatpush.msra.mxu0 0.0
  %2169 = vmatpush.msra.mxu0 0.0
  %2170 = vmatpush.msra.mxu0 0.0
  %2171 = vmatpush.msra.mxu0 0.0
  %2172 = vmatpush.msra.mxu0 %v1362
  %2173 = vmatpush.msra.mxu0 %v1361
  %2174 = vmatmul.f32.gmra.mxu0 %v2072
  %v2175 = vpop.f32.mrf.mxu0
  %v2176 = vadd.f32 %v1466, %v2175
  %2177 = vdwg.mxu0
  %v2178 = vmul.f32 %v2114, %v2176
  %v2179 = vadd.f32 %v2157, %v2178
  %v2180 = vtanh.pop %v2179
  %v2181 = vsub.f32 1.0, %v2156
  %v2182 = vmul.f32 %v2181, %v2180
  %v2183 = vmul.f32 %v2156, %v2069
  %v2184 = vadd.f32 %v2182, %v2183
  %v2185 = vld [vmem:[#allocation2] sm:$0xff]
  %v2187 = vsel %vm106, %v2184, 0
  %2189 = vmatpush.msra.mxu0 0.0
  %2190 = vmatpush.msra.mxu0 0.0
  %2191 = vmatpush.msra.mxu0 0.0
  %2192 = vmatpush.msra.mxu0 0.0
  %2193 = vmatpush.msra.mxu0 0.0
  %2194 = vmatpush.msra.mxu0 0.0
  %2195 = vmatpush.msra.mxu0 0.0
  %2196 = vmatpush.msra.mxu0 0.0
  %2197 = vmatpush.msra.mxu0 0.0
  %2198 = vmatpush.msra.mxu0 0.0
  %2199 = vmatpush.msra.mxu0 0.0
  %2200 = vmatpush.msra.mxu0 0.0
  %2201 = vmatpush.msra.mxu0 0.0
  %2202 = vmatpush.msra.mxu0 0.0
  %2203 = vmatpush.msra.mxu0 %v1356
  %2204 = vmatpush.msra.mxu0 %v1355
  %2205 = vmatmul.f32.gmra.mxu0 %v2187
  %v2206 = vpop.f32.mrf.mxu0
  %v2207 = vadd.f32 0.0, %v2206
  %2208 = vdwg.mxu0
  %v2209 = vadd.f32 %v2185, %v2207
  %v2210 = vadd.f32 %v2209, %v1397
  %v2211 = vxor.u32 %v2210, 2147483648
  %v2212 = vmul.f32 %v2211, 1.442695
  %v2213 = vpow.pop %v2212
  %v2214 = vadd.f32 %v2213, 1.0
  %v2215 = vrcp.pop %v2214
  %v2216 = vmul.f32 %v2214, %v2215
  %v2217 = vsub.f32 1.0, %v2216
  %v2218 = vmul.f32 %v2215, %v2217
  %v2219 = vadd.f32 %v2215, %v2218
  %vm2220 = vweird.f32 %v2214
  %vm2221 = vweird.f32 %v2215
  %vm2222 = vmor %vm2220, %vm2221
  %v2223 = vsel %vm2222, %v2215, %v2219
  %v2224 = vand.u32 2147483647, %v2214
  %vm2225 = vcmp.eq.f32.partialorder %v2224, 8.507059e+37
  %v2226 = vand.u32 %v2214, 2147483648
  %v2227 = vor.u32 1.1754944e-38, %v2226
  %v2228 = vsel %vm2225, %v2227, %v2223
  %v2229 = vmul.f32 1.0, %v2228
  %v2230 = vld [vmem:[#allocation3] sm:$0xff]
  %2231 = vmatpush.msra.mxu0 0.0
  %2232 = vmatpush.msra.mxu0 0.0
  %2233 = vmatpush.msra.mxu0 0.0
  %2234 = vmatpush.msra.mxu0 0.0
  %2235 = vmatpush.msra.mxu0 0.0
  %2236 = vmatpush.msra.mxu0 0.0
  %2237 = vmatpush.msra.mxu0 0.0
  %2238 = vmatpush.msra.mxu0 0.0
  %2239 = vmatpush.msra.mxu0 0.0
  %2240 = vmatpush.msra.mxu0 0.0
  %2241 = vmatpush.msra.mxu0 0.0
  %2242 = vmatpush.msra.mxu0 0.0
  %2243 = vmatpush.msra.mxu0 0.0
  %2244 = vmatpush.msra.mxu0 0.0
  %2245 = vmatpush.msra.mxu0 %v1359
  %2246 = vmatpush.msra.mxu0 %v1358
  %2247 = vmatmul.f32.gmra.mxu0 %v2187
  %v2248 = vpop.f32.mrf.mxu0
  %v2249 = vadd.f32 0.0, %v2248
  %2250 = vdwg.mxu0
  %v2251 = vadd.f32 %v2230, %v2249
  %v2252 = vadd.f32 %v2251, %v1442
  %v2253 = vxor.u32 %v2252, 2147483648
  %v2254 = vmul.f32 %v2253, 1.442695
  %v2255 = vpow.pop %v2254
  %v2256 = vadd.f32 %v2255, 1.0
  %v2257 = vrcp.pop %v2256
  %v2258 = vmul.f32 %v2256, %v2257
  %v2259 = vsub.f32 1.0, %v2258
  %v2260 = vmul.f32 %v2257, %v2259
  %v2261 = vadd.f32 %v2257, %v2260
  %vm2262 = vweird.f32 %v2256
  %vm2263 = vweird.f32 %v2257
  %vm2264 = vmor %vm2262, %vm2263
  %v2265 = vsel %vm2264, %v2257, %v2261
  %v2266 = vand.u32 2147483647, %v2256
  %vm2267 = vcmp.eq.f32.partialorder %v2266, 8.507059e+37
  %v2268 = vand.u32 %v2256, 2147483648
  %v2269 = vor.u32 1.1754944e-38, %v2268
  %v2270 = vsel %vm2267, %v2269, %v2265
  %v2271 = vmul.f32 1.0, %v2270
  %v2272 = vld [vmem:[#allocation4] sm:$0xff]
  %2273 = vmatpush.msra.mxu0 0.0
  %2274 = vmatpush.msra.mxu0 0.0
  %2275 = vmatpush.msra.mxu0 0.0
  %2276 = vmatpush.msra.mxu0 0.0
  %2277 = vmatpush.msra.mxu0 0.0
  %2278 = vmatpush.msra.mxu0 0.0
  %2279 = vmatpush.msra.mxu0 0.0
  %2280 = vmatpush.msra.mxu0 0.0
  %2281 = vmatpush.msra.mxu0 0.0
  %2282 = vmatpush.msra.mxu0 0.0
  %2283 = vmatpush.msra.mxu0 0.0
  %2284 = vmatpush.msra.mxu0 0.0
  %2285 = vmatpush.msra.mxu0 0.0
  %2286 = vmatpush.msra.mxu0 0.0
  %2287 = vmatpush.msra.mxu0 %v1362
  %2288 = vmatpush.msra.mxu0 %v1361
  %2289 = vmatmul.f32.gmra.mxu0 %v2187
  %v2290 = vpop.f32.mrf.mxu0
  %v2291 = vadd.f32 %v1466, %v2290
  %2292 = vdwg.mxu0
  %v2293 = vmul.f32 %v2229, %v2291
  %v2294 = vadd.f32 %v2272, %v2293
  %v2295 = vtanh.pop %v2294
  %v2296 = vsub.f32 1.0, %v2271
  %v2297 = vmul.f32 %v2296, %v2295
  %v2298 = vmul.f32 %v2271, %v2184
  %v2299 = vadd.f32 %v2297, %v2298
  %s2300 = scalar_lea.vmem %s6, 8
  %2301 = vst.msk [vmem:[%s2300] sm:$0xff] %vm106, %v2299
  // Predicated region
  $region26: #{_lambda_.4} parent=0 // pred_check
    _
  $region27: #{_lambda_.4} parent=0 // pred_check_branch
    %2303 = sbr.rel (0) target = $region29
  $region28: #{_lambda_.4} parent=0 // pred_region
    _
  $region29: #{_lambda_.4} parent=0 // pred_fallthru
    _
  // Predicated region
  $region30: #{_lambda_.4} parent=0 // pred_check
    _
  $region31: #{_lambda_.4} parent=0 // pred_check_branch
    %2305 = sbr.rel (0) target = $region33
  $region32: #{_lambda_.4} parent=0 // pred_region
    _
  $region33: #{_lambda_.4} parent=0 // pred_fallthru
    _

// kernel: _lambda_.7
$region0: #{_lambda_.7}
  #allocation0 [shape = 'u32[]', space=smem, size = 0x4, offset = 0x4, fixed_abs, tag = 'smem constant byte address 0x4 - core index']
  #allocation1 [shape = 'u32[72,128]{1,0:T(1,128)}', space=vmem, size = 0x9000, scoped, tag = 'internal scratch']
  #allocation2 [shape = 'f32[64,16]{1,0:T(8,128)}', space=vmem, size = 0x8000, scoped, tag = 'scratch operand']
  #allocation3 [shape = 'f32[64,16]{1,0:T(8,128)}', space=vmem, size = 0x8000, scoped, tag = 'scratch operand']
  %s0 = inlined_call_operand.vmem [shape: f32[2,8,16], index: 0, kind: input, shape index: {}]
  %s1 = inlined_call_operand.vmem [shape: f32[2,3,16,16], index: 1, kind: input, shape index: {}]
  %s2 = inlined_call_operand.vmem [shape: f32[2,3,1,16], index: 2, kind: input, shape index: {}]
  %s3 = inlined_call_operand.vmem [shape: f32[2,3,1,16], index: 3, kind: input, shape index: {}]
  %s4 = inlined_call_operand.vmem [shape: f32[16,3], index: 4, kind: input, shape index: {}]
  %s5 = inlined_call_operand.vmem [shape: f32[16,3], index: 5, kind: input, shape index: {}]
  %s6 = inlined_call_operand.vmem [shape: f32[1,3], index: 6, kind: input, shape index: {}]
  %s7 = inlined_call_operand.vmem [shape: f32[8,8,3], index: 7, kind: output, shape index: {}]
  %s8 = sld [smem:[#allocation0]]
  $region38: #{_lambda_.7} parent=0
    _
  %s10 = ssub.s32 1, %s8
  %s11 = scalar_select 0, %s10, %s8
  // Predicated region
  $region2: #{_lambda_.7} parent=0 // pred_check
    _
  $region3: #{_lambda_.7} parent=0 // pred_check_branch
    %13 = sbr.rel (0) target = $region5
  $region4: #{_lambda_.7} parent=0 // pred_region
    _
  $region5: #{_lambda_.7} parent=0 // pred_fallthru
    _
  // Predicated region
  $region6: #{_lambda_.7} parent=0 // pred_check
    _
  $region7: #{_lambda_.7} parent=0 // pred_check_branch
    %15 = sbr.rel (0) target = $region9
  $region8: #{_lambda_.7} parent=0 // pred_region
    _
  $region9: #{_lambda_.7} parent=0 // pred_fallthru
    _
  // Predicated region
  $region10: #{_lambda_.7} parent=0 // pred_check
    _
  $region11: #{_lambda_.7} parent=0 // pred_check_branch
    %17 = sbr.rel (0) target = $region13
  $region12: #{_lambda_.7} parent=0 // pred_region
    _
  $region13: #{_lambda_.7} parent=0 // pred_fallthru
    _
  // Predicated region
  $region14: #{_lambda_.7} parent=0 // pred_check
    _
  $region15: #{_lambda_.7} parent=0 // pred_check_branch
    %19 = sbr.rel (0) target = $region17
  $region16: #{_lambda_.7} parent=0 // pred_region
    _
  $region17: #{_lambda_.7} parent=0 // pred_fallthru
    _
  // Predicated region
  $region18: #{_lambda_.7} parent=0 // pred_check
    _
  $region19: #{_lambda_.7} parent=0 // pred_check_branch
    %21 = sbr.rel (0) target = $region21
  $region20: #{_lambda_.7} parent=0 // pred_region
    _
  $region21: #{_lambda_.7} parent=0 // pred_fallthru
    _
  // Predicated region
  $region22: #{_lambda_.7} parent=0 // pred_check
    _
  $region23: #{_lambda_.7} parent=0 // pred_check_branch
    %23 = sbr.rel (0) target = $region25
  $region24: #{_lambda_.7} parent=0 // pred_region
    _
  $region25: #{_lambda_.7} parent=0 // pred_fallthru
    _
  // Predicated region
  $region26: #{_lambda_.7} parent=0 // pred_check
    _
  $region27: #{_lambda_.7} parent=0 // pred_check_branch
    %25 = sbr.rel (0) target = $region29
  $region28: #{_lambda_.7} parent=0 // pred_region
    _
  $region29: #{_lambda_.7} parent=0 // pred_fallthru
    _
  %v26 = vld [vmem:[%s1] sm:$0xff]
  %v27 = vld [vmem:[%s1 + $0x8] sm:$0xff]
  %s28 = scalar_lea.vmem %s1, 16
  %v29 = vld [vmem:[%s28] sm:$0xff]
  %v30 = vld [vmem:[%s28 + $0x8] sm:$0xff]
  %s31 = scalar_lea.vmem %s1, 32
  %v32 = vld [vmem:[%s31] sm:$0xff]
  %v33 = vld [vmem:[%s31 + $0x8] sm:$0xff]
  %v34 = vld [vmem:[%s2] sm:$0x1]
  %v35 = vld [vmem:[%s3] sm:$0x1]
  %v36 = vadd.f32 %v34, %v35
  %s37 = scalar_lea.vmem %s2, 1
  %v38 = vld [vmem:[%s37] sm:$0x1]
  %s39 = scalar_lea.vmem %s3, 1
  %v40 = vld [vmem:[%s39] sm:$0x1]
  %v41 = vadd.f32 %v38, %v40
  %s42 = scalar_lea.vmem %s2, 2
  %v43 = vld [vmem:[%s42] sm:$0x1]
  %s44 = scalar_lea.vmem %s3, 2
  %v45 = vld [vmem:[%s44] sm:$0x1]
  %v46 = vld [vmem:[%s0] sm:$0xff]
  %v48 = vperm.slane %v36, 0
  %vm50 = vcmask 130048
  %v52 = vsel %vm50, %v46, 0
  %54 = vmatpush.msra.mxu0 0.0
  %55 = vmatpush.msra.mxu0 0.0
  %56 = vmatpush.msra.mxu0 0.0
  %57 = vmatpush.msra.mxu0 0.0
  %58 = vmatpush.msra.mxu0 0.0
  %59 = vmatpush.msra.mxu0 0.0
  %60 = vmatpush.msra.mxu0 0.0
  %61 = vmatpush.msra.mxu0 0.0
  %62 = vmatpush.msra.mxu0 0.0
  %63 = vmatpush.msra.mxu0 0.0
  %64 = vmatpush.msra.mxu0 0.0
  %65 = vmatpush.msra.mxu0 0.0
  %66 = vmatpush.msra.mxu0 0.0
  %67 = vmatpush.msra.mxu0 0.0
  %68 = vmatpush.msra.mxu0 %v27
  %69 = vmatpush.msra.mxu0 %v26
  %70 = vmatmul.f32.gmra.mxu0 %v52
  %v71 = vpop.f32.mrf.mxu0
  %v72 = vadd.f32 %v48, %v71
  %73 = vdwg.mxu0
  %v74 = vxor.u32 %v72, 2147483648
  %v75 = vmul.f32 %v74, 1.442695
  %v76 = vpow.pop %v75
  %v77 = vadd.f32 %v76, 1.0
  %v78 = vrcp.pop %v77
  %v79 = vmul.f32 %v77, %v78
  %v80 = vsub.f32 1.0, %v79
  %v81 = vmul.f32 %v78, %v80
  %v82 = vadd.f32 %v78, %v81
  %vm83 = vweird.f32 %v77
  %vm84 = vweird.f32 %v78
  %vm85 = vmor %vm83, %vm84
  %v86 = vsel %vm85, %v78, %v82
  %v87 = vand.u32 2147483647, %v77
  %vm88 = vcmp.eq.f32.partialorder %v87, 8.507059e+37
  %v89 = vand.u32 %v77, 2147483648
  %v90 = vor.u32 1.1754944e-38, %v89
  %v91 = vsel %vm88, %v90, %v86
  %v92 = vmul.f32 1.0, %v91
  %v94 = vperm.slane %v41, 0
  %96 = vmatpush.msra.mxu0 0.0
  %97 = vmatpush.msra.mxu0 0.0
  %98 = vmatpush.msra.mxu0 0.0
  %99 = vmatpush.msra.mxu0 0.0
  %100 = vmatpush.msra.mxu0 0.0
  %101 = vmatpush.msra.mxu0 0.0
  %102 = vmatpush.msra.mxu0 0.0
  %103 = vmatpush.msra.mxu0 0.0
  %104 = vmatpush.msra.mxu0 0.0
  %105 = vmatpush.msra.mxu0 0.0
  %106 = vmatpush.msra.mxu0 0.0
  %107 = vmatpush.msra.mxu0 0.0
  %108 = vmatpush.msra.mxu0 0.0
  %109 = vmatpush.msra.mxu0 0.0
  %110 = vmatpush.msra.mxu0 %v30
  %111 = vmatpush.msra.mxu0 %v29
  %112 = vmatmul.f32.gmra.mxu0 %v52
  %v113 = vpop.f32.mrf.mxu0
  %v114 = vadd.f32 %v94, %v113
  %115 = vdwg.mxu0
  %v116 = vxor.u32 %v114, 2147483648
  %v117 = vmul.f32 %v116, 1.442695
  %v118 = vpow.pop %v117
  %v119 = vadd.f32 %v118, 1.0
  %v120 = vrcp.pop %v119
  %v121 = vmul.f32 %v119, %v120
  %v122 = vsub.f32 1.0, %v121
  %v123 = vmul.f32 %v120, %v122
  %v124 = vadd.f32 %v120, %v123
  %vm125 = vweird.f32 %v119
  %vm126 = vweird.f32 %v120
  %vm127 = vmor %vm125, %vm126
  %v128 = vsel %vm127, %v120, %v124
  %v129 = vand.u32 2147483647, %v119
  %vm130 = vcmp.eq.f32.partialorder %v129, 8.507059e+37
  %v131 = vand.u32 %v119, 2147483648
  %v132 = vor.u32 1.1754944e-38, %v131
  %v133 = vsel %vm130, %v132, %v128
  %v134 = vmul.f32 1.0, %v133
  %v136 = vperm.slane %v45, 0
  %138 = vmatpush.msra.mxu0 0.0
  %139 = vmatpush.msra.mxu0 0.0
  %140 = vmatpush.msra.mxu0 0.0
  %141 = vmatpush.msra.mxu0 0.0
  %142 = vmatpush.msra.mxu0 0.0
  %143 = vmatpush.msra.mxu0 0.0
  %144 = vmatpush.msra.mxu0 0.0
  %145 = vmatpush.msra.mxu0 0.0
  %146 = vmatpush.msra.mxu0 0.0
  %147 = vmatpush.msra.mxu0 0.0
  %148 = vmatpush.msra.mxu0 0.0
  %149 = vmatpush.msra.mxu0 0.0
  %150 = vmatpush.msra.mxu0 0.0
  %151 = vmatpush.msra.mxu0 0.0
  %152 = vmatpush.msra.mxu0 %v33
  %153 = vmatpush.msra.mxu0 %v32
  %154 = vmatmul.f32.gmra.mxu0 %v52
  %v155 = vpop.f32.mrf.mxu0
  %v156 = vadd.f32 %v136, %v155
  %157 = vdwg.mxu0
  %v158 = vmul.f32 %v92, %v156
  %v160 = vperm.slane %v43, 0
  %v162 = vadd.f32 %v160, %v158
  %v163 = vtanh.pop %v162
  %v164 = vsub.f32 1.0, %v134
  %v165 = vmul.f32 %v164, %v163
  %v166 = vmul.f32 %v134, %v46
  %v167 = vadd.f32 %v165, %v166
  %168 = vst.msk [vmem:[#allocation2] sm:$0xff] %vm50, %v167
  %v170 = vsel %vm50, %v167, 0
  %172 = vmatpush.msra.mxu0 0.0
  %173 = vmatpush.msra.mxu0 0.0
  %174 = vmatpush.msra.mxu0 0.0
  %175 = vmatpush.msra.mxu0 0.0
  %176 = vmatpush.msra.mxu0 0.0
  %177 = vmatpush.msra.mxu0 0.0
  %178 = vmatpush.msra.mxu0 0.0
  %179 = vmatpush.msra.mxu0 0.0
  %180 = vmatpush.msra.mxu0 0.0
  %181 = vmatpush.msra.mxu0 0.0
  %182 = vmatpush.msra.mxu0 0.0
  %183 = vmatpush.msra.mxu0 0.0
  %184 = vmatpush.msra.mxu0 0.0
  %185 = vmatpush.msra.mxu0 0.0
  %186 = vmatpush.msra.mxu0 %v27
  %187 = vmatpush.msra.mxu0 %v26
  %188 = vmatmul.f32.gmra.mxu0 %v170
  %v189 = vpop.f32.mrf.mxu0
  %v190 = vadd.f32 %v48, %v189
  %191 = vdwg.mxu0
  %v192 = vxor.u32 %v190, 2147483648
  %v193 = vmul.f32 %v192, 1.442695
  %v194 = vpow.pop %v193
  %v195 = vadd.f32 %v194, 1.0
  %v196 = vrcp.pop %v195
  %v197 = vmul.f32 %v195, %v196
  %v198 = vsub.f32 1.0, %v197
  %v199 = vmul.f32 %v196, %v198
  %v200 = vadd.f32 %v196, %v199
  %vm201 = vweird.f32 %v195
  %vm202 = vweird.f32 %v196
  %vm203 = vmor %vm201, %vm202
  %v204 = vsel %vm203, %v196, %v200
  %v205 = vand.u32 2147483647, %v195
  %vm206 = vcmp.eq.f32.partialorder %v205, 8.507059e+37
  %v207 = vand.u32 %v195, 2147483648
  %v208 = vor.u32 1.1754944e-38, %v207
  %v209 = vsel %vm206, %v208, %v204
  %v210 = vmul.f32 1.0, %v209
  %211 = vmatpush.msra.mxu0 0.0
  %212 = vmatpush.msra.mxu0 0.0
  %213 = vmatpush.msra.mxu0 0.0
  %214 = vmatpush.msra.mxu0 0.0
  %215 = vmatpush.msra.mxu0 0.0
  %216 = vmatpush.msra.mxu0 0.0
  %217 = vmatpush.msra.mxu0 0.0
  %218 = vmatpush.msra.mxu0 0.0
  %219 = vmatpush.msra.mxu0 0.0
  %220 = vmatpush.msra.mxu0 0.0
  %221 = vmatpush.msra.mxu0 0.0
  %222 = vmatpush.msra.mxu0 0.0
  %223 = vmatpush.msra.mxu0 0.0
  %224 = vmatpush.msra.mxu0 0.0
  %225 = vmatpush.msra.mxu0 %v30
  %226 = vmatpush.msra.mxu0 %v29
  %227 = vmatmul.f32.gmra.mxu0 %v170
  %v228 = vpop.f32.mrf.mxu0
  %v229 = vadd.f32 %v94, %v228
  %230 = vdwg.mxu0
  %v231 = vxor.u32 %v229, 2147483648
  %v232 = vmul.f32 %v231, 1.442695
  %v233 = vpow.pop %v232
  %v234 = vadd.f32 %v233, 1.0
  %v235 = vrcp.pop %v234
  %v236 = vmul.f32 %v234, %v235
  %v237 = vsub.f32 1.0, %v236
  %v238 = vmul.f32 %v235, %v237
  %v239 = vadd.f32 %v235, %v238
  %vm240 = vweird.f32 %v234
  %vm241 = vweird.f32 %v235
  %vm242 = vmor %vm240, %vm241
  %v243 = vsel %vm242, %v235, %v239
  %v244 = vand.u32 2147483647, %v234
  %vm245 = vcmp.eq.f32.partialorder %v244, 8.507059e+37
  %v246 = vand.u32 %v234, 2147483648
  %v247 = vor.u32 1.1754944e-38, %v246
  %v248 = vsel %vm245, %v247, %v243
  %v249 = vmul.f32 1.0, %v248
  %250 = vmatpush.msra.mxu0 0.0
  %251 = vmatpush.msra.mxu0 0.0
  %252 = vmatpush.msra.mxu0 0.0
  %253 = vmatpush.msra.mxu0 0.0
  %254 = vmatpush.msra.mxu0 0.0
  %255 = vmatpush.msra.mxu0 0.0
  %256 = vmatpush.msra.mxu0 0.0
  %257 = vmatpush.msra.mxu0 0.0
  %258 = vmatpush.msra.mxu0 0.0
  %259 = vmatpush.msra.mxu0 0.0
  %260 = vmatpush.msra.mxu0 0.0
  %261 = vmatpush.msra.mxu0 0.0
  %262 = vmatpush.msra.mxu0 0.0
  %263 = vmatpush.msra.mxu0 0.0
  %264 = vmatpush.msra.mxu0 %v33
  %265 = vmatpush.msra.mxu0 %v32
  %266 = vmatmul.f32.gmra.mxu0 %v170
  %v267 = vpop.f32.mrf.mxu0
  %v268 = vadd.f32 %v136, %v267
  %269 = vdwg.mxu0
  %v270 = vmul.f32 %v210, %v268
  %v271 = vadd.f32 %v160, %v270
  %v272 = vtanh.pop %v271
  %v273 = vsub.f32 1.0, %v249
  %v274 = vmul.f32 %v273, %v272
  %v275 = vmul.f32 %v249, %v167
  %v276 = vadd.f32 %v274, %v275
  %277 = vst.msk [vmem:[#allocation2 + $0x8] sm:$0xff] %vm50, %v276
  %v279 = vsel %vm50, %v276, 0
  %281 = vmatpush.msra.mxu0 0.0
  %282 = vmatpush.msra.mxu0 0.0
  %283 = vmatpush.msra.mxu0 0.0
  %284 = vmatpush.msra.mxu0 0.0
  %285 = vmatpush.msra.mxu0 0.0
  %286 = vmatpush.msra.mxu0 0.0
  %287 = vmatpush.msra.mxu0 0.0
  %288 = vmatpush.msra.mxu0 0.0
  %289 = vmatpush.msra.mxu0 0.0
  %290 = vmatpush.msra.mxu0 0.0
  %291 = vmatpush.msra.mxu0 0.0
  %292 = vmatpush.msra.mxu0 0.0
  %293 = vmatpush.msra.mxu0 0.0
  %294 = vmatpush.msra.mxu0 0.0
  %295 = vmatpush.msra.mxu0 %v27
  %296 = vmatpush.msra.mxu0 %v26
  %297 = vmatmul.f32.gmra.mxu0 %v279
  %v298 = vpop.f32.mrf.mxu0
  %v299 = vadd.f32 %v48, %v298
  %300 = vdwg.mxu0
  %v301 = vxor.u32 %v299, 2147483648
  %v302 = vmul.f32 %v301, 1.442695
  %v303 = vpow.pop %v302
  %v304 = vadd.f32 %v303, 1.0
  %v305 = vrcp.pop %v304
  %v306 = vmul.f32 %v304, %v305
  %v307 = vsub.f32 1.0, %v306
  %v308 = vmul.f32 %v305, %v307
  %v309 = vadd.f32 %v305, %v308
  %vm310 = vweird.f32 %v304
  %vm311 = vweird.f32 %v305
  %vm312 = vmor %vm310, %vm311
  %v313 = vsel %vm312, %v305, %v309
  %v314 = vand.u32 2147483647, %v304
  %vm315 = vcmp.eq.f32.partialorder %v314, 8.507059e+37
  %v316 = vand.u32 %v304, 2147483648
  %v317 = vor.u32 1.1754944e-38, %v316
  %v318 = vsel %vm315, %v317, %v313
  %v319 = vmul.f32 1.0, %v318
  %320 = vmatpush.msra.mxu0 0.0
  %321 = vmatpush.msra.mxu0 0.0
  %322 = vmatpush.msra.mxu0 0.0
  %323 = vmatpush.msra.mxu0 0.0
  %324 = vmatpush.msra.mxu0 0.0
  %325 = vmatpush.msra.mxu0 0.0
  %326 = vmatpush.msra.mxu0 0.0
  %327 = vmatpush.msra.mxu0 0.0
  %328 = vmatpush.msra.mxu0 0.0
  %329 = vmatpush.msra.mxu0 0.0
  %330 = vmatpush.msra.mxu0 0.0
  %331 = vmatpush.msra.mxu0 0.0
  %332 = vmatpush.msra.mxu0 0.0
  %333 = vmatpush.msra.mxu0 0.0
  %334 = vmatpush.msra.mxu0 %v30
  %335 = vmatpush.msra.mxu0 %v29
  %336 = vmatmul.f32.gmra.mxu0 %v279
  %v337 = vpop.f32.mrf.mxu0
  %v338 = vadd.f32 %v94, %v337
  %339 = vdwg.mxu0
  %v340 = vxor.u32 %v338, 2147483648
  %v341 = vmul.f32 %v340, 1.442695
  %v342 = vpow.pop %v341
  %v343 = vadd.f32 %v342, 1.0
  %v344 = vrcp.pop %v343
  %v345 = vmul.f32 %v343, %v344
  %v346 = vsub.f32 1.0, %v345
  %v347 = vmul.f32 %v344, %v346
  %v348 = vadd.f32 %v344, %v347
  %vm349 = vweird.f32 %v343
  %vm350 = vweird.f32 %v344
  %vm351 = vmor %vm349, %vm350
  %v352 = vsel %vm351, %v344, %v348
  %v353 = vand.u32 2147483647, %v343
  %vm354 = vcmp.eq.f32.partialorder %v353, 8.507059e+37
  %v355 = vand.u32 %v343, 2147483648
  %v356 = vor.u32 1.1754944e-38, %v355
  %v357 = vsel %vm354, %v356, %v352
  %v358 = vmul.f32 1.0, %v357
  %359 = vmatpush.msra.mxu0 0.0
  %360 = vmatpush.msra.mxu0 0.0
  %361 = vmatpush.msra.mxu0 0.0
  %362 = vmatpush.msra.mxu0 0.0
  %363 = vmatpush.msra.mxu0 0.0
  %364 = vmatpush.msra.mxu0 0.0
  %365 = vmatpush.msra.mxu0 0.0
  %366 = vmatpush.msra.mxu0 0.0
  %367 = vmatpush.msra.mxu0 0.0
  %368 = vmatpush.msra.mxu0 0.0
  %369 = vmatpush.msra.mxu0 0.0
  %370 = vmatpush.msra.mxu0 0.0
  %371 = vmatpush.msra.mxu0 0.0
  %372 = vmatpush.msra.mxu0 0.0
  %373 = vmatpush.msra.mxu0 %v33
  %374 = vmatpush.msra.mxu0 %v32
  %375 = vmatmul.f32.gmra.mxu0 %v279
  %v376 = vpop.f32.mrf.mxu0
  %v377 = vadd.f32 %v136, %v376
  %378 = vdwg.mxu0
  %v379 = vmul.f32 %v319, %v377
  %v380 = vadd.f32 %v160, %v379
  %v381 = vtanh.pop %v380
  %v382 = vsub.f32 1.0, %v358
  %v383 = vmul.f32 %v382, %v381
  %v384 = vmul.f32 %v358, %v276
  %v385 = vadd.f32 %v383, %v384
  %386 = vst.msk [vmem:[#allocation2 + $0x10] sm:$0xff] %vm50, %v385
  %v388 = vsel %vm50, %v385, 0
  %390 = vmatpush.msra.mxu0 0.0
  %391 = vmatpush.msra.mxu0 0.0
  %392 = vmatpush.msra.mxu0 0.0
  %393 = vmatpush.msra.mxu0 0.0
  %394 = vmatpush.msra.mxu0 0.0
  %395 = vmatpush.msra.mxu0 0.0
  %396 = vmatpush.msra.mxu0 0.0
  %397 = vmatpush.msra.mxu0 0.0
  %398 = vmatpush.msra.mxu0 0.0
  %399 = vmatpush.msra.mxu0 0.0
  %400 = vmatpush.msra.mxu0 0.0
  %401 = vmatpush.msra.mxu0 0.0
  %402 = vmatpush.msra.mxu0 0.0
  %403 = vmatpush.msra.mxu0 0.0
  %404 = vmatpush.msra.mxu0 %v27
  %405 = vmatpush.msra.mxu0 %v26
  %406 = vmatmul.f32.gmra.mxu0 %v388
  %v407 = vpop.f32.mrf.mxu0
  %v408 = vadd.f32 %v48, %v407
  %409 = vdwg.mxu0
  %v410 = vxor.u32 %v408, 2147483648
  %v411 = vmul.f32 %v410, 1.442695
  %v412 = vpow.pop %v411
  %v413 = vadd.f32 %v412, 1.0
  %v414 = vrcp.pop %v413
  %v415 = vmul.f32 %v413, %v414
  %v416 = vsub.f32 1.0, %v415
  %v417 = vmul.f32 %v414, %v416
  %v418 = vadd.f32 %v414, %v417
  %vm419 = vweird.f32 %v413
  %vm420 = vweird.f32 %v414
  %vm421 = vmor %vm419, %vm420
  %v422 = vsel %vm421, %v414, %v418
  %v423 = vand.u32 2147483647, %v413
  %vm424 = vcmp.eq.f32.partialorder %v423, 8.507059e+37
  %v425 = vand.u32 %v413, 2147483648
  %v426 = vor.u32 1.1754944e-38, %v425
  %v427 = vsel %vm424, %v426, %v422
  %v428 = vmul.f32 1.0, %v427
  %429 = vmatpush.msra.mxu0 0.0
  %430 = vmatpush.msra.mxu0 0.0
  %431 = vmatpush.msra.mxu0 0.0
  %432 = vmatpush.msra.mxu0 0.0
  %433 = vmatpush.msra.mxu0 0.0
  %434 = vmatpush.msra.mxu0 0.0
  %435 = vmatpush.msra.mxu0 0.0
  %436 = vmatpush.msra.mxu0 0.0
  %437 = vmatpush.msra.mxu0 0.0
  %438 = vmatpush.msra.mxu0 0.0
  %439 = vmatpush.msra.mxu0 0.0
  %440 = vmatpush.msra.mxu0 0.0
  %441 = vmatpush.msra.mxu0 0.0
  %442 = vmatpush.msra.mxu0 0.0
  %443 = vmatpush.msra.mxu0 %v30
  %444 = vmatpush.msra.mxu0 %v29
  %445 = vmatmul.f32.gmra.mxu0 %v388
  %v446 = vpop.f32.mrf.mxu0
  %v447 = vadd.f32 %v94, %v446
  %448 = vdwg.mxu0
  %v449 = vxor.u32 %v447, 2147483648
  %v450 = vmul.f32 %v449, 1.442695
  %v451 = vpow.pop %v450
  %v452 = vadd.f32 %v451, 1.0
  %v453 = vrcp.pop %v452
  %v454 = vmul.f32 %v452, %v453
  %v455 = vsub.f32 1.0, %v454
  %v456 = vmul.f32 %v453, %v455
  %v457 = vadd.f32 %v453, %v456
  %vm458 = vweird.f32 %v452
  %vm459 = vweird.f32 %v453
  %vm460 = vmor %vm458, %vm459
  %v461 = vsel %vm460, %v453, %v457
  %v462 = vand.u32 2147483647, %v452
  %vm463 = vcmp.eq.f32.partialorder %v462, 8.507059e+37
  %v464 = vand.u32 %v452, 2147483648
  %v465 = vor.u32 1.1754944e-38, %v464
  %v466 = vsel %vm463, %v465, %v461
  %v467 = vmul.f32 1.0, %v466
  %468 = vmatpush.msra.mxu0 0.0
  %469 = vmatpush.msra.mxu0 0.0
  %470 = vmatpush.msra.mxu0 0.0
  %471 = vmatpush.msra.mxu0 0.0
  %472 = vmatpush.msra.mxu0 0.0
  %473 = vmatpush.msra.mxu0 0.0
  %474 = vmatpush.msra.mxu0 0.0
  %475 = vmatpush.msra.mxu0 0.0
  %476 = vmatpush.msra.mxu0 0.0
  %477 = vmatpush.msra.mxu0 0.0
  %478 = vmatpush.msra.mxu0 0.0
  %479 = vmatpush.msra.mxu0 0.0
  %480 = vmatpush.msra.mxu0 0.0
  %481 = vmatpush.msra.mxu0 0.0
  %482 = vmatpush.msra.mxu0 %v33
  %483 = vmatpush.msra.mxu0 %v32
  %484 = vmatmul.f32.gmra.mxu0 %v388
  %v485 = vpop.f32.mrf.mxu0
  %v486 = vadd.f32 %v136, %v485
  %487 = vdwg.mxu0
  %v488 = vmul.f32 %v428, %v486
  %v489 = vadd.f32 %v160, %v488
  %v490 = vtanh.pop %v489
  %v491 = vsub.f32 1.0, %v467
  %v492 = vmul.f32 %v491, %v490
  %v493 = vmul.f32 %v467, %v385
  %v494 = vadd.f32 %v492, %v493
  %495 = vst.msk [vmem:[#allocation2 + $0x18] sm:$0xff] %vm50, %v494
  %v497 = vsel %vm50, %v494, 0
  %499 = vmatpush.msra.mxu0 0.0
  %500 = vmatpush.msra.mxu0 0.0
  %501 = vmatpush.msra.mxu0 0.0
  %502 = vmatpush.msra.mxu0 0.0
  %503 = vmatpush.msra.mxu0 0.0
  %504 = vmatpush.msra.mxu0 0.0
  %505 = vmatpush.msra.mxu0 0.0
  %506 = vmatpush.msra.mxu0 0.0
  %507 = vmatpush.msra.mxu0 0.0
  %508 = vmatpush.msra.mxu0 0.0
  %509 = vmatpush.msra.mxu0 0.0
  %510 = vmatpush.msra.mxu0 0.0
  %511 = vmatpush.msra.mxu0 0.0
  %512 = vmatpush.msra.mxu0 0.0
  %513 = vmatpush.msra.mxu0 %v27
  %514 = vmatpush.msra.mxu0 %v26
  %515 = vmatmul.f32.gmra.mxu0 %v497
  %v516 = vpop.f32.mrf.mxu0
  %v517 = vadd.f32 %v48, %v516
  %518 = vdwg.mxu0
  %v519 = vxor.u32 %v517, 2147483648
  %v520 = vmul.f32 %v519, 1.442695
  %v521 = vpow.pop %v520
  %v522 = vadd.f32 %v521, 1.0
  %v523 = vrcp.pop %v522
  %v524 = vmul.f32 %v522, %v523
  %v525 = vsub.f32 1.0, %v524
  %v526 = vmul.f32 %v523, %v525
  %v527 = vadd.f32 %v523, %v526
  %vm528 = vweird.f32 %v522
  %vm529 = vweird.f32 %v523
  %vm530 = vmor %vm528, %vm529
  %v531 = vsel %vm530, %v523, %v527
  %v532 = vand.u32 2147483647, %v522
  %vm533 = vcmp.eq.f32.partialorder %v532, 8.507059e+37
  %v534 = vand.u32 %v522, 2147483648
  %v535 = vor.u32 1.1754944e-38, %v534
  %v536 = vsel %vm533, %v535, %v531
  %v537 = vmul.f32 1.0, %v536
  %538 = vmatpush.msra.mxu0 0.0
  %539 = vmatpush.msra.mxu0 0.0
  %540 = vmatpush.msra.mxu0 0.0
  %541 = vmatpush.msra.mxu0 0.0
  %542 = vmatpush.msra.mxu0 0.0
  %543 = vmatpush.msra.mxu0 0.0
  %544 = vmatpush.msra.mxu0 0.0
  %545 = vmatpush.msra.mxu0 0.0
  %546 = vmatpush.msra.mxu0 0.0
  %547 = vmatpush.msra.mxu0 0.0
  %548 = vmatpush.msra.mxu0 0.0
  %549 = vmatpush.msra.mxu0 0.0
  %550 = vmatpush.msra.mxu0 0.0
  %551 = vmatpush.msra.mxu0 0.0
  %552 = vmatpush.msra.mxu0 %v30
  %553 = vmatpush.msra.mxu0 %v29
  %554 = vmatmul.f32.gmra.mxu0 %v497
  %v555 = vpop.f32.mrf.mxu0
  %v556 = vadd.f32 %v94, %v555
  %557 = vdwg.mxu0
  %v558 = vxor.u32 %v556, 2147483648
  %v559 = vmul.f32 %v558, 1.442695
  %v560 = vpow.pop %v559
  %v561 = vadd.f32 %v560, 1.0
  %v562 = vrcp.pop %v561
  %v563 = vmul.f32 %v561, %v562
  %v564 = vsub.f32 1.0, %v563
  %v565 = vmul.f32 %v562, %v564
  %v566 = vadd.f32 %v562, %v565
  %vm567 = vweird.f32 %v561
  %vm568 = vweird.f32 %v562
  %vm569 = vmor %vm567, %vm568
  %v570 = vsel %vm569, %v562, %v566
  %v571 = vand.u32 2147483647, %v561
  %vm572 = vcmp.eq.f32.partialorder %v571, 8.507059e+37
  %v573 = vand.u32 %v561, 2147483648
  %v574 = vor.u32 1.1754944e-38, %v573
  %v575 = vsel %vm572, %v574, %v570
  %v576 = vmul.f32 1.0, %v575
  %577 = vmatpush.msra.mxu0 0.0
  %578 = vmatpush.msra.mxu0 0.0
  %579 = vmatpush.msra.mxu0 0.0
  %580 = vmatpush.msra.mxu0 0.0
  %581 = vmatpush.msra.mxu0 0.0
  %582 = vmatpush.msra.mxu0 0.0
  %583 = vmatpush.msra.mxu0 0.0
  %584 = vmatpush.msra.mxu0 0.0
  %585 = vmatpush.msra.mxu0 0.0
  %586 = vmatpush.msra.mxu0 0.0
  %587 = vmatpush.msra.mxu0 0.0
  %588 = vmatpush.msra.mxu0 0.0
  %589 = vmatpush.msra.mxu0 0.0
  %590 = vmatpush.msra.mxu0 0.0
  %591 = vmatpush.msra.mxu0 %v33
  %592 = vmatpush.msra.mxu0 %v32
  %593 = vmatmul.f32.gmra.mxu0 %v497
  %v594 = vpop.f32.mrf.mxu0
  %v595 = vadd.f32 %v136, %v594
  %596 = vdwg.mxu0
  %v597 = vmul.f32 %v537, %v595
  %v598 = vadd.f32 %v160, %v597
  %v599 = vtanh.pop %v598
  %v600 = vsub.f32 1.0, %v576
  %v601 = vmul.f32 %v600, %v599
  %v602 = vmul.f32 %v576, %v494
  %v603 = vadd.f32 %v601, %v602
  %604 = vst.msk [vmem:[#allocation2 + $0x20] sm:$0xff] %vm50, %v603
  %v606 = vsel %vm50, %v603, 0
  %608 = vmatpush.msra.mxu0 0.0
  %609 = vmatpush.msra.mxu0 0.0
  %610 = vmatpush.msra.mxu0 0.0
  %611 = vmatpush.msra.mxu0 0.0
  %612 = vmatpush.msra.mxu0 0.0
  %613 = vmatpush.msra.mxu0 0.0
  %614 = vmatpush.msra.mxu0 0.0
  %615 = vmatpush.msra.mxu0 0.0
  %616 = vmatpush.msra.mxu0 0.0
  %617 = vmatpush.msra.mxu0 0.0
  %618 = vmatpush.msra.mxu0 0.0
  %619 = vmatpush.msra.mxu0 0.0
  %620 = vmatpush.msra.mxu0 0.0
  %621 = vmatpush.msra.mxu0 0.0
  %622 = vmatpush.msra.mxu0 %v27
  %623 = vmatpush.msra.mxu0 %v26
  %624 = vmatmul.f32.gmra.mxu0 %v606
  %v625 = vpop.f32.mrf.mxu0
  %v626 = vadd.f32 %v48, %v625
  %627 = vdwg.mxu0
  %v628 = vxor.u32 %v626, 2147483648
  %v629 = vmul.f32 %v628, 1.442695
  %v630 = vpow.pop %v629
  %v631 = vadd.f32 %v630, 1.0
  %v632 = vrcp.pop %v631
  %v633 = vmul.f32 %v631, %v632
  %v634 = vsub.f32 1.0, %v633
  %v635 = vmul.f32 %v632, %v634
  %v636 = vadd.f32 %v632, %v635
  %vm637 = vweird.f32 %v631
  %vm638 = vweird.f32 %v632
  %vm639 = vmor %vm637, %vm638
  %v640 = vsel %vm639, %v632, %v636
  %v641 = vand.u32 2147483647, %v631
  %vm642 = vcmp.eq.f32.partialorder %v641, 8.507059e+37
  %v643 = vand.u32 %v631, 2147483648
  %v644 = vor.u32 1.1754944e-38, %v643
  %v645 = vsel %vm642, %v644, %v640
  %v646 = vmul.f32 1.0, %v645
  %647 = vmatpush.msra.mxu0 0.0
  %648 = vmatpush.msra.mxu0 0.0
  %649 = vmatpush.msra.mxu0 0.0
  %650 = vmatpush.msra.mxu0 0.0
  %651 = vmatpush.msra.mxu0 0.0
  %652 = vmatpush.msra.mxu0 0.0
  %653 = vmatpush.msra.mxu0 0.0
  %654 = vmatpush.msra.mxu0 0.0
  %655 = vmatpush.msra.mxu0 0.0
  %656 = vmatpush.msra.mxu0 0.0
  %657 = vmatpush.msra.mxu0 0.0
  %658 = vmatpush.msra.mxu0 0.0
  %659 = vmatpush.msra.mxu0 0.0
  %660 = vmatpush.msra.mxu0 0.0
  %661 = vmatpush.msra.mxu0 %v30
  %662 = vmatpush.msra.mxu0 %v29
  %663 = vmatmul.f32.gmra.mxu0 %v606
  %v664 = vpop.f32.mrf.mxu0
  %v665 = vadd.f32 %v94, %v664
  %666 = vdwg.mxu0
  %v667 = vxor.u32 %v665, 2147483648
  %v668 = vmul.f32 %v667, 1.442695
  %v669 = vpow.pop %v668
  %v670 = vadd.f32 %v669, 1.0
  %v671 = vrcp.pop %v670
  %v672 = vmul.f32 %v670, %v671
  %v673 = vsub.f32 1.0, %v672
  %v674 = vmul.f32 %v671, %v673
  %v675 = vadd.f32 %v671, %v674
  %vm676 = vweird.f32 %v670
  %vm677 = vweird.f32 %v671
  %vm678 = vmor %vm676, %vm677
  %v679 = vsel %vm678, %v671, %v675
  %v680 = vand.u32 2147483647, %v670
  %vm681 = vcmp.eq.f32.partialorder %v680, 8.507059e+37
  %v682 = vand.u32 %v670, 2147483648
  %v683 = vor.u32 1.1754944e-38, %v682
  %v684 = vsel %vm681, %v683, %v679
  %v685 = vmul.f32 1.0, %v684
  %686 = vmatpush.msra.mxu0 0.0
  %687 = vmatpush.msra.mxu0 0.0
  %688 = vmatpush.msra.mxu0 0.0
  %689 = vmatpush.msra.mxu0 0.0
  %690 = vmatpush.msra.mxu0 0.0
  %691 = vmatpush.msra.mxu0 0.0
  %692 = vmatpush.msra.mxu0 0.0
  %693 = vmatpush.msra.mxu0 0.0
  %694 = vmatpush.msra.mxu0 0.0
  %695 = vmatpush.msra.mxu0 0.0
  %696 = vmatpush.msra.mxu0 0.0
  %697 = vmatpush.msra.mxu0 0.0
  %698 = vmatpush.msra.mxu0 0.0
  %699 = vmatpush.msra.mxu0 0.0
  %700 = vmatpush.msra.mxu0 %v33
  %701 = vmatpush.msra.mxu0 %v32
  %702 = vmatmul.f32.gmra.mxu0 %v606
  %v703 = vpop.f32.mrf.mxu0
  %v704 = vadd.f32 %v136, %v703
  %705 = vdwg.mxu0
  %v706 = vmul.f32 %v646, %v704
  %v707 = vadd.f32 %v160, %v706
  %v708 = vtanh.pop %v707
  %v709 = vsub.f32 1.0, %v685
  %v710 = vmul.f32 %v709, %v708
  %v711 = vmul.f32 %v685, %v603
  %v712 = vadd.f32 %v710, %v711
  %713 = vst.msk [vmem:[#allocation2 + $0x28] sm:$0xff] %vm50, %v712
  %v715 = vsel %vm50, %v712, 0
  %717 = vmatpush.msra.mxu0 0.0
  %718 = vmatpush.msra.mxu0 0.0
  %719 = vmatpush.msra.mxu0 0.0
  %720 = vmatpush.msra.mxu0 0.0
  %721 = vmatpush.msra.mxu0 0.0
  %722 = vmatpush.msra.mxu0 0.0
  %723 = vmatpush.msra.mxu0 0.0
  %724 = vmatpush.msra.mxu0 0.0
  %725 = vmatpush.msra.mxu0 0.0
  %726 = vmatpush.msra.mxu0 0.0
  %727 = vmatpush.msra.mxu0 0.0
  %728 = vmatpush.msra.mxu0 0.0
  %729 = vmatpush.msra.mxu0 0.0
  %730 = vmatpush.msra.mxu0 0.0
  %731 = vmatpush.msra.mxu0 %v27
  %732 = vmatpush.msra.mxu0 %v26
  %733 = vmatmul.f32.gmra.mxu0 %v715
  %v734 = vpop.f32.mrf.mxu0
  %v735 = vadd.f32 %v48, %v734
  %736 = vdwg.mxu0
  %v737 = vxor.u32 %v735, 2147483648
  %v738 = vmul.f32 %v737, 1.442695
  %v739 = vpow.pop %v738
  %v740 = vadd.f32 %v739, 1.0
  %v741 = vrcp.pop %v740
  %v742 = vmul.f32 %v740, %v741
  %v743 = vsub.f32 1.0, %v742
  %v744 = vmul.f32 %v741, %v743
  %v745 = vadd.f32 %v741, %v744
  %vm746 = vweird.f32 %v740
  %vm747 = vweird.f32 %v741
  %vm748 = vmor %vm746, %vm747
  %v749 = vsel %vm748, %v741, %v745
  %v750 = vand.u32 2147483647, %v740
  %vm751 = vcmp.eq.f32.partialorder %v750, 8.507059e+37
  %v752 = vand.u32 %v740, 2147483648
  %v753 = vor.u32 1.1754944e-38, %v752
  %v754 = vsel %vm751, %v753, %v749
  %v755 = vmul.f32 1.0, %v754
  %756 = vmatpush.msra.mxu0 0.0
  %757 = vmatpush.msra.mxu0 0.0
  %758 = vmatpush.msra.mxu0 0.0
  %759 = vmatpush.msra.mxu0 0.0
  %760 = vmatpush.msra.mxu0 0.0
  %761 = vmatpush.msra.mxu0 0.0
  %762 = vmatpush.msra.mxu0 0.0
  %763 = vmatpush.msra.mxu0 0.0
  %764 = vmatpush.msra.mxu0 0.0
  %765 = vmatpush.msra.mxu0 0.0
  %766 = vmatpush.msra.mxu0 0.0
  %767 = vmatpush.msra.mxu0 0.0
  %768 = vmatpush.msra.mxu0 0.0
  %769 = vmatpush.msra.mxu0 0.0
  %770 = vmatpush.msra.mxu0 %v30
  %771 = vmatpush.msra.mxu0 %v29
  %772 = vmatmul.f32.gmra.mxu0 %v715
  %v773 = vpop.f32.mrf.mxu0
  %v774 = vadd.f32 %v94, %v773
  %775 = vdwg.mxu0
  %v776 = vxor.u32 %v774, 2147483648
  %v777 = vmul.f32 %v776, 1.442695
  %v778 = vpow.pop %v777
  %v779 = vadd.f32 %v778, 1.0
  %v780 = vrcp.pop %v779
  %v781 = vmul.f32 %v779, %v780
  %v782 = vsub.f32 1.0, %v781
  %v783 = vmul.f32 %v780, %v782
  %v784 = vadd.f32 %v780, %v783
  %vm785 = vweird.f32 %v779
  %vm786 = vweird.f32 %v780
  %vm787 = vmor %vm785, %vm786
  %v788 = vsel %vm787, %v780, %v784
  %v789 = vand.u32 2147483647, %v779
  %vm790 = vcmp.eq.f32.partialorder %v789, 8.507059e+37
  %v791 = vand.u32 %v779, 2147483648
  %v792 = vor.u32 1.1754944e-38, %v791
  %v793 = vsel %vm790, %v792, %v788
  %v794 = vmul.f32 1.0, %v793
  %795 = vmatpush.msra.mxu0 0.0
  %796 = vmatpush.msra.mxu0 0.0
  %797 = vmatpush.msra.mxu0 0.0
  %798 = vmatpush.msra.mxu0 0.0
  %799 = vmatpush.msra.mxu0 0.0
  %800 = vmatpush.msra.mxu0 0.0
  %801 = vmatpush.msra.mxu0 0.0
  %802 = vmatpush.msra.mxu0 0.0
  %803 = vmatpush.msra.mxu0 0.0
  %804 = vmatpush.msra.mxu0 0.0
  %805 = vmatpush.msra.mxu0 0.0
  %806 = vmatpush.msra.mxu0 0.0
  %807 = vmatpush.msra.mxu0 0.0
  %808 = vmatpush.msra.mxu0 0.0
  %809 = vmatpush.msra.mxu0 %v33
  %810 = vmatpush.msra.mxu0 %v32
  %811 = vmatmul.f32.gmra.mxu0 %v715
  %v812 = vpop.f32.mrf.mxu0
  %v813 = vadd.f32 %v136, %v812
  %814 = vdwg.mxu0
  %v815 = vmul.f32 %v755, %v813
  %v816 = vadd.f32 %v160, %v815
  %v817 = vtanh.pop %v816
  %v818 = vsub.f32 1.0, %v794
  %v819 = vmul.f32 %v818, %v817
  %v820 = vmul.f32 %v794, %v712
  %v821 = vadd.f32 %v819, %v820
  %822 = vst.msk [vmem:[#allocation2 + $0x30] sm:$0xff] %vm50, %v821
  %v824 = vsel %vm50, %v821, 0
  %826 = vmatpush.msra.mxu0 0.0
  %827 = vmatpush.msra.mxu0 0.0
  %828 = vmatpush.msra.mxu0 0.0
  %829 = vmatpush.msra.mxu0 0.0
  %830 = vmatpush.msra.mxu0 0.0
  %831 = vmatpush.msra.mxu0 0.0
  %832 = vmatpush.msra.mxu0 0.0
  %833 = vmatpush.msra.mxu0 0.0
  %834 = vmatpush.msra.mxu0 0.0
  %835 = vmatpush.msra.mxu0 0.0
  %836 = vmatpush.msra.mxu0 0.0
  %837 = vmatpush.msra.mxu0 0.0
  %838 = vmatpush.msra.mxu0 0.0
  %839 = vmatpush.msra.mxu0 0.0
  %840 = vmatpush.msra.mxu0 %v27
  %841 = vmatpush.msra.mxu0 %v26
  %842 = vmatmul.f32.gmra.mxu0 %v824
  %v843 = vpop.f32.mrf.mxu0
  %v844 = vadd.f32 %v48, %v843
  %845 = vdwg.mxu0
  %v846 = vxor.u32 %v844, 2147483648
  %v847 = vmul.f32 %v846, 1.442695
  %v848 = vpow.pop %v847
  %v849 = vadd.f32 %v848, 1.0
  %v850 = vrcp.pop %v849
  %v851 = vmul.f32 %v849, %v850
  %v852 = vsub.f32 1.0, %v851
  %v853 = vmul.f32 %v850, %v852
  %v854 = vadd.f32 %v850, %v853
  %vm855 = vweird.f32 %v849
  %vm856 = vweird.f32 %v850
  %vm857 = vmor %vm855, %vm856
  %v858 = vsel %vm857, %v850, %v854
  %v859 = vand.u32 2147483647, %v849
  %vm860 = vcmp.eq.f32.partialorder %v859, 8.507059e+37
  %v861 = vand.u32 %v849, 2147483648
  %v862 = vor.u32 1.1754944e-38, %v861
  %v863 = vsel %vm860, %v862, %v858
  %v864 = vmul.f32 1.0, %v863
  %865 = vmatpush.msra.mxu0 0.0
  %866 = vmatpush.msra.mxu0 0.0
  %867 = vmatpush.msra.mxu0 0.0
  %868 = vmatpush.msra.mxu0 0.0
  %869 = vmatpush.msra.mxu0 0.0
  %870 = vmatpush.msra.mxu0 0.0
  %871 = vmatpush.msra.mxu0 0.0
  %872 = vmatpush.msra.mxu0 0.0
  %873 = vmatpush.msra.mxu0 0.0
  %874 = vmatpush.msra.mxu0 0.0
  %875 = vmatpush.msra.mxu0 0.0
  %876 = vmatpush.msra.mxu0 0.0
  %877 = vmatpush.msra.mxu0 0.0
  %878 = vmatpush.msra.mxu0 0.0
  %879 = vmatpush.msra.mxu0 %v30
  %880 = vmatpush.msra.mxu0 %v29
  %881 = vmatmul.f32.gmra.mxu0 %v824
  %v882 = vpop.f32.mrf.mxu0
  %v883 = vadd.f32 %v94, %v882
  %884 = vdwg.mxu0
  %v885 = vxor.u32 %v883, 2147483648
  %v886 = vmul.f32 %v885, 1.442695
  %v887 = vpow.pop %v886
  %v888 = vadd.f32 %v887, 1.0
  %v889 = vrcp.pop %v888
  %v890 = vmul.f32 %v888, %v889
  %v891 = vsub.f32 1.0, %v890
  %v892 = vmul.f32 %v889, %v891
  %v893 = vadd.f32 %v889, %v892
  %vm894 = vweird.f32 %v888
  %vm895 = vweird.f32 %v889
  %vm896 = vmor %vm894, %vm895
  %v897 = vsel %vm896, %v889, %v893
  %v898 = vand.u32 2147483647, %v888
  %vm899 = vcmp.eq.f32.partialorder %v898, 8.507059e+37
  %v900 = vand.u32 %v888, 2147483648
  %v901 = vor.u32 1.1754944e-38, %v900
  %v902 = vsel %vm899, %v901, %v897
  %v903 = vmul.f32 1.0, %v902
  %904 = vmatpush.msra.mxu0 0.0
  %905 = vmatpush.msra.mxu0 0.0
  %906 = vmatpush.msra.mxu0 0.0
  %907 = vmatpush.msra.mxu0 0.0
  %908 = vmatpush.msra.mxu0 0.0
  %909 = vmatpush.msra.mxu0 0.0
  %910 = vmatpush.msra.mxu0 0.0
  %911 = vmatpush.msra.mxu0 0.0
  %912 = vmatpush.msra.mxu0 0.0
  %913 = vmatpush.msra.mxu0 0.0
  %914 = vmatpush.msra.mxu0 0.0
  %915 = vmatpush.msra.mxu0 0.0
  %916 = vmatpush.msra.mxu0 0.0
  %917 = vmatpush.msra.mxu0 0.0
  %918 = vmatpush.msra.mxu0 %v33
  %919 = vmatpush.msra.mxu0 %v32
  %920 = vmatmul.f32.gmra.mxu0 %v824
  %v921 = vpop.f32.mrf.mxu0
  %v922 = vadd.f32 %v136, %v921
  %923 = vdwg.mxu0
  %v924 = vmul.f32 %v864, %v922
  %v925 = vadd.f32 %v160, %v924
  %v926 = vtanh.pop %v925
  %v927 = vsub.f32 1.0, %v903
  %v928 = vmul.f32 %v927, %v926
  %v929 = vmul.f32 %v903, %v821
  %v930 = vadd.f32 %v928, %v929
  %931 = vst.msk [vmem:[#allocation2 + $0x38] sm:$0xff] %vm50, %v930
  %s932 = scalar_lea.vmem %s1, 48
  %v933 = vld [vmem:[%s932] sm:$0xff]
  %v934 = vld [vmem:[%s932 + $0x8] sm:$0xff]
  %s935 = scalar_lea.vmem %s1, 64
  %v936 = vld [vmem:[%s935] sm:$0xff]
  %v937 = vld [vmem:[%s935 + $0x8] sm:$0xff]
  %s938 = scalar_lea.vmem %s1, 80
  %v939 = vld [vmem:[%s938] sm:$0xff]
  %v940 = vld [vmem:[%s938 + $0x8] sm:$0xff]
  %s941 = scalar_lea.vmem %s2, 3
  %v942 = vld [vmem:[%s941] sm:$0x1]
  %s943 = scalar_lea.vmem %s3, 3
  %v944 = vld [vmem:[%s943] sm:$0x1]
  %v945 = vadd.f32 %v942, %v944
  %s946 = scalar_lea.vmem %s2, 4
  %v947 = vld [vmem:[%s946] sm:$0x1]
  %s948 = scalar_lea.vmem %s3, 4
  %v949 = vld [vmem:[%s948] sm:$0x1]
  %v950 = vadd.f32 %v947, %v949
  %s951 = scalar_lea.vmem %s2, 5
  %v952 = vld [vmem:[%s951] sm:$0x1]
  %s953 = scalar_lea.vmem %s3, 5
  %v954 = vld [vmem:[%s953] sm:$0x1]
  %s955 = scalar_lea.vmem %s0, 8
  %v956 = vld [vmem:[%s955] sm:$0xff]
  %v958 = vperm.slane %v945, 0
  %v961 = vsel %vm50, %v956, 0
  %963 = vmatpush.msra.mxu0 0.0
  %964 = vmatpush.msra.mxu0 0.0
  %965 = vmatpush.msra.mxu0 0.0
  %966 = vmatpush.msra.mxu0 0.0
  %967 = vmatpush.msra.mxu0 0.0
  %968 = vmatpush.msra.mxu0 0.0
  %969 = vmatpush.msra.mxu0 0.0
  %970 = vmatpush.msra.mxu0 0.0
  %971 = vmatpush.msra.mxu0 0.0
  %972 = vmatpush.msra.mxu0 0.0
  %973 = vmatpush.msra.mxu0 0.0
  %974 = vmatpush.msra.mxu0 0.0
  %975 = vmatpush.msra.mxu0 0.0
  %976 = vmatpush.msra.mxu0 0.0
  %977 = vmatpush.msra.mxu0 %v934
  %978 = vmatpush.msra.mxu0 %v933
  %979 = vmatmul.f32.gmra.mxu0 %v961
  %v980 = vpop.f32.mrf.mxu0
  %v981 = vadd.f32 %v958, %v980
  %982 = vdwg.mxu0
  %v983 = vxor.u32 %v981, 2147483648
  %v984 = vmul.f32 %v983, 1.442695
  %v985 = vpow.pop %v984
  %v986 = vadd.f32 %v985, 1.0
  %v987 = vrcp.pop %v986
  %v988 = vmul.f32 %v986, %v987
  %v989 = vsub.f32 1.0, %v988
  %v990 = vmul.f32 %v987, %v989
  %v991 = vadd.f32 %v987, %v990
  %vm992 = vweird.f32 %v986
  %vm993 = vweird.f32 %v987
  %vm994 = vmor %vm992, %vm993
  %v995 = vsel %vm994, %v987, %v991
  %v996 = vand.u32 2147483647, %v986
  %vm997 = vcmp.eq.f32.partialorder %v996, 8.507059e+37
  %v998 = vand.u32 %v986, 2147483648
  %v999 = vor.u32 1.1754944e-38, %v998
  %v1000 = vsel %vm997, %v999, %v995
  %v1001 = vmul.f32 1.0, %v1000
  %v1003 = vperm.slane %v950, 0
  %1005 = vmatpush.msra.mxu0 0.0
  %1006 = vmatpush.msra.mxu0 0.0
  %1007 = vmatpush.msra.mxu0 0.0
  %1008 = vmatpush.msra.mxu0 0.0
  %1009 = vmatpush.msra.mxu0 0.0
  %1010 = vmatpush.msra.mxu0 0.0
  %1011 = vmatpush.msra.mxu0 0.0
  %1012 = vmatpush.msra.mxu0 0.0
  %1013 = vmatpush.msra.mxu0 0.0
  %1014 = vmatpush.msra.mxu0 0.0
  %1015 = vmatpush.msra.mxu0 0.0
  %1016 = vmatpush.msra.mxu0 0.0
  %1017 = vmatpush.msra.mxu0 0.0
  %1018 = vmatpush.msra.mxu0 0.0
  %1019 = vmatpush.msra.mxu0 %v937
  %1020 = vmatpush.msra.mxu0 %v936
  %1021 = vmatmul.f32.gmra.mxu0 %v961
  %v1022 = vpop.f32.mrf.mxu0
  %v1023 = vadd.f32 %v1003, %v1022
  %1024 = vdwg.mxu0
  %v1025 = vxor.u32 %v1023, 2147483648
  %v1026 = vmul.f32 %v1025, 1.442695
  %v1027 = vpow.pop %v1026
  %v1028 = vadd.f32 %v1027, 1.0
  %v1029 = vrcp.pop %v1028
  %v1030 = vmul.f32 %v1028, %v1029
  %v1031 = vsub.f32 1.0, %v1030
  %v1032 = vmul.f32 %v1029, %v1031
  %v1033 = vadd.f32 %v1029, %v1032
  %vm1034 = vweird.f32 %v1028
  %vm1035 = vweird.f32 %v1029
  %vm1036 = vmor %vm1034, %vm1035
  %v1037 = vsel %vm1036, %v1029, %v1033
  %v1038 = vand.u32 2147483647, %v1028
  %vm1039 = vcmp.eq.f32.partialorder %v1038, 8.507059e+37
  %v1040 = vand.u32 %v1028, 2147483648
  %v1041 = vor.u32 1.1754944e-38, %v1040
  %v1042 = vsel %vm1039, %v1041, %v1037
  %v1043 = vmul.f32 1.0, %v1042
  %v1045 = vperm.slane %v954, 0
  %1047 = vmatpush.msra.mxu0 0.0
  %1048 = vmatpush.msra.mxu0 0.0
  %1049 = vmatpush.msra.mxu0 0.0
  %1050 = vmatpush.msra.mxu0 0.0
  %1051 = vmatpush.msra.mxu0 0.0
  %1052 = vmatpush.msra.mxu0 0.0
  %1053 = vmatpush.msra.mxu0 0.0
  %1054 = vmatpush.msra.mxu0 0.0
  %1055 = vmatpush.msra.mxu0 0.0
  %1056 = vmatpush.msra.mxu0 0.0
  %1057 = vmatpush.msra.mxu0 0.0
  %1058 = vmatpush.msra.mxu0 0.0
  %1059 = vmatpush.msra.mxu0 0.0
  %1060 = vmatpush.msra.mxu0 0.0
  %1061 = vmatpush.msra.mxu0 %v940
  %1062 = vmatpush.msra.mxu0 %v939
  %1063 = vmatmul.f32.gmra.mxu0 %v961
  %v1064 = vpop.f32.mrf.mxu0
  %v1065 = vadd.f32 %v1045, %v1064
  %1066 = vdwg.mxu0
  %v1067 = vmul.f32 %v1001, %v1065
  %v1069 = vperm.slane %v952, 0
  %v1071 = vadd.f32 %v1069, %v1067
  %v1072 = vtanh.pop %v1071
  %v1073 = vsub.f32 1.0, %v1043
  %v1074 = vmul.f32 %v1073, %v1072
  %v1075 = vmul.f32 %v1043, %v956
  %v1076 = vadd.f32 %v1074, %v1075
  %1077 = vst.msk [vmem:[#allocation3 + $0x38] sm:$0xff] %vm50, %v1076
  %v1079 = vsel %vm50, %v1076, 0
  %1081 = vmatpush.msra.mxu0 0.0
  %1082 = vmatpush.msra.mxu0 0.0
  %1083 = vmatpush.msra.mxu0 0.0
  %1084 = vmatpush.msra.mxu0 0.0
  %1085 = vmatpush.msra.mxu0 0.0
  %1086 = vmatpush.msra.mxu0 0.0
  %1087 = vmatpush.msra.mxu0 0.0
  %1088 = vmatpush.msra.mxu0 0.0
  %1089 = vmatpush.msra.mxu0 0.0
  %1090 = vmatpush.msra.mxu0 0.0
  %1091 = vmatpush.msra.mxu0 0.0
  %1092 = vmatpush.msra.mxu0 0.0
  %1093 = vmatpush.msra.mxu0 0.0
  %1094 = vmatpush.msra.mxu0 0.0
  %1095 = vmatpush.msra.mxu0 %v934
  %1096 = vmatpush.msra.mxu0 %v933
  %1097 = vmatmul.f32.gmra.mxu0 %v1079
  %v1098 = vpop.f32.mrf.mxu0
  %v1099 = vadd.f32 %v958, %v1098
  %1100 = vdwg.mxu0
  %v1101 = vxor.u32 %v1099, 2147483648
  %v1102 = vmul.f32 %v1101, 1.442695
  %v1103 = vpow.pop %v1102
  %v1104 = vadd.f32 %v1103, 1.0
  %v1105 = vrcp.pop %v1104
  %v1106 = vmul.f32 %v1104, %v1105
  %v1107 = vsub.f32 1.0, %v1106
  %v1108 = vmul.f32 %v1105, %v1107
  %v1109 = vadd.f32 %v1105, %v1108
  %vm1110 = vweird.f32 %v1104
  %vm1111 = vweird.f32 %v1105
  %vm1112 = vmor %vm1110, %vm1111
  %v1113 = vsel %vm1112, %v1105, %v1109
  %v1114 = vand.u32 2147483647, %v1104
  %vm1115 = vcmp.eq.f32.partialorder %v1114, 8.507059e+37
  %v1116 = vand.u32 %v1104, 2147483648
  %v1117 = vor.u32 1.1754944e-38, %v1116
  %v1118 = vsel %vm1115, %v1117, %v1113
  %v1119 = vmul.f32 1.0, %v1118
  %1120 = vmatpush.msra.mxu0 0.0
  %1121 = vmatpush.msra.mxu0 0.0
  %1122 = vmatpush.msra.mxu0 0.0
  %1123 = vmatpush.msra.mxu0 0.0
  %1124 = vmatpush.msra.mxu0 0.0
  %1125 = vmatpush.msra.mxu0 0.0
  %1126 = vmatpush.msra.mxu0 0.0
  %1127 = vmatpush.msra.mxu0 0.0
  %1128 = vmatpush.msra.mxu0 0.0
  %1129 = vmatpush.msra.mxu0 0.0
  %1130 = vmatpush.msra.mxu0 0.0
  %1131 = vmatpush.msra.mxu0 0.0
  %1132 = vmatpush.msra.mxu0 0.0
  %1133 = vmatpush.msra.mxu0 0.0
  %1134 = vmatpush.msra.mxu0 %v937
  %1135 = vmatpush.msra.mxu0 %v936
  %1136 = vmatmul.f32.gmra.mxu0 %v1079
  %v1137 = vpop.f32.mrf.mxu0
  %v1138 = vadd.f32 %v1003, %v1137
  %1139 = vdwg.mxu0
  %v1140 = vxor.u32 %v1138, 2147483648
  %v1141 = vmul.f32 %v1140, 1.442695
  %v1142 = vpow.pop %v1141
  %v1143 = vadd.f32 %v1142, 1.0
  %v1144 = vrcp.pop %v1143
  %v1145 = vmul.f32 %v1143, %v1144
  %v1146 = vsub.f32 1.0, %v1145
  %v1147 = vmul.f32 %v1144, %v1146
  %v1148 = vadd.f32 %v1144, %v1147
  %vm1149 = vweird.f32 %v1143
  %vm1150 = vweird.f32 %v1144
  %vm1151 = vmor %vm1149, %vm1150
  %v1152 = vsel %vm1151, %v1144, %v1148
  %v1153 = vand.u32 2147483647, %v1143
  %vm1154 = vcmp.eq.f32.partialorder %v1153, 8.507059e+37
  %v1155 = vand.u32 %v1143, 2147483648
  %v1156 = vor.u32 1.1754944e-38, %v1155
  %v1157 = vsel %vm1154, %v1156, %v1152
  %v1158 = vmul.f32 1.0, %v1157
  %1159 = vmatpush.msra.mxu0 0.0
  %1160 = vmatpush.msra.mxu0 0.0
  %1161 = vmatpush.msra.mxu0 0.0
  %1162 = vmatpush.msra.mxu0 0.0
  %1163 = vmatpush.msra.mxu0 0.0
  %1164 = vmatpush.msra.mxu0 0.0
  %1165 = vmatpush.msra.mxu0 0.0
  %1166 = vmatpush.msra.mxu0 0.0
  %1167 = vmatpush.msra.mxu0 0.0
  %1168 = vmatpush.msra.mxu0 0.0
  %1169 = vmatpush.msra.mxu0 0.0
  %1170 = vmatpush.msra.mxu0 0.0
  %1171 = vmatpush.msra.mxu0 0.0
  %1172 = vmatpush.msra.mxu0 0.0
  %1173 = vmatpush.msra.mxu0 %v940
  %1174 = vmatpush.msra.mxu0 %v939
  %1175 = vmatmul.f32.gmra.mxu0 %v1079
  %v1176 = vpop.f32.mrf.mxu0
  %v1177 = vadd.f32 %v1045, %v1176
  %1178 = vdwg.mxu0
  %v1179 = vmul.f32 %v1119, %v1177
  %v1180 = vadd.f32 %v1069, %v1179
  %v1181 = vtanh.pop %v1180
  %v1182 = vsub.f32 1.0, %v1158
  %v1183 = vmul.f32 %v1182, %v1181
  %v1184 = vmul.f32 %v1158, %v1076
  %v1185 = vadd.f32 %v1183, %v1184
  %1186 = vst.msk [vmem:[#allocation3 + $0x30] sm:$0xff] %vm50, %v1185
  %v1188 = vsel %vm50, %v1185, 0
  %1190 = vmatpush.msra.mxu0 0.0
  %1191 = vmatpush.msra.mxu0 0.0
  %1192 = vmatpush.msra.mxu0 0.0
  %1193 = vmatpush.msra.mxu0 0.0
  %1194 = vmatpush.msra.mxu0 0.0
  %1195 = vmatpush.msra.mxu0 0.0
  %1196 = vmatpush.msra.mxu0 0.0
  %1197 = vmatpush.msra.mxu0 0.0
  %1198 = vmatpush.msra.mxu0 0.0
  %1199 = vmatpush.msra.mxu0 0.0
  %1200 = vmatpush.msra.mxu0 0.0
  %1201 = vmatpush.msra.mxu0 0.0
  %1202 = vmatpush.msra.mxu0 0.0
  %1203 = vmatpush.msra.mxu0 0.0
  %1204 = vmatpush.msra.mxu0 %v934
  %1205 = vmatpush.msra.mxu0 %v933
  %1206 = vmatmul.f32.gmra.mxu0 %v1188
  %v1207 = vpop.f32.mrf.mxu0
  %v1208 = vadd.f32 %v958, %v1207
  %1209 = vdwg.mxu0
  %v1210 = vxor.u32 %v1208, 2147483648
  %v1211 = vmul.f32 %v1210, 1.442695
  %v1212 = vpow.pop %v1211
  %v1213 = vadd.f32 %v1212, 1.0
  %v1214 = vrcp.pop %v1213
  %v1215 = vmul.f32 %v1213, %v1214
  %v1216 = vsub.f32 1.0, %v1215
  %v1217 = vmul.f32 %v1214, %v1216
  %v1218 = vadd.f32 %v1214, %v1217
  %vm1219 = vweird.f32 %v1213
  %vm1220 = vweird.f32 %v1214
  %vm1221 = vmor %vm1219, %vm1220
  %v1222 = vsel %vm1221, %v1214, %v1218
  %v1223 = vand.u32 2147483647, %v1213
  %vm1224 = vcmp.eq.f32.partialorder %v1223, 8.507059e+37
  %v1225 = vand.u32 %v1213, 2147483648
  %v1226 = vor.u32 1.1754944e-38, %v1225
  %v1227 = vsel %vm1224, %v1226, %v1222
  %v1228 = vmul.f32 1.0, %v1227
  %1229 = vmatpush.msra.mxu0 0.0
  %1230 = vmatpush.msra.mxu0 0.0
  %1231 = vmatpush.msra.mxu0 0.0
  %1232 = vmatpush.msra.mxu0 0.0
  %1233 = vmatpush.msra.mxu0 0.0
  %1234 = vmatpush.msra.mxu0 0.0
  %1235 = vmatpush.msra.mxu0 0.0
  %1236 = vmatpush.msra.mxu0 0.0
  %1237 = vmatpush.msra.mxu0 0.0
  %1238 = vmatpush.msra.mxu0 0.0
  %1239 = vmatpush.msra.mxu0 0.0
  %1240 = vmatpush.msra.mxu0 0.0
  %1241 = vmatpush.msra.mxu0 0.0
  %1242 = vmatpush.msra.mxu0 0.0
  %1243 = vmatpush.msra.mxu0 %v937
  %1244 = vmatpush.msra.mxu0 %v936
  %1245 = vmatmul.f32.gmra.mxu0 %v1188
  %v1246 = vpop.f32.mrf.mxu0
  %v1247 = vadd.f32 %v1003, %v1246
  %1248 = vdwg.mxu0
  %v1249 = vxor.u32 %v1247, 2147483648
  %v1250 = vmul.f32 %v1249, 1.442695
  %v1251 = vpow.pop %v1250
  %v1252 = vadd.f32 %v1251, 1.0
  %v1253 = vrcp.pop %v1252
  %v1254 = vmul.f32 %v1252, %v1253
  %v1255 = vsub.f32 1.0, %v1254
  %v1256 = vmul.f32 %v1253, %v1255
  %v1257 = vadd.f32 %v1253, %v1256
  %vm1258 = vweird.f32 %v1252
  %vm1259 = vweird.f32 %v1253
  %vm1260 = vmor %vm1258, %vm1259
  %v1261 = vsel %vm1260, %v1253, %v1257
  %v1262 = vand.u32 2147483647, %v1252
  %vm1263 = vcmp.eq.f32.partialorder %v1262, 8.507059e+37
  %v1264 = vand.u32 %v1252, 2147483648
  %v1265 = vor.u32 1.1754944e-38, %v1264
  %v1266 = vsel %vm1263, %v1265, %v1261
  %v1267 = vmul.f32 1.0, %v1266
  %1268 = vmatpush.msra.mxu0 0.0
  %1269 = vmatpush.msra.mxu0 0.0
  %1270 = vmatpush.msra.mxu0 0.0
  %1271 = vmatpush.msra.mxu0 0.0
  %1272 = vmatpush.msra.mxu0 0.0
  %1273 = vmatpush.msra.mxu0 0.0
  %1274 = vmatpush.msra.mxu0 0.0
  %1275 = vmatpush.msra.mxu0 0.0
  %1276 = vmatpush.msra.mxu0 0.0
  %1277 = vmatpush.msra.mxu0 0.0
  %1278 = vmatpush.msra.mxu0 0.0
  %1279 = vmatpush.msra.mxu0 0.0
  %1280 = vmatpush.msra.mxu0 0.0
  %1281 = vmatpush.msra.mxu0 0.0
  %1282 = vmatpush.msra.mxu0 %v940
  %1283 = vmatpush.msra.mxu0 %v939
  %1284 = vmatmul.f32.gmra.mxu0 %v1188
  %v1285 = vpop.f32.mrf.mxu0
  %v1286 = vadd.f32 %v1045, %v1285
  %1287 = vdwg.mxu0
  %v1288 = vmul.f32 %v1228, %v1286
  %v1289 = vadd.f32 %v1069, %v1288
  %v1290 = vtanh.pop %v1289
  %v1291 = vsub.f32 1.0, %v1267
  %v1292 = vmul.f32 %v1291, %v1290
  %v1293 = vmul.f32 %v1267, %v1185
  %v1294 = vadd.f32 %v1292, %v1293
  %1295 = vst.msk [vmem:[#allocation3 + $0x28] sm:$0xff] %vm50, %v1294
  %v1297 = vsel %vm50, %v1294, 0
  %1299 = vmatpush.msra.mxu0 0.0
  %1300 = vmatpush.msra.mxu0 0.0
  %1301 = vmatpush.msra.mxu0 0.0
  %1302 = vmatpush.msra.mxu0 0.0
  %1303 = vmatpush.msra.mxu0 0.0
  %1304 = vmatpush.msra.mxu0 0.0
  %1305 = vmatpush.msra.mxu0 0.0
  %1306 = vmatpush.msra.mxu0 0.0
  %1307 = vmatpush.msra.mxu0 0.0
  %1308 = vmatpush.msra.mxu0 0.0
  %1309 = vmatpush.msra.mxu0 0.0
  %1310 = vmatpush.msra.mxu0 0.0
  %1311 = vmatpush.msra.mxu0 0.0
  %1312 = vmatpush.msra.mxu0 0.0
  %1313 = vmatpush.msra.mxu0 %v934
  %1314 = vmatpush.msra.mxu0 %v933
  %1315 = vmatmul.f32.gmra.mxu0 %v1297
  %v1316 = vpop.f32.mrf.mxu0
  %v1317 = vadd.f32 %v958, %v1316
  %1318 = vdwg.mxu0
  %v1319 = vxor.u32 %v1317, 2147483648
  %v1320 = vmul.f32 %v1319, 1.442695
  %v1321 = vpow.pop %v1320
  %v1322 = vadd.f32 %v1321, 1.0
  %v1323 = vrcp.pop %v1322
  %v1324 = vmul.f32 %v1322, %v1323
  %v1325 = vsub.f32 1.0, %v1324
  %v1326 = vmul.f32 %v1323, %v1325
  %v1327 = vadd.f32 %v1323, %v1326
  %vm1328 = vweird.f32 %v1322
  %vm1329 = vweird.f32 %v1323
  %vm1330 = vmor %vm1328, %vm1329
  %v1331 = vsel %vm1330, %v1323, %v1327
  %v1332 = vand.u32 2147483647, %v1322
  %vm1333 = vcmp.eq.f32.partialorder %v1332, 8.507059e+37
  %v1334 = vand.u32 %v1322, 2147483648
  %v1335 = vor.u32 1.1754944e-38, %v1334
  %v1336 = vsel %vm1333, %v1335, %v1331
  %v1337 = vmul.f32 1.0, %v1336
  %1338 = vmatpush.msra.mxu0 0.0
  %1339 = vmatpush.msra.mxu0 0.0
  %1340 = vmatpush.msra.mxu0 0.0
  %1341 = vmatpush.msra.mxu0 0.0
  %1342 = vmatpush.msra.mxu0 0.0
  %1343 = vmatpush.msra.mxu0 0.0
  %1344 = vmatpush.msra.mxu0 0.0
  %1345 = vmatpush.msra.mxu0 0.0
  %1346 = vmatpush.msra.mxu0 0.0
  %1347 = vmatpush.msra.mxu0 0.0
  %1348 = vmatpush.msra.mxu0 0.0
  %1349 = vmatpush.msra.mxu0 0.0
  %1350 = vmatpush.msra.mxu0 0.0
  %1351 = vmatpush.msra.mxu0 0.0
  %1352 = vmatpush.msra.mxu0 %v937
  %1353 = vmatpush.msra.mxu0 %v936
  %1354 = vmatmul.f32.gmra.mxu0 %v1297
  %v1355 = vpop.f32.mrf.mxu0
  %v1356 = vadd.f32 %v1003, %v1355
  %1357 = vdwg.mxu0
  %v1358 = vxor.u32 %v1356, 2147483648
  %v1359 = vmul.f32 %v1358, 1.442695
  %v1360 = vpow.pop %v1359
  %v1361 = vadd.f32 %v1360, 1.0
  %v1362 = vrcp.pop %v1361
  %v1363 = vmul.f32 %v1361, %v1362
  %v1364 = vsub.f32 1.0, %v1363
  %v1365 = vmul.f32 %v1362, %v1364
  %v1366 = vadd.f32 %v1362, %v1365
  %vm1367 = vweird.f32 %v1361
  %vm1368 = vweird.f32 %v1362
  %vm1369 = vmor %vm1367, %vm1368
  %v1370 = vsel %vm1369, %v1362, %v1366
  %v1371 = vand.u32 2147483647, %v1361
  %vm1372 = vcmp.eq.f32.partialorder %v1371, 8.507059e+37
  %v1373 = vand.u32 %v1361, 2147483648
  %v1374 = vor.u32 1.1754944e-38, %v1373
  %v1375 = vsel %vm1372, %v1374, %v1370
  %v1376 = vmul.f32 1.0, %v1375
  %1377 = vmatpush.msra.mxu0 0.0
  %1378 = vmatpush.msra.mxu0 0.0
  %1379 = vmatpush.msra.mxu0 0.0
  %1380 = vmatpush.msra.mxu0 0.0
  %1381 = vmatpush.msra.mxu0 0.0
  %1382 = vmatpush.msra.mxu0 0.0
  %1383 = vmatpush.msra.mxu0 0.0
  %1384 = vmatpush.msra.mxu0 0.0
  %1385 = vmatpush.msra.mxu0 0.0
  %1386 = vmatpush.msra.mxu0 0.0
  %1387 = vmatpush.msra.mxu0 0.0
  %1388 = vmatpush.msra.mxu0 0.0
  %1389 = vmatpush.msra.mxu0 0.0
  %1390 = vmatpush.msra.mxu0 0.0
  %1391 = vmatpush.msra.mxu0 %v940
  %1392 = vmatpush.msra.mxu0 %v939
  %1393 = vmatmul.f32.gmra.mxu0 %v1297
  %v1394 = vpop.f32.mrf.mxu0
  %v1395 = vadd.f32 %v1045, %v1394
  %1396 = vdwg.mxu0
  %v1397 = vmul.f32 %v1337, %v1395
  %v1398 = vadd.f32 %v1069, %v1397
  %v1399 = vtanh.pop %v1398
  %v1400 = vsub.f32 1.0, %v1376
  %v1401 = vmul.f32 %v1400, %v1399
  %v1402 = vmul.f32 %v1376, %v1294
  %v1403 = vadd.f32 %v1401, %v1402
  %1404 = vst.msk [vmem:[#allocation3 + $0x20] sm:$0xff] %vm50, %v1403
  %v1406 = vsel %vm50, %v1403, 0
  %1408 = vmatpush.msra.mxu0 0.0
  %1409 = vmatpush.msra.mxu0 0.0
  %1410 = vmatpush.msra.mxu0 0.0
  %1411 = vmatpush.msra.mxu0 0.0
  %1412 = vmatpush.msra.mxu0 0.0
  %1413 = vmatpush.msra.mxu0 0.0
  %1414 = vmatpush.msra.mxu0 0.0
  %1415 = vmatpush.msra.mxu0 0.0
  %1416 = vmatpush.msra.mxu0 0.0
  %1417 = vmatpush.msra.mxu0 0.0
  %1418 = vmatpush.msra.mxu0 0.0
  %1419 = vmatpush.msra.mxu0 0.0
  %1420 = vmatpush.msra.mxu0 0.0
  %1421 = vmatpush.msra.mxu0 0.0
  %1422 = vmatpush.msra.mxu0 %v934
  %1423 = vmatpush.msra.mxu0 %v933
  %1424 = vmatmul.f32.gmra.mxu0 %v1406
  %v1425 = vpop.f32.mrf.mxu0
  %v1426 = vadd.f32 %v958, %v1425
  %1427 = vdwg.mxu0
  %v1428 = vxor.u32 %v1426, 2147483648
  %v1429 = vmul.f32 %v1428, 1.442695
  %v1430 = vpow.pop %v1429
  %v1431 = vadd.f32 %v1430, 1.0
  %v1432 = vrcp.pop %v1431
  %v1433 = vmul.f32 %v1431, %v1432
  %v1434 = vsub.f32 1.0, %v1433
  %v1435 = vmul.f32 %v1432, %v1434
  %v1436 = vadd.f32 %v1432, %v1435
  %vm1437 = vweird.f32 %v1431
  %vm1438 = vweird.f32 %v1432
  %vm1439 = vmor %vm1437, %vm1438
  %v1440 = vsel %vm1439, %v1432, %v1436
  %v1441 = vand.u32 2147483647, %v1431
  %vm1442 = vcmp.eq.f32.partialorder %v1441, 8.507059e+37
  %v1443 = vand.u32 %v1431, 2147483648
  %v1444 = vor.u32 1.1754944e-38, %v1443
  %v1445 = vsel %vm1442, %v1444, %v1440
  %v1446 = vmul.f32 1.0, %v1445
  %1447 = vmatpush.msra.mxu0 0.0
  %1448 = vmatpush.msra.mxu0 0.0
  %1449 = vmatpush.msra.mxu0 0.0
  %1450 = vmatpush.msra.mxu0 0.0
  %1451 = vmatpush.msra.mxu0 0.0
  %1452 = vmatpush.msra.mxu0 0.0
  %1453 = vmatpush.msra.mxu0 0.0
  %1454 = vmatpush.msra.mxu0 0.0
  %1455 = vmatpush.msra.mxu0 0.0
  %1456 = vmatpush.msra.mxu0 0.0
  %1457 = vmatpush.msra.mxu0 0.0
  %1458 = vmatpush.msra.mxu0 0.0
  %1459 = vmatpush.msra.mxu0 0.0
  %1460 = vmatpush.msra.mxu0 0.0
  %1461 = vmatpush.msra.mxu0 %v937
  %1462 = vmatpush.msra.mxu0 %v936
  %1463 = vmatmul.f32.gmra.mxu0 %v1406
  %v1464 = vpop.f32.mrf.mxu0
  %v1465 = vadd.f32 %v1003, %v1464
  %1466 = vdwg.mxu0
  %v1467 = vxor.u32 %v1465, 2147483648
  %v1468 = vmul.f32 %v1467, 1.442695
  %v1469 = vpow.pop %v1468
  %v1470 = vadd.f32 %v1469, 1.0
  %v1471 = vrcp.pop %v1470
  %v1472 = vmul.f32 %v1470, %v1471
  %v1473 = vsub.f32 1.0, %v1472
  %v1474 = vmul.f32 %v1471, %v1473
  %v1475 = vadd.f32 %v1471, %v1474
  %vm1476 = vweird.f32 %v1470
  %vm1477 = vweird.f32 %v1471
  %vm1478 = vmor %vm1476, %vm1477
  %v1479 = vsel %vm1478, %v1471, %v1475
  %v1480 = vand.u32 2147483647, %v1470
  %vm1481 = vcmp.eq.f32.partialorder %v1480, 8.507059e+37
  %v1482 = vand.u32 %v1470, 2147483648
  %v1483 = vor.u32 1.1754944e-38, %v1482
  %v1484 = vsel %vm1481, %v1483, %v1479
  %v1485 = vmul.f32 1.0, %v1484
  %1486 = vmatpush.msra.mxu0 0.0
  %1487 = vmatpush.msra.mxu0 0.0
  %1488 = vmatpush.msra.mxu0 0.0
  %1489 = vmatpush.msra.mxu0 0.0
  %1490 = vmatpush.msra.mxu0 0.0
  %1491 = vmatpush.msra.mxu0 0.0
  %1492 = vmatpush.msra.mxu0 0.0
  %1493 = vmatpush.msra.mxu0 0.0
  %1494 = vmatpush.msra.mxu0 0.0
  %1495 = vmatpush.msra.mxu0 0.0
  %1496 = vmatpush.msra.mxu0 0.0
  %1497 = vmatpush.msra.mxu0 0.0
  %1498 = vmatpush.msra.mxu0 0.0
  %1499 = vmatpush.msra.mxu0 0.0
  %1500 = vmatpush.msra.mxu0 %v940
  %1501 = vmatpush.msra.mxu0 %v939
  %1502 = vmatmul.f32.gmra.mxu0 %v1406
  %v1503 = vpop.f32.mrf.mxu0
  %v1504 = vadd.f32 %v1045, %v1503
  %1505 = vdwg.mxu0
  %v1506 = vmul.f32 %v1446, %v1504
  %v1507 = vadd.f32 %v1069, %v1506
  %v1508 = vtanh.pop %v1507
  %v1509 = vsub.f32 1.0, %v1485
  %v1510 = vmul.f32 %v1509, %v1508
  %v1511 = vmul.f32 %v1485, %v1403
  %v1512 = vadd.f32 %v1510, %v1511
  %1513 = vst.msk [vmem:[#allocation3 + $0x18] sm:$0xff] %vm50, %v1512
  %v1515 = vsel %vm50, %v1512, 0
  %1517 = vmatpush.msra.mxu0 0.0
  %1518 = vmatpush.msra.mxu0 0.0
  %1519 = vmatpush.msra.mxu0 0.0
  %1520 = vmatpush.msra.mxu0 0.0
  %1521 = vmatpush.msra.mxu0 0.0
  %1522 = vmatpush.msra.mxu0 0.0
  %1523 = vmatpush.msra.mxu0 0.0
  %1524 = vmatpush.msra.mxu0 0.0
  %1525 = vmatpush.msra.mxu0 0.0
  %1526 = vmatpush.msra.mxu0 0.0
  %1527 = vmatpush.msra.mxu0 0.0
  %1528 = vmatpush.msra.mxu0 0.0
  %1529 = vmatpush.msra.mxu0 0.0
  %1530 = vmatpush.msra.mxu0 0.0
  %1531 = vmatpush.msra.mxu0 %v934
  %1532 = vmatpush.msra.mxu0 %v933
  %1533 = vmatmul.f32.gmra.mxu0 %v1515
  %v1534 = vpop.f32.mrf.mxu0
  %v1535 = vadd.f32 %v958, %v1534
  %1536 = vdwg.mxu0
  %v1537 = vxor.u32 %v1535, 2147483648
  %v1538 = vmul.f32 %v1537, 1.442695
  %v1539 = vpow.pop %v1538
  %v1540 = vadd.f32 %v1539, 1.0
  %v1541 = vrcp.pop %v1540
  %v1542 = vmul.f32 %v1540, %v1541
  %v1543 = vsub.f32 1.0, %v1542
  %v1544 = vmul.f32 %v1541, %v1543
  %v1545 = vadd.f32 %v1541, %v1544
  %vm1546 = vweird.f32 %v1540
  %vm1547 = vweird.f32 %v1541
  %vm1548 = vmor %vm1546, %vm1547
  %v1549 = vsel %vm1548, %v1541, %v1545
  %v1550 = vand.u32 2147483647, %v1540
  %vm1551 = vcmp.eq.f32.partialorder %v1550, 8.507059e+37
  %v1552 = vand.u32 %v1540, 2147483648
  %v1553 = vor.u32 1.1754944e-38, %v1552
  %v1554 = vsel %vm1551, %v1553, %v1549
  %v1555 = vmul.f32 1.0, %v1554
  %1556 = vmatpush.msra.mxu0 0.0
  %1557 = vmatpush.msra.mxu0 0.0
  %1558 = vmatpush.msra.mxu0 0.0
  %1559 = vmatpush.msra.mxu0 0.0
  %1560 = vmatpush.msra.mxu0 0.0
  %1561 = vmatpush.msra.mxu0 0.0
  %1562 = vmatpush.msra.mxu0 0.0
  %1563 = vmatpush.msra.mxu0 0.0
  %1564 = vmatpush.msra.mxu0 0.0
  %1565 = vmatpush.msra.mxu0 0.0
  %1566 = vmatpush.msra.mxu0 0.0
  %1567 = vmatpush.msra.mxu0 0.0
  %1568 = vmatpush.msra.mxu0 0.0
  %1569 = vmatpush.msra.mxu0 0.0
  %1570 = vmatpush.msra.mxu0 %v937
  %1571 = vmatpush.msra.mxu0 %v936
  %1572 = vmatmul.f32.gmra.mxu0 %v1515
  %v1573 = vpop.f32.mrf.mxu0
  %v1574 = vadd.f32 %v1003, %v1573
  %1575 = vdwg.mxu0
  %v1576 = vxor.u32 %v1574, 2147483648
  %v1577 = vmul.f32 %v1576, 1.442695
  %v1578 = vpow.pop %v1577
  %v1579 = vadd.f32 %v1578, 1.0
  %v1580 = vrcp.pop %v1579
  %v1581 = vmul.f32 %v1579, %v1580
  %v1582 = vsub.f32 1.0, %v1581
  %v1583 = vmul.f32 %v1580, %v1582
  %v1584 = vadd.f32 %v1580, %v1583
  %vm1585 = vweird.f32 %v1579
  %vm1586 = vweird.f32 %v1580
  %vm1587 = vmor %vm1585, %vm1586
  %v1588 = vsel %vm1587, %v1580, %v1584
  %v1589 = vand.u32 2147483647, %v1579
  %vm1590 = vcmp.eq.f32.partialorder %v1589, 8.507059e+37
  %v1591 = vand.u32 %v1579, 2147483648
  %v1592 = vor.u32 1.1754944e-38, %v1591
  %v1593 = vsel %vm1590, %v1592, %v1588
  %v1594 = vmul.f32 1.0, %v1593
  %1595 = vmatpush.msra.mxu0 0.0
  %1596 = vmatpush.msra.mxu0 0.0
  %1597 = vmatpush.msra.mxu0 0.0
  %1598 = vmatpush.msra.mxu0 0.0
  %1599 = vmatpush.msra.mxu0 0.0
  %1600 = vmatpush.msra.mxu0 0.0
  %1601 = vmatpush.msra.mxu0 0.0
  %1602 = vmatpush.msra.mxu0 0.0
  %1603 = vmatpush.msra.mxu0 0.0
  %1604 = vmatpush.msra.mxu0 0.0
  %1605 = vmatpush.msra.mxu0 0.0
  %1606 = vmatpush.msra.mxu0 0.0
  %1607 = vmatpush.msra.mxu0 0.0
  %1608 = vmatpush.msra.mxu0 0.0
  %1609 = vmatpush.msra.mxu0 %v940
  %1610 = vmatpush.msra.mxu0 %v939
  %1611 = vmatmul.f32.gmra.mxu0 %v1515
  %v1612 = vpop.f32.mrf.mxu0
  %v1613 = vadd.f32 %v1045, %v1612
  %1614 = vdwg.mxu0
  %v1615 = vmul.f32 %v1555, %v1613
  %v1616 = vadd.f32 %v1069, %v1615
  %v1617 = vtanh.pop %v1616
  %v1618 = vsub.f32 1.0, %v1594
  %v1619 = vmul.f32 %v1618, %v1617
  %v1620 = vmul.f32 %v1594, %v1512
  %v1621 = vadd.f32 %v1619, %v1620
  %1622 = vst.msk [vmem:[#allocation3 + $0x10] sm:$0xff] %vm50, %v1621
  %v1624 = vsel %vm50, %v1621, 0
  %1626 = vmatpush.msra.mxu0 0.0
  %1627 = vmatpush.msra.mxu0 0.0
  %1628 = vmatpush.msra.mxu0 0.0
  %1629 = vmatpush.msra.mxu0 0.0
  %1630 = vmatpush.msra.mxu0 0.0
  %1631 = vmatpush.msra.mxu0 0.0
  %1632 = vmatpush.msra.mxu0 0.0
  %1633 = vmatpush.msra.mxu0 0.0
  %1634 = vmatpush.msra.mxu0 0.0
  %1635 = vmatpush.msra.mxu0 0.0
  %1636 = vmatpush.msra.mxu0 0.0
  %1637 = vmatpush.msra.mxu0 0.0
  %1638 = vmatpush.msra.mxu0 0.0
  %1639 = vmatpush.msra.mxu0 0.0
  %1640 = vmatpush.msra.mxu0 %v934
  %1641 = vmatpush.msra.mxu0 %v933
  %1642 = vmatmul.f32.gmra.mxu0 %v1624
  %v1643 = vpop.f32.mrf.mxu0
  %v1644 = vadd.f32 %v958, %v1643
  %1645 = vdwg.mxu0
  %v1646 = vxor.u32 %v1644, 2147483648
  %v1647 = vmul.f32 %v1646, 1.442695
  %v1648 = vpow.pop %v1647
  %v1649 = vadd.f32 %v1648, 1.0
  %v1650 = vrcp.pop %v1649
  %v1651 = vmul.f32 %v1649, %v1650
  %v1652 = vsub.f32 1.0, %v1651
  %v1653 = vmul.f32 %v1650, %v1652
  %v1654 = vadd.f32 %v1650, %v1653
  %vm1655 = vweird.f32 %v1649
  %vm1656 = vweird.f32 %v1650
  %vm1657 = vmor %vm1655, %vm1656
  %v1658 = vsel %vm1657, %v1650, %v1654
  %v1659 = vand.u32 2147483647, %v1649
  %vm1660 = vcmp.eq.f32.partialorder %v1659, 8.507059e+37
  %v1661 = vand.u32 %v1649, 2147483648
  %v1662 = vor.u32 1.1754944e-38, %v1661
  %v1663 = vsel %vm1660, %v1662, %v1658
  %v1664 = vmul.f32 1.0, %v1663
  %1665 = vmatpush.msra.mxu0 0.0
  %1666 = vmatpush.msra.mxu0 0.0
  %1667 = vmatpush.msra.mxu0 0.0
  %1668 = vmatpush.msra.mxu0 0.0
  %1669 = vmatpush.msra.mxu0 0.0
  %1670 = vmatpush.msra.mxu0 0.0
  %1671 = vmatpush.msra.mxu0 0.0
  %1672 = vmatpush.msra.mxu0 0.0
  %1673 = vmatpush.msra.mxu0 0.0
  %1674 = vmatpush.msra.mxu0 0.0
  %1675 = vmatpush.msra.mxu0 0.0
  %1676 = vmatpush.msra.mxu0 0.0
  %1677 = vmatpush.msra.mxu0 0.0
  %1678 = vmatpush.msra.mxu0 0.0
  %1679 = vmatpush.msra.mxu0 %v937
  %1680 = vmatpush.msra.mxu0 %v936
  %1681 = vmatmul.f32.gmra.mxu0 %v1624
  %v1682 = vpop.f32.mrf.mxu0
  %v1683 = vadd.f32 %v1003, %v1682
  %1684 = vdwg.mxu0
  %v1685 = vxor.u32 %v1683, 2147483648
  %v1686 = vmul.f32 %v1685, 1.442695
  %v1687 = vpow.pop %v1686
  %v1688 = vadd.f32 %v1687, 1.0
  %v1689 = vrcp.pop %v1688
  %v1690 = vmul.f32 %v1688, %v1689
  %v1691 = vsub.f32 1.0, %v1690
  %v1692 = vmul.f32 %v1689, %v1691
  %v1693 = vadd.f32 %v1689, %v1692
  %vm1694 = vweird.f32 %v1688
  %vm1695 = vweird.f32 %v1689
  %vm1696 = vmor %vm1694, %vm1695
  %v1697 = vsel %vm1696, %v1689, %v1693
  %v1698 = vand.u32 2147483647, %v1688
  %vm1699 = vcmp.eq.f32.partialorder %v1698, 8.507059e+37
  %v1700 = vand.u32 %v1688, 2147483648
  %v1701 = vor.u32 1.1754944e-38, %v1700
  %v1702 = vsel %vm1699, %v1701, %v1697
  %v1703 = vmul.f32 1.0, %v1702
  %1704 = vmatpush.msra.mxu0 0.0
  %1705 = vmatpush.msra.mxu0 0.0
  %1706 = vmatpush.msra.mxu0 0.0
  %1707 = vmatpush.msra.mxu0 0.0
  %1708 = vmatpush.msra.mxu0 0.0
  %1709 = vmatpush.msra.mxu0 0.0
  %1710 = vmatpush.msra.mxu0 0.0
  %1711 = vmatpush.msra.mxu0 0.0
  %1712 = vmatpush.msra.mxu0 0.0
  %1713 = vmatpush.msra.mxu0 0.0
  %1714 = vmatpush.msra.mxu0 0.0
  %1715 = vmatpush.msra.mxu0 0.0
  %1716 = vmatpush.msra.mxu0 0.0
  %1717 = vmatpush.msra.mxu0 0.0
  %1718 = vmatpush.msra.mxu0 %v940
  %1719 = vmatpush.msra.mxu0 %v939
  %1720 = vmatmul.f32.gmra.mxu0 %v1624
  %v1721 = vpop.f32.mrf.mxu0
  %v1722 = vadd.f32 %v1045, %v1721
  %1723 = vdwg.mxu0
  %v1724 = vmul.f32 %v1664, %v1722
  %v1725 = vadd.f32 %v1069, %v1724
  %v1726 = vtanh.pop %v1725
  %v1727 = vsub.f32 1.0, %v1703
  %v1728 = vmul.f32 %v1727, %v1726
  %v1729 = vmul.f32 %v1703, %v1621
  %v1730 = vadd.f32 %v1728, %v1729
  %1731 = vst.msk [vmem:[#allocation3 + $0x8] sm:$0xff] %vm50, %v1730
  %v1733 = vsel %vm50, %v1730, 0
  %1735 = vmatpush.msra.mxu0 0.0
  %1736 = vmatpush.msra.mxu0 0.0
  %1737 = vmatpush.msra.mxu0 0.0
  %1738 = vmatpush.msra.mxu0 0.0
  %1739 = vmatpush.msra.mxu0 0.0
  %1740 = vmatpush.msra.mxu0 0.0
  %1741 = vmatpush.msra.mxu0 0.0
  %1742 = vmatpush.msra.mxu0 0.0
  %1743 = vmatpush.msra.mxu0 0.0
  %1744 = vmatpush.msra.mxu0 0.0
  %1745 = vmatpush.msra.mxu0 0.0
  %1746 = vmatpush.msra.mxu0 0.0
  %1747 = vmatpush.msra.mxu0 0.0
  %1748 = vmatpush.msra.mxu0 0.0
  %1749 = vmatpush.msra.mxu0 %v934
  %1750 = vmatpush.msra.mxu0 %v933
  %1751 = vmatmul.f32.gmra.mxu0 %v1733
  %v1752 = vpop.f32.mrf.mxu0
  %v1753 = vadd.f32 %v958, %v1752
  %1754 = vdwg.mxu0
  %v1755 = vxor.u32 %v1753, 2147483648
  %v1756 = vmul.f32 %v1755, 1.442695
  %v1757 = vpow.pop %v1756
  %v1758 = vadd.f32 %v1757, 1.0
  %v1759 = vrcp.pop %v1758
  %v1760 = vmul.f32 %v1758, %v1759
  %v1761 = vsub.f32 1.0, %v1760
  %v1762 = vmul.f32 %v1759, %v1761
  %v1763 = vadd.f32 %v1759, %v1762
  %vm1764 = vweird.f32 %v1758
  %vm1765 = vweird.f32 %v1759
  %vm1766 = vmor %vm1764, %vm1765
  %v1767 = vsel %vm1766, %v1759, %v1763
  %v1768 = vand.u32 2147483647, %v1758
  %vm1769 = vcmp.eq.f32.partialorder %v1768, 8.507059e+37
  %v1770 = vand.u32 %v1758, 2147483648
  %v1771 = vor.u32 1.1754944e-38, %v1770
  %v1772 = vsel %vm1769, %v1771, %v1767
  %v1773 = vmul.f32 1.0, %v1772
  %1774 = vmatpush.msra.mxu0 0.0
  %1775 = vmatpush.msra.mxu0 0.0
  %1776 = vmatpush.msra.mxu0 0.0
  %1777 = vmatpush.msra.mxu0 0.0
  %1778 = vmatpush.msra.mxu0 0.0
  %1779 = vmatpush.msra.mxu0 0.0
  %1780 = vmatpush.msra.mxu0 0.0
  %1781 = vmatpush.msra.mxu0 0.0
  %1782 = vmatpush.msra.mxu0 0.0
  %1783 = vmatpush.msra.mxu0 0.0
  %1784 = vmatpush.msra.mxu0 0.0
  %1785 = vmatpush.msra.mxu0 0.0
  %1786 = vmatpush.msra.mxu0 0.0
  %1787 = vmatpush.msra.mxu0 0.0
  %1788 = vmatpush.msra.mxu0 %v937
  %1789 = vmatpush.msra.mxu0 %v936
  %1790 = vmatmul.f32.gmra.mxu0 %v1733
  %v1791 = vpop.f32.mrf.mxu0
  %v1792 = vadd.f32 %v1003, %v1791
  %1793 = vdwg.mxu0
  %v1794 = vxor.u32 %v1792, 2147483648
  %v1795 = vmul.f32 %v1794, 1.442695
  %v1796 = vpow.pop %v1795
  %v1797 = vadd.f32 %v1796, 1.0
  %v1798 = vrcp.pop %v1797
  %v1799 = vmul.f32 %v1797, %v1798
  %v1800 = vsub.f32 1.0, %v1799
  %v1801 = vmul.f32 %v1798, %v1800
  %v1802 = vadd.f32 %v1798, %v1801
  %vm1803 = vweird.f32 %v1797
  %vm1804 = vweird.f32 %v1798
  %vm1805 = vmor %vm1803, %vm1804
  %v1806 = vsel %vm1805, %v1798, %v1802
  %v1807 = vand.u32 2147483647, %v1797
  %vm1808 = vcmp.eq.f32.partialorder %v1807, 8.507059e+37
  %v1809 = vand.u32 %v1797, 2147483648
  %v1810 = vor.u32 1.1754944e-38, %v1809
  %v1811 = vsel %vm1808, %v1810, %v1806
  %v1812 = vmul.f32 1.0, %v1811
  %1813 = vmatpush.msra.mxu0 0.0
  %1814 = vmatpush.msra.mxu0 0.0
  %1815 = vmatpush.msra.mxu0 0.0
  %1816 = vmatpush.msra.mxu0 0.0
  %1817 = vmatpush.msra.mxu0 0.0
  %1818 = vmatpush.msra.mxu0 0.0
  %1819 = vmatpush.msra.mxu0 0.0
  %1820 = vmatpush.msra.mxu0 0.0
  %1821 = vmatpush.msra.mxu0 0.0
  %1822 = vmatpush.msra.mxu0 0.0
  %1823 = vmatpush.msra.mxu0 0.0
  %1824 = vmatpush.msra.mxu0 0.0
  %1825 = vmatpush.msra.mxu0 0.0
  %1826 = vmatpush.msra.mxu0 0.0
  %1827 = vmatpush.msra.mxu0 %v940
  %1828 = vmatpush.msra.mxu0 %v939
  %1829 = vmatmul.f32.gmra.mxu0 %v1733
  %v1830 = vpop.f32.mrf.mxu0
  %v1831 = vadd.f32 %v1045, %v1830
  %1832 = vdwg.mxu0
  %v1833 = vmul.f32 %v1773, %v1831
  %v1834 = vadd.f32 %v1069, %v1833
  %v1835 = vtanh.pop %v1834
  %v1836 = vsub.f32 1.0, %v1812
  %v1837 = vmul.f32 %v1836, %v1835
  %v1838 = vmul.f32 %v1812, %v1730
  %v1839 = vadd.f32 %v1837, %v1838
  %1840 = vst.msk [vmem:[#allocation3] sm:$0xff] %vm50, %v1839
  %v1841 = vld [vmem:[#allocation2] sm:$0xff]
  %v1842 = vld [vmem:[#allocation2 + $0x8] sm:$0xff]
  %v1843 = vld [vmem:[#allocation2 + $0x10] sm:$0xff]
  %v1844 = vld [vmem:[#allocation2 + $0x18] sm:$0xff]
  %v1845 = vld [vmem:[#allocation2 + $0x20] sm:$0xff]
  %v1846 = vld [vmem:[#allocation2 + $0x28] sm:$0xff]
  %v1847 = vld [vmem:[#allocation2 + $0x30] sm:$0xff]
  %v1848 = vld [vmem:[#allocation2 + $0x38] sm:$0xff]
  %v1849 = vld [vmem:[%s4] sm:$0xff]
  %v1850 = vld [vmem:[%s4 + $0x8] sm:$0xff]
  %v1851 = vld [vmem:[#allocation3] sm:$0xff]
  %v1852 = vld [vmem:[#allocation3 + $0x8] sm:$0xff]
  %v1853 = vld [vmem:[#allocation3 + $0x10] sm:$0xff]
  %v1854 = vld [vmem:[#allocation3 + $0x18] sm:$0xff]
  %v1855 = vld [vmem:[#allocation3 + $0x20] sm:$0xff]
  %v1856 = vld [vmem:[#allocation3 + $0x28] sm:$0xff]
  %v1857 = vld [vmem:[#allocation3 + $0x30] sm:$0xff]
  %v1858 = vld [vmem:[#allocation3 + $0x38] sm:$0xff]
  %v1859 = vld [vmem:[%s5] sm:$0xff]
  %v1860 = vld [vmem:[%s5 + $0x8] sm:$0xff]
  %v1862 = vsel %vm50, %v1851, 0
  %v1865 = vsel %vm50, %v1852, 0
  %v1868 = vsel %vm50, %v1853, 0
  %v1871 = vsel %vm50, %v1854, 0
  %v1874 = vsel %vm50, %v1855, 0
  %v1877 = vsel %vm50, %v1856, 0
  %v1880 = vsel %vm50, %v1857, 0
  %v1883 = vsel %vm50, %v1858, 0
  %1885 = vmatpush.msra.mxu0 0.0
  %1886 = vmatpush.msra.mxu0 0.0
  %1887 = vmatpush.msra.mxu0 0.0
  %1888 = vmatpush.msra.mxu0 0.0
  %1889 = vmatpush.msra.mxu0 0.0
  %1890 = vmatpush.msra.mxu0 0.0
  %1891 = vmatpush.msra.mxu0 0.0
  %1892 = vmatpush.msra.mxu0 0.0
  %1893 = vmatpush.msra.mxu0 0.0
  %1894 = vmatpush.msra.mxu0 0.0
  %1895 = vmatpush.msra.mxu0 0.0
  %1896 = vmatpush.msra.mxu0 0.0
  %1897 = vmatpush.msra.mxu0 0.0
  %1898 = vmatpush.msra.mxu0 0.0
  %1899 = vmatpush.msra.mxu0 %v1860
  %1900 = vmatpush.msra.mxu0 %v1859
  %1901 = vmatmul.f32.gmra.mxu0 %v1862
  %v1902 = vpop.f32.mrf.mxu0
  %v1903 = vadd.f32 0.0, %v1902
  %1904 = vmatmul.f32.gmra.mxu0 %v1865
  %v1905 = vpop.f32.mrf.mxu0
  %v1906 = vadd.f32 0.0, %v1905
  %1907 = vmatmul.f32.gmra.mxu0 %v1868
  %v1908 = vpop.f32.mrf.mxu0
  %v1909 = vadd.f32 0.0, %v1908
  %1910 = vmatmul.f32.gmra.mxu0 %v1871
  %v1911 = vpop.f32.mrf.mxu0
  %v1912 = vadd.f32 0.0, %v1911
  %1913 = vmatmul.f32.gmra.mxu0 %v1874
  %v1914 = vpop.f32.mrf.mxu0
  %v1915 = vadd.f32 0.0, %v1914
  %1916 = vmatmul.f32.gmra.mxu0 %v1877
  %v1917 = vpop.f32.mrf.mxu0
  %v1918 = vadd.f32 0.0, %v1917
  %1919 = vmatmul.f32.gmra.mxu0 %v1880
  %v1920 = vpop.f32.mrf.mxu0
  %v1921 = vadd.f32 0.0, %v1920
  %1922 = vmatmul.f32.gmra.mxu0 %v1883
  %v1923 = vpop.f32.mrf.mxu0
  %v1924 = vadd.f32 0.0, %v1923
  %1925 = vdwg.mxu0
  %v1927 = vsel %vm50, %v1841, 0
  %v1930 = vsel %vm50, %v1842, 0
  %v1933 = vsel %vm50, %v1843, 0
  %v1936 = vsel %vm50, %v1844, 0
  %v1939 = vsel %vm50, %v1845, 0
  %v1942 = vsel %vm50, %v1846, 0
  %v1945 = vsel %vm50, %v1847, 0
  %v1948 = vsel %vm50, %v1848, 0
  %1950 = vmatpush.msra.mxu0 0.0
  %1951 = vmatpush.msra.mxu0 0.0
  %1952 = vmatpush.msra.mxu0 0.0
  %1953 = vmatpush.msra.mxu0 0.0
  %1954 = vmatpush.msra.mxu0 0.0
  %1955 = vmatpush.msra.mxu0 0.0
  %1956 = vmatpush.msra.mxu0 0.0
  %1957 = vmatpush.msra.mxu0 0.0
  %1958 = vmatpush.msra.mxu0 0.0
  %1959 = vmatpush.msra.mxu0 0.0
  %1960 = vmatpush.msra.mxu0 0.0
  %1961 = vmatpush.msra.mxu0 0.0
  %1962 = vmatpush.msra.mxu0 0.0
  %1963 = vmatpush.msra.mxu0 0.0
  %1964 = vmatpush.msra.mxu0 %v1850
  %1965 = vmatpush.msra.mxu0 %v1849
  %1966 = vmatmul.f32.gmra.mxu0 %v1927
  %v1967 = vpop.f32.mrf.mxu0
  %v1968 = vadd.f32 %v1903, %v1967
  %1969 = vmatmul.f32.gmra.mxu0 %v1930
  %v1970 = vpop.f32.mrf.mxu0
  %v1971 = vadd.f32 %v1906, %v1970
  %1972 = vmatmul.f32.gmra.mxu0 %v1933
  %v1973 = vpop.f32.mrf.mxu0
  %v1974 = vadd.f32 %v1909, %v1973
  %1975 = vmatmul.f32.gmra.mxu0 %v1936
  %v1976 = vpop.f32.mrf.mxu0
  %v1977 = vadd.f32 %v1912, %v1976
  %1978 = vmatmul.f32.gmra.mxu0 %v1939
  %v1979 = vpop.f32.mrf.mxu0
  %v1980 = vadd.f32 %v1915, %v1979
  %1981 = vmatmul.f32.gmra.mxu0 %v1942
  %v1982 = vpop.f32.mrf.mxu0
  %v1983 = vadd.f32 %v1918, %v1982
  %1984 = vmatmul.f32.gmra.mxu0 %v1945
  %v1985 = vpop.f32.mrf.mxu0
  %v1986 = vadd.f32 %v1921, %v1985
  %1987 = vmatmul.f32.gmra.mxu0 %v1948
  %v1988 = vpop.f32.mrf.mxu0
  %v1989 = vadd.f32 %v1924, %v1988
  %1990 = vdwg.mxu0
  %v1991 = vld [vmem:[%s6] sm:$0x1]
  %v1993 = vperm.slane %v1991, 0
  %v1995 = vadd.f32 %v1968, %v1993
  %v1996 = vadd.f32 %v1971, %v1993
  %v1997 = vadd.f32 %v1974, %v1993
  %v1998 = vadd.f32 %v1977, %v1993
  %v1999 = vadd.f32 %v1980, %v1993
  %v2000 = vadd.f32 %v1983, %v1993
  %v2001 = vadd.f32 %v1986, %v1993
  %v2002 = vadd.f32 %v1989, %v1993
  %v2003 = vtanh.pop %v1995
  %v2004 = vtanh.pop %v1996
  %v2005 = vtanh.pop %v1997
  %v2006 = vtanh.pop %v1998
  %v2007 = vtanh.pop %v1999
  %v2008 = vtanh.pop %v2000
  %v2009 = vtanh.pop %v2001
  %v2010 = vtanh.pop %v2002
  %vm2011 = vcmask 23552
  %2012 = vst.msk [vmem:[%s7] sm:$0xff] %vm2011, %v2003
  %2013 = vst.msk [vmem:[%s7 + $0x8] sm:$0xff] %vm2011, %v2004
  %2014 = vst.msk [vmem:[%s7 + $0x10] sm:$0xff] %vm2011, %v2005
  %2015 = vst.msk [vmem:[%s7 + $0x18] sm:$0xff] %vm2011, %v2006
  %2016 = vst.msk [vmem:[%s7 + $0x20] sm:$0xff] %vm2011, %v2007
  %2017 = vst.msk [vmem:[%s7 + $0x28] sm:$0xff] %vm2011, %v2008
  %2018 = vst.msk [vmem:[%s7 + $0x30] sm:$0xff] %vm2011, %v2009
  %2019 = vst.msk [vmem:[%s7 + $0x38] sm:$0xff] %vm2011, %v2010
  // Predicated region
  $region30: #{_lambda_.7} parent=0 // pred_check
    _
  $region31: #{_lambda_.7} parent=0 // pred_check_branch
    %2021 = sbr.rel (0) target = $region33
  $region32: #{_lambda_.7} parent=0 // pred_region
    _
  $region33: #{_lambda_.7} parent=0 // pred_fallthru
    _
  // Predicated region
  $region34: #{_lambda_.7} parent=0 // pred_check
    _
  $region35: #{_lambda_.7} parent=0 // pred_check_branch
    %2023 = sbr.rel (0) target = $region37
  $region36: #{_lambda_.7} parent=0 // pred_region
    _
  $region37: #{_lambda_.7} parent=0 // pred_fallthru
    _

</llo_original>
